<compile_context>
chip_gen: v5e
topology: v5e:2x2
jax: 0.10.0
libtpu: 0.0.40
codegen_flags: <defaults>
</compile_context>

<pallas_src>
import math

import numpy as np
import jax
import jax.numpy as jnp
from jax import lax
from jax.experimental import pallas as pl
from jax.experimental.pallas import tpu as pltpu

D_MODEL = 32
NHEAD = 4
NUM_LAYERS = 2          # used for both encoder and decoder stacks (matches prior accepted impl)
DIM_FF = 2048           # nn.Transformer default dim_feedforward
HEAD_DIM = D_MODEL // NHEAD
SEQ_LEN = 8
IN_FEATURES = 7
LN_EPS = 1e-5
ATTN_SCALE = 1.0 / math.sqrt(HEAD_DIM)
LANE = 128


def _pad_lane(n):
    return ((n + LANE - 1) // LANE) * LANE


# ----------------------------------------------------------------------------
# Static slab layouts (lane offsets for the bf16 weight slab, row indices for the
# f32 vector slab).  Computed once at import; used by both the host packer and the
# kernel (all offsets are Python constants -> static slices, no relayout surprises).
# ----------------------------------------------------------------------------
def _build_weight_layout():
    off = 0

    def alloc(width):
        nonlocal off
        o = off
        off += _pad_lane(width)
        return o

    enc, dec = [], []
    for _ in range(NUM_LAYERS):
        enc.append({"qkv": alloc(3 * D_MODEL), "wo": alloc(D_MODEL),
                    "w1": alloc(DIM_FF), "w2t": alloc(DIM_FF)})
    for _ in range(NUM_LAYERS):
        dec.append({"qkv": alloc(3 * D_MODEL), "wo": alloc(D_MODEL),
                    "ca_q": alloc(D_MODEL), "ca_kv": alloc(2 * D_MODEL),
                    "ca_wo": alloc(D_MODEL),
                    "w1": alloc(DIM_FF), "w2t": alloc(DIM_FF)})
    return enc, dec, off


def _build_vec_layout():
    rows = {"emb_w": 0, "fc_wt": 8}   # tile-aligned blocks of 7 rows each
    r = 16

    def alloc():
        nonlocal r
        o = r
        r += 1
        return o

    rows["emb_b"] = alloc()
    rows["fc_b"] = alloc()
    enc, dec = [], []
    for _ in range(NUM_LAYERS):
        enc.append({k: alloc() for k in
                    ("b_qkv", "b_o", "n1_g", "n1_b", "b2", "n2_g", "n2_b")})
    rows["enc_ng"] = alloc()
    rows["enc_nb"] = alloc()
    for _ in range(NUM_LAYERS):
        dec.append({k: alloc() for k in
                    ("b_qkv", "b_o", "n1_g", "n1_b",
                     "ca_b_q", "ca_b_kv", "ca_b_o",
                     "n2_g", "n2_b", "b2", "n3_g", "n3_b")})
    rows["dec_ng"] = alloc()
    rows["dec_nb"] = alloc()
    total = ((r + 7) // 8) * 8
    return rows, enc, dec, total


_W_ENC, _W_DEC, _W_LANES = _build_weight_layout()
_V_ROWS, _V_ENC, _V_DEC, _V_TOTAL = _build_vec_layout()
_B1_ROWS = ((2 * NUM_LAYERS + 7) // 8) * 8


# ----------------------------------------------------------------------------
# In-kernel building blocks (pure functions on loaded VMEM values, f32 math)
# ----------------------------------------------------------------------------
def _mm(x, w):
    """x @ w with f32 accumulation; x cast to weight dtype so bf16 weights hit the MXU."""
    return jnp.dot(x.astype(w.dtype), w, preferred_element_type=jnp.float32)


def _layer_norm(h, g, b):
    mean = jnp.mean(h, axis=-1, keepdims=True)
    var = jnp.mean((h - mean) ** 2, axis=-1, keepdims=True)
    return (h - mean) * lax.rsqrt(var + LN_EPS) * g + b


def _softmax(s):
    s = s - jnp.max(s, axis=-1, keepdims=True)
    p = jnp.exp(s)
    return p * pl.reciprocal(jnp.sum(p, axis=-1, keepdims=True), approx=True)


def _mha_core(q, k, v, w_o, b_o):
    """Per-head attention with per-head output-projection accumulation
    (avoids a lane-offset concat on the critical path)."""
    acc = None
    for h in range(NHEAD):
        lo, hi = h * HEAD_DIM, (h + 1) * HEAD_DIM
        qh, kh, vh = q[:, lo:hi], k[:, lo:hi], v[:, lo:hi]
        s = lax.dot_general(qh, kh, (((1,), (1,)), ((), ())),
                            preferred_element_type=jnp.float32) * ATTN_SCALE
        p = _softmax(s)
        oh = jnp.dot(p, vh, preferred_element_type=jnp.float32)          # (S, HEAD_DIM)
        w_oh = w_o[lo:hi, :]                                              # (HEAD_DIM, D)
        contrib = jnp.dot(oh.astype(w_oh.dtype), w_oh,
                          preferred_element_type=jnp.float32)             # (S, D)
        acc = contrib if acc is None else acc + contrib
    return acc + b_o


def _self_attn(x, w_qkv, b_qkv, w_o, b_o):
    qkv = _mm(x, w_qkv) + b_qkv                                           # one (S,32)@(32,96)
    q = qkv[:, 0 * D_MODEL:1 * D_MODEL]
    k = qkv[:, 1 * D_MODEL:2 * D_MODEL]
    v = qkv[:, 2 * D_MODEL:3 * D_MODEL]
    return _mha_core(q, k, v, w_o, b_o)


def _cross_attn(x, mem, w_q, b_q, w_kv, b_kv, w_o, b_o):
    q = _mm(x, w_q) + b_q
    kv = _mm(mem, w_kv) + b_kv
    k = kv[:, :D_MODEL]
    v = kv[:, D_MODEL:]
    return _mha_core(q, k, v, w_o, b_o)


def _ffn(x, w1, b1, w2t, b2):
    h = jnp.maximum(_mm(x, w1) + b1, 0.0)                                 # (S, 2048) in VMEM
    y = lax.dot_general(h.astype(w2t.dtype), w2t, (((1,), (1,)), ((), ())),
                        preferred_element_type=jnp.float32)               # h @ w2t.T
    return y + b2


# ----------------------------------------------------------------------------
# Single fused kernel: embedding -> encoder(x2 + norm) -> decoder(x2 + norm) -> fc
# ----------------------------------------------------------------------------
def _fused_transformer_kernel(src_ref, w_ref, v_ref, b1_ref, out_ref):
    def wmat(off, width):
        return w_ref[:, off:off + width]                  # (32, width) bf16, 128-aligned off

    def vrow(row, width=D_MODEL):
        return v_ref[row:row + 1, :width]                 # (1, width) f32

    src = src_ref[...]                                    # (S, 7) f32
    emb_w = v_ref[_V_ROWS["emb_w"]:_V_ROWS["emb_w"] + IN_FEATURES, :D_MODEL]   # (7, 32)
    x = jnp.dot(src, emb_w, preferred_element_type=jnp.float32) + vrow(_V_ROWS["emb_b"])

    # ---------------- encoder (src -> memory) ----------------
    mem = x
    for l in range(NUM_LAYERS):
        wo, ro = _W_ENC[l], _V_ENC[l]
        sa = _self_attn(mem,
                        wmat(wo["qkv"], 3 * D_MODEL), vrow(ro["b_qkv"], 3 * D_MODEL),
                        wmat(wo["wo"], D_MODEL), vrow(ro["b_o"]))
        mem = _layer_norm(mem + sa, vrow(ro["n1_g"]), vrow(ro["n1_b"]))
        ff = _ffn(mem, wmat(wo["w1"], DIM_FF), b1_ref[l:l + 1, :],
                  wmat(wo["w2t"], DIM_FF), vrow(ro["b2"]))
        mem = _layer_norm(mem + ff, vrow(ro["n2_g"]), vrow(ro["n2_b"]))
    mem = _layer_norm(mem, vrow(_V_ROWS["enc_ng"]), vrow(_V_ROWS["enc_nb"]))

    # ---------------- decoder (tgt == embedded src) ----------------
    y = x
    for l in range(NUM_LAYERS):
        wo, ro = _W_DEC[l], _V_DEC[l]
        sa = _self_attn(y,
                        wmat(wo["qkv"], 3 * D_MODEL), vrow(ro["b_qkv"], 3 * D_MODEL),
                        wmat(wo["wo"], D_MODEL), vrow(ro["b_o"]))
        y = _layer_norm(y + sa, vrow(ro["n1_g"]), vrow(ro["n1_b"]))
        ca = _cross_attn(y, mem,
                         wmat(wo["ca_q"], D_MODEL), vrow(ro["ca_b_q"]),
                         wmat(wo["ca_kv"], 2 * D_MODEL), vrow(ro["ca_b_kv"], 2 * D_MODEL),
                         wmat(wo["ca_wo"], D_MODEL), vrow(ro["ca_b_o"]))
        y = _layer_norm(y + ca, vrow(ro["n2_g"]), vrow(ro["n2_b"]))
        ff = _ffn(y, wmat(wo["w1"], DIM_FF),
                  b1_ref[NUM_LAYERS + l:NUM_LAYERS + l + 1, :],
                  wmat(wo["w2t"], DIM_FF), vrow(ro["b2"]))
        y = _layer_norm(y + ff, vrow(ro["n3_g"]), vrow(ro["n3_b"]))
    y = _layer_norm(y, vrow(_V_ROWS["dec_ng"]), vrow(_V_ROWS["dec_nb"]))

    # ---------------- output projection ----------------
    fc_wt = v_ref[_V_ROWS["fc_wt"]:_V_ROWS["fc_wt"] + IN_FEATURES, :D_MODEL]   # (7, 32)
    fc_b = vrow(_V_ROWS["fc_b"], IN_FEATURES)
    out = lax.dot_general(y, fc_wt, (((1,), (1,)), ((), ())),
                          preferred_element_type=jnp.float32) + fc_b
    out_ref[...] = out.astype(out_ref.dtype)


# ----------------------------------------------------------------------------
# Wrapper
# ----------------------------------------------------------------------------
def transformer_forward(src, packed):
    """Equivalent of TransformerModel.forward (eval mode, batch=1 elided).
    `packed` = output of pack_params()."""
    return pl.pallas_call(
        _fused_transformer_kernel,
        out_shape=jax.ShapeDtypeStruct((src.shape[0], IN_FEATURES), jnp.float32),
        # No grid: 4 inputs, each DMA'd whole into VMEM once (~1.3 MiB resident).
        compiler_params=pltpu.CompilerParams(vmem_limit_bytes=16 * 1024 * 1024),
    )(src, packed["w"], packed["v"], packed["b1"])


# ----------------------------------------------------------------------------
# Host-side parameter packing into the three slabs (done once, outside jit).
# ----------------------------------------------------------------------------
def pack_params(p):
    w_slab = np.zeros((D_MODEL, _W_LANES), np.float32)

    def put_w(off, arr):
        a = np.asarray(arr, np.float32)
        w_slab[:, off:off + a.shape[1]] = a

    for l, lp in enumerate(p["enc_layers"]):
        o = _W_ENC[l]
        put_w(o["qkv"], lp["sa"]["w_qkv"])
        put_w(o["wo"], lp["sa"]["w_o"])
        put_w(o["w1"], lp["w1"])
        put_w(o["w2t"], np.asarray(lp["w2"], np.float32).T)
    for l, lp in enumerate(p["dec_layers"]):
        o = _W_DEC[l]
        put_w(o["qkv"], lp["sa"]["w_qkv"])
        put_w(o["wo"], lp["sa"]["w_o"])
        put_w(o["ca_q"], lp["ca"]["w_q"])
        put_w(o["ca_kv"], lp["ca"]["w_kv"])
        put_w(o["ca_wo"], lp["ca"]["w_o"])
        put_w(o["w1"], lp["w1"])
        put_w(o["w2t"], np.asarray(lp["w2"], np.float32).T)

    v_slab = np.zeros((_V_TOTAL, LANE), np.float32)

    def put_v(row, arr):
        a = np.asarray(arr, np.float32)
        if a.ndim == 1:
            a = a.reshape(1, -1)
        v_slab[row:row + a.shape[0], :a.shape[1]] = a

    put_v(_V_ROWS["emb_w"], p["emb_w"])                               # (7, 32)
    put_v(_V_ROWS["fc_wt"], np.asarray(p["fc_w"], np.float32).T)      # (7, 32)
    put_v(_V_ROWS["emb_b"], p["emb_b"])
    put_v(_V_ROWS["fc_b"], p["fc_b"])
    for l, lp in enumerate(p["enc_layers"]):
        r = _V_ENC[l]
        put_v(r["b_qkv"], lp["sa"]["b_qkv"]); put_v(r["b_o"], lp["sa"]["b_o"])
        put_v(r["n1_g"], lp["n1_g"]); put_v(r["n1_b"], lp["n1_b"])
        put_v(r["b2"], lp["b2"])
        put_v(r["n2_g"], lp["n2_g"]); put_v(r["n2_b"], lp["n2_b"])
    put_v(_V_ROWS["enc_ng"], p["enc_norm_g"]); put_v(_V_ROWS["enc_nb"], p["enc_norm_b"])
    for l, lp in enumerate(p["dec_layers"]):
        r = _V_DEC[l]
        put_v(r["b_qkv"], lp["sa"]["b_qkv"]); put_v(r["b_o"], lp["sa"]["b_o"])
        put_v(r["n1_g"], lp["n1_g"]); put_v(r["n1_b"], lp["n1_b"])
        put_v(r["ca_b_q"], lp["ca"]["b_q"]); put_v(r["ca_b_kv"], lp["ca"]["b_kv"])
        put_v(r["ca_b_o"], lp["ca"]["b_o"])
        put_v(r["n2_g"], lp["n2_g"]); put_v(r["n2_b"], lp["n2_b"])
        put_v(r["b2"], lp["b2"])
        put_v(r["n3_g"], lp["n3_g"]); put_v(r["n3_b"], lp["n3_b"])
    put_v(_V_ROWS["dec_ng"], p["dec_norm_g"]); put_v(_V_ROWS["dec_nb"], p["dec_norm_b"])

    b1_slab = np.zeros((_B1_ROWS, DIM_FF), np.float32)
    for l, lp in enumerate(p["enc_layers"]):
        b1_slab[l, :] = np.asarray(lp["b1"], np.float32).reshape(-1)
    for l, lp in enumerate(p["dec_layers"]):
        b1_slab[NUM_LAYERS + l, :] = np.asarray(lp["b1"], np.float32).reshape(-1)

    return {
        "w": jnp.asarray(w_slab, jnp.bfloat16),    # matmul weights, bf16 (f32 accumulate)
        "v": jnp.asarray(v_slab, jnp.float32),     # biases / LN params / tiny f32 weights
        "b1": jnp.asarray(b1_slab, jnp.float32),   # FFN hidden biases
    }
    # TODO(synk): int8 (v5e/v6e) or fp8 (v7x) FFN-weight quantization with per-channel
    # scales would halve the dominant HBM bytes; kept bf16 here for numerical parity.


# ----------------------------------------------------------------------------
# Deterministic parameter init (weights stored (in, out) so kernel computes x @ w + b;
# cross-attn weights pre-split into q / kv; LayerNorms at identity).
# ----------------------------------------------------------------------------
def init_params(key):
    keys = iter(jax.random.split(key, 128))

    def rnd(shape, scale=0.02):
        return scale * jax.random.normal(next(keys), shape, dtype=jnp.float32)

    def self_attn_params():
        return {"w_qkv": rnd((D_MODEL, 3 * D_MODEL)), "b_qkv": rnd((1, 3 * D_MODEL)),
                "w_o": rnd((D_MODEL, D_MODEL)), "b_o": rnd((1, D_MODEL))}

    def cross_attn_params():
        return {"w_q": rnd((D_MODEL, D_MODEL)), "b_q": rnd((1, D_MODEL)),
                "w_kv": rnd((D_MODEL, 2 * D_MODEL)), "b_kv": rnd((1, 2 * D_MODEL)),
                "w_o": rnd((D_MODEL, D_MODEL)), "b_o": rnd((1, D_MODEL))}

    def ff_params():
        return {"w1": rnd((D_MODEL, DIM_FF)), "b1": rnd((1, DIM_FF)),
                "w2": rnd((DIM_FF, D_MODEL)), "b2": rnd((1, D_MODEL))}

    ones = jnp.ones((1, D_MODEL), jnp.float32)
    zeros = jnp.zeros((1, D_MODEL), jnp.float32)

    enc_layers = [{"sa": self_attn_params(), "n1_g": ones, "n1_b": zeros,
                   **ff_params(), "n2_g": ones, "n2_b": zeros}
                  for _ in range(NUM_LAYERS)]
    dec_layers = [{"sa": self_attn_params(), "n1_g": ones, "n1_b": zeros,
                   "ca": cross_attn_params(), "n2_g": ones, "n2_b": zeros,
                   **ff_params(), "n3_g": ones, "n3_b": zeros}
                  for _ in range(NUM_LAYERS)]

    return {"emb_w": rnd((IN_FEATURES, D_MODEL)), "emb_b": rnd((1, D_MODEL)),
            "enc_layers": enc_layers, "enc_norm_g": ones, "enc_norm_b": zeros,
            "dec_layers": dec_layers, "dec_norm_g": ones, "dec_norm_b": zeros,
            "fc_w": rnd((D_MODEL, IN_FEATURES)), "fc_b": rnd((1, IN_FEATURES))}


# TODO(synk): nn.Dropout inside nn.Transformer is identity in eval mode and is not modeled.

if __name__ == "__main__":
    key = jax.random.PRNGKey(0)
    pkey, xkey = jax.random.split(key)
    params = init_params(pkey)
    packed = pack_params(params)          # packed once, outside jit
    src = jax.random.normal(xkey, (SEQ_LEN, IN_FEATURES), dtype=jnp.float32)

    fwd = jax.jit(transformer_forward)
    out = jax.block_until_ready(fwd(src, packed))

    assert out.shape == (SEQ_LEN, IN_FEATURES), out.shape
    assert out.dtype == jnp.float32
    assert bool(jnp.all(jnp.isfinite(out)))
    print("KERNEL_OK")
</pallas_src>

<mosaic_0001>
module attributes {stable_mosaic.version = 11 : i64} {
  func.func @_fused_transformer_kernel(%arg0: memref<8x7xf32, #tpu.memory_space<vmem>>, %arg1: memref<32x18176xbf16, #tpu.memory_space<vmem>>, %arg2: memref<64x128xf32, #tpu.memory_space<vmem>>, %arg3: memref<8x2048xf32, #tpu.memory_space<vmem>>, %arg4: memref<8x7xf32, #tpu.memory_space<vmem>>) attributes {dimension_semantics = [], scalar_prefetch = 0 : i64, scratch_operands = 0 : i64, tpu.core_type = #tpu.core_type<tc>} {
    %c0 = arith.constant 0 : index
    %c0_0 = arith.constant 0 : index
    %0 = vector.load %arg0[%c0, %c0_0] : memref<8x7xf32, #tpu.memory_space<vmem>>, vector<8x7xf32>
    %c0_1 = arith.constant 0 : index
    %c0_2 = arith.constant 0 : index
    %1 = vector.load %arg2[%c0_1, %c0_2] : memref<64x128xf32, #tpu.memory_space<vmem>>, vector<7x32xf32>
    %cst = arith.constant dense<0.000000e+00> : vector<8x32xf32>
    %2 = tpu.matmul %0, %1, %cst {dimension_numbers = #tpu.dot_dimension_numbers<[1], [0], [0], [1], [0, 0, 1, 1], [], []>} : vector<8x7xf32>, vector<7x32xf32>, vector<8x32xf32> -> vector<8x32xf32>
    %c16 = arith.constant 16 : index
    %c0_3 = arith.constant 0 : index
    %3 = vector.load %arg2[%c16, %c0_3] : memref<64x128xf32, #tpu.memory_space<vmem>>, vector<1x32xf32>
    %4 = vector.broadcast %3 : vector<1x32xf32> to vector<8x32xf32>
    %5 = arith.addf %2, %4 : vector<8x32xf32>
    %c0_4 = arith.constant 0 : index
    %c0_5 = arith.constant 0 : index
    %6 = vector.load %arg1[%c0_4, %c0_5] : memref<32x18176xbf16, #tpu.memory_space<vmem>>, vector<32x96xbf16>
    %c18 = arith.constant 18 : index
    %c0_6 = arith.constant 0 : index
    %7 = vector.load %arg2[%c18, %c0_6] : memref<64x128xf32, #tpu.memory_space<vmem>>, vector<1x96xf32>
    %c0_7 = arith.constant 0 : index
    %c128 = arith.constant 128 : index
    %8 = vector.load %arg1[%c0_7, %c128] : memref<32x18176xbf16, #tpu.memory_space<vmem>>, vector<32x32xbf16>
    %c19 = arith.constant 19 : index
    %c0_8 = arith.constant 0 : index
    %9 = vector.load %arg2[%c19, %c0_8] : memref<64x128xf32, #tpu.memory_space<vmem>>, vector<1x32xf32>
    %10 = arith.truncf %5 : vector<8x32xf32> to vector<8x32xbf16>
    %cst_9 = arith.constant dense<0.000000e+00> : vector<8x96xf32>
    %11 = tpu.matmul %10, %6, %cst_9 {dimension_numbers = #tpu.dot_dimension_numbers<[1], [0], [0], [1], [0, 0, 1, 1], [], []>} : vector<8x32xbf16>, vector<32x96xbf16>, vector<8x96xf32> -> vector<8x96xf32>
    %12 = vector.broadcast %7 : vector<1x96xf32> to vector<8x96xf32>
    %13 = arith.addf %11, %12 : vector<8x96xf32>
    %14 = vector.extract_strided_slice %13 {offsets = [0, 0], sizes = [8, 32], strides = [1, 1]} : vector<8x96xf32> to vector<8x32xf32>
    %15 = vector.extract_strided_slice %13 {offsets = [0, 32], sizes = [8, 32], strides = [1, 1]} : vector<8x96xf32> to vector<8x32xf32>
    %16 = vector.extract_strided_slice %13 {offsets = [0, 64], sizes = [8, 32], strides = [1, 1]} : vector<8x96xf32> to vector<8x32xf32>
    %17 = vector.extract_strided_slice %14 {offsets = [0, 0], sizes = [8, 8], strides = [1, 1]} : vector<8x32xf32> to vector<8x8xf32>
    %18 = vector.extract_strided_slice %15 {offsets = [0, 0], sizes = [8, 8], strides = [1, 1]} : vector<8x32xf32> to vector<8x8xf32>
    %19 = vector.extract_strided_slice %16 {offsets = [0, 0], sizes = [8, 8], strides = [1, 1]} : vector<8x32xf32> to vector<8x8xf32>
    %cst_10 = arith.constant dense<0.000000e+00> : vector<8x8xf32>
    %20 = tpu.matmul %17, %18, %cst_10 {dimension_numbers = #tpu.dot_dimension_numbers<[1], [1], [0], [0], [0, 0, 1, 0], [], []>} : vector<8x8xf32>, vector<8x8xf32>, vector<8x8xf32> -> vector<8x8xf32>
    %cst_11 = arith.constant 0.353553385 : f32
    %21 = vector.broadcast %cst_11 : f32 to vector<8x8xf32>
    %22 = arith.mulf %20, %21 : vector<8x8xf32>
    %cst_12 = arith.constant dense<0xFF800000> : vector<8xf32>
    %23 = vector.multi_reduction <maximumf>, %22, %cst_12 [1] : vector<8x8xf32> to vector<8xf32>
    %24 = vector.shape_cast %23 : vector<8xf32> to vector<8x1xf32>
    %25 = vector.broadcast %24 : vector<8x1xf32> to vector<8x8xf32>
    %26 = arith.subf %22, %25 : vector<8x8xf32>
    %27 = math.exp %26 : vector<8x8xf32>
    %cst_13 = arith.constant dense<0.000000e+00> : vector<8xf32>
    %28 = vector.multi_reduction <add>, %27, %cst_13 [1] : vector<8x8xf32> to vector<8xf32>
    %29 = vector.shape_cast %28 : vector<8xf32> to vector<8x1xf32>
    %30 = tpu.reciprocal %29 {approx = true} : vector<8x1xf32> -> vector<8x1xf32>
    %31 = vector.broadcast %30 : vector<8x1xf32> to vector<8x8xf32>
    %32 = arith.mulf %27, %31 : vector<8x8xf32>
    %cst_14 = arith.constant dense<0.000000e+00> : vector<8x8xf32>
    %33 = tpu.matmul %32, %19, %cst_14 {dimension_numbers = #tpu.dot_dimension_numbers<[1], [0], [0], [1], [0, 0, 1, 1], [], []>} : vector<8x8xf32>, vector<8x8xf32>, vector<8x8xf32> -> vector<8x8xf32>
    %34 = vector.extract_strided_slice %8 {offsets = [0, 0], sizes = [8, 32], strides = [1, 1]} : vector<32x32xbf16> to vector<8x32xbf16>
    %35 = arith.truncf %33 : vector<8x8xf32> to vector<8x8xbf16>
    %cst_15 = arith.constant dense<0.000000e+00> : vector<8x32xf32>
    %36 = tpu.matmul %35, %34, %cst_15 {dimension_numbers = #tpu.dot_dimension_numbers<[1], [0], [0], [1], [0, 0, 1, 1], [], []>} : vector<8x8xbf16>, vector<8x32xbf16>, vector<8x32xf32> -> vector<8x32xf32>
    %37 = vector.extract_strided_slice %14 {offsets = [0, 8], sizes = [8, 8], strides = [1, 1]} : vector<8x32xf32> to vector<8x8xf32>
    %38 = vector.extract_strided_slice %15 {offsets = [0, 8], sizes = [8, 8], strides = [1, 1]} : vector<8x32xf32> to vector<8x8xf32>
    %39 = vector.extract_strided_slice %16 {offsets = [0, 8], sizes = [8, 8], strides = [1, 1]} : vector<8x32xf32> to vector<8x8xf32>
    %cst_16 = arith.constant dense<0.000000e+00> : vector<8x8xf32>
    %40 = tpu.matmul %37, %38, %cst_16 {dimension_numbers = #tpu.dot_dimension_numbers<[1], [1], [0], [0], [0, 0, 1, 0], [], []>} : vector<8x8xf32>, vector<8x8xf32>, vector<8x8xf32> -> vector<8x8xf32>
    %cst_17 = arith.constant 0.353553385 : f32
    %41 = vector.broadcast %cst_17 : f32 to vector<8x8xf32>
    %42 = arith.mulf %40, %41 : vector<8x8xf32>
    %cst_18 = arith.constant dense<0xFF800000> : vector<8xf32>
    %43 = vector.multi_reduction <maximumf>, %42, %cst_18 [1] : vector<8x8xf32> to vector<8xf32>
    %44 = vector.shape_cast %43 : vector<8xf32> to vector<8x1xf32>
    %45 = vector.broadcast %44 : vector<8x1xf32> to vector<8x8xf32>
    %46 = arith.subf %42, %45 : vector<8x8xf32>
    %47 = math.exp %46 : vector<8x8xf32>
    %cst_19 = arith.constant dense<0.000000e+00> : vector<8xf32>
    %48 = vector.multi_reduction <add>, %47, %cst_19 [1] : vector<8x8xf32> to vector<8xf32>
    %49 = vector.shape_cast %48 : vector<8xf32> to vector<8x1xf32>
    %50 = tpu.reciprocal %49 {approx = true} : vector<8x1xf32> -> vector<8x1xf32>
    %51 = vector.broadcast %50 : vector<8x1xf32> to vector<8x8xf32>
    %52 = arith.mulf %47, %51 : vector<8x8xf32>
    %cst_20 = arith.constant dense<0.000000e+00> : vector<8x8xf32>
    %53 = tpu.matmul %52, %39, %cst_20 {dimension_numbers = #tpu.dot_dimension_numbers<[1], [0], [0], [1], [0, 0, 1, 1], [], []>} : vector<8x8xf32>, vector<8x8xf32>, vector<8x8xf32> -> vector<8x8xf32>
    %54 = vector.extract_strided_slice %8 {offsets = [8, 0], sizes = [8, 32], strides = [1, 1]} : vector<32x32xbf16> to vector<8x32xbf16>
    %55 = arith.truncf %53 : vector<8x8xf32> to vector<8x8xbf16>
    %cst_21 = arith.constant dense<0.000000e+00> : vector<8x32xf32>
    %56 = tpu.matmul %55, %54, %cst_21 {dimension_numbers = #tpu.dot_dimension_numbers<[1], [0], [0], [1], [0, 0, 1, 1], [], []>} : vector<8x8xbf16>, vector<8x32xbf16>, vector<8x32xf32> -> vector<8x32xf32>
    %57 = arith.addf %36, %56 : vector<8x32xf32>
    %58 = vector.extract_strided_slice %14 {offsets = [0, 16], sizes = [8, 8], strides = [1, 1]} : vector<8x32xf32> to vector<8x8xf32>
    %59 = vector.extract_strided_slice %15 {offsets = [0, 16], sizes = [8, 8], strides = [1, 1]} : vector<8x32xf32> to vector<8x8xf32>
    %60 = vector.extract_strided_slice %16 {offsets = [0, 16], sizes = [8, 8], strides = [1, 1]} : vector<8x32xf32> to vector<8x8xf32>
    %cst_22 = arith.constant dense<0.000000e+00> : vector<8x8xf32>
    %61 = tpu.matmul %58, %59, %cst_22 {dimension_numbers = #tpu.dot_dimension_numbers<[1], [1], [0], [0], [0, 0, 1, 0], [], []>} : vector<8x8xf32>, vector<8x8xf32>, vector<8x8xf32> -> vector<8x8xf32>
    %cst_23 = arith.constant 0.353553385 : f32
    %62 = vector.broadcast %cst_23 : f32 to vector<8x8xf32>
    %63 = arith.mulf %61, %62 : vector<8x8xf32>
    %cst_24 = arith.constant dense<0xFF800000> : vector<8xf32>
    %64 = vector.multi_reduction <maximumf>, %63, %cst_24 [1] : vector<8x8xf32> to vector<8xf32>
    %65 = vector.shape_cast %64 : vector<8xf32> to vector<8x1xf32>
    %66 = vector.broadcast %65 : vector<8x1xf32> to vector<8x8xf32>
    %67 = arith.subf %63, %66 : vector<8x8xf32>
    %68 = math.exp %67 : vector<8x8xf32>
    %cst_25 = arith.constant dense<0.000000e+00> : vector<8xf32>
    %69 = vector.multi_reduction <add>, %68, %cst_25 [1] : vector<8x8xf32> to vector<8xf32>
    %70 = vector.shape_cast %69 : vector<8xf32> to vector<8x1xf32>
    %71 = tpu.reciprocal %70 {approx = true} : vector<8x1xf32> -> vector<8x1xf32>
    %72 = vector.broadcast %71 : vector<8x1xf32> to vector<8x8xf32>
    %73 = arith.mulf %68, %72 : vector<8x8xf32>
    %cst_26 = arith.constant dense<0.000000e+00> : vector<8x8xf32>
    %74 = tpu.matmul %73, %60, %cst_26 {dimension_numbers = #tpu.dot_dimension_numbers<[1], [0], [0], [1], [0, 0, 1, 1], [], []>} : vector<8x8xf32>, vector<8x8xf32>, vector<8x8xf32> -> vector<8x8xf32>
    %75 = vector.extract_strided_slice %8 {offsets = [16, 0], sizes = [8, 32], strides = [1, 1]} : vector<32x32xbf16> to vector<8x32xbf16>
    %76 = arith.truncf %74 : vector<8x8xf32> to vector<8x8xbf16>
    %cst_27 = arith.constant dense<0.000000e+00> : vector<8x32xf32>
    %77 = tpu.matmul %76, %75, %cst_27 {dimension_numbers = #tpu.dot_dimension_numbers<[1], [0], [0], [1], [0, 0, 1, 1], [], []>} : vector<8x8xbf16>, vector<8x32xbf16>, vector<8x32xf32> -> vector<8x32xf32>
    %78 = arith.addf %57, %77 : vector<8x32xf32>
    %79 = vector.extract_strided_slice %14 {offsets = [0, 24], sizes = [8, 8], strides = [1, 1]} : vector<8x32xf32> to vector<8x8xf32>
    %80 = vector.extract_strided_slice %15 {offsets = [0, 24], sizes = [8, 8], strides = [1, 1]} : vector<8x32xf32> to vector<8x8xf32>
    %81 = vector.extract_strided_slice %16 {offsets = [0, 24], sizes = [8, 8], strides = [1, 1]} : vector<8x32xf32> to vector<8x8xf32>
    %cst_28 = arith.constant dense<0.000000e+00> : vector<8x8xf32>
    %82 = tpu.matmul %79, %80, %cst_28 {dimension_numbers = #tpu.dot_dimension_numbers<[1], [1], [0], [0], [0, 0, 1, 0], [], []>} : vector<8x8xf32>, vector<8x8xf32>, vector<8x8xf32> -> vector<8x8xf32>
    %cst_29 = arith.constant 0.353553385 : f32
    %83 = vector.broadcast %cst_29 : f32 to vector<8x8xf32>
    %84 = arith.mulf %82, %83 : vector<8x8xf32>
    %cst_30 = arith.constant dense<0xFF800000> : vector<8xf32>
    %85 = vector.multi_reduction <maximumf>, %84, %cst_30 [1] : vector<8x8xf32> to vector<8xf32>
    %86 = vector.shape_cast %85 : vector<8xf32> to vector<8x1xf32>
    %87 = vector.broadcast %86 : vector<8x1xf32> to vector<8x8xf32>
    %88 = arith.subf %84, %87 : vector<8x8xf32>
    %89 = math.exp %88 : vector<8x8xf32>
    %cst_31 = arith.constant dense<0.000000e+00> : vector<8xf32>
    %90 = vector.multi_reduction <add>, %89, %cst_31 [1] : vector<8x8xf32> to vector<8xf32>
    %91 = vector.shape_cast %90 : vector<8xf32> to vector<8x1xf32>
    %92 = tpu.reciprocal %91 {approx = true} : vector<8x1xf32> -> vector<8x1xf32>
    %93 = vector.broadcast %92 : vector<8x1xf32> to vector<8x8xf32>
    %94 = arith.mulf %89, %93 : vector<8x8xf32>
    %cst_32 = arith.constant dense<0.000000e+00> : vector<8x8xf32>
    %95 = tpu.matmul %94, %81, %cst_32 {dimension_numbers = #tpu.dot_dimension_numbers<[1], [0], [0], [1], [0, 0, 1, 1], [], []>} : vector<8x8xf32>, vector<8x8xf32>, vector<8x8xf32> -> vector<8x8xf32>
    %96 = vector.extract_strided_slice %8 {offsets = [24, 0], sizes = [8, 32], strides = [1, 1]} : vector<32x32xbf16> to vector<8x32xbf16>
    %97 = arith.truncf %95 : vector<8x8xf32> to vector<8x8xbf16>
    %cst_33 = arith.constant dense<0.000000e+00> : vector<8x32xf32>
    %98 = tpu.matmul %97, %96, %cst_33 {dimension_numbers = #tpu.dot_dimension_numbers<[1], [0], [0], [1], [0, 0, 1, 1], [], []>} : vector<8x8xbf16>, vector<8x32xbf16>, vector<8x32xf32> -> vector<8x32xf32>
    %99 = arith.addf %78, %98 : vector<8x32xf32>
    %100 = vector.broadcast %9 : vector<1x32xf32> to vector<8x32xf32>
    %101 = arith.addf %99, %100 : vector<8x32xf32>
    %102 = arith.addf %5, %101 : vector<8x32xf32>
    %c20 = arith.constant 20 : index
    %c0_34 = arith.constant 0 : index
    %103 = vector.load %arg2[%c20, %c0_34] : memref<64x128xf32, #tpu.memory_space<vmem>>, vector<1x32xf32>
    %c21 = arith.constant 21 : index
    %c0_35 = arith.constant 0 : index
    %104 = vector.load %arg2[%c21, %c0_35] : memref<64x128xf32, #tpu.memory_space<vmem>>, vector<1x32xf32>
    %cst_36 = arith.constant dense<0.000000e+00> : vector<8xf32>
    %105 = vector.multi_reduction <add>, %102, %cst_36 [1] : vector<8x32xf32> to vector<8xf32>
    %106 = vector.shape_cast %105 : vector<8xf32> to vector<8x1xf32>
    %cst_37 = arith.constant 3.200000e+01 : f32
    %107 = vector.broadcast %cst_37 : f32 to vector<8x1xf32>
    %108 = arith.divf %106, %107 : vector<8x1xf32>
    %109 = vector.broadcast %108 : vector<8x1xf32> to vector<8x32xf32>
    %110 = arith.subf %102, %109 : vector<8x32xf32>
    %111 = arith.mulf %110, %110 : vector<8x32xf32>
    %cst_38 = arith.constant dense<0.000000e+00> : vector<8xf32>
    %112 = vector.multi_reduction <add>, %111, %cst_38 [1] : vector<8x32xf32> to vector<8xf32>
    %113 = vector.shape_cast %112 : vector<8xf32> to vector<8x1xf32>
    %cst_39 = arith.constant 3.200000e+01 : f32
    %114 = vector.broadcast %cst_39 : f32 to vector<8x1xf32>
    %115 = arith.divf %113, %114 : vector<8x1xf32>
    %116 = vector.broadcast %108 : vector<8x1xf32> to vector<8x32xf32>
    %117 = arith.subf %102, %116 : vector<8x32xf32>
    %cst_40 = arith.constant 9.99999974E-6 : f32
    %118 = vector.broadcast %cst_40 : f32 to vector<8x1xf32>
    %119 = arith.addf %115, %118 : vector<8x1xf32>
    %120 = math.rsqrt %119 : vector<8x1xf32>
    %121 = vector.broadcast %120 : vector<8x1xf32> to vector<8x32xf32>
    %122 = arith.mulf %117, %121 : vector<8x32xf32>
    %123 = vector.broadcast %103 : vector<1x32xf32> to vector<8x32xf32>
    %124 = arith.mulf %122, %123 : vector<8x32xf32>
    %125 = vector.broadcast %104 : vector<1x32xf32> to vector<8x32xf32>
    %126 = arith.addf %124, %125 : vector<8x32xf32>
    %c0_41 = arith.constant 0 : index
    %c256 = arith.constant 256 : index
    %127 = vector.load %arg1[%c0_41, %c256] : memref<32x18176xbf16, #tpu.memory_space<vmem>>, vector<32x2048xbf16>
    %c0_42 = arith.constant 0 : index
    %c0_43 = arith.constant 0 : index
    %128 = vector.load %arg3[%c0_42, %c0_43] : memref<8x2048xf32, #tpu.memory_space<vmem>>, vector<1x2048xf32>
    %c0_44 = arith.constant 0 : index
    %c2304 = arith.constant 2304 : index
    %129 = vector.load %arg1[%c0_44, %c2304] : memref<32x18176xbf16, #tpu.memory_space<vmem>>, vector<32x2048xbf16>
    %c22 = arith.constant 22 : index
    %c0_45 = arith.constant 0 : index
    %130 = vector.load %arg2[%c22, %c0_45] : memref<64x128xf32, #tpu.memory_space<vmem>>, vector<1x32xf32>
    %131 = arith.truncf %126 : vector<8x32xf32> to vector<8x32xbf16>
    %cst_46 = arith.constant dense<0.000000e+00> : vector<8x2048xf32>
    %132 = tpu.matmul %131, %127, %cst_46 {dimension_numbers = #tpu.dot_dimension_numbers<[1], [0], [0], [1], [0, 0, 1, 1], [], []>} : vector<8x32xbf16>, vector<32x2048xbf16>, vector<8x2048xf32> -> vector<8x2048xf32>
    %133 = vector.broadcast %128 : vector<1x2048xf32> to vector<8x2048xf32>
    %134 = arith.addf %132, %133 : vector<8x2048xf32>
    %cst_47 = arith.constant 0.000000e+00 : f32
    %135 = vector.broadcast %cst_47 : f32 to vector<8x2048xf32>
    %136 = arith.maximumf %134, %135 : vector<8x2048xf32>
    %137 = arith.truncf %136 : vector<8x2048xf32> to vector<8x2048xbf16>
    %cst_48 = arith.constant dense<0.000000e+00> : vector<8x32xf32>
    %138 = tpu.matmul %137, %129, %cst_48 {dimension_numbers = #tpu.dot_dimension_numbers<[1], [1], [0], [0], [0, 0, 1, 0], [], []>} : vector<8x2048xbf16>, vector<32x2048xbf16>, vector<8x32xf32> -> vector<8x32xf32>
    %139 = vector.broadcast %130 : vector<1x32xf32> to vector<8x32xf32>
    %140 = arith.addf %138, %139 : vector<8x32xf32>
    %141 = arith.addf %126, %140 : vector<8x32xf32>
    %c23 = arith.constant 23 : index
    %c0_49 = arith.constant 0 : index
    %142 = vector.load %arg2[%c23, %c0_49] : memref<64x128xf32, #tpu.memory_space<vmem>>, vector<1x32xf32>
    %c24 = arith.constant 24 : index
    %c0_50 = arith.constant 0 : index
    %143 = vector.load %arg2[%c24, %c0_50] : memref<64x128xf32, #tpu.memory_space<vmem>>, vector<1x32xf32>
    %cst_51 = arith.constant dense<0.000000e+00> : vector<8xf32>
    %144 = vector.multi_reduction <add>, %141, %cst_51 [1] : vector<8x32xf32> to vector<8xf32>
    %145 = vector.shape_cast %144 : vector<8xf32> to vector<8x1xf32>
    %cst_52 = arith.constant 3.200000e+01 : f32
    %146 = vector.broadcast %cst_52 : f32 to vector<8x1xf32>
    %147 = arith.divf %145, %146 : vector<8x1xf32>
    %148 = vector.broadcast %147 : vector<8x1xf32> to vector<8x32xf32>
    %149 = arith.subf %141, %148 : vector<8x32xf32>
    %150 = arith.mulf %149, %149 : vector<8x32xf32>
    %cst_53 = arith.constant dense<0.000000e+00> : vector<8xf32>
    %151 = vector.multi_reduction <add>, %150, %cst_53 [1] : vector<8x32xf32> to vector<8xf32>
    %152 = vector.shape_cast %151 : vector<8xf32> to vector<8x1xf32>
    %cst_54 = arith.constant 3.200000e+01 : f32
    %153 = vector.broadcast %cst_54 : f32 to vector<8x1xf32>
    %154 = arith.divf %152, %153 : vector<8x1xf32>
    %155 = vector.broadcast %147 : vector<8x1xf32> to vector<8x32xf32>
    %156 = arith.subf %141, %155 : vector<8x32xf32>
    %cst_55 = arith.constant 9.99999974E-6 : f32
    %157 = vector.broadcast %cst_55 : f32 to vector<8x1xf32>
    %158 = arith.addf %154, %157 : vector<8x1xf32>
    %159 = math.rsqrt %158 : vector<8x1xf32>
    %160 = vector.broadcast %159 : vector<8x1xf32> to vector<8x32xf32>
    %161 = arith.mulf %156, %160 : vector<8x32xf32>
    %162 = vector.broadcast %142 : vector<1x32xf32> to vector<8x32xf32>
    %163 = arith.mulf %161, %162 : vector<8x32xf32>
    %164 = vector.broadcast %143 : vector<1x32xf32> to vector<8x32xf32>
    %165 = arith.addf %163, %164 : vector<8x32xf32>
    %c0_56 = arith.constant 0 : index
    %c4352 = arith.constant 4352 : index
    %166 = vector.load %arg1[%c0_56, %c4352] : memref<32x18176xbf16, #tpu.memory_space<vmem>>, vector<32x96xbf16>
    %c25 = arith.constant 25 : index
    %c0_57 = arith.constant 0 : index
    %167 = vector.load %arg2[%c25, %c0_57] : memref<64x128xf32, #tpu.memory_space<vmem>>, vector<1x96xf32>
    %c0_58 = arith.constant 0 : index
    %c4480 = arith.constant 4480 : index
    %168 = vector.load %arg1[%c0_58, %c4480] : memref<32x18176xbf16, #tpu.memory_space<vmem>>, vector<32x32xbf16>
    %c26 = arith.constant 26 : index
    %c0_59 = arith.constant 0 : index
    %169 = vector.load %arg2[%c26, %c0_59] : memref<64x128xf32, #tpu.memory_space<vmem>>, vector<1x32xf32>
    %170 = arith.truncf %165 : vector<8x32xf32> to vector<8x32xbf16>
    %cst_60 = arith.constant dense<0.000000e+00> : vector<8x96xf32>
    %171 = tpu.matmul %170, %166, %cst_60 {dimension_numbers = #tpu.dot_dimension_numbers<[1], [0], [0], [1], [0, 0, 1, 1], [], []>} : vector<8x32xbf16>, vector<32x96xbf16>, vector<8x96xf32> -> vector<8x96xf32>
    %172 = vector.broadcast %167 : vector<1x96xf32> to vector<8x96xf32>
    %173 = arith.addf %171, %172 : vector<8x96xf32>
    %174 = vector.extract_strided_slice %173 {offsets = [0, 0], sizes = [8, 32], strides = [1, 1]} : vector<8x96xf32> to vector<8x32xf32>
    %175 = vector.extract_strided_slice %173 {offsets = [0, 32], sizes = [8, 32], strides = [1, 1]} : vector<8x96xf32> to vector<8x32xf32>
    %176 = vector.extract_strided_slice %173 {offsets = [0, 64], sizes = [8, 32], strides = [1, 1]} : vector<8x96xf32> to vector<8x32xf32>
    %177 = vector.extract_strided_slice %174 {offsets = [0, 0], sizes = [8, 8], strides = [1, 1]} : vector<8x32xf32> to vector<8x8xf32>
    %178 = vector.extract_strided_slice %175 {offsets = [0, 0], sizes = [8, 8], strides = [1, 1]} : vector<8x32xf32> to vector<8x8xf32>
    %179 = vector.extract_strided_slice %176 {offsets = [0, 0], sizes = [8, 8], strides = [1, 1]} : vector<8x32xf32> to vector<8x8xf32>
    %cst_61 = arith.constant dense<0.000000e+00> : vector<8x8xf32>
    %180 = tpu.matmul %177, %178, %cst_61 {dimension_numbers = #tpu.dot_dimension_numbers<[1], [1], [0], [0], [0, 0, 1, 0], [], []>} : vector<8x8xf32>, vector<8x8xf32>, vector<8x8xf32> -> vector<8x8xf32>
    %cst_62 = arith.constant 0.353553385 : f32
    %181 = vector.broadcast %cst_62 : f32 to vector<8x8xf32>
    %182 = arith.mulf %180, %181 : vector<8x8xf32>
    %cst_63 = arith.constant dense<0xFF800000> : vector<8xf32>
    %183 = vector.multi_reduction <maximumf>, %182, %cst_63 [1] : vector<8x8xf32> to vector<8xf32>
    %184 = vector.shape_cast %183 : vector<8xf32> to vector<8x1xf32>
    %185 = vector.broadcast %184 : vector<8x1xf32> to vector<8x8xf32>
    %186 = arith.subf %182, %185 : vector<8x8xf32>
    %187 = math.exp %186 : vector<8x8xf32>
    %cst_64 = arith.constant dense<0.000000e+00> : vector<8xf32>
    %188 = vector.multi_reduction <add>, %187, %cst_64 [1] : vector<8x8xf32> to vector<8xf32>
    %189 = vector.shape_cast %188 : vector<8xf32> to vector<8x1xf32>
    %190 = tpu.reciprocal %189 {approx = true} : vector<8x1xf32> -> vector<8x1xf32>
    %191 = vector.broadcast %190 : vector<8x1xf32> to vector<8x8xf32>
    %192 = arith.mulf %187, %191 : vector<8x8xf32>
    %cst_65 = arith.constant dense<0.000000e+00> : vector<8x8xf32>
    %193 = tpu.matmul %192, %179, %cst_65 {dimension_numbers = #tpu.dot_dimension_numbers<[1], [0], [0], [1], [0, 0, 1, 1], [], []>} : vector<8x8xf32>, vector<8x8xf32>, vector<8x8xf32> -> vector<8x8xf32>
    %194 = vector.extract_strided_slice %168 {offsets = [0, 0], sizes = [8, 32], strides = [1, 1]} : vector<32x32xbf16> to vector<8x32xbf16>
    %195 = arith.truncf %193 : vector<8x8xf32> to vector<8x8xbf16>
    %cst_66 = arith.constant dense<0.000000e+00> : vector<8x32xf32>
    %196 = tpu.matmul %195, %194, %cst_66 {dimension_numbers = #tpu.dot_dimension_numbers<[1], [0], [0], [1], [0, 0, 1, 1], [], []>} : vector<8x8xbf16>, vector<8x32xbf16>, vector<8x32xf32> -> vector<8x32xf32>
    %197 = vector.extract_strided_slice %174 {offsets = [0, 8], sizes = [8, 8], strides = [1, 1]} : vector<8x32xf32> to vector<8x8xf32>
    %198 = vector.extract_strided_slice %175 {offsets = [0, 8], sizes = [8, 8], strides = [1, 1]} : vector<8x32xf32> to vector<8x8xf32>
    %199 = vector.extract_strided_slice %176 {offsets = [0, 8], sizes = [8, 8], strides = [1, 1]} : vector<8x32xf32> to vector<8x8xf32>
    %cst_67 = arith.constant dense<0.000000e+00> : vector<8x8xf32>
    %200 = tpu.matmul %197, %198, %cst_67 {dimension_numbers = #tpu.dot_dimension_numbers<[1], [1], [0], [0], [0, 0, 1, 0], [], []>} : vector<8x8xf32>, vector<8x8xf32>, vector<8x8xf32> -> vector<8x8xf32>
    %cst_68 = arith.constant 0.353553385 : f32
    %201 = vector.broadcast %cst_68 : f32 to vector<8x8xf32>
    %202 = arith.mulf %200, %201 : vector<8x8xf32>
    %cst_69 = arith.constant dense<0xFF800000> : vector<8xf32>
    %203 = vector.multi_reduction <maximumf>, %202, %cst_69 [1] : vector<8x8xf32> to vector<8xf32>
    %204 = vector.shape_cast %203 : vector<8xf32> to vector<8x1xf32>
    %205 = vector.broadcast %204 : vector<8x1xf32> to vector<8x8xf32>
    %206 = arith.subf %202, %205 : vector<8x8xf32>
    %207 = math.exp %206 : vector<8x8xf32>
    %cst_70 = arith.constant dense<0.000000e+00> : vector<8xf32>
    %208 = vector.multi_reduction <add>, %207, %cst_70 [1] : vector<8x8xf32> to vector<8xf32>
    %209 = vector.shape_cast %208 : vector<8xf32> to vector<8x1xf32>
    %210 = tpu.reciprocal %209 {approx = true} : vector<8x1xf32> -> vector<8x1xf32>
    %211 = vector.broadcast %210 : vector<8x1xf32> to vector<8x8xf32>
    %212 = arith.mulf %207, %211 : vector<8x8xf32>
    %cst_71 = arith.constant dense<0.000000e+00> : vector<8x8xf32>
    %213 = tpu.matmul %212, %199, %cst_71 {dimension_numbers = #tpu.dot_dimension_numbers<[1], [0], [0], [1], [0, 0, 1, 1], [], []>} : vector<8x8xf32>, vector<8x8xf32>, vector<8x8xf32> -> vector<8x8xf32>
    %214 = vector.extract_strided_slice %168 {offsets = [8, 0], sizes = [8, 32], strides = [1, 1]} : vector<32x32xbf16> to vector<8x32xbf16>
    %215 = arith.truncf %213 : vector<8x8xf32> to vector<8x8xbf16>
    %cst_72 = arith.constant dense<0.000000e+00> : vector<8x32xf32>
    %216 = tpu.matmul %215, %214, %cst_72 {dimension_numbers = #tpu.dot_dimension_numbers<[1], [0], [0], [1], [0, 0, 1, 1], [], []>} : vector<8x8xbf16>, vector<8x32xbf16>, vector<8x32xf32> -> vector<8x32xf32>
    %217 = arith.addf %196, %216 : vector<8x32xf32>
    %218 = vector.extract_strided_slice %174 {offsets = [0, 16], sizes = [8, 8], strides = [1, 1]} : vector<8x32xf32> to vector<8x8xf32>
    %219 = vector.extract_strided_slice %175 {offsets = [0, 16], sizes = [8, 8], strides = [1, 1]} : vector<8x32xf32> to vector<8x8xf32>
    %220 = vector.extract_strided_slice %176 {offsets = [0, 16], sizes = [8, 8], strides = [1, 1]} : vector<8x32xf32> to vector<8x8xf32>
    %cst_73 = arith.constant dense<0.000000e+00> : vector<8x8xf32>
    %221 = tpu.matmul %218, %219, %cst_73 {dimension_numbers = #tpu.dot_dimension_numbers<[1], [1], [0], [0], [0, 0, 1, 0], [], []>} : vector<8x8xf32>, vector<8x8xf32>, vector<8x8xf32> -> vector<8x8xf32>
    %cst_74 = arith.constant 0.353553385 : f32
    %222 = vector.broadcast %cst_74 : f32 to vector<8x8xf32>
    %223 = arith.mulf %221, %222 : vector<8x8xf32>
    %cst_75 = arith.constant dense<0xFF800000> : vector<8xf32>
    %224 = vector.multi_reduction <maximumf>, %223, %cst_75 [1] : vector<8x8xf32> to vector<8xf32>
    %225 = vector.shape_cast %224 : vector<8xf32> to vector<8x1xf32>
    %226 = vector.broadcast %225 : vector<8x1xf32> to vector<8x8xf32>
    %227 = arith.subf %223, %226 : vector<8x8xf32>
    %228 = math.exp %227 : vector<8x8xf32>
    %cst_76 = arith.constant dense<0.000000e+00> : vector<8xf32>
    %229 = vector.multi_reduction <add>, %228, %cst_76 [1] : vector<8x8xf32> to vector<8xf32>
    %230 = vector.shape_cast %229 : vector<8xf32> to vector<8x1xf32>
    %231 = tpu.reciprocal %230 {approx = true} : vector<8x1xf32> -> vector<8x1xf32>
    %232 = vector.broadcast %231 : vector<8x1xf32> to vector<8x8xf32>
    %233 = arith.mulf %228, %232 : vector<8x8xf32>
    %cst_77 = arith.constant dense<0.000000e+00> : vector<8x8xf32>
    %234 = tpu.matmul %233, %220, %cst_77 {dimension_numbers = #tpu.dot_dimension_numbers<[1], [0], [0], [1], [0, 0, 1, 1], [], []>} : vector<8x8xf32>, vector<8x8xf32>, vector<8x8xf32> -> vector<8x8xf32>
    %235 = vector.extract_strided_slice %168 {offsets = [16, 0], sizes = [8, 32], strides = [1, 1]} : vector<32x32xbf16> to vector<8x32xbf16>
    %236 = arith.truncf %234 : vector<8x8xf32> to vector<8x8xbf16>
    %cst_78 = arith.constant dense<0.000000e+00> : vector<8x32xf32>
    %237 = tpu.matmul %236, %235, %cst_78 {dimension_numbers = #tpu.dot_dimension_numbers<[1], [0], [0], [1], [0, 0, 1, 1], [], []>} : vector<8x8xbf16>, vector<8x32xbf16>, vector<8x32xf32> -> vector<8x32xf32>
    %238 = arith.addf %217, %237 : vector<8x32xf32>
    %239 = vector.extract_strided_slice %174 {offsets = [0, 24], sizes = [8, 8], strides = [1, 1]} : vector<8x32xf32> to vector<8x8xf32>
    %240 = vector.extract_strided_slice %175 {offsets = [0, 24], sizes = [8, 8], strides = [1, 1]} : vector<8x32xf32> to vector<8x8xf32>
    %241 = vector.extract_strided_slice %176 {offsets = [0, 24], sizes = [8, 8], strides = [1, 1]} : vector<8x32xf32> to vector<8x8xf32>
    %cst_79 = arith.constant dense<0.000000e+00> : vector<8x8xf32>
    %242 = tpu.matmul %239, %240, %cst_79 {dimension_numbers = #tpu.dot_dimension_numbers<[1], [1], [0], [0], [0, 0, 1, 0], [], []>} : vector<8x8xf32>, vector<8x8xf32>, vector<8x8xf32> -> vector<8x8xf32>
    %cst_80 = arith.constant 0.353553385 : f32
    %243 = vector.broadcast %cst_80 : f32 to vector<8x8xf32>
    %244 = arith.mulf %242, %243 : vector<8x8xf32>
    %cst_81 = arith.constant dense<0xFF800000> : vector<8xf32>
    %245 = vector.multi_reduction <maximumf>, %244, %cst_81 [1] : vector<8x8xf32> to vector<8xf32>
    %246 = vector.shape_cast %245 : vector<8xf32> to vector<8x1xf32>
    %247 = vector.broadcast %246 : vector<8x1xf32> to vector<8x8xf32>
    %248 = arith.subf %244, %247 : vector<8x8xf32>
    %249 = math.exp %248 : vector<8x8xf32>
    %cst_82 = arith.constant dense<0.000000e+00> : vector<8xf32>
    %250 = vector.multi_reduction <add>, %249, %cst_82 [1] : vector<8x8xf32> to vector<8xf32>
    %251 = vector.shape_cast %250 : vector<8xf32> to vector<8x1xf32>
    %252 = tpu.reciprocal %251 {approx = true} : vector<8x1xf32> -> vector<8x1xf32>
    %253 = vector.broadcast %252 : vector<8x1xf32> to vector<8x8xf32>
    %254 = arith.mulf %249, %253 : vector<8x8xf32>
    %cst_83 = arith.constant dense<0.000000e+00> : vector<8x8xf32>
    %255 = tpu.matmul %254, %241, %cst_83 {dimension_numbers = #tpu.dot_dimension_numbers<[1], [0], [0], [1], [0, 0, 1, 1], [], []>} : vector<8x8xf32>, vector<8x8xf32>, vector<8x8xf32> -> vector<8x8xf32>
    %256 = vector.extract_strided_slice %168 {offsets = [24, 0], sizes = [8, 32], strides = [1, 1]} : vector<32x32xbf16> to vector<8x32xbf16>
    %257 = arith.truncf %255 : vector<8x8xf32> to vector<8x8xbf16>
    %cst_84 = arith.constant dense<0.000000e+00> : vector<8x32xf32>
    %258 = tpu.matmul %257, %256, %cst_84 {dimension_numbers = #tpu.dot_dimension_numbers<[1], [0], [0], [1], [0, 0, 1, 1], [], []>} : vector<8x8xbf16>, vector<8x32xbf16>, vector<8x32xf32> -> vector<8x32xf32>
    %259 = arith.addf %238, %258 : vector<8x32xf32>
    %260 = vector.broadcast %169 : vector<1x32xf32> to vector<8x32xf32>
    %261 = arith.addf %259, %260 : vector<8x32xf32>
    %262 = arith.addf %165, %261 : vector<8x32xf32>
    %c27 = arith.constant 27 : index
    %c0_85 = arith.constant 0 : index
    %263 = vector.load %arg2[%c27, %c0_85] : memref<64x128xf32, #tpu.memory_space<vmem>>, vector<1x32xf32>
    %c28 = arith.constant 28 : index
    %c0_86 = arith.constant 0 : index
    %264 = vector.load %arg2[%c28, %c0_86] : memref<64x128xf32, #tpu.memory_space<vmem>>, vector<1x32xf32>
    %cst_87 = arith.constant dense<0.000000e+00> : vector<8xf32>
    %265 = vector.multi_reduction <add>, %262, %cst_87 [1] : vector<8x32xf32> to vector<8xf32>
    %266 = vector.shape_cast %265 : vector<8xf32> to vector<8x1xf32>
    %cst_88 = arith.constant 3.200000e+01 : f32
    %267 = vector.broadcast %cst_88 : f32 to vector<8x1xf32>
    %268 = arith.divf %266, %267 : vector<8x1xf32>
    %269 = vector.broadcast %268 : vector<8x1xf32> to vector<8x32xf32>
    %270 = arith.subf %262, %269 : vector<8x32xf32>
    %271 = arith.mulf %270, %270 : vector<8x32xf32>
    %cst_89 = arith.constant dense<0.000000e+00> : vector<8xf32>
    %272 = vector.multi_reduction <add>, %271, %cst_89 [1] : vector<8x32xf32> to vector<8xf32>
    %273 = vector.shape_cast %272 : vector<8xf32> to vector<8x1xf32>
    %cst_90 = arith.constant 3.200000e+01 : f32
    %274 = vector.broadcast %cst_90 : f32 to vector<8x1xf32>
    %275 = arith.divf %273, %274 : vector<8x1xf32>
    %276 = vector.broadcast %268 : vector<8x1xf32> to vector<8x32xf32>
    %277 = arith.subf %262, %276 : vector<8x32xf32>
    %cst_91 = arith.constant 9.99999974E-6 : f32
    %278 = vector.broadcast %cst_91 : f32 to vector<8x1xf32>
    %279 = arith.addf %275, %278 : vector<8x1xf32>
    %280 = math.rsqrt %279 : vector<8x1xf32>
    %281 = vector.broadcast %280 : vector<8x1xf32> to vector<8x32xf32>
    %282 = arith.mulf %277, %281 : vector<8x32xf32>
    %283 = vector.broadcast %263 : vector<1x32xf32> to vector<8x32xf32>
    %284 = arith.mulf %282, %283 : vector<8x32xf32>
    %285 = vector.broadcast %264 : vector<1x32xf32> to vector<8x32xf32>
    %286 = arith.addf %284, %285 : vector<8x32xf32>
    %c0_92 = arith.constant 0 : index
    %c4608 = arith.constant 4608 : index
    %287 = vector.load %arg1[%c0_92, %c4608] : memref<32x18176xbf16, #tpu.memory_space<vmem>>, vector<32x2048xbf16>
    %c1 = arith.constant 1 : index
    %c0_93 = arith.constant 0 : index
    %288 = vector.load %arg3[%c1, %c0_93] : memref<8x2048xf32, #tpu.memory_space<vmem>>, vector<1x2048xf32>
    %c0_94 = arith.constant 0 : index
    %c6656 = arith.constant 6656 : index
    %289 = vector.load %arg1[%c0_94, %c6656] : memref<32x18176xbf16, #tpu.memory_space<vmem>>, vector<32x2048xbf16>
    %c29 = arith.constant 29 : index
    %c0_95 = arith.constant 0 : index
    %290 = vector.load %arg2[%c29, %c0_95] : memref<64x128xf32, #tpu.memory_space<vmem>>, vector<1x32xf32>
    %291 = arith.truncf %286 : vector<8x32xf32> to vector<8x32xbf16>
    %cst_96 = arith.constant dense<0.000000e+00> : vector<8x2048xf32>
    %292 = tpu.matmul %291, %287, %cst_96 {dimension_numbers = #tpu.dot_dimension_numbers<[1], [0], [0], [1], [0, 0, 1, 1], [], []>} : vector<8x32xbf16>, vector<32x2048xbf16>, vector<8x2048xf32> -> vector<8x2048xf32>
    %293 = vector.broadcast %288 : vector<1x2048xf32> to vector<8x2048xf32>
    %294 = arith.addf %292, %293 : vector<8x2048xf32>
    %cst_97 = arith.constant 0.000000e+00 : f32
    %295 = vector.broadcast %cst_97 : f32 to vector<8x2048xf32>
    %296 = arith.maximumf %294, %295 : vector<8x2048xf32>
    %297 = arith.truncf %296 : vector<8x2048xf32> to vector<8x2048xbf16>
    %cst_98 = arith.constant dense<0.000000e+00> : vector<8x32xf32>
    %298 = tpu.matmul %297, %289, %cst_98 {dimension_numbers = #tpu.dot_dimension_numbers<[1], [1], [0], [0], [0, 0, 1, 0], [], []>} : vector<8x2048xbf16>, vector<32x2048xbf16>, vector<8x32xf32> -> vector<8x32xf32>
    %299 = vector.broadcast %290 : vector<1x32xf32> to vector<8x32xf32>
    %300 = arith.addf %298, %299 : vector<8x32xf32>
    %301 = arith.addf %286, %300 : vector<8x32xf32>
    %c30 = arith.constant 30 : index
    %c0_99 = arith.constant 0 : index
    %302 = vector.load %arg2[%c30, %c0_99] : memref<64x128xf32, #tpu.memory_space<vmem>>, vector<1x32xf32>
    %c31 = arith.constant 31 : index
    %c0_100 = arith.constant 0 : index
    %303 = vector.load %arg2[%c31, %c0_100] : memref<64x128xf32, #tpu.memory_space<vmem>>, vector<1x32xf32>
    %cst_101 = arith.constant dense<0.000000e+00> : vector<8xf32>
    %304 = vector.multi_reduction <add>, %301, %cst_101 [1] : vector<8x32xf32> to vector<8xf32>
    %305 = vector.shape_cast %304 : vector<8xf32> to vector<8x1xf32>
    %cst_102 = arith.constant 3.200000e+01 : f32
    %306 = vector.broadcast %cst_102 : f32 to vector<8x1xf32>
    %307 = arith.divf %305, %306 : vector<8x1xf32>
    %308 = vector.broadcast %307 : vector<8x1xf32> to vector<8x32xf32>
    %309 = arith.subf %301, %308 : vector<8x32xf32>
    %310 = arith.mulf %309, %309 : vector<8x32xf32>
    %cst_103 = arith.constant dense<0.000000e+00> : vector<8xf32>
    %311 = vector.multi_reduction <add>, %310, %cst_103 [1] : vector<8x32xf32> to vector<8xf32>
    %312 = vector.shape_cast %311 : vector<8xf32> to vector<8x1xf32>
    %cst_104 = arith.constant 3.200000e+01 : f32
    %313 = vector.broadcast %cst_104 : f32 to vector<8x1xf32>
    %314 = arith.divf %312, %313 : vector<8x1xf32>
    %315 = vector.broadcast %307 : vector<8x1xf32> to vector<8x32xf32>
    %316 = arith.subf %301, %315 : vector<8x32xf32>
    %cst_105 = arith.constant 9.99999974E-6 : f32
    %317 = vector.broadcast %cst_105 : f32 to vector<8x1xf32>
    %318 = arith.addf %314, %317 : vector<8x1xf32>
    %319 = math.rsqrt %318 : vector<8x1xf32>
    %320 = vector.broadcast %319 : vector<8x1xf32> to vector<8x32xf32>
    %321 = arith.mulf %316, %320 : vector<8x32xf32>
    %322 = vector.broadcast %302 : vector<1x32xf32> to vector<8x32xf32>
    %323 = arith.mulf %321, %322 : vector<8x32xf32>
    %324 = vector.broadcast %303 : vector<1x32xf32> to vector<8x32xf32>
    %325 = arith.addf %323, %324 : vector<8x32xf32>
    %c32 = arith.constant 32 : index
    %c0_106 = arith.constant 0 : index
    %326 = vector.load %arg2[%c32, %c0_106] : memref<64x128xf32, #tpu.memory_space<vmem>>, vector<1x32xf32>
    %c33 = arith.constant 33 : index
    %c0_107 = arith.constant 0 : index
    %327 = vector.load %arg2[%c33, %c0_107] : memref<64x128xf32, #tpu.memory_space<vmem>>, vector<1x32xf32>
    %cst_108 = arith.constant dense<0.000000e+00> : vector<8xf32>
    %328 = vector.multi_reduction <add>, %325, %cst_108 [1] : vector<8x32xf32> to vector<8xf32>
    %329 = vector.shape_cast %328 : vector<8xf32> to vector<8x1xf32>
    %cst_109 = arith.constant 3.200000e+01 : f32
    %330 = vector.broadcast %cst_109 : f32 to vector<8x1xf32>
    %331 = arith.divf %329, %330 : vector<8x1xf32>
    %332 = vector.broadcast %331 : vector<8x1xf32> to vector<8x32xf32>
    %333 = arith.subf %325, %332 : vector<8x32xf32>
    %334 = arith.mulf %333, %333 : vector<8x32xf32>
    %cst_110 = arith.constant dense<0.000000e+00> : vector<8xf32>
    %335 = vector.multi_reduction <add>, %334, %cst_110 [1] : vector<8x32xf32> to vector<8xf32>
    %336 = vector.shape_cast %335 : vector<8xf32> to vector<8x1xf32>
    %cst_111 = arith.constant 3.200000e+01 : f32
    %337 = vector.broadcast %cst_111 : f32 to vector<8x1xf32>
    %338 = arith.divf %336, %337 : vector<8x1xf32>
    %339 = vector.broadcast %331 : vector<8x1xf32> to vector<8x32xf32>
    %340 = arith.subf %325, %339 : vector<8x32xf32>
    %cst_112 = arith.constant 9.99999974E-6 : f32
    %341 = vector.broadcast %cst_112 : f32 to vector<8x1xf32>
    %342 = arith.addf %338, %341 : vector<8x1xf32>
    %343 = math.rsqrt %342 : vector<8x1xf32>
    %344 = vector.broadcast %343 : vector<8x1xf32> to vector<8x32xf32>
    %345 = arith.mulf %340, %344 : vector<8x32xf32>
    %346 = vector.broadcast %326 : vector<1x32xf32> to vector<8x32xf32>
    %347 = arith.mulf %345, %346 : vector<8x32xf32>
    %348 = vector.broadcast %327 : vector<1x32xf32> to vector<8x32xf32>
    %349 = arith.addf %347, %348 : vector<8x32xf32>
    %c0_113 = arith.constant 0 : index
    %c8704 = arith.constant 8704 : index
    %350 = vector.load %arg1[%c0_113, %c8704] : memref<32x18176xbf16, #tpu.memory_space<vmem>>, vector<32x96xbf16>
    %c34 = arith.constant 34 : index
    %c0_114 = arith.constant 0 : index
    %351 = vector.load %arg2[%c34, %c0_114] : memref<64x128xf32, #tpu.memory_space<vmem>>, vector<1x96xf32>
    %c0_115 = arith.constant 0 : index
    %c8832 = arith.constant 8832 : index
    %352 = vector.load %arg1[%c0_115, %c8832] : memref<32x18176xbf16, #tpu.memory_space<vmem>>, vector<32x32xbf16>
    %c35 = arith.constant 35 : index
    %c0_116 = arith.constant 0 : index
    %353 = vector.load %arg2[%c35, %c0_116] : memref<64x128xf32, #tpu.memory_space<vmem>>, vector<1x32xf32>
    %354 = arith.truncf %5 : vector<8x32xf32> to vector<8x32xbf16>
    %cst_117 = arith.constant dense<0.000000e+00> : vector<8x96xf32>
    %355 = tpu.matmul %354, %350, %cst_117 {dimension_numbers = #tpu.dot_dimension_numbers<[1], [0], [0], [1], [0, 0, 1, 1], [], []>} : vector<8x32xbf16>, vector<32x96xbf16>, vector<8x96xf32> -> vector<8x96xf32>
    %356 = vector.broadcast %351 : vector<1x96xf32> to vector<8x96xf32>
    %357 = arith.addf %355, %356 : vector<8x96xf32>
    %358 = vector.extract_strided_slice %357 {offsets = [0, 0], sizes = [8, 32], strides = [1, 1]} : vector<8x96xf32> to vector<8x32xf32>
    %359 = vector.extract_strided_slice %357 {offsets = [0, 32], sizes = [8, 32], strides = [1, 1]} : vector<8x96xf32> to vector<8x32xf32>
    %360 = vector.extract_strided_slice %357 {offsets = [0, 64], sizes = [8, 32], strides = [1, 1]} : vector<8x96xf32> to vector<8x32xf32>
    %361 = vector.extract_strided_slice %358 {offsets = [0, 0], sizes = [8, 8], strides = [1, 1]} : vector<8x32xf32> to vector<8x8xf32>
    %362 = vector.extract_strided_slice %359 {offsets = [0, 0], sizes = [8, 8], strides = [1, 1]} : vector<8x32xf32> to vector<8x8xf32>
    %363 = vector.extract_strided_slice %360 {offsets = [0, 0], sizes = [8, 8], strides = [1, 1]} : vector<8x32xf32> to vector<8x8xf32>
    %cst_118 = arith.constant dense<0.000000e+00> : vector<8x8xf32>
    %364 = tpu.matmul %361, %362, %cst_118 {dimension_numbers = #tpu.dot_dimension_numbers<[1], [1], [0], [0], [0, 0, 1, 0], [], []>} : vector<8x8xf32>, vector<8x8xf32>, vector<8x8xf32> -> vector<8x8xf32>
    %cst_119 = arith.constant 0.353553385 : f32
    %365 = vector.broadcast %cst_119 : f32 to vector<8x8xf32>
    %366 = arith.mulf %364, %365 : vector<8x8xf32>
    %cst_120 = arith.constant dense<0xFF800000> : vector<8xf32>
    %367 = vector.multi_reduction <maximumf>, %366, %cst_120 [1] : vector<8x8xf32> to vector<8xf32>
    %368 = vector.shape_cast %367 : vector<8xf32> to vector<8x1xf32>
    %369 = vector.broadcast %368 : vector<8x1xf32> to vector<8x8xf32>
    %370 = arith.subf %366, %369 : vector<8x8xf32>
    %371 = math.exp %370 : vector<8x8xf32>
    %cst_121 = arith.constant dense<0.000000e+00> : vector<8xf32>
    %372 = vector.multi_reduction <add>, %371, %cst_121 [1] : vector<8x8xf32> to vector<8xf32>
    %373 = vector.shape_cast %372 : vector<8xf32> to vector<8x1xf32>
    %374 = tpu.reciprocal %373 {approx = true} : vector<8x1xf32> -> vector<8x1xf32>
    %375 = vector.broadcast %374 : vector<8x1xf32> to vector<8x8xf32>
    %376 = arith.mulf %371, %375 : vector<8x8xf32>
    %cst_122 = arith.constant dense<0.000000e+00> : vector<8x8xf32>
    %377 = tpu.matmul %376, %363, %cst_122 {dimension_numbers = #tpu.dot_dimension_numbers<[1], [0], [0], [1], [0, 0, 1, 1], [], []>} : vector<8x8xf32>, vector<8x8xf32>, vector<8x8xf32> -> vector<8x8xf32>
    %378 = vector.extract_strided_slice %352 {offsets = [0, 0], sizes = [8, 32], strides = [1, 1]} : vector<32x32xbf16> to vector<8x32xbf16>
    %379 = arith.truncf %377 : vector<8x8xf32> to vector<8x8xbf16>
    %cst_123 = arith.constant dense<0.000000e+00> : vector<8x32xf32>
    %380 = tpu.matmul %379, %378, %cst_123 {dimension_numbers = #tpu.dot_dimension_numbers<[1], [0], [0], [1], [0, 0, 1, 1], [], []>} : vector<8x8xbf16>, vector<8x32xbf16>, vector<8x32xf32> -> vector<8x32xf32>
    %381 = vector.extract_strided_slice %358 {offsets = [0, 8], sizes = [8, 8], strides = [1, 1]} : vector<8x32xf32> to vector<8x8xf32>
    %382 = vector.extract_strided_slice %359 {offsets = [0, 8], sizes = [8, 8], strides = [1, 1]} : vector<8x32xf32> to vector<8x8xf32>
    %383 = vector.extract_strided_slice %360 {offsets = [0, 8], sizes = [8, 8], strides = [1, 1]} : vector<8x32xf32> to vector<8x8xf32>
    %cst_124 = arith.constant dense<0.000000e+00> : vector<8x8xf32>
    %384 = tpu.matmul %381, %382, %cst_124 {dimension_numbers = #tpu.dot_dimension_numbers<[1], [1], [0], [0], [0, 0, 1, 0], [], []>} : vector<8x8xf32>, vector<8x8xf32>, vector<8x8xf32> -> vector<8x8xf32>
    %cst_125 = arith.constant 0.353553385 : f32
    %385 = vector.broadcast %cst_125 : f32 to vector<8x8xf32>
    %386 = arith.mulf %384, %385 : vector<8x8xf32>
    %cst_126 = arith.constant dense<0xFF800000> : vector<8xf32>
    %387 = vector.multi_reduction <maximumf>, %386, %cst_126 [1] : vector<8x8xf32> to vector<8xf32>
    %388 = vector.shape_cast %387 : vector<8xf32> to vector<8x1xf32>
    %389 = vector.broadcast %388 : vector<8x1xf32> to vector<8x8xf32>
    %390 = arith.subf %386, %389 : vector<8x8xf32>
    %391 = math.exp %390 : vector<8x8xf32>
    %cst_127 = arith.constant dense<0.000000e+00> : vector<8xf32>
    %392 = vector.multi_reduction <add>, %391, %cst_127 [1] : vector<8x8xf32> to vector<8xf32>
    %393 = vector.shape_cast %392 : vector<8xf32> to vector<8x1xf32>
    %394 = tpu.reciprocal %393 {approx = true} : vector<8x1xf32> -> vector<8x1xf32>
    %395 = vector.broadcast %394 : vector<8x1xf32> to vector<8x8xf32>
    %396 = arith.mulf %391, %395 : vector<8x8xf32>
    %cst_128 = arith.constant dense<0.000000e+00> : vector<8x8xf32>
    %397 = tpu.matmul %396, %383, %cst_128 {dimension_numbers = #tpu.dot_dimension_numbers<[1], [0], [0], [1], [0, 0, 1, 1], [], []>} : vector<8x8xf32>, vector<8x8xf32>, vector<8x8xf32> -> vector<8x8xf32>
    %398 = vector.extract_strided_slice %352 {offsets = [8, 0], sizes = [8, 32], strides = [1, 1]} : vector<32x32xbf16> to vector<8x32xbf16>
    %399 = arith.truncf %397 : vector<8x8xf32> to vector<8x8xbf16>
    %cst_129 = arith.constant dense<0.000000e+00> : vector<8x32xf32>
    %400 = tpu.matmul %399, %398, %cst_129 {dimension_numbers = #tpu.dot_dimension_numbers<[1], [0], [0], [1], [0, 0, 1, 1], [], []>} : vector<8x8xbf16>, vector<8x32xbf16>, vector<8x32xf32> -> vector<8x32xf32>
    %401 = arith.addf %380, %400 : vector<8x32xf32>
    %402 = vector.extract_strided_slice %358 {offsets = [0, 16], sizes = [8, 8], strides = [1, 1]} : vector<8x32xf32> to vector<8x8xf32>
    %403 = vector.extract_strided_slice %359 {offsets = [0, 16], sizes = [8, 8], strides = [1, 1]} : vector<8x32xf32> to vector<8x8xf32>
    %404 = vector.extract_strided_slice %360 {offsets = [0, 16], sizes = [8, 8], strides = [1, 1]} : vector<8x32xf32> to vector<8x8xf32>
    %cst_130 = arith.constant dense<0.000000e+00> : vector<8x8xf32>
    %405 = tpu.matmul %402, %403, %cst_130 {dimension_numbers = #tpu.dot_dimension_numbers<[1], [1], [0], [0], [0, 0, 1, 0], [], []>} : vector<8x8xf32>, vector<8x8xf32>, vector<8x8xf32> -> vector<8x8xf32>
    %cst_131 = arith.constant 0.353553385 : f32
    %406 = vector.broadcast %cst_131 : f32 to vector<8x8xf32>
    %407 = arith.mulf %405, %406 : vector<8x8xf32>
    %cst_132 = arith.constant dense<0xFF800000> : vector<8xf32>
    %408 = vector.multi_reduction <maximumf>, %407, %cst_132 [1] : vector<8x8xf32> to vector<8xf32>
    %409 = vector.shape_cast %408 : vector<8xf32> to vector<8x1xf32>
    %410 = vector.broadcast %409 : vector<8x1xf32> to vector<8x8xf32>
    %411 = arith.subf %407, %410 : vector<8x8xf32>
    %412 = math.exp %411 : vector<8x8xf32>
    %cst_133 = arith.constant dense<0.000000e+00> : vector<8xf32>
    %413 = vector.multi_reduction <add>, %412, %cst_133 [1] : vector<8x8xf32> to vector<8xf32>
    %414 = vector.shape_cast %413 : vector<8xf32> to vector<8x1xf32>
    %415 = tpu.reciprocal %414 {approx = true} : vector<8x1xf32> -> vector<8x1xf32>
    %416 = vector.broadcast %415 : vector<8x1xf32> to vector<8x8xf32>
    %417 = arith.mulf %412, %416 : vector<8x8xf32>
    %cst_134 = arith.constant dense<0.000000e+00> : vector<8x8xf32>
    %418 = tpu.matmul %417, %404, %cst_134 {dimension_numbers = #tpu.dot_dimension_numbers<[1], [0], [0], [1], [0, 0, 1, 1], [], []>} : vector<8x8xf32>, vector<8x8xf32>, vector<8x8xf32> -> vector<8x8xf32>
    %419 = vector.extract_strided_slice %352 {offsets = [16, 0], sizes = [8, 32], strides = [1, 1]} : vector<32x32xbf16> to vector<8x32xbf16>
    %420 = arith.truncf %418 : vector<8x8xf32> to vector<8x8xbf16>
    %cst_135 = arith.constant dense<0.000000e+00> : vector<8x32xf32>
    %421 = tpu.matmul %420, %419, %cst_135 {dimension_numbers = #tpu.dot_dimension_numbers<[1], [0], [0], [1], [0, 0, 1, 1], [], []>} : vector<8x8xbf16>, vector<8x32xbf16>, vector<8x32xf32> -> vector<8x32xf32>
    %422 = arith.addf %401, %421 : vector<8x32xf32>
    %423 = vector.extract_strided_slice %358 {offsets = [0, 24], sizes = [8, 8], strides = [1, 1]} : vector<8x32xf32> to vector<8x8xf32>
    %424 = vector.extract_strided_slice %359 {offsets = [0, 24], sizes = [8, 8], strides = [1, 1]} : vector<8x32xf32> to vector<8x8xf32>
    %425 = vector.extract_strided_slice %360 {offsets = [0, 24], sizes = [8, 8], strides = [1, 1]} : vector<8x32xf32> to vector<8x8xf32>
    %cst_136 = arith.constant dense<0.000000e+00> : vector<8x8xf32>
    %426 = tpu.matmul %423, %424, %cst_136 {dimension_numbers = #tpu.dot_dimension_numbers<[1], [1], [0], [0], [0, 0, 1, 0], [], []>} : vector<8x8xf32>, vector<8x8xf32>, vector<8x8xf32> -> vector<8x8xf32>
    %cst_137 = arith.constant 0.353553385 : f32
    %427 = vector.broadcast %cst_137 : f32 to vector<8x8xf32>
    %428 = arith.mulf %426, %427 : vector<8x8xf32>
    %cst_138 = arith.constant dense<0xFF800000> : vector<8xf32>
    %429 = vector.multi_reduction <maximumf>, %428, %cst_138 [1] : vector<8x8xf32> to vector<8xf32>
    %430 = vector.shape_cast %429 : vector<8xf32> to vector<8x1xf32>
    %431 = vector.broadcast %430 : vector<8x1xf32> to vector<8x8xf32>
    %432 = arith.subf %428, %431 : vector<8x8xf32>
    %433 = math.exp %432 : vector<8x8xf32>
    %cst_139 = arith.constant dense<0.000000e+00> : vector<8xf32>
    %434 = vector.multi_reduction <add>, %433, %cst_139 [1] : vector<8x8xf32> to vector<8xf32>
    %435 = vector.shape_cast %434 : vector<8xf32> to vector<8x1xf32>
    %436 = tpu.reciprocal %435 {approx = true} : vector<8x1xf32> -> vector<8x1xf32>
    %437 = vector.broadcast %436 : vector<8x1xf32> to vector<8x8xf32>
    %438 = arith.mulf %433, %437 : vector<8x8xf32>
    %cst_140 = arith.constant dense<0.000000e+00> : vector<8x8xf32>
    %439 = tpu.matmul %438, %425, %cst_140 {dimension_numbers = #tpu.dot_dimension_numbers<[1], [0], [0], [1], [0, 0, 1, 1], [], []>} : vector<8x8xf32>, vector<8x8xf32>, vector<8x8xf32> -> vector<8x8xf32>
    %440 = vector.extract_strided_slice %352 {offsets = [24, 0], sizes = [8, 32], strides = [1, 1]} : vector<32x32xbf16> to vector<8x32xbf16>
    %441 = arith.truncf %439 : vector<8x8xf32> to vector<8x8xbf16>
    %cst_141 = arith.constant dense<0.000000e+00> : vector<8x32xf32>
    %442 = tpu.matmul %441, %440, %cst_141 {dimension_numbers = #tpu.dot_dimension_numbers<[1], [0], [0], [1], [0, 0, 1, 1], [], []>} : vector<8x8xbf16>, vector<8x32xbf16>, vector<8x32xf32> -> vector<8x32xf32>
    %443 = arith.addf %422, %442 : vector<8x32xf32>
    %444 = vector.broadcast %353 : vector<1x32xf32> to vector<8x32xf32>
    %445 = arith.addf %443, %444 : vector<8x32xf32>
    %446 = arith.addf %5, %445 : vector<8x32xf32>
    %c36 = arith.constant 36 : index
    %c0_142 = arith.constant 0 : index
    %447 = vector.load %arg2[%c36, %c0_142] : memref<64x128xf32, #tpu.memory_space<vmem>>, vector<1x32xf32>
    %c37 = arith.constant 37 : index
    %c0_143 = arith.constant 0 : index
    %448 = vector.load %arg2[%c37, %c0_143] : memref<64x128xf32, #tpu.memory_space<vmem>>, vector<1x32xf32>
    %cst_144 = arith.constant dense<0.000000e+00> : vector<8xf32>
    %449 = vector.multi_reduction <add>, %446, %cst_144 [1] : vector<8x32xf32> to vector<8xf32>
    %450 = vector.shape_cast %449 : vector<8xf32> to vector<8x1xf32>
    %cst_145 = arith.constant 3.200000e+01 : f32
    %451 = vector.broadcast %cst_145 : f32 to vector<8x1xf32>
    %452 = arith.divf %450, %451 : vector<8x1xf32>
    %453 = vector.broadcast %452 : vector<8x1xf32> to vector<8x32xf32>
    %454 = arith.subf %446, %453 : vector<8x32xf32>
    %455 = arith.mulf %454, %454 : vector<8x32xf32>
    %cst_146 = arith.constant dense<0.000000e+00> : vector<8xf32>
    %456 = vector.multi_reduction <add>, %455, %cst_146 [1] : vector<8x32xf32> to vector<8xf32>
    %457 = vector.shape_cast %456 : vector<8xf32> to vector<8x1xf32>
    %cst_147 = arith.constant 3.200000e+01 : f32
    %458 = vector.broadcast %cst_147 : f32 to vector<8x1xf32>
    %459 = arith.divf %457, %458 : vector<8x1xf32>
    %460 = vector.broadcast %452 : vector<8x1xf32> to vector<8x32xf32>
    %461 = arith.subf %446, %460 : vector<8x32xf32>
    %cst_148 = arith.constant 9.99999974E-6 : f32
    %462 = vector.broadcast %cst_148 : f32 to vector<8x1xf32>
    %463 = arith.addf %459, %462 : vector<8x1xf32>
    %464 = math.rsqrt %463 : vector<8x1xf32>
    %465 = vector.broadcast %464 : vector<8x1xf32> to vector<8x32xf32>
    %466 = arith.mulf %461, %465 : vector<8x32xf32>
    %467 = vector.broadcast %447 : vector<1x32xf32> to vector<8x32xf32>
    %468 = arith.mulf %466, %467 : vector<8x32xf32>
    %469 = vector.broadcast %448 : vector<1x32xf32> to vector<8x32xf32>
    %470 = arith.addf %468, %469 : vector<8x32xf32>
    %c0_149 = arith.constant 0 : index
    %c8960 = arith.constant 8960 : index
    %471 = vector.load %arg1[%c0_149, %c8960] : memref<32x18176xbf16, #tpu.memory_space<vmem>>, vector<32x32xbf16>
    %c38 = arith.constant 38 : index
    %c0_150 = arith.constant 0 : index
    %472 = vector.load %arg2[%c38, %c0_150] : memref<64x128xf32, #tpu.memory_space<vmem>>, vector<1x32xf32>
    %c0_151 = arith.constant 0 : index
    %c9088 = arith.constant 9088 : index
    %473 = vector.load %arg1[%c0_151, %c9088] : memref<32x18176xbf16, #tpu.memory_space<vmem>>, vector<32x64xbf16>
    %c39 = arith.constant 39 : index
    %c0_152 = arith.constant 0 : index
    %474 = vector.load %arg2[%c39, %c0_152] : memref<64x128xf32, #tpu.memory_space<vmem>>, vector<1x64xf32>
    %c0_153 = arith.constant 0 : index
    %c9216 = arith.constant 9216 : index
    %475 = vector.load %arg1[%c0_153, %c9216] : memref<32x18176xbf16, #tpu.memory_space<vmem>>, vector<32x32xbf16>
    %c40 = arith.constant 40 : index
    %c0_154 = arith.constant 0 : index
    %476 = vector.load %arg2[%c40, %c0_154] : memref<64x128xf32, #tpu.memory_space<vmem>>, vector<1x32xf32>
    %477 = arith.truncf %470 : vector<8x32xf32> to vector<8x32xbf16>
    %cst_155 = arith.constant dense<0.000000e+00> : vector<8x32xf32>
    %478 = tpu.matmul %477, %471, %cst_155 {dimension_numbers = #tpu.dot_dimension_numbers<[1], [0], [0], [1], [0, 0, 1, 1], [], []>} : vector<8x32xbf16>, vector<32x32xbf16>, vector<8x32xf32> -> vector<8x32xf32>
    %479 = vector.broadcast %472 : vector<1x32xf32> to vector<8x32xf32>
    %480 = arith.addf %478, %479 : vector<8x32xf32>
    %481 = arith.truncf %349 : vector<8x32xf32> to vector<8x32xbf16>
    %cst_156 = arith.constant dense<0.000000e+00> : vector<8x64xf32>
    %482 = tpu.matmul %481, %473, %cst_156 {dimension_numbers = #tpu.dot_dimension_numbers<[1], [0], [0], [1], [0, 0, 1, 1], [], []>} : vector<8x32xbf16>, vector<32x64xbf16>, vector<8x64xf32> -> vector<8x64xf32>
    %483 = vector.broadcast %474 : vector<1x64xf32> to vector<8x64xf32>
    %484 = arith.addf %482, %483 : vector<8x64xf32>
    %485 = vector.extract_strided_slice %484 {offsets = [0, 0], sizes = [8, 32], strides = [1, 1]} : vector<8x64xf32> to vector<8x32xf32>
    %486 = vector.extract_strided_slice %484 {offsets = [0, 32], sizes = [8, 32], strides = [1, 1]} : vector<8x64xf32> to vector<8x32xf32>
    %487 = vector.extract_strided_slice %480 {offsets = [0, 0], sizes = [8, 8], strides = [1, 1]} : vector<8x32xf32> to vector<8x8xf32>
    %488 = vector.extract_strided_slice %485 {offsets = [0, 0], sizes = [8, 8], strides = [1, 1]} : vector<8x32xf32> to vector<8x8xf32>
    %489 = vector.extract_strided_slice %486 {offsets = [0, 0], sizes = [8, 8], strides = [1, 1]} : vector<8x32xf32> to vector<8x8xf32>
    %cst_157 = arith.constant dense<0.000000e+00> : vector<8x8xf32>
    %490 = tpu.matmul %487, %488, %cst_157 {dimension_numbers = #tpu.dot_dimension_numbers<[1], [1], [0], [0], [0, 0, 1, 0], [], []>} : vector<8x8xf32>, vector<8x8xf32>, vector<8x8xf32> -> vector<8x8xf32>
    %cst_158 = arith.constant 0.353553385 : f32
    %491 = vector.broadcast %cst_158 : f32 to vector<8x8xf32>
    %492 = arith.mulf %490, %491 : vector<8x8xf32>
    %cst_159 = arith.constant dense<0xFF800000> : vector<8xf32>
    %493 = vector.multi_reduction <maximumf>, %492, %cst_159 [1] : vector<8x8xf32> to vector<8xf32>
    %494 = vector.shape_cast %493 : vector<8xf32> to vector<8x1xf32>
    %495 = vector.broadcast %494 : vector<8x1xf32> to vector<8x8xf32>
    %496 = arith.subf %492, %495 : vector<8x8xf32>
    %497 = math.exp %496 : vector<8x8xf32>
    %cst_160 = arith.constant dense<0.000000e+00> : vector<8xf32>
    %498 = vector.multi_reduction <add>, %497, %cst_160 [1] : vector<8x8xf32> to vector<8xf32>
    %499 = vector.shape_cast %498 : vector<8xf32> to vector<8x1xf32>
    %500 = tpu.reciprocal %499 {approx = true} : vector<8x1xf32> -> vector<8x1xf32>
    %501 = vector.broadcast %500 : vector<8x1xf32> to vector<8x8xf32>
    %502 = arith.mulf %497, %501 : vector<8x8xf32>
    %cst_161 = arith.constant dense<0.000000e+00> : vector<8x8xf32>
    %503 = tpu.matmul %502, %489, %cst_161 {dimension_numbers = #tpu.dot_dimension_numbers<[1], [0], [0], [1], [0, 0, 1, 1], [], []>} : vector<8x8xf32>, vector<8x8xf32>, vector<8x8xf32> -> vector<8x8xf32>
    %504 = vector.extract_strided_slice %475 {offsets = [0, 0], sizes = [8, 32], strides = [1, 1]} : vector<32x32xbf16> to vector<8x32xbf16>
    %505 = arith.truncf %503 : vector<8x8xf32> to vector<8x8xbf16>
    %cst_162 = arith.constant dense<0.000000e+00> : vector<8x32xf32>
    %506 = tpu.matmul %505, %504, %cst_162 {dimension_numbers = #tpu.dot_dimension_numbers<[1], [0], [0], [1], [0, 0, 1, 1], [], []>} : vector<8x8xbf16>, vector<8x32xbf16>, vector<8x32xf32> -> vector<8x32xf32>
    %507 = vector.extract_strided_slice %480 {offsets = [0, 8], sizes = [8, 8], strides = [1, 1]} : vector<8x32xf32> to vector<8x8xf32>
    %508 = vector.extract_strided_slice %485 {offsets = [0, 8], sizes = [8, 8], strides = [1, 1]} : vector<8x32xf32> to vector<8x8xf32>
    %509 = vector.extract_strided_slice %486 {offsets = [0, 8], sizes = [8, 8], strides = [1, 1]} : vector<8x32xf32> to vector<8x8xf32>
    %cst_163 = arith.constant dense<0.000000e+00> : vector<8x8xf32>
    %510 = tpu.matmul %507, %508, %cst_163 {dimension_numbers = #tpu.dot_dimension_numbers<[1], [1], [0], [0], [0, 0, 1, 0], [], []>} : vector<8x8xf32>, vector<8x8xf32>, vector<8x8xf32> -> vector<8x8xf32>
    %cst_164 = arith.constant 0.353553385 : f32
    %511 = vector.broadcast %cst_164 : f32 to vector<8x8xf32>
    %512 = arith.mulf %510, %511 : vector<8x8xf32>
    %cst_165 = arith.constant dense<0xFF800000> : vector<8xf32>
    %513 = vector.multi_reduction <maximumf>, %512, %cst_165 [1] : vector<8x8xf32> to vector<8xf32>
    %514 = vector.shape_cast %513 : vector<8xf32> to vector<8x1xf32>
    %515 = vector.broadcast %514 : vector<8x1xf32> to vector<8x8xf32>
    %516 = arith.subf %512, %515 : vector<8x8xf32>
    %517 = math.exp %516 : vector<8x8xf32>
    %cst_166 = arith.constant dense<0.000000e+00> : vector<8xf32>
    %518 = vector.multi_reduction <add>, %517, %cst_166 [1] : vector<8x8xf32> to vector<8xf32>
    %519 = vector.shape_cast %518 : vector<8xf32> to vector<8x1xf32>
    %520 = tpu.reciprocal %519 {approx = true} : vector<8x1xf32> -> vector<8x1xf32>
    %521 = vector.broadcast %520 : vector<8x1xf32> to vector<8x8xf32>
    %522 = arith.mulf %517, %521 : vector<8x8xf32>
    %cst_167 = arith.constant dense<0.000000e+00> : vector<8x8xf32>
    %523 = tpu.matmul %522, %509, %cst_167 {dimension_numbers = #tpu.dot_dimension_numbers<[1], [0], [0], [1], [0, 0, 1, 1], [], []>} : vector<8x8xf32>, vector<8x8xf32>, vector<8x8xf32> -> vector<8x8xf32>
    %524 = vector.extract_strided_slice %475 {offsets = [8, 0], sizes = [8, 32], strides = [1, 1]} : vector<32x32xbf16> to vector<8x32xbf16>
    %525 = arith.truncf %523 : vector<8x8xf32> to vector<8x8xbf16>
    %cst_168 = arith.constant dense<0.000000e+00> : vector<8x32xf32>
    %526 = tpu.matmul %525, %524, %cst_168 {dimension_numbers = #tpu.dot_dimension_numbers<[1], [0], [0], [1], [0, 0, 1, 1], [], []>} : vector<8x8xbf16>, vector<8x32xbf16>, vector<8x32xf32> -> vector<8x32xf32>
    %527 = arith.addf %506, %526 : vector<8x32xf32>
    %528 = vector.extract_strided_slice %480 {offsets = [0, 16], sizes = [8, 8], strides = [1, 1]} : vector<8x32xf32> to vector<8x8xf32>
    %529 = vector.extract_strided_slice %485 {offsets = [0, 16], sizes = [8, 8], strides = [1, 1]} : vector<8x32xf32> to vector<8x8xf32>
    %530 = vector.extract_strided_slice %486 {offsets = [0, 16], sizes = [8, 8], strides = [1, 1]} : vector<8x32xf32> to vector<8x8xf32>
    %cst_169 = arith.constant dense<0.000000e+00> : vector<8x8xf32>
    %531 = tpu.matmul %528, %529, %cst_169 {dimension_numbers = #tpu.dot_dimension_numbers<[1], [1], [0], [0], [0, 0, 1, 0], [], []>} : vector<8x8xf32>, vector<8x8xf32>, vector<8x8xf32> -> vector<8x8xf32>
    %cst_170 = arith.constant 0.353553385 : f32
    %532 = vector.broadcast %cst_170 : f32 to vector<8x8xf32>
    %533 = arith.mulf %531, %532 : vector<8x8xf32>
    %cst_171 = arith.constant dense<0xFF800000> : vector<8xf32>
    %534 = vector.multi_reduction <maximumf>, %533, %cst_171 [1] : vector<8x8xf32> to vector<8xf32>
    %535 = vector.shape_cast %534 : vector<8xf32> to vector<8x1xf32>
    %536 = vector.broadcast %535 : vector<8x1xf32> to vector<8x8xf32>
    %537 = arith.subf %533, %536 : vector<8x8xf32>
    %538 = math.exp %537 : vector<8x8xf32>
    %cst_172 = arith.constant dense<0.000000e+00> : vector<8xf32>
    %539 = vector.multi_reduction <add>, %538, %cst_172 [1] : vector<8x8xf32> to vector<8xf32>
    %540 = vector.shape_cast %539 : vector<8xf32> to vector<8x1xf32>
    %541 = tpu.reciprocal %540 {approx = true} : vector<8x1xf32> -> vector<8x1xf32>
    %542 = vector.broadcast %541 : vector<8x1xf32> to vector<8x8xf32>
    %543 = arith.mulf %538, %542 : vector<8x8xf32>
    %cst_173 = arith.constant dense<0.000000e+00> : vector<8x8xf32>
    %544 = tpu.matmul %543, %530, %cst_173 {dimension_numbers = #tpu.dot_dimension_numbers<[1], [0], [0], [1], [0, 0, 1, 1], [], []>} : vector<8x8xf32>, vector<8x8xf32>, vector<8x8xf32> -> vector<8x8xf32>
    %545 = vector.extract_strided_slice %475 {offsets = [16, 0], sizes = [8, 32], strides = [1, 1]} : vector<32x32xbf16> to vector<8x32xbf16>
    %546 = arith.truncf %544 : vector<8x8xf32> to vector<8x8xbf16>
    %cst_174 = arith.constant dense<0.000000e+00> : vector<8x32xf32>
    %547 = tpu.matmul %546, %545, %cst_174 {dimension_numbers = #tpu.dot_dimension_numbers<[1], [0], [0], [1], [0, 0, 1, 1], [], []>} : vector<8x8xbf16>, vector<8x32xbf16>, vector<8x32xf32> -> vector<8x32xf32>
    %548 = arith.addf %527, %547 : vector<8x32xf32>
    %549 = vector.extract_strided_slice %480 {offsets = [0, 24], sizes = [8, 8], strides = [1, 1]} : vector<8x32xf32> to vector<8x8xf32>
    %550 = vector.extract_strided_slice %485 {offsets = [0, 24], sizes = [8, 8], strides = [1, 1]} : vector<8x32xf32> to vector<8x8xf32>
    %551 = vector.extract_strided_slice %486 {offsets = [0, 24], sizes = [8, 8], strides = [1, 1]} : vector<8x32xf32> to vector<8x8xf32>
    %cst_175 = arith.constant dense<0.000000e+00> : vector<8x8xf32>
    %552 = tpu.matmul %549, %550, %cst_175 {dimension_numbers = #tpu.dot_dimension_numbers<[1], [1], [0], [0], [0, 0, 1, 0], [], []>} : vector<8x8xf32>, vector<8x8xf32>, vector<8x8xf32> -> vector<8x8xf32>
    %cst_176 = arith.constant 0.353553385 : f32
    %553 = vector.broadcast %cst_176 : f32 to vector<8x8xf32>
    %554 = arith.mulf %552, %553 : vector<8x8xf32>
    %cst_177 = arith.constant dense<0xFF800000> : vector<8xf32>
    %555 = vector.multi_reduction <maximumf>, %554, %cst_177 [1] : vector<8x8xf32> to vector<8xf32>
    %556 = vector.shape_cast %555 : vector<8xf32> to vector<8x1xf32>
    %557 = vector.broadcast %556 : vector<8x1xf32> to vector<8x8xf32>
    %558 = arith.subf %554, %557 : vector<8x8xf32>
    %559 = math.exp %558 : vector<8x8xf32>
    %cst_178 = arith.constant dense<0.000000e+00> : vector<8xf32>
    %560 = vector.multi_reduction <add>, %559, %cst_178 [1] : vector<8x8xf32> to vector<8xf32>
    %561 = vector.shape_cast %560 : vector<8xf32> to vector<8x1xf32>
    %562 = tpu.reciprocal %561 {approx = true} : vector<8x1xf32> -> vector<8x1xf32>
    %563 = vector.broadcast %562 : vector<8x1xf32> to vector<8x8xf32>
    %564 = arith.mulf %559, %563 : vector<8x8xf32>
    %cst_179 = arith.constant dense<0.000000e+00> : vector<8x8xf32>
    %565 = tpu.matmul %564, %551, %cst_179 {dimension_numbers = #tpu.dot_dimension_numbers<[1], [0], [0], [1], [0, 0, 1, 1], [], []>} : vector<8x8xf32>, vector<8x8xf32>, vector<8x8xf32> -> vector<8x8xf32>
    %566 = vector.extract_strided_slice %475 {offsets = [24, 0], sizes = [8, 32], strides = [1, 1]} : vector<32x32xbf16> to vector<8x32xbf16>
    %567 = arith.truncf %565 : vector<8x8xf32> to vector<8x8xbf16>
    %cst_180 = arith.constant dense<0.000000e+00> : vector<8x32xf32>
    %568 = tpu.matmul %567, %566, %cst_180 {dimension_numbers = #tpu.dot_dimension_numbers<[1], [0], [0], [1], [0, 0, 1, 1], [], []>} : vector<8x8xbf16>, vector<8x32xbf16>, vector<8x32xf32> -> vector<8x32xf32>
    %569 = arith.addf %548, %568 : vector<8x32xf32>
    %570 = vector.broadcast %476 : vector<1x32xf32> to vector<8x32xf32>
    %571 = arith.addf %569, %570 : vector<8x32xf32>
    %572 = arith.addf %470, %571 : vector<8x32xf32>
    %c41 = arith.constant 41 : index
    %c0_181 = arith.constant 0 : index
    %573 = vector.load %arg2[%c41, %c0_181] : memref<64x128xf32, #tpu.memory_space<vmem>>, vector<1x32xf32>
    %c42 = arith.constant 42 : index
    %c0_182 = arith.constant 0 : index
    %574 = vector.load %arg2[%c42, %c0_182] : memref<64x128xf32, #tpu.memory_space<vmem>>, vector<1x32xf32>
    %cst_183 = arith.constant dense<0.000000e+00> : vector<8xf32>
    %575 = vector.multi_reduction <add>, %572, %cst_183 [1] : vector<8x32xf32> to vector<8xf32>
    %576 = vector.shape_cast %575 : vector<8xf32> to vector<8x1xf32>
    %cst_184 = arith.constant 3.200000e+01 : f32
    %577 = vector.broadcast %cst_184 : f32 to vector<8x1xf32>
    %578 = arith.divf %576, %577 : vector<8x1xf32>
    %579 = vector.broadcast %578 : vector<8x1xf32> to vector<8x32xf32>
    %580 = arith.subf %572, %579 : vector<8x32xf32>
    %581 = arith.mulf %580, %580 : vector<8x32xf32>
    %cst_185 = arith.constant dense<0.000000e+00> : vector<8xf32>
    %582 = vector.multi_reduction <add>, %581, %cst_185 [1] : vector<8x32xf32> to vector<8xf32>
    %583 = vector.shape_cast %582 : vector<8xf32> to vector<8x1xf32>
    %cst_186 = arith.constant 3.200000e+01 : f32
    %584 = vector.broadcast %cst_186 : f32 to vector<8x1xf32>
    %585 = arith.divf %583, %584 : vector<8x1xf32>
    %586 = vector.broadcast %578 : vector<8x1xf32> to vector<8x32xf32>
    %587 = arith.subf %572, %586 : vector<8x32xf32>
    %cst_187 = arith.constant 9.99999974E-6 : f32
    %588 = vector.broadcast %cst_187 : f32 to vector<8x1xf32>
    %589 = arith.addf %585, %588 : vector<8x1xf32>
    %590 = math.rsqrt %589 : vector<8x1xf32>
    %591 = vector.broadcast %590 : vector<8x1xf32> to vector<8x32xf32>
    %592 = arith.mulf %587, %591 : vector<8x32xf32>
    %593 = vector.broadcast %573 : vector<1x32xf32> to vector<8x32xf32>
    %594 = arith.mulf %592, %593 : vector<8x32xf32>
    %595 = vector.broadcast %574 : vector<1x32xf32> to vector<8x32xf32>
    %596 = arith.addf %594, %595 : vector<8x32xf32>
    %c0_188 = arith.constant 0 : index
    %c9344 = arith.constant 9344 : index
    %597 = vector.load %arg1[%c0_188, %c9344] : memref<32x18176xbf16, #tpu.memory_space<vmem>>, vector<32x2048xbf16>
    %c2 = arith.constant 2 : index
    %c0_189 = arith.constant 0 : index
    %598 = vector.load %arg3[%c2, %c0_189] : memref<8x2048xf32, #tpu.memory_space<vmem>>, vector<1x2048xf32>
    %c0_190 = arith.constant 0 : index
    %c11392 = arith.constant 11392 : index
    %599 = vector.load %arg1[%c0_190, %c11392] : memref<32x18176xbf16, #tpu.memory_space<vmem>>, vector<32x2048xbf16>
    %c43 = arith.constant 43 : index
    %c0_191 = arith.constant 0 : index
    %600 = vector.load %arg2[%c43, %c0_191] : memref<64x128xf32, #tpu.memory_space<vmem>>, vector<1x32xf32>
    %601 = arith.truncf %596 : vector<8x32xf32> to vector<8x32xbf16>
    %cst_192 = arith.constant dense<0.000000e+00> : vector<8x2048xf32>
    %602 = tpu.matmul %601, %597, %cst_192 {dimension_numbers = #tpu.dot_dimension_numbers<[1], [0], [0], [1], [0, 0, 1, 1], [], []>} : vector<8x32xbf16>, vector<32x2048xbf16>, vector<8x2048xf32> -> vector<8x2048xf32>
    %603 = vector.broadcast %598 : vector<1x2048xf32> to vector<8x2048xf32>
    %604 = arith.addf %602, %603 : vector<8x2048xf32>
    %cst_193 = arith.constant 0.000000e+00 : f32
    %605 = vector.broadcast %cst_193 : f32 to vector<8x2048xf32>
    %606 = arith.maximumf %604, %605 : vector<8x2048xf32>
    %607 = arith.truncf %606 : vector<8x2048xf32> to vector<8x2048xbf16>
    %cst_194 = arith.constant dense<0.000000e+00> : vector<8x32xf32>
    %608 = tpu.matmul %607, %599, %cst_194 {dimension_numbers = #tpu.dot_dimension_numbers<[1], [1], [0], [0], [0, 0, 1, 0], [], []>} : vector<8x2048xbf16>, vector<32x2048xbf16>, vector<8x32xf32> -> vector<8x32xf32>
    %609 = vector.broadcast %600 : vector<1x32xf32> to vector<8x32xf32>
    %610 = arith.addf %608, %609 : vector<8x32xf32>
    %611 = arith.addf %596, %610 : vector<8x32xf32>
    %c44 = arith.constant 44 : index
    %c0_195 = arith.constant 0 : index
    %612 = vector.load %arg2[%c44, %c0_195] : memref<64x128xf32, #tpu.memory_space<vmem>>, vector<1x32xf32>
    %c45 = arith.constant 45 : index
    %c0_196 = arith.constant 0 : index
    %613 = vector.load %arg2[%c45, %c0_196] : memref<64x128xf32, #tpu.memory_space<vmem>>, vector<1x32xf32>
    %cst_197 = arith.constant dense<0.000000e+00> : vector<8xf32>
    %614 = vector.multi_reduction <add>, %611, %cst_197 [1] : vector<8x32xf32> to vector<8xf32>
    %615 = vector.shape_cast %614 : vector<8xf32> to vector<8x1xf32>
    %cst_198 = arith.constant 3.200000e+01 : f32
    %616 = vector.broadcast %cst_198 : f32 to vector<8x1xf32>
    %617 = arith.divf %615, %616 : vector<8x1xf32>
    %618 = vector.broadcast %617 : vector<8x1xf32> to vector<8x32xf32>
    %619 = arith.subf %611, %618 : vector<8x32xf32>
    %620 = arith.mulf %619, %619 : vector<8x32xf32>
    %cst_199 = arith.constant dense<0.000000e+00> : vector<8xf32>
    %621 = vector.multi_reduction <add>, %620, %cst_199 [1] : vector<8x32xf32> to vector<8xf32>
    %622 = vector.shape_cast %621 : vector<8xf32> to vector<8x1xf32>
    %cst_200 = arith.constant 3.200000e+01 : f32
    %623 = vector.broadcast %cst_200 : f32 to vector<8x1xf32>
    %624 = arith.divf %622, %623 : vector<8x1xf32>
    %625 = vector.broadcast %617 : vector<8x1xf32> to vector<8x32xf32>
    %626 = arith.subf %611, %625 : vector<8x32xf32>
    %cst_201 = arith.constant 9.99999974E-6 : f32
    %627 = vector.broadcast %cst_201 : f32 to vector<8x1xf32>
    %628 = arith.addf %624, %627 : vector<8x1xf32>
    %629 = math.rsqrt %628 : vector<8x1xf32>
    %630 = vector.broadcast %629 : vector<8x1xf32> to vector<8x32xf32>
    %631 = arith.mulf %626, %630 : vector<8x32xf32>
    %632 = vector.broadcast %612 : vector<1x32xf32> to vector<8x32xf32>
    %633 = arith.mulf %631, %632 : vector<8x32xf32>
    %634 = vector.broadcast %613 : vector<1x32xf32> to vector<8x32xf32>
    %635 = arith.addf %633, %634 : vector<8x32xf32>
    %c0_202 = arith.constant 0 : index
    %c13440 = arith.constant 13440 : index
    %636 = vector.load %arg1[%c0_202, %c13440] : memref<32x18176xbf16, #tpu.memory_space<vmem>>, vector<32x96xbf16>
    %c46 = arith.constant 46 : index
    %c0_203 = arith.constant 0 : index
    %637 = vector.load %arg2[%c46, %c0_203] : memref<64x128xf32, #tpu.memory_space<vmem>>, vector<1x96xf32>
    %c0_204 = arith.constant 0 : index
    %c13568 = arith.constant 13568 : index
    %638 = vector.load %arg1[%c0_204, %c13568] : memref<32x18176xbf16, #tpu.memory_space<vmem>>, vector<32x32xbf16>
    %c47 = arith.constant 47 : index
    %c0_205 = arith.constant 0 : index
    %639 = vector.load %arg2[%c47, %c0_205] : memref<64x128xf32, #tpu.memory_space<vmem>>, vector<1x32xf32>
    %640 = arith.truncf %635 : vector<8x32xf32> to vector<8x32xbf16>
    %cst_206 = arith.constant dense<0.000000e+00> : vector<8x96xf32>
    %641 = tpu.matmul %640, %636, %cst_206 {dimension_numbers = #tpu.dot_dimension_numbers<[1], [0], [0], [1], [0, 0, 1, 1], [], []>} : vector<8x32xbf16>, vector<32x96xbf16>, vector<8x96xf32> -> vector<8x96xf32>
    %642 = vector.broadcast %637 : vector<1x96xf32> to vector<8x96xf32>
    %643 = arith.addf %641, %642 : vector<8x96xf32>
    %644 = vector.extract_strided_slice %643 {offsets = [0, 0], sizes = [8, 32], strides = [1, 1]} : vector<8x96xf32> to vector<8x32xf32>
    %645 = vector.extract_strided_slice %643 {offsets = [0, 32], sizes = [8, 32], strides = [1, 1]} : vector<8x96xf32> to vector<8x32xf32>
    %646 = vector.extract_strided_slice %643 {offsets = [0, 64], sizes = [8, 32], strides = [1, 1]} : vector<8x96xf32> to vector<8x32xf32>
    %647 = vector.extract_strided_slice %644 {offsets = [0, 0], sizes = [8, 8], strides = [1, 1]} : vector<8x32xf32> to vector<8x8xf32>
    %648 = vector.extract_strided_slice %645 {offsets = [0, 0], sizes = [8, 8], strides = [1, 1]} : vector<8x32xf32> to vector<8x8xf32>
    %649 = vector.extract_strided_slice %646 {offsets = [0, 0], sizes = [8, 8], strides = [1, 1]} : vector<8x32xf32> to vector<8x8xf32>
    %cst_207 = arith.constant dense<0.000000e+00> : vector<8x8xf32>
    %650 = tpu.matmul %647, %648, %cst_207 {dimension_numbers = #tpu.dot_dimension_numbers<[1], [1], [0], [0], [0, 0, 1, 0], [], []>} : vector<8x8xf32>, vector<8x8xf32>, vector<8x8xf32> -> vector<8x8xf32>
    %cst_208 = arith.constant 0.353553385 : f32
    %651 = vector.broadcast %cst_208 : f32 to vector<8x8xf32>
    %652 = arith.mulf %650, %651 : vector<8x8xf32>
    %cst_209 = arith.constant dense<0xFF800000> : vector<8xf32>
    %653 = vector.multi_reduction <maximumf>, %652, %cst_209 [1] : vector<8x8xf32> to vector<8xf32>
    %654 = vector.shape_cast %653 : vector<8xf32> to vector<8x1xf32>
    %655 = vector.broadcast %654 : vector<8x1xf32> to vector<8x8xf32>
    %656 = arith.subf %652, %655 : vector<8x8xf32>
    %657 = math.exp %656 : vector<8x8xf32>
    %cst_210 = arith.constant dense<0.000000e+00> : vector<8xf32>
    %658 = vector.multi_reduction <add>, %657, %cst_210 [1] : vector<8x8xf32> to vector<8xf32>
    %659 = vector.shape_cast %658 : vector<8xf32> to vector<8x1xf32>
    %660 = tpu.reciprocal %659 {approx = true} : vector<8x1xf32> -> vector<8x1xf32>
    %661 = vector.broadcast %660 : vector<8x1xf32> to vector<8x8xf32>
    %662 = arith.mulf %657, %661 : vector<8x8xf32>
    %cst_211 = arith.constant dense<0.000000e+00> : vector<8x8xf32>
    %663 = tpu.matmul %662, %649, %cst_211 {dimension_numbers = #tpu.dot_dimension_numbers<[1], [0], [0], [1], [0, 0, 1, 1], [], []>} : vector<8x8xf32>, vector<8x8xf32>, vector<8x8xf32> -> vector<8x8xf32>
    %664 = vector.extract_strided_slice %638 {offsets = [0, 0], sizes = [8, 32], strides = [1, 1]} : vector<32x32xbf16> to vector<8x32xbf16>
    %665 = arith.truncf %663 : vector<8x8xf32> to vector<8x8xbf16>
    %cst_212 = arith.constant dense<0.000000e+00> : vector<8x32xf32>
    %666 = tpu.matmul %665, %664, %cst_212 {dimension_numbers = #tpu.dot_dimension_numbers<[1], [0], [0], [1], [0, 0, 1, 1], [], []>} : vector<8x8xbf16>, vector<8x32xbf16>, vector<8x32xf32> -> vector<8x32xf32>
    %667 = vector.extract_strided_slice %644 {offsets = [0, 8], sizes = [8, 8], strides = [1, 1]} : vector<8x32xf32> to vector<8x8xf32>
    %668 = vector.extract_strided_slice %645 {offsets = [0, 8], sizes = [8, 8], strides = [1, 1]} : vector<8x32xf32> to vector<8x8xf32>
    %669 = vector.extract_strided_slice %646 {offsets = [0, 8], sizes = [8, 8], strides = [1, 1]} : vector<8x32xf32> to vector<8x8xf32>
    %cst_213 = arith.constant dense<0.000000e+00> : vector<8x8xf32>
    %670 = tpu.matmul %667, %668, %cst_213 {dimension_numbers = #tpu.dot_dimension_numbers<[1], [1], [0], [0], [0, 0, 1, 0], [], []>} : vector<8x8xf32>, vector<8x8xf32>, vector<8x8xf32> -> vector<8x8xf32>
    %cst_214 = arith.constant 0.353553385 : f32
    %671 = vector.broadcast %cst_214 : f32 to vector<8x8xf32>
    %672 = arith.mulf %670, %671 : vector<8x8xf32>
    %cst_215 = arith.constant dense<0xFF800000> : vector<8xf32>
    %673 = vector.multi_reduction <maximumf>, %672, %cst_215 [1] : vector<8x8xf32> to vector<8xf32>
    %674 = vector.shape_cast %673 : vector<8xf32> to vector<8x1xf32>
    %675 = vector.broadcast %674 : vector<8x1xf32> to vector<8x8xf32>
    %676 = arith.subf %672, %675 : vector<8x8xf32>
    %677 = math.exp %676 : vector<8x8xf32>
    %cst_216 = arith.constant dense<0.000000e+00> : vector<8xf32>
    %678 = vector.multi_reduction <add>, %677, %cst_216 [1] : vector<8x8xf32> to vector<8xf32>
    %679 = vector.shape_cast %678 : vector<8xf32> to vector<8x1xf32>
    %680 = tpu.reciprocal %679 {approx = true} : vector<8x1xf32> -> vector<8x1xf32>
    %681 = vector.broadcast %680 : vector<8x1xf32> to vector<8x8xf32>
    %682 = arith.mulf %677, %681 : vector<8x8xf32>
    %cst_217 = arith.constant dense<0.000000e+00> : vector<8x8xf32>
    %683 = tpu.matmul %682, %669, %cst_217 {dimension_numbers = #tpu.dot_dimension_numbers<[1], [0], [0], [1], [0, 0, 1, 1], [], []>} : vector<8x8xf32>, vector<8x8xf32>, vector<8x8xf32> -> vector<8x8xf32>
    %684 = vector.extract_strided_slice %638 {offsets = [8, 0], sizes = [8, 32], strides = [1, 1]} : vector<32x32xbf16> to vector<8x32xbf16>
    %685 = arith.truncf %683 : vector<8x8xf32> to vector<8x8xbf16>
    %cst_218 = arith.constant dense<0.000000e+00> : vector<8x32xf32>
    %686 = tpu.matmul %685, %684, %cst_218 {dimension_numbers = #tpu.dot_dimension_numbers<[1], [0], [0], [1], [0, 0, 1, 1], [], []>} : vector<8x8xbf16>, vector<8x32xbf16>, vector<8x32xf32> -> vector<8x32xf32>
    %687 = arith.addf %666, %686 : vector<8x32xf32>
    %688 = vector.extract_strided_slice %644 {offsets = [0, 16], sizes = [8, 8], strides = [1, 1]} : vector<8x32xf32> to vector<8x8xf32>
    %689 = vector.extract_strided_slice %645 {offsets = [0, 16], sizes = [8, 8], strides = [1, 1]} : vector<8x32xf32> to vector<8x8xf32>
    %690 = vector.extract_strided_slice %646 {offsets = [0, 16], sizes = [8, 8], strides = [1, 1]} : vector<8x32xf32> to vector<8x8xf32>
    %cst_219 = arith.constant dense<0.000000e+00> : vector<8x8xf32>
    %691 = tpu.matmul %688, %689, %cst_219 {dimension_numbers = #tpu.dot_dimension_numbers<[1], [1], [0], [0], [0, 0, 1, 0], [], []>} : vector<8x8xf32>, vector<8x8xf32>, vector<8x8xf32> -> vector<8x8xf32>
    %cst_220 = arith.constant 0.353553385 : f32
    %692 = vector.broadcast %cst_220 : f32 to vector<8x8xf32>
    %693 = arith.mulf %691, %692 : vector<8x8xf32>
    %cst_221 = arith.constant dense<0xFF800000> : vector<8xf32>
    %694 = vector.multi_reduction <maximumf>, %693, %cst_221 [1] : vector<8x8xf32> to vector<8xf32>
    %695 = vector.shape_cast %694 : vector<8xf32> to vector<8x1xf32>
    %696 = vector.broadcast %695 : vector<8x1xf32> to vector<8x8xf32>
    %697 = arith.subf %693, %696 : vector<8x8xf32>
    %698 = math.exp %697 : vector<8x8xf32>
    %cst_222 = arith.constant dense<0.000000e+00> : vector<8xf32>
    %699 = vector.multi_reduction <add>, %698, %cst_222 [1] : vector<8x8xf32> to vector<8xf32>
    %700 = vector.shape_cast %699 : vector<8xf32> to vector<8x1xf32>
    %701 = tpu.reciprocal %700 {approx = true} : vector<8x1xf32> -> vector<8x1xf32>
    %702 = vector.broadcast %701 : vector<8x1xf32> to vector<8x8xf32>
    %703 = arith.mulf %698, %702 : vector<8x8xf32>
    %cst_223 = arith.constant dense<0.000000e+00> : vector<8x8xf32>
    %704 = tpu.matmul %703, %690, %cst_223 {dimension_numbers = #tpu.dot_dimension_numbers<[1], [0], [0], [1], [0, 0, 1, 1], [], []>} : vector<8x8xf32>, vector<8x8xf32>, vector<8x8xf32> -> vector<8x8xf32>
    %705 = vector.extract_strided_slice %638 {offsets = [16, 0], sizes = [8, 32], strides = [1, 1]} : vector<32x32xbf16> to vector<8x32xbf16>
    %706 = arith.truncf %704 : vector<8x8xf32> to vector<8x8xbf16>
    %cst_224 = arith.constant dense<0.000000e+00> : vector<8x32xf32>
    %707 = tpu.matmul %706, %705, %cst_224 {dimension_numbers = #tpu.dot_dimension_numbers<[1], [0], [0], [1], [0, 0, 1, 1], [], []>} : vector<8x8xbf16>, vector<8x32xbf16>, vector<8x32xf32> -> vector<8x32xf32>
    %708 = arith.addf %687, %707 : vector<8x32xf32>
    %709 = vector.extract_strided_slice %644 {offsets = [0, 24], sizes = [8, 8], strides = [1, 1]} : vector<8x32xf32> to vector<8x8xf32>
    %710 = vector.extract_strided_slice %645 {offsets = [0, 24], sizes = [8, 8], strides = [1, 1]} : vector<8x32xf32> to vector<8x8xf32>
    %711 = vector.extract_strided_slice %646 {offsets = [0, 24], sizes = [8, 8], strides = [1, 1]} : vector<8x32xf32> to vector<8x8xf32>
    %cst_225 = arith.constant dense<0.000000e+00> : vector<8x8xf32>
    %712 = tpu.matmul %709, %710, %cst_225 {dimension_numbers = #tpu.dot_dimension_numbers<[1], [1], [0], [0], [0, 0, 1, 0], [], []>} : vector<8x8xf32>, vector<8x8xf32>, vector<8x8xf32> -> vector<8x8xf32>
    %cst_226 = arith.constant 0.353553385 : f32
    %713 = vector.broadcast %cst_226 : f32 to vector<8x8xf32>
    %714 = arith.mulf %712, %713 : vector<8x8xf32>
    %cst_227 = arith.constant dense<0xFF800000> : vector<8xf32>
    %715 = vector.multi_reduction <maximumf>, %714, %cst_227 [1] : vector<8x8xf32> to vector<8xf32>
    %716 = vector.shape_cast %715 : vector<8xf32> to vector<8x1xf32>
    %717 = vector.broadcast %716 : vector<8x1xf32> to vector<8x8xf32>
    %718 = arith.subf %714, %717 : vector<8x8xf32>
    %719 = math.exp %718 : vector<8x8xf32>
    %cst_228 = arith.constant dense<0.000000e+00> : vector<8xf32>
    %720 = vector.multi_reduction <add>, %719, %cst_228 [1] : vector<8x8xf32> to vector<8xf32>
    %721 = vector.shape_cast %720 : vector<8xf32> to vector<8x1xf32>
    %722 = tpu.reciprocal %721 {approx = true} : vector<8x1xf32> -> vector<8x1xf32>
    %723 = vector.broadcast %722 : vector<8x1xf32> to vector<8x8xf32>
    %724 = arith.mulf %719, %723 : vector<8x8xf32>
    %cst_229 = arith.constant dense<0.000000e+00> : vector<8x8xf32>
    %725 = tpu.matmul %724, %711, %cst_229 {dimension_numbers = #tpu.dot_dimension_numbers<[1], [0], [0], [1], [0, 0, 1, 1], [], []>} : vector<8x8xf32>, vector<8x8xf32>, vector<8x8xf32> -> vector<8x8xf32>
    %726 = vector.extract_strided_slice %638 {offsets = [24, 0], sizes = [8, 32], strides = [1, 1]} : vector<32x32xbf16> to vector<8x32xbf16>
    %727 = arith.truncf %725 : vector<8x8xf32> to vector<8x8xbf16>
    %cst_230 = arith.constant dense<0.000000e+00> : vector<8x32xf32>
    %728 = tpu.matmul %727, %726, %cst_230 {dimension_numbers = #tpu.dot_dimension_numbers<[1], [0], [0], [1], [0, 0, 1, 1], [], []>} : vector<8x8xbf16>, vector<8x32xbf16>, vector<8x32xf32> -> vector<8x32xf32>
    %729 = arith.addf %708, %728 : vector<8x32xf32>
    %730 = vector.broadcast %639 : vector<1x32xf32> to vector<8x32xf32>
    %731 = arith.addf %729, %730 : vector<8x32xf32>
    %732 = arith.addf %635, %731 : vector<8x32xf32>
    %c48 = arith.constant 48 : index
    %c0_231 = arith.constant 0 : index
    %733 = vector.load %arg2[%c48, %c0_231] : memref<64x128xf32, #tpu.memory_space<vmem>>, vector<1x32xf32>
    %c49 = arith.constant 49 : index
    %c0_232 = arith.constant 0 : index
    %734 = vector.load %arg2[%c49, %c0_232] : memref<64x128xf32, #tpu.memory_space<vmem>>, vector<1x32xf32>
    %cst_233 = arith.constant dense<0.000000e+00> : vector<8xf32>
    %735 = vector.multi_reduction <add>, %732, %cst_233 [1] : vector<8x32xf32> to vector<8xf32>
    %736 = vector.shape_cast %735 : vector<8xf32> to vector<8x1xf32>
    %cst_234 = arith.constant 3.200000e+01 : f32
    %737 = vector.broadcast %cst_234 : f32 to vector<8x1xf32>
    %738 = arith.divf %736, %737 : vector<8x1xf32>
    %739 = vector.broadcast %738 : vector<8x1xf32> to vector<8x32xf32>
    %740 = arith.subf %732, %739 : vector<8x32xf32>
    %741 = arith.mulf %740, %740 : vector<8x32xf32>
    %cst_235 = arith.constant dense<0.000000e+00> : vector<8xf32>
    %742 = vector.multi_reduction <add>, %741, %cst_235 [1] : vector<8x32xf32> to vector<8xf32>
    %743 = vector.shape_cast %742 : vector<8xf32> to vector<8x1xf32>
    %cst_236 = arith.constant 3.200000e+01 : f32
    %744 = vector.broadcast %cst_236 : f32 to vector<8x1xf32>
    %745 = arith.divf %743, %744 : vector<8x1xf32>
    %746 = vector.broadcast %738 : vector<8x1xf32> to vector<8x32xf32>
    %747 = arith.subf %732, %746 : vector<8x32xf32>
    %cst_237 = arith.constant 9.99999974E-6 : f32
    %748 = vector.broadcast %cst_237 : f32 to vector<8x1xf32>
    %749 = arith.addf %745, %748 : vector<8x1xf32>
    %750 = math.rsqrt %749 : vector<8x1xf32>
    %751 = vector.broadcast %750 : vector<8x1xf32> to vector<8x32xf32>
    %752 = arith.mulf %747, %751 : vector<8x32xf32>
    %753 = vector.broadcast %733 : vector<1x32xf32> to vector<8x32xf32>
    %754 = arith.mulf %752, %753 : vector<8x32xf32>
    %755 = vector.broadcast %734 : vector<1x32xf32> to vector<8x32xf32>
    %756 = arith.addf %754, %755 : vector<8x32xf32>
    %c0_238 = arith.constant 0 : index
    %c13696 = arith.constant 13696 : index
    %757 = vector.load %arg1[%c0_238, %c13696] : memref<32x18176xbf16, #tpu.memory_space<vmem>>, vector<32x32xbf16>
    %c50 = arith.constant 50 : index
    %c0_239 = arith.constant 0 : index
    %758 = vector.load %arg2[%c50, %c0_239] : memref<64x128xf32, #tpu.memory_space<vmem>>, vector<1x32xf32>
    %c0_240 = arith.constant 0 : index
    %c13824 = arith.constant 13824 : index
    %759 = vector.load %arg1[%c0_240, %c13824] : memref<32x18176xbf16, #tpu.memory_space<vmem>>, vector<32x64xbf16>
    %c51 = arith.constant 51 : index
    %c0_241 = arith.constant 0 : index
    %760 = vector.load %arg2[%c51, %c0_241] : memref<64x128xf32, #tpu.memory_space<vmem>>, vector<1x64xf32>
    %c0_242 = arith.constant 0 : index
    %c13952 = arith.constant 13952 : index
    %761 = vector.load %arg1[%c0_242, %c13952] : memref<32x18176xbf16, #tpu.memory_space<vmem>>, vector<32x32xbf16>
    %c52 = arith.constant 52 : index
    %c0_243 = arith.constant 0 : index
    %762 = vector.load %arg2[%c52, %c0_243] : memref<64x128xf32, #tpu.memory_space<vmem>>, vector<1x32xf32>
    %763 = arith.truncf %756 : vector<8x32xf32> to vector<8x32xbf16>
    %cst_244 = arith.constant dense<0.000000e+00> : vector<8x32xf32>
    %764 = tpu.matmul %763, %757, %cst_244 {dimension_numbers = #tpu.dot_dimension_numbers<[1], [0], [0], [1], [0, 0, 1, 1], [], []>} : vector<8x32xbf16>, vector<32x32xbf16>, vector<8x32xf32> -> vector<8x32xf32>
    %765 = vector.broadcast %758 : vector<1x32xf32> to vector<8x32xf32>
    %766 = arith.addf %764, %765 : vector<8x32xf32>
    %767 = arith.truncf %349 : vector<8x32xf32> to vector<8x32xbf16>
    %cst_245 = arith.constant dense<0.000000e+00> : vector<8x64xf32>
    %768 = tpu.matmul %767, %759, %cst_245 {dimension_numbers = #tpu.dot_dimension_numbers<[1], [0], [0], [1], [0, 0, 1, 1], [], []>} : vector<8x32xbf16>, vector<32x64xbf16>, vector<8x64xf32> -> vector<8x64xf32>
    %769 = vector.broadcast %760 : vector<1x64xf32> to vector<8x64xf32>
    %770 = arith.addf %768, %769 : vector<8x64xf32>
    %771 = vector.extract_strided_slice %770 {offsets = [0, 0], sizes = [8, 32], strides = [1, 1]} : vector<8x64xf32> to vector<8x32xf32>
    %772 = vector.extract_strided_slice %770 {offsets = [0, 32], sizes = [8, 32], strides = [1, 1]} : vector<8x64xf32> to vector<8x32xf32>
    %773 = vector.extract_strided_slice %766 {offsets = [0, 0], sizes = [8, 8], strides = [1, 1]} : vector<8x32xf32> to vector<8x8xf32>
    %774 = vector.extract_strided_slice %771 {offsets = [0, 0], sizes = [8, 8], strides = [1, 1]} : vector<8x32xf32> to vector<8x8xf32>
    %775 = vector.extract_strided_slice %772 {offsets = [0, 0], sizes = [8, 8], strides = [1, 1]} : vector<8x32xf32> to vector<8x8xf32>
    %cst_246 = arith.constant dense<0.000000e+00> : vector<8x8xf32>
    %776 = tpu.matmul %773, %774, %cst_246 {dimension_numbers = #tpu.dot_dimension_numbers<[1], [1], [0], [0], [0, 0, 1, 0], [], []>} : vector<8x8xf32>, vector<8x8xf32>, vector<8x8xf32> -> vector<8x8xf32>
    %cst_247 = arith.constant 0.353553385 : f32
    %777 = vector.broadcast %cst_247 : f32 to vector<8x8xf32>
    %778 = arith.mulf %776, %777 : vector<8x8xf32>
    %cst_248 = arith.constant dense<0xFF800000> : vector<8xf32>
    %779 = vector.multi_reduction <maximumf>, %778, %cst_248 [1] : vector<8x8xf32> to vector<8xf32>
    %780 = vector.shape_cast %779 : vector<8xf32> to vector<8x1xf32>
    %781 = vector.broadcast %780 : vector<8x1xf32> to vector<8x8xf32>
    %782 = arith.subf %778, %781 : vector<8x8xf32>
    %783 = math.exp %782 : vector<8x8xf32>
    %cst_249 = arith.constant dense<0.000000e+00> : vector<8xf32>
    %784 = vector.multi_reduction <add>, %783, %cst_249 [1] : vector<8x8xf32> to vector<8xf32>
    %785 = vector.shape_cast %784 : vector<8xf32> to vector<8x1xf32>
    %786 = tpu.reciprocal %785 {approx = true} : vector<8x1xf32> -> vector<8x1xf32>
    %787 = vector.broadcast %786 : vector<8x1xf32> to vector<8x8xf32>
    %788 = arith.mulf %783, %787 : vector<8x8xf32>
    %cst_250 = arith.constant dense<0.000000e+00> : vector<8x8xf32>
    %789 = tpu.matmul %788, %775, %cst_250 {dimension_numbers = #tpu.dot_dimension_numbers<[1], [0], [0], [1], [0, 0, 1, 1], [], []>} : vector<8x8xf32>, vector<8x8xf32>, vector<8x8xf32> -> vector<8x8xf32>
    %790 = vector.extract_strided_slice %761 {offsets = [0, 0], sizes = [8, 32], strides = [1, 1]} : vector<32x32xbf16> to vector<8x32xbf16>
    %791 = arith.truncf %789 : vector<8x8xf32> to vector<8x8xbf16>
    %cst_251 = arith.constant dense<0.000000e+00> : vector<8x32xf32>
    %792 = tpu.matmul %791, %790, %cst_251 {dimension_numbers = #tpu.dot_dimension_numbers<[1], [0], [0], [1], [0, 0, 1, 1], [], []>} : vector<8x8xbf16>, vector<8x32xbf16>, vector<8x32xf32> -> vector<8x32xf32>
    %793 = vector.extract_strided_slice %766 {offsets = [0, 8], sizes = [8, 8], strides = [1, 1]} : vector<8x32xf32> to vector<8x8xf32>
    %794 = vector.extract_strided_slice %771 {offsets = [0, 8], sizes = [8, 8], strides = [1, 1]} : vector<8x32xf32> to vector<8x8xf32>
    %795 = vector.extract_strided_slice %772 {offsets = [0, 8], sizes = [8, 8], strides = [1, 1]} : vector<8x32xf32> to vector<8x8xf32>
    %cst_252 = arith.constant dense<0.000000e+00> : vector<8x8xf32>
    %796 = tpu.matmul %793, %794, %cst_252 {dimension_numbers = #tpu.dot_dimension_numbers<[1], [1], [0], [0], [0, 0, 1, 0], [], []>} : vector<8x8xf32>, vector<8x8xf32>, vector<8x8xf32> -> vector<8x8xf32>
    %cst_253 = arith.constant 0.353553385 : f32
    %797 = vector.broadcast %cst_253 : f32 to vector<8x8xf32>
    %798 = arith.mulf %796, %797 : vector<8x8xf32>
    %cst_254 = arith.constant dense<0xFF800000> : vector<8xf32>
    %799 = vector.multi_reduction <maximumf>, %798, %cst_254 [1] : vector<8x8xf32> to vector<8xf32>
    %800 = vector.shape_cast %799 : vector<8xf32> to vector<8x1xf32>
    %801 = vector.broadcast %800 : vector<8x1xf32> to vector<8x8xf32>
    %802 = arith.subf %798, %801 : vector<8x8xf32>
    %803 = math.exp %802 : vector<8x8xf32>
    %cst_255 = arith.constant dense<0.000000e+00> : vector<8xf32>
    %804 = vector.multi_reduction <add>, %803, %cst_255 [1] : vector<8x8xf32> to vector<8xf32>
    %805 = vector.shape_cast %804 : vector<8xf32> to vector<8x1xf32>
    %806 = tpu.reciprocal %805 {approx = true} : vector<8x1xf32> -> vector<8x1xf32>
    %807 = vector.broadcast %806 : vector<8x1xf32> to vector<8x8xf32>
    %808 = arith.mulf %803, %807 : vector<8x8xf32>
    %cst_256 = arith.constant dense<0.000000e+00> : vector<8x8xf32>
    %809 = tpu.matmul %808, %795, %cst_256 {dimension_numbers = #tpu.dot_dimension_numbers<[1], [0], [0], [1], [0, 0, 1, 1], [], []>} : vector<8x8xf32>, vector<8x8xf32>, vector<8x8xf32> -> vector<8x8xf32>
    %810 = vector.extract_strided_slice %761 {offsets = [8, 0], sizes = [8, 32], strides = [1, 1]} : vector<32x32xbf16> to vector<8x32xbf16>
    %811 = arith.truncf %809 : vector<8x8xf32> to vector<8x8xbf16>
    %cst_257 = arith.constant dense<0.000000e+00> : vector<8x32xf32>
    %812 = tpu.matmul %811, %810, %cst_257 {dimension_numbers = #tpu.dot_dimension_numbers<[1], [0], [0], [1], [0, 0, 1, 1], [], []>} : vector<8x8xbf16>, vector<8x32xbf16>, vector<8x32xf32> -> vector<8x32xf32>
    %813 = arith.addf %792, %812 : vector<8x32xf32>
    %814 = vector.extract_strided_slice %766 {offsets = [0, 16], sizes = [8, 8], strides = [1, 1]} : vector<8x32xf32> to vector<8x8xf32>
    %815 = vector.extract_strided_slice %771 {offsets = [0, 16], sizes = [8, 8], strides = [1, 1]} : vector<8x32xf32> to vector<8x8xf32>
    %816 = vector.extract_strided_slice %772 {offsets = [0, 16], sizes = [8, 8], strides = [1, 1]} : vector<8x32xf32> to vector<8x8xf32>
    %cst_258 = arith.constant dense<0.000000e+00> : vector<8x8xf32>
    %817 = tpu.matmul %814, %815, %cst_258 {dimension_numbers = #tpu.dot_dimension_numbers<[1], [1], [0], [0], [0, 0, 1, 0], [], []>} : vector<8x8xf32>, vector<8x8xf32>, vector<8x8xf32> -> vector<8x8xf32>
    %cst_259 = arith.constant 0.353553385 : f32
    %818 = vector.broadcast %cst_259 : f32 to vector<8x8xf32>
    %819 = arith.mulf %817, %818 : vector<8x8xf32>
    %cst_260 = arith.constant dense<0xFF800000> : vector<8xf32>
    %820 = vector.multi_reduction <maximumf>, %819, %cst_260 [1] : vector<8x8xf32> to vector<8xf32>
    %821 = vector.shape_cast %820 : vector<8xf32> to vector<8x1xf32>
    %822 = vector.broadcast %821 : vector<8x1xf32> to vector<8x8xf32>
    %823 = arith.subf %819, %822 : vector<8x8xf32>
    %824 = math.exp %823 : vector<8x8xf32>
    %cst_261 = arith.constant dense<0.000000e+00> : vector<8xf32>
    %825 = vector.multi_reduction <add>, %824, %cst_261 [1] : vector<8x8xf32> to vector<8xf32>
    %826 = vector.shape_cast %825 : vector<8xf32> to vector<8x1xf32>
    %827 = tpu.reciprocal %826 {approx = true} : vector<8x1xf32> -> vector<8x1xf32>
    %828 = vector.broadcast %827 : vector<8x1xf32> to vector<8x8xf32>
    %829 = arith.mulf %824, %828 : vector<8x8xf32>
    %cst_262 = arith.constant dense<0.000000e+00> : vector<8x8xf32>
    %830 = tpu.matmul %829, %816, %cst_262 {dimension_numbers = #tpu.dot_dimension_numbers<[1], [0], [0], [1], [0, 0, 1, 1], [], []>} : vector<8x8xf32>, vector<8x8xf32>, vector<8x8xf32> -> vector<8x8xf32>
    %831 = vector.extract_strided_slice %761 {offsets = [16, 0], sizes = [8, 32], strides = [1, 1]} : vector<32x32xbf16> to vector<8x32xbf16>
    %832 = arith.truncf %830 : vector<8x8xf32> to vector<8x8xbf16>
    %cst_263 = arith.constant dense<0.000000e+00> : vector<8x32xf32>
    %833 = tpu.matmul %832, %831, %cst_263 {dimension_numbers = #tpu.dot_dimension_numbers<[1], [0], [0], [1], [0, 0, 1, 1], [], []>} : vector<8x8xbf16>, vector<8x32xbf16>, vector<8x32xf32> -> vector<8x32xf32>
    %834 = arith.addf %813, %833 : vector<8x32xf32>
    %835 = vector.extract_strided_slice %766 {offsets = [0, 24], sizes = [8, 8], strides = [1, 1]} : vector<8x32xf32> to vector<8x8xf32>
    %836 = vector.extract_strided_slice %771 {offsets = [0, 24], sizes = [8, 8], strides = [1, 1]} : vector<8x32xf32> to vector<8x8xf32>
    %837 = vector.extract_strided_slice %772 {offsets = [0, 24], sizes = [8, 8], strides = [1, 1]} : vector<8x32xf32> to vector<8x8xf32>
    %cst_264 = arith.constant dense<0.000000e+00> : vector<8x8xf32>
    %838 = tpu.matmul %835, %836, %cst_264 {dimension_numbers = #tpu.dot_dimension_numbers<[1], [1], [0], [0], [0, 0, 1, 0], [], []>} : vector<8x8xf32>, vector<8x8xf32>, vector<8x8xf32> -> vector<8x8xf32>
    %cst_265 = arith.constant 0.353553385 : f32
    %839 = vector.broadcast %cst_265 : f32 to vector<8x8xf32>
    %840 = arith.mulf %838, %839 : vector<8x8xf32>
    %cst_266 = arith.constant dense<0xFF800000> : vector<8xf32>
    %841 = vector.multi_reduction <maximumf>, %840, %cst_266 [1] : vector<8x8xf32> to vector<8xf32>
    %842 = vector.shape_cast %841 : vector<8xf32> to vector<8x1xf32>
    %843 = vector.broadcast %842 : vector<8x1xf32> to vector<8x8xf32>
    %844 = arith.subf %840, %843 : vector<8x8xf32>
    %845 = math.exp %844 : vector<8x8xf32>
    %cst_267 = arith.constant dense<0.000000e+00> : vector<8xf32>
    %846 = vector.multi_reduction <add>, %845, %cst_267 [1] : vector<8x8xf32> to vector<8xf32>
    %847 = vector.shape_cast %846 : vector<8xf32> to vector<8x1xf32>
    %848 = tpu.reciprocal %847 {approx = true} : vector<8x1xf32> -> vector<8x1xf32>
    %849 = vector.broadcast %848 : vector<8x1xf32> to vector<8x8xf32>
    %850 = arith.mulf %845, %849 : vector<8x8xf32>
    %cst_268 = arith.constant dense<0.000000e+00> : vector<8x8xf32>
    %851 = tpu.matmul %850, %837, %cst_268 {dimension_numbers = #tpu.dot_dimension_numbers<[1], [0], [0], [1], [0, 0, 1, 1], [], []>} : vector<8x8xf32>, vector<8x8xf32>, vector<8x8xf32> -> vector<8x8xf32>
    %852 = vector.extract_strided_slice %761 {offsets = [24, 0], sizes = [8, 32], strides = [1, 1]} : vector<32x32xbf16> to vector<8x32xbf16>
    %853 = arith.truncf %851 : vector<8x8xf32> to vector<8x8xbf16>
    %cst_269 = arith.constant dense<0.000000e+00> : vector<8x32xf32>
    %854 = tpu.matmul %853, %852, %cst_269 {dimension_numbers = #tpu.dot_dimension_numbers<[1], [0], [0], [1], [0, 0, 1, 1], [], []>} : vector<8x8xbf16>, vector<8x32xbf16>, vector<8x32xf32> -> vector<8x32xf32>
    %855 = arith.addf %834, %854 : vector<8x32xf32>
    %856 = vector.broadcast %762 : vector<1x32xf32> to vector<8x32xf32>
    %857 = arith.addf %855, %856 : vector<8x32xf32>
    %858 = arith.addf %756, %857 : vector<8x32xf32>
    %c53 = arith.constant 53 : index
    %c0_270 = arith.constant 0 : index
    %859 = vector.load %arg2[%c53, %c0_270] : memref<64x128xf32, #tpu.memory_space<vmem>>, vector<1x32xf32>
    %c54 = arith.constant 54 : index
    %c0_271 = arith.constant 0 : index
    %860 = vector.load %arg2[%c54, %c0_271] : memref<64x128xf32, #tpu.memory_space<vmem>>, vector<1x32xf32>
    %cst_272 = arith.constant dense<0.000000e+00> : vector<8xf32>
    %861 = vector.multi_reduction <add>, %858, %cst_272 [1] : vector<8x32xf32> to vector<8xf32>
    %862 = vector.shape_cast %861 : vector<8xf32> to vector<8x1xf32>
    %cst_273 = arith.constant 3.200000e+01 : f32
    %863 = vector.broadcast %cst_273 : f32 to vector<8x1xf32>
    %864 = arith.divf %862, %863 : vector<8x1xf32>
    %865 = vector.broadcast %864 : vector<8x1xf32> to vector<8x32xf32>
    %866 = arith.subf %858, %865 : vector<8x32xf32>
    %867 = arith.mulf %866, %866 : vector<8x32xf32>
    %cst_274 = arith.constant dense<0.000000e+00> : vector<8xf32>
    %868 = vector.multi_reduction <add>, %867, %cst_274 [1] : vector<8x32xf32> to vector<8xf32>
    %869 = vector.shape_cast %868 : vector<8xf32> to vector<8x1xf32>
    %cst_275 = arith.constant 3.200000e+01 : f32
    %870 = vector.broadcast %cst_275 : f32 to vector<8x1xf32>
    %871 = arith.divf %869, %870 : vector<8x1xf32>
    %872 = vector.broadcast %864 : vector<8x1xf32> to vector<8x32xf32>
    %873 = arith.subf %858, %872 : vector<8x32xf32>
    %cst_276 = arith.constant 9.99999974E-6 : f32
    %874 = vector.broadcast %cst_276 : f32 to vector<8x1xf32>
    %875 = arith.addf %871, %874 : vector<8x1xf32>
    %876 = math.rsqrt %875 : vector<8x1xf32>
    %877 = vector.broadcast %876 : vector<8x1xf32> to vector<8x32xf32>
    %878 = arith.mulf %873, %877 : vector<8x32xf32>
    %879 = vector.broadcast %859 : vector<1x32xf32> to vector<8x32xf32>
    %880 = arith.mulf %878, %879 : vector<8x32xf32>
    %881 = vector.broadcast %860 : vector<1x32xf32> to vector<8x32xf32>
    %882 = arith.addf %880, %881 : vector<8x32xf32>
    %c0_277 = arith.constant 0 : index
    %c14080 = arith.constant 14080 : index
    %883 = vector.load %arg1[%c0_277, %c14080] : memref<32x18176xbf16, #tpu.memory_space<vmem>>, vector<32x2048xbf16>
    %c3 = arith.constant 3 : index
    %c0_278 = arith.constant 0 : index
    %884 = vector.load %arg3[%c3, %c0_278] : memref<8x2048xf32, #tpu.memory_space<vmem>>, vector<1x2048xf32>
    %c0_279 = arith.constant 0 : index
    %c16128 = arith.constant 16128 : index
    %885 = vector.load %arg1[%c0_279, %c16128] : memref<32x18176xbf16, #tpu.memory_space<vmem>>, vector<32x2048xbf16>
    %c55 = arith.constant 55 : index
    %c0_280 = arith.constant 0 : index
    %886 = vector.load %arg2[%c55, %c0_280] : memref<64x128xf32, #tpu.memory_space<vmem>>, vector<1x32xf32>
    %887 = arith.truncf %882 : vector<8x32xf32> to vector<8x32xbf16>
    %cst_281 = arith.constant dense<0.000000e+00> : vector<8x2048xf32>
    %888 = tpu.matmul %887, %883, %cst_281 {dimension_numbers = #tpu.dot_dimension_numbers<[1], [0], [0], [1], [0, 0, 1, 1], [], []>} : vector<8x32xbf16>, vector<32x2048xbf16>, vector<8x2048xf32> -> vector<8x2048xf32>
    %889 = vector.broadcast %884 : vector<1x2048xf32> to vector<8x2048xf32>
    %890 = arith.addf %888, %889 : vector<8x2048xf32>
    %cst_282 = arith.constant 0.000000e+00 : f32
    %891 = vector.broadcast %cst_282 : f32 to vector<8x2048xf32>
    %892 = arith.maximumf %890, %891 : vector<8x2048xf32>
    %893 = arith.truncf %892 : vector<8x2048xf32> to vector<8x2048xbf16>
    %cst_283 = arith.constant dense<0.000000e+00> : vector<8x32xf32>
    %894 = tpu.matmul %893, %885, %cst_283 {dimension_numbers = #tpu.dot_dimension_numbers<[1], [1], [0], [0], [0, 0, 1, 0], [], []>} : vector<8x2048xbf16>, vector<32x2048xbf16>, vector<8x32xf32> -> vector<8x32xf32>
    %895 = vector.broadcast %886 : vector<1x32xf32> to vector<8x32xf32>
    %896 = arith.addf %894, %895 : vector<8x32xf32>
    %897 = arith.addf %882, %896 : vector<8x32xf32>
    %c56 = arith.constant 56 : index
    %c0_284 = arith.constant 0 : index
    %898 = vector.load %arg2[%c56, %c0_284] : memref<64x128xf32, #tpu.memory_space<vmem>>, vector<1x32xf32>
    %c57 = arith.constant 57 : index
    %c0_285 = arith.constant 0 : index
    %899 = vector.load %arg2[%c57, %c0_285] : memref<64x128xf32, #tpu.memory_space<vmem>>, vector<1x32xf32>
    %cst_286 = arith.constant dense<0.000000e+00> : vector<8xf32>
    %900 = vector.multi_reduction <add>, %897, %cst_286 [1] : vector<8x32xf32> to vector<8xf32>
    %901 = vector.shape_cast %900 : vector<8xf32> to vector<8x1xf32>
    %cst_287 = arith.constant 3.200000e+01 : f32
    %902 = vector.broadcast %cst_287 : f32 to vector<8x1xf32>
    %903 = arith.divf %901, %902 : vector<8x1xf32>
    %904 = vector.broadcast %903 : vector<8x1xf32> to vector<8x32xf32>
    %905 = arith.subf %897, %904 : vector<8x32xf32>
    %906 = arith.mulf %905, %905 : vector<8x32xf32>
    %cst_288 = arith.constant dense<0.000000e+00> : vector<8xf32>
    %907 = vector.multi_reduction <add>, %906, %cst_288 [1] : vector<8x32xf32> to vector<8xf32>
    %908 = vector.shape_cast %907 : vector<8xf32> to vector<8x1xf32>
    %cst_289 = arith.constant 3.200000e+01 : f32
    %909 = vector.broadcast %cst_289 : f32 to vector<8x1xf32>
    %910 = arith.divf %908, %909 : vector<8x1xf32>
    %911 = vector.broadcast %903 : vector<8x1xf32> to vector<8x32xf32>
    %912 = arith.subf %897, %911 : vector<8x32xf32>
    %cst_290 = arith.constant 9.99999974E-6 : f32
    %913 = vector.broadcast %cst_290 : f32 to vector<8x1xf32>
    %914 = arith.addf %910, %913 : vector<8x1xf32>
    %915 = math.rsqrt %914 : vector<8x1xf32>
    %916 = vector.broadcast %915 : vector<8x1xf32> to vector<8x32xf32>
    %917 = arith.mulf %912, %916 : vector<8x32xf32>
    %918 = vector.broadcast %898 : vector<1x32xf32> to vector<8x32xf32>
    %919 = arith.mulf %917, %918 : vector<8x32xf32>
    %920 = vector.broadcast %899 : vector<1x32xf32> to vector<8x32xf32>
    %921 = arith.addf %919, %920 : vector<8x32xf32>
    %c58 = arith.constant 58 : index
    %c0_291 = arith.constant 0 : index
    %922 = vector.load %arg2[%c58, %c0_291] : memref<64x128xf32, #tpu.memory_space<vmem>>, vector<1x32xf32>
    %c59 = arith.constant 59 : index
    %c0_292 = arith.constant 0 : index
    %923 = vector.load %arg2[%c59, %c0_292] : memref<64x128xf32, #tpu.memory_space<vmem>>, vector<1x32xf32>
    %cst_293 = arith.constant dense<0.000000e+00> : vector<8xf32>
    %924 = vector.multi_reduction <add>, %921, %cst_293 [1] : vector<8x32xf32> to vector<8xf32>
    %925 = vector.shape_cast %924 : vector<8xf32> to vector<8x1xf32>
    %cst_294 = arith.constant 3.200000e+01 : f32
    %926 = vector.broadcast %cst_294 : f32 to vector<8x1xf32>
    %927 = arith.divf %925, %926 : vector<8x1xf32>
    %928 = vector.broadcast %927 : vector<8x1xf32> to vector<8x32xf32>
    %929 = arith.subf %921, %928 : vector<8x32xf32>
    %930 = arith.mulf %929, %929 : vector<8x32xf32>
    %cst_295 = arith.constant dense<0.000000e+00> : vector<8xf32>
    %931 = vector.multi_reduction <add>, %930, %cst_295 [1] : vector<8x32xf32> to vector<8xf32>
    %932 = vector.shape_cast %931 : vector<8xf32> to vector<8x1xf32>
    %cst_296 = arith.constant 3.200000e+01 : f32
    %933 = vector.broadcast %cst_296 : f32 to vector<8x1xf32>
    %934 = arith.divf %932, %933 : vector<8x1xf32>
    %935 = vector.broadcast %927 : vector<8x1xf32> to vector<8x32xf32>
    %936 = arith.subf %921, %935 : vector<8x32xf32>
    %cst_297 = arith.constant 9.99999974E-6 : f32
    %937 = vector.broadcast %cst_297 : f32 to vector<8x1xf32>
    %938 = arith.addf %934, %937 : vector<8x1xf32>
    %939 = math.rsqrt %938 : vector<8x1xf32>
    %940 = vector.broadcast %939 : vector<8x1xf32> to vector<8x32xf32>
    %941 = arith.mulf %936, %940 : vector<8x32xf32>
    %942 = vector.broadcast %922 : vector<1x32xf32> to vector<8x32xf32>
    %943 = arith.mulf %941, %942 : vector<8x32xf32>
    %944 = vector.broadcast %923 : vector<1x32xf32> to vector<8x32xf32>
    %945 = arith.addf %943, %944 : vector<8x32xf32>
    %c8 = arith.constant 8 : index
    %c0_298 = arith.constant 0 : index
    %946 = vector.load %arg2[%c8, %c0_298] : memref<64x128xf32, #tpu.memory_space<vmem>>, vector<7x32xf32>
    %c17 = arith.constant 17 : index
    %c0_299 = arith.constant 0 : index
    %947 = vector.load %arg2[%c17, %c0_299] : memref<64x128xf32, #tpu.memory_space<vmem>>, vector<1x7xf32>
    %cst_300 = arith.constant dense<0.000000e+00> : vector<8x7xf32>
    %948 = tpu.matmul %945, %946, %cst_300 {dimension_numbers = #tpu.dot_dimension_numbers<[1], [1], [0], [0], [0, 0, 1, 0], [], []>} : vector<8x32xf32>, vector<7x32xf32>, vector<8x7xf32> -> vector<8x7xf32>
    %949 = vector.broadcast %947 : vector<1x7xf32> to vector<8x7xf32>
    %950 = arith.addf %948, %949 : vector<8x7xf32>
    %c0_301 = arith.constant 0 : index
    %c0_302 = arith.constant 0 : index
    %951 = vector.load %arg4[%c0_301, %c0_302] : memref<8x7xf32, #tpu.memory_space<vmem>>, vector<8x7xf32>
    tpu.vector_store %arg4[%c0_301, %c0_302], %950 {strides = array<i32>} : memref<8x7xf32, #tpu.memory_space<vmem>>, vector<8x7xf32>,
    return
  }
}

</mosaic_0001>

<llo_original>
// kernel: transformer_forward.1
$region0: #{transformer_forward.1}
  #allocation0 [shape = 'u32[]', space=smem, size = 0x4, offset = 0x4, fixed_abs, tag = 'smem constant byte address 0x4 - core index']
  #allocation1 [shape = 'u32[72,128]{1,0:T(1,128)}', space=vmem, size = 0x9000, scoped, tag = 'internal scratch']
  %s0 = inlined_call_operand.hbm [shape: f32[8,7], index: 0, kind: input, shape index: {}]
  %s1 = inlined_call_operand.hbm [shape: bf16[32,18176], index: 1, kind: input, shape index: {}]
  %s2 = inlined_call_operand.hbm [shape: f32[64,128], index: 2, kind: input, shape index: {}]
  %s3 = inlined_call_operand.hbm [shape: f32[8,2048], index: 3, kind: input, shape index: {}]
  %s4 = inlined_call_operand.hbm [shape: f32[8,7], index: 4, kind: output, shape index: {}]
  %s5 = sld [smem:[#allocation0]]
  $region42: #{transformer_forward.1} parent=0
    _
  %s7 = ssub.s32 1, %s5
  %s8 = scalar_select 0, %s7, %s5
  $region1: #{transformer_forward.1} parent=0
    #allocation2 [shape = 'u8[4096]{0}', space=vmem, size = 0x1000, scoped, tag = 'input window, operand 0, single buffered']
    #allocation3 [shape = 's32[1]{0}', space=sflag, size = 0x4, scoped, tag = 'scoped memory for transformer_forward.1']
    #allocation4 [shape = 's32[1]{0}', space=sflag, size = 0x4, scoped, tag = 'scoped memory for transformer_forward.1']
    #allocation5 [shape = 'u8[1163264]{0}', space=vmem, size = 0x11c000, scoped, tag = 'input window, operand 1, single buffered']
    #allocation6 [shape = 's32[1]{0}', space=sflag, size = 0x4, scoped, tag = 'scoped memory for transformer_forward.1']
    #allocation7 [shape = 'u8[32768]{0}', space=vmem, size = 0x8000, scoped, tag = 'input window, operand 2, single buffered']
    #allocation8 [shape = 'u8[65536]{0}', space=vmem, size = 0x10000, scoped, tag = 'input window, operand 3, single buffered']
    #allocation9 [shape = 's32[1]{0}', space=sflag, size = 0x4, scoped, tag = 'scoped memory for transformer_forward.1']
    #allocation10 [shape = 'u8[4096]{0}', space=vmem, size = 0x1000, scoped, tag = 'output window, operand 0, single buffered']
    %9 = vsyncpa [#allocation3], 0
    %10 = vsyncpa [#allocation6], 0
    %11 = vsyncpa [#allocation9], 0
    %12 = vsyncpa [#allocation4], 0
    // Predicated region
    $region2: #{transformer_forward.1} parent=1 // pred_check
      _
    $region3: #{transformer_forward.1} parent=1 // pred_check_branch
      %14 = sbr.rel (0) target = $region5
    $region4: #{transformer_forward.1} parent=1 // pred_region
      %16 = vsyncadd [#allocation3], 0
      %s18 = sshll.u32 %s0, 4
      %s19 = int_to_ptr.hbm [resolvable:$true] %s18
      %s20 = sshll.u32 [#allocation2], 4
      %s21 = int_to_ptr.vmem [resolvable:$true] %s20
      %23 = dma.hbm_to_vmem [thread:$0]  %s19, 128, %s21, [#allocation3]
    $region5: #{transformer_forward.1} parent=1 // pred_fallthru
      _
    // Predicated region
    $region6: #{transformer_forward.1} parent=1 // pred_check
      _
    $region7: #{transformer_forward.1} parent=1 // pred_check_branch
      %25 = sbr.rel (0) target = $region9
    $region8: #{transformer_forward.1} parent=1 // pred_region
      %27 = vsyncadd [#allocation6], 0
      %s28 = sshll.u32 %s1, 4
      %s29 = int_to_ptr.hbm [resolvable:$true] %s28
      %s30 = sshll.u32 [#allocation5], 4
      %s31 = int_to_ptr.vmem [resolvable:$true] %s30
      %36 = dma.hbm_to_vmem [thread:$0]  %s29, 36352, %s31, [#allocation6], 9088, 9088, 568
    $region9: #{transformer_forward.1} parent=1 // pred_fallthru
      _
    // Predicated region
    $region10: #{transformer_forward.1} parent=1 // pred_check
      _
    $region11: #{transformer_forward.1} parent=1 // pred_check_branch
      %38 = sbr.rel (0) target = $region13
    $region12: #{transformer_forward.1} parent=1 // pred_region
      %40 = vsyncadd [#allocation6], 0
      %s41 = sshll.u32 %s2, 4
      %s42 = int_to_ptr.hbm [resolvable:$true] %s41
      %s43 = sshll.u32 [#allocation7], 4
      %s44 = int_to_ptr.vmem [resolvable:$true] %s43
      %49 = dma.hbm_to_vmem [thread:$0]  %s42, 1024, %s44, [#allocation6], 128, 128, 8
    $region13: #{transformer_forward.1} parent=1 // pred_fallthru
      _
    // Predicated region
    $region14: #{transformer_forward.1} parent=1 // pred_check
      _
    $region15: #{transformer_forward.1} parent=1 // pred_check_branch
      %51 = sbr.rel (0) target = $region17
    $region16: #{transformer_forward.1} parent=1 // pred_region
      %53 = vsyncadd [#allocation9], 0
      %s55 = sshll.u32 %s3, 4
      %s56 = int_to_ptr.hbm [resolvable:$true] %s55
      %s57 = sshll.u32 [#allocation8], 4
      %s58 = int_to_ptr.vmem [resolvable:$true] %s57
      %60 = dma.hbm_to_vmem [thread:$0]  %s56, 2048, %s58, [#allocation9]
    $region17: #{transformer_forward.1} parent=1 // pred_fallthru
      _
    // Predicated region
    $region18: #{transformer_forward.1} parent=1 // pred_check
      _
    $region19: #{transformer_forward.1} parent=1 // pred_check_branch
      %62 = sbr.rel (0) target = $region21
    $region20: #{transformer_forward.1} parent=1 // pred_region
      %64 = dma.done [#allocation3], 128
    $region21: #{transformer_forward.1} parent=1 // pred_fallthru
      _
    // Predicated region
    $region22: #{transformer_forward.1} parent=1 // pred_check
      _
    $region23: #{transformer_forward.1} parent=1 // pred_check_branch
      %66 = sbr.rel (0) target = $region25
    $region24: #{transformer_forward.1} parent=1 // pred_region
      %68 = dma.done [#allocation6], 36352
    $region25: #{transformer_forward.1} parent=1 // pred_fallthru
      _
    // Predicated region
    $region26: #{transformer_forward.1} parent=1 // pred_check
      _
    $region27: #{transformer_forward.1} parent=1 // pred_check_branch
      %70 = sbr.rel (0) target = $region29
    $region28: #{transformer_forward.1} parent=1 // pred_region
      %72 = dma.done [#allocation6], 1024
    $region29: #{transformer_forward.1} parent=1 // pred_fallthru
      _
    // Predicated region
    $region30: #{transformer_forward.1} parent=1 // pred_check
      _
    $region31: #{transformer_forward.1} parent=1 // pred_check_branch
      %74 = sbr.rel (0) target = $region33
    $region32: #{transformer_forward.1} parent=1 // pred_region
      %76 = dma.done [#allocation9], 2048
    $region33: #{transformer_forward.1} parent=1 // pred_fallthru
      _
    %v78 = vld [vmem:[#allocation2] sm:$0xff]
    %v79 = vld [vmem:[#allocation7] sm:$0x7f]
    %v80 = vld [vmem:[#allocation7 + $0x10] sm:$0x1]
    %v81 = vperm.slane %v80, 0
    %vm82 = vcmask 56320
    %v84 = vsel %vm82, %v78, 0
    %vm86 = vcmask 1046528
    %v88 = vsel %vm86, %v79, 0
    %90 = vmatpush.msra.mxu0 0.0
    %91 = vmatpush.msra.mxu0 0.0
    %92 = vmatpush.msra.mxu0 0.0
    %93 = vmatpush.msra.mxu0 0.0
    %94 = vmatpush.msra.mxu0 0.0
    %95 = vmatpush.msra.mxu0 0.0
    %96 = vmatpush.msra.mxu0 0.0
    %97 = vmatpush.msra.mxu0 0.0
    %98 = vmatpush.msra.mxu0 0.0
    %99 = vmatpush.msra.mxu0 0.0
    %100 = vmatpush.msra.mxu0 0.0
    %101 = vmatpush.msra.mxu0 0.0
    %102 = vmatpush.msra.mxu0 0.0
    %103 = vmatpush.msra.mxu0 0.0
    %104 = vmatpush.msra.mxu0 0.0
    %105 = vmatpush.msra.mxu0 %v88
    %106 = vmatmul.f32.gmra.mxu0 %v84
    %v107 = vpop.f32.mrf.mxu0
    %v108 = vadd.f32 %v81, %v107
    %109 = vdwg.mxu0
    %v110 = vld [vmem:[#allocation5] sm:$0xf]
    %v111 = vld [vmem:[#allocation5 + $0x238] sm:$0xf]
    %v112 = vld [vmem:[#allocation5 + $0x470] sm:$0xf]
    %v113 = vld [vmem:[#allocation5 + $0x6a8] sm:$0xf]
    %v114 = vld [vmem:[#allocation7 + $0x12] sm:$0x1]
    %v115 = vld [vmem:[#allocation5 + $0x4] sm:$0xf]
    %v116 = vld [vmem:[#allocation5 + $0x23c] sm:$0xf]
    %v117 = vld [vmem:[#allocation5 + $0x474] sm:$0xf]
    %v118 = vld [vmem:[#allocation5 + $0x6ac] sm:$0xf]
    %v119 = vld [vmem:[#allocation7 + $0x13] sm:$0x1]
    %v120 = vpack.c.bf16 %v108, %v108
    %v121 = vperm.slane %v114, 0
    %v126 = vunpack.c.l.b16 %v110
    %v127 = vunpack.c.l.b16 %v111
    %v128 = vunpack.c.l.b16 %v112
    %v129 = vunpack.c.l.b16 %v113
    %v130 = vpack.c.b16 %v127, %v126
    %v131 = vpack.c.b16 %v129, %v128
    %vm134 = vcmask 261120
    %v136 = vsel %vm134, %v120, 0
    %138 = vmatpush.bf16.msra.mxu0 0
    %139 = vmatpush.bf16.msra.mxu0 0
    %140 = vmatpush.bf16.msra.mxu0 0
    %141 = vmatpush.bf16.msra.mxu0 0
    %142 = vmatpush.bf16.msra.mxu0 0
    %143 = vmatpush.bf16.msra.mxu0 0
    %144 = vmatpush.bf16.msra.mxu0 %v131
    %145 = vmatpush.bf16.msra.mxu0 %v130
    %146 = vmatmul.bf16.gmra.mxu0 %v136
    %v147 = vpop.f32.mrf.mxu0
    %v148 = vadd.f32 %v121, %v147
    %v149 = vpop.f32.mrf.mxu0
    %150 = vdwg.mxu0
    %152 = vrot.lane.b32.xlu0 %v148, 96
    %v153 = vpop.permute.xlu0 %152
    %vm154 = vcmask 64512
    %v155 = vsel %vm154, %v148, 0
    %v157 = vsel %vm154, %v153, 0
    %159 = vmatpush.xpose.msra.mxu0 0.0
    %160 = vmatpush.xpose.msra.mxu0 0.0
    %161 = vmatpush.xpose.msra.mxu0 0.0
    %162 = vmatpush.xpose.msra.mxu0 0.0
    %163 = vmatpush.xpose.msra.mxu0 0.0
    %164 = vmatpush.xpose.msra.mxu0 0.0
    %165 = vmatpush.xpose.msra.mxu0 0.0
    %166 = vmatpush.xpose.msra.mxu0 0.0
    %167 = vmatpush.xpose.msra.mxu0 0.0
    %168 = vmatpush.xpose.msra.mxu0 0.0
    %169 = vmatpush.xpose.msra.mxu0 0.0
    %170 = vmatpush.xpose.msra.mxu0 0.0
    %171 = vmatpush.xpose.msra.mxu0 0.0
    %172 = vmatpush.xpose.msra.mxu0 0.0
    %173 = vmatpush.xpose.msra.mxu0 0.0
    %174 = vmatpush.xpose.msra.mxu0 %v157
    %175 = vmatmul.f32.gmra.mxu0 %v155
    %v176 = vpop.f32.mrf.mxu0
    %v177 = vadd.f32 0.0, %v176
    %178 = vdwg.mxu0
    %v179 = vmul.f32 %v177, 0.35355338
    %v180 = vsel %vm154, %v179, -inf
    %181 = vmax.xlane.f32.xlu0 %v180
    %v182 = vpop.xlane.xlu0 %181
    %v183 = vsub.f32 %v179, %v182
    %v184 = vmul.f32 %v183, 1.442695
    %v185 = vpow.pop %v184
    %v186 = vsel %vm154, %v185, 0.0
    %187 = vadd.xlane.f32.xlu0 %v186
    %v188 = vpop.xlane.xlu0 %187
    %v189 = vrcp.pop %v188
    %v190 = vmul.f32 %v185, %v189
    %191 = vrot.lane.b32.xlu0 %v148, 64
    %v192 = vpop.permute.xlu0 %191
    %v195 = vsel %vm154, %v190, 0
    %197 = vmatpush.msra.mxu0 0.0
    %198 = vmatpush.msra.mxu0 0.0
    %199 = vmatpush.msra.mxu0 0.0
    %200 = vmatpush.msra.mxu0 0.0
    %201 = vmatpush.msra.mxu0 0.0
    %202 = vmatpush.msra.mxu0 0.0
    %203 = vmatpush.msra.mxu0 0.0
    %204 = vmatpush.msra.mxu0 0.0
    %205 = vmatpush.msra.mxu0 0.0
    %206 = vmatpush.msra.mxu0 0.0
    %207 = vmatpush.msra.mxu0 0.0
    %208 = vmatpush.msra.mxu0 0.0
    %209 = vmatpush.msra.mxu0 0.0
    %210 = vmatpush.msra.mxu0 0.0
    %211 = vmatpush.msra.mxu0 0.0
    %212 = vmatpush.msra.mxu0 %v192
    %213 = vmatmul.f32.gmra.mxu0 %v195
    %v214 = vpop.f32.mrf.mxu0
    %v215 = vadd.f32 0.0, %v214
    %216 = vdwg.mxu0
    %v217 = vpack.c.bf16 %v215, %v215
    %218 = vrot.lane.b32.xlu0 %v148, 120
    %v219 = vpop.permute.xlu0 %218
    %220 = vrot.lane.b32.xlu0 %v148, 88
    %v221 = vpop.permute.xlu0 %220
    %v222 = vsel %vm154, %v219, 0
    %v224 = vsel %vm154, %v221, 0
    %226 = vmatpush.xpose.msra.mxu0 0.0
    %227 = vmatpush.xpose.msra.mxu0 0.0
    %228 = vmatpush.xpose.msra.mxu0 0.0
    %229 = vmatpush.xpose.msra.mxu0 0.0
    %230 = vmatpush.xpose.msra.mxu0 0.0
    %231 = vmatpush.xpose.msra.mxu0 0.0
    %232 = vmatpush.xpose.msra.mxu0 0.0
    %233 = vmatpush.xpose.msra.mxu0 0.0
    %234 = vmatpush.xpose.msra.mxu0 0.0
    %235 = vmatpush.xpose.msra.mxu0 0.0
    %236 = vmatpush.xpose.msra.mxu0 0.0
    %237 = vmatpush.xpose.msra.mxu0 0.0
    %238 = vmatpush.xpose.msra.mxu0 0.0
    %239 = vmatpush.xpose.msra.mxu0 0.0
    %240 = vmatpush.xpose.msra.mxu0 0.0
    %241 = vmatpush.xpose.msra.mxu0 %v224
    %242 = vmatmul.f32.gmra.mxu0 %v222
    %v243 = vpop.f32.mrf.mxu0
    %v244 = vadd.f32 0.0, %v243
    %245 = vdwg.mxu0
    %v246 = vmul.f32 %v244, 0.35355338
    %v247 = vsel %vm154, %v246, -inf
    %248 = vmax.xlane.f32.xlu0 %v247
    %v249 = vpop.xlane.xlu0 %248
    %v250 = vsub.f32 %v246, %v249
    %v251 = vmul.f32 %v250, 1.442695
    %v252 = vpow.pop %v251
    %v253 = vsel %vm154, %v252, 0.0
    %254 = vadd.xlane.f32.xlu0 %v253
    %v255 = vpop.xlane.xlu0 %254
    %v256 = vrcp.pop %v255
    %v257 = vmul.f32 %v252, %v256
    %258 = vrot.lane.b32.xlu0 %v148, 56
    %v259 = vpop.permute.xlu0 %258
    %v262 = vsel %vm154, %v257, 0
    %264 = vmatpush.msra.mxu0 0.0
    %265 = vmatpush.msra.mxu0 0.0
    %266 = vmatpush.msra.mxu0 0.0
    %267 = vmatpush.msra.mxu0 0.0
    %268 = vmatpush.msra.mxu0 0.0
    %269 = vmatpush.msra.mxu0 0.0
    %270 = vmatpush.msra.mxu0 0.0
    %271 = vmatpush.msra.mxu0 0.0
    %272 = vmatpush.msra.mxu0 0.0
    %273 = vmatpush.msra.mxu0 0.0
    %274 = vmatpush.msra.mxu0 0.0
    %275 = vmatpush.msra.mxu0 0.0
    %276 = vmatpush.msra.mxu0 0.0
    %277 = vmatpush.msra.mxu0 0.0
    %278 = vmatpush.msra.mxu0 0.0
    %279 = vmatpush.msra.mxu0 %v259
    %280 = vmatmul.f32.gmra.mxu0 %v262
    %v281 = vpop.f32.mrf.mxu0
    %v282 = vadd.f32 0.0, %v281
    %283 = vdwg.mxu0
    %v284 = vpack.c.bf16 %v282, %v282
    %v286 = vsel %vm154, %v284, 0
    %vm288 = vcmask 1043456
    %v290 = vsel %vm288, %v116, 0
    %292 = vmatpush.bf16.msra.mxu0 0
    %293 = vmatpush.bf16.msra.mxu0 0
    %294 = vmatpush.bf16.msra.mxu0 0
    %295 = vmatpush.bf16.msra.mxu0 0
    %296 = vmatpush.bf16.msra.mxu0 0
    %297 = vmatpush.bf16.msra.mxu0 0
    %298 = vmatpush.bf16.msra.mxu0 0
    %299 = vmatpush.bf16.msra.mxu0 %v290
    %300 = vmatmul.bf16.gmra.mxu0 %v286
    %v301 = vpop.f32.mrf.mxu0
    %v302 = vadd.f32 0.0, %v301
    %v303 = vpop.f32.mrf.mxu0
    %304 = vdwg.mxu0
    %v306 = vsel %vm154, %v217, 0
    %v309 = vsel %vm288, %v115, 0
    %311 = vmatpush.bf16.msra.mxu0 0
    %312 = vmatpush.bf16.msra.mxu0 0
    %313 = vmatpush.bf16.msra.mxu0 0
    %314 = vmatpush.bf16.msra.mxu0 0
    %315 = vmatpush.bf16.msra.mxu0 0
    %316 = vmatpush.bf16.msra.mxu0 0
    %317 = vmatpush.bf16.msra.mxu0 0
    %318 = vmatpush.bf16.msra.mxu0 %v309
    %319 = vmatmul.bf16.gmra.mxu0 %v306
    %v320 = vpop.f32.mrf.mxu0
    %v321 = vadd.f32 %v302, %v320
    %v322 = vpop.f32.mrf.mxu0
    %323 = vdwg.mxu0
    %324 = vrot.lane.b32.xlu0 %v148, 112
    %v325 = vpop.permute.xlu0 %324
    %326 = vrot.lane.b32.xlu0 %v148, 80
    %v327 = vpop.permute.xlu0 %326
    %v328 = vsel %vm154, %v325, 0
    %v330 = vsel %vm154, %v327, 0
    %332 = vmatpush.xpose.msra.mxu0 0.0
    %333 = vmatpush.xpose.msra.mxu0 0.0
    %334 = vmatpush.xpose.msra.mxu0 0.0
    %335 = vmatpush.xpose.msra.mxu0 0.0
    %336 = vmatpush.xpose.msra.mxu0 0.0
    %337 = vmatpush.xpose.msra.mxu0 0.0
    %338 = vmatpush.xpose.msra.mxu0 0.0
    %339 = vmatpush.xpose.msra.mxu0 0.0
    %340 = vmatpush.xpose.msra.mxu0 0.0
    %341 = vmatpush.xpose.msra.mxu0 0.0
    %342 = vmatpush.xpose.msra.mxu0 0.0
    %343 = vmatpush.xpose.msra.mxu0 0.0
    %344 = vmatpush.xpose.msra.mxu0 0.0
    %345 = vmatpush.xpose.msra.mxu0 0.0
    %346 = vmatpush.xpose.msra.mxu0 0.0
    %347 = vmatpush.xpose.msra.mxu0 %v330
    %348 = vmatmul.f32.gmra.mxu0 %v328
    %v349 = vpop.f32.mrf.mxu0
    %v350 = vadd.f32 0.0, %v349
    %351 = vdwg.mxu0
    %v352 = vmul.f32 %v350, 0.35355338
    %v353 = vsel %vm154, %v352, -inf
    %354 = vmax.xlane.f32.xlu0 %v353
    %v355 = vpop.xlane.xlu0 %354
    %v356 = vsub.f32 %v352, %v355
    %v357 = vmul.f32 %v356, 1.442695
    %v358 = vpow.pop %v357
    %v359 = vsel %vm154, %v358, 0.0
    %360 = vadd.xlane.f32.xlu0 %v359
    %v361 = vpop.xlane.xlu0 %360
    %v362 = vrcp.pop %v361
    %v363 = vmul.f32 %v358, %v362
    %364 = vrot.lane.b32.xlu0 %v148, 48
    %v365 = vpop.permute.xlu0 %364
    %v368 = vsel %vm154, %v363, 0
    %370 = vmatpush.msra.mxu0 0.0
    %371 = vmatpush.msra.mxu0 0.0
    %372 = vmatpush.msra.mxu0 0.0
    %373 = vmatpush.msra.mxu0 0.0
    %374 = vmatpush.msra.mxu0 0.0
    %375 = vmatpush.msra.mxu0 0.0
    %376 = vmatpush.msra.mxu0 0.0
    %377 = vmatpush.msra.mxu0 0.0
    %378 = vmatpush.msra.mxu0 0.0
    %379 = vmatpush.msra.mxu0 0.0
    %380 = vmatpush.msra.mxu0 0.0
    %381 = vmatpush.msra.mxu0 0.0
    %382 = vmatpush.msra.mxu0 0.0
    %383 = vmatpush.msra.mxu0 0.0
    %384 = vmatpush.msra.mxu0 0.0
    %385 = vmatpush.msra.mxu0 %v365
    %386 = vmatmul.f32.gmra.mxu0 %v368
    %v387 = vpop.f32.mrf.mxu0
    %v388 = vadd.f32 0.0, %v387
    %389 = vdwg.mxu0
    %v390 = vpack.c.bf16 %v388, %v388
    %v392 = vsel %vm154, %v390, 0
    %v395 = vsel %vm288, %v117, 0
    %397 = vmatpush.bf16.msra.mxu0 0
    %398 = vmatpush.bf16.msra.mxu0 0
    %399 = vmatpush.bf16.msra.mxu0 0
    %400 = vmatpush.bf16.msra.mxu0 0
    %401 = vmatpush.bf16.msra.mxu0 0
    %402 = vmatpush.bf16.msra.mxu0 0
    %403 = vmatpush.bf16.msra.mxu0 0
    %404 = vmatpush.bf16.msra.mxu0 %v395
    %405 = vmatmul.bf16.gmra.mxu0 %v392
    %v406 = vpop.f32.mrf.mxu0
    %v407 = vadd.f32 0.0, %v406
    %v408 = vpop.f32.mrf.mxu0
    %409 = vdwg.mxu0
    %v410 = vadd.f32 %v321, %v407
    %411 = vrot.lane.b32.xlu0 %v148, 104
    %v412 = vpop.permute.xlu0 %411
    %413 = vrot.lane.b32.xlu0 %v148, 72
    %v414 = vpop.permute.xlu0 %413
    %v415 = vsel %vm154, %v412, 0
    %v417 = vsel %vm154, %v414, 0
    %419 = vmatpush.xpose.msra.mxu0 0.0
    %420 = vmatpush.xpose.msra.mxu0 0.0
    %421 = vmatpush.xpose.msra.mxu0 0.0
    %422 = vmatpush.xpose.msra.mxu0 0.0
    %423 = vmatpush.xpose.msra.mxu0 0.0
    %424 = vmatpush.xpose.msra.mxu0 0.0
    %425 = vmatpush.xpose.msra.mxu0 0.0
    %426 = vmatpush.xpose.msra.mxu0 0.0
    %427 = vmatpush.xpose.msra.mxu0 0.0
    %428 = vmatpush.xpose.msra.mxu0 0.0
    %429 = vmatpush.xpose.msra.mxu0 0.0
    %430 = vmatpush.xpose.msra.mxu0 0.0
    %431 = vmatpush.xpose.msra.mxu0 0.0
    %432 = vmatpush.xpose.msra.mxu0 0.0
    %433 = vmatpush.xpose.msra.mxu0 0.0
    %434 = vmatpush.xpose.msra.mxu0 %v417
    %435 = vmatmul.f32.gmra.mxu0 %v415
    %v436 = vpop.f32.mrf.mxu0
    %v437 = vadd.f32 0.0, %v436
    %438 = vdwg.mxu0
    %v439 = vmul.f32 %v437, 0.35355338
    %v440 = vsel %vm154, %v439, -inf
    %441 = vmax.xlane.f32.xlu0 %v440
    %v442 = vpop.xlane.xlu0 %441
    %v443 = vsub.f32 %v439, %v442
    %v444 = vmul.f32 %v443, 1.442695
    %v445 = vpow.pop %v444
    %v446 = vsel %vm154, %v445, 0.0
    %447 = vadd.xlane.f32.xlu0 %v446
    %v448 = vpop.xlane.xlu0 %447
    %v449 = vrcp.pop %v448
    %v450 = vmul.f32 %v445, %v449
    %451 = vrot.lane.b32.xlu0 %v148, 40
    %v452 = vpop.permute.xlu0 %451
    %v455 = vsel %vm154, %v450, 0
    %457 = vmatpush.msra.mxu0 0.0
    %458 = vmatpush.msra.mxu0 0.0
    %459 = vmatpush.msra.mxu0 0.0
    %460 = vmatpush.msra.mxu0 0.0
    %461 = vmatpush.msra.mxu0 0.0
    %462 = vmatpush.msra.mxu0 0.0
    %463 = vmatpush.msra.mxu0 0.0
    %464 = vmatpush.msra.mxu0 0.0
    %465 = vmatpush.msra.mxu0 0.0
    %466 = vmatpush.msra.mxu0 0.0
    %467 = vmatpush.msra.mxu0 0.0
    %468 = vmatpush.msra.mxu0 0.0
    %469 = vmatpush.msra.mxu0 0.0
    %470 = vmatpush.msra.mxu0 0.0
    %471 = vmatpush.msra.mxu0 0.0
    %472 = vmatpush.msra.mxu0 %v452
    %473 = vmatmul.f32.gmra.mxu0 %v455
    %v474 = vpop.f32.mrf.mxu0
    %v475 = vadd.f32 0.0, %v474
    %476 = vdwg.mxu0
    %v477 = vpack.c.bf16 %v475, %v475
    %v479 = vsel %vm154, %v477, 0
    %v482 = vsel %vm288, %v118, 0
    %484 = vmatpush.bf16.msra.mxu0 0
    %485 = vmatpush.bf16.msra.mxu0 0
    %486 = vmatpush.bf16.msra.mxu0 0
    %487 = vmatpush.bf16.msra.mxu0 0
    %488 = vmatpush.bf16.msra.mxu0 0
    %489 = vmatpush.bf16.msra.mxu0 0
    %490 = vmatpush.bf16.msra.mxu0 0
    %491 = vmatpush.bf16.msra.mxu0 %v482
    %492 = vmatmul.bf16.gmra.mxu0 %v479
    %v493 = vpop.f32.mrf.mxu0
    %v494 = vadd.f32 0.0, %v493
    %v495 = vpop.f32.mrf.mxu0
    %496 = vdwg.mxu0
    %v497 = vadd.f32 %v410, %v494
    %v498 = vperm.slane %v119, 0
    %v499 = vadd.f32 %v497, %v498
    %v500 = vadd.f32 %v108, %v499
    %v501 = vld [vmem:[#allocation7 + $0x14] sm:$0x1]
    %v502 = vld [vmem:[#allocation7 + $0x15] sm:$0x1]
    %v503 = vsel %vm134, %v500, 0.0
    %504 = vadd.xlane.f32.xlu0 %v503
    %v505 = vpop.xlane.xlu0 %504
    %v506 = vrcp.pop 32.0
    %v507 = vmul.f32 32.0, %v506
    %v508 = vsub.f32 1.0, %v507
    %v509 = vmul.f32 %v506, %v508
    %v510 = vadd.f32 %v506, %v509
    %vm511 = vweird.f32 %v506
    %v512 = vsel %vm511, %v506, %v510
    %v513 = vmul.f32 %v505, %v512
    %v514 = vsub.f32 %v500, %v513
    %v515 = vmul.f32 %v514, %v514
    %v516 = vsel %vm134, %v515, 0.0
    %517 = vadd.xlane.f32.xlu0 %v516
    %v518 = vpop.xlane.xlu0 %517
    %v519 = vmul.f32 %v518, %v512
    %v520 = vadd.f32 %v519, 1e-05
    %v521 = vrsqrt.pop %v520
    %v522 = vmul.f32 %v521, %v520
    %v523 = vmul.f32 %v522, %v521
    %v524 = vmul.f32 0.5, %v523
    %v525 = vsub.f32 1.5, %v524
    %v526 = vmul.f32 %v521, %v525
    %vm527 = vweird.f32 %v520
    %vm528 = vweird.f32 %v521
    %vm529 = vmor %vm527, %vm528
    %v530 = vsel %vm529, %v521, %v526
    %v531 = vmul.f32 %v514, %v530
    %v532 = vperm.slane %v501, 0
    %v533 = vmul.f32 %v531, %v532
    %v534 = vperm.slane %v502, 0
    %v535 = vadd.f32 %v533, %v534
    %v536 = vld [vmem:[#allocation5 + $0x8] sm:$0xff]
    %v537 = vld [vmem:[#allocation5 + $0x10] sm:$0xff]
    %v538 = vld [vmem:[#allocation5 + $0x18] sm:$0xff]
    %v539 = vld [vmem:[#allocation5 + $0x20] sm:$0xff]
    %v540 = vld [vmem:[#allocation5 + $0x28] sm:$0xff]
    %v541 = vld [vmem:[#allocation5 + $0x30] sm:$0xff]
    %v542 = vld [vmem:[#allocation5 + $0x38] sm:$0xff]
    %v543 = vld [vmem:[#allocation5 + $0x40] sm:$0xff]
    %v544 = vld [vmem:[#allocation5 + $0x240] sm:$0xff]
    %v545 = vld [vmem:[#allocation5 + $0x248] sm:$0xff]
    %v546 = vld [vmem:[#allocation5 + $0x250] sm:$0xff]
    %v547 = vld [vmem:[#allocation5 + $0x258] sm:$0xff]
    %v548 = vld [vmem:[#allocation5 + $0x260] sm:$0xff]
    %v549 = vld [vmem:[#allocation5 + $0x268] sm:$0xff]
    %v550 = vld [vmem:[#allocation5 + $0x270] sm:$0xff]
    %v551 = vld [vmem:[#allocation5 + $0x278] sm:$0xff]
    %v552 = vld [vmem:[#allocation5 + $0x478] sm:$0xff]
    %v553 = vld [vmem:[#allocation5 + $0x480] sm:$0xff]
    %v554 = vld [vmem:[#allocation5 + $0x488] sm:$0xff]
    %v555 = vld [vmem:[#allocation5 + $0x490] sm:$0xff]
    %v556 = vld [vmem:[#allocation5 + $0x498] sm:$0xff]
    %v557 = vld [vmem:[#allocation5 + $0x4a0] sm:$0xff]
    %v558 = vld [vmem:[#allocation5 + $0x4a8] sm:$0xff]
    %v559 = vld [vmem:[#allocation5 + $0x4b0] sm:$0xff]
    %v560 = vld [vmem:[#allocation5 + $0x6b0] sm:$0xff]
    %v561 = vld [vmem:[#allocation5 + $0x6b8] sm:$0xff]
    %v562 = vld [vmem:[#allocation5 + $0x6c0] sm:$0xff]
    %v563 = vld [vmem:[#allocation5 + $0x6c8] sm:$0xff]
    %v564 = vld [vmem:[#allocation5 + $0x6d0] sm:$0xff]
    %v565 = vld [vmem:[#allocation5 + $0x6d8] sm:$0xff]
    %v566 = vld [vmem:[#allocation5 + $0x6e0] sm:$0xff]
    %v567 = vld [vmem:[#allocation5 + $0x6e8] sm:$0xff]
    %v568 = vld [vmem:[#allocation8] ss:$8 sm:$0xf]
    %v569 = vld [vmem:[#allocation8] ss:$8 sm:$0xf0]
    %v570 = vor.u32 %v568, %v569
    %s571 = scalar_lea.vmem [#allocation8], 64
    %v572 = vld [vmem:[%s571] ss:$8 sm:$0xf]
    %v573 = vld [vmem:[%s571] ss:$8 sm:$0xf0]
    %v574 = vor.u32 %v572, %v573
    %v575 = vld [vmem:[#allocation5 + $0x48] sm:$0xff]
    %v576 = vld [vmem:[#allocation5 + $0x50] sm:$0xff]
    %v577 = vld [vmem:[#allocation5 + $0x58] sm:$0xff]
    %v578 = vld [vmem:[#allocation5 + $0x60] sm:$0xff]
    %v579 = vld [vmem:[#allocation5 + $0x68] sm:$0xff]
    %v580 = vld [vmem:[#allocation5 + $0x70] sm:$0xff]
    %v581 = vld [vmem:[#allocation5 + $0x78] sm:$0xff]
    %v582 = vld [vmem:[#allocation5 + $0x80] sm:$0xff]
    %v583 = vld [vmem:[#allocation5 + $0x280] sm:$0xff]
    %v584 = vld [vmem:[#allocation5 + $0x288] sm:$0xff]
    %v585 = vld [vmem:[#allocation5 + $0x290] sm:$0xff]
    %v586 = vld [vmem:[#allocation5 + $0x298] sm:$0xff]
    %v587 = vld [vmem:[#allocation5 + $0x2a0] sm:$0xff]
    %v588 = vld [vmem:[#allocation5 + $0x2a8] sm:$0xff]
    %v589 = vld [vmem:[#allocation5 + $0x2b0] sm:$0xff]
    %v590 = vld [vmem:[#allocation5 + $0x2b8] sm:$0xff]
    %v591 = vld [vmem:[#allocation5 + $0x4b8] sm:$0xff]
    %v592 = vld [vmem:[#allocation5 + $0x4c0] sm:$0xff]
    %v593 = vld [vmem:[#allocation5 + $0x4c8] sm:$0xff]
    %v594 = vld [vmem:[#allocation5 + $0x4d0] sm:$0xff]
    %v595 = vld [vmem:[#allocation5 + $0x4d8] sm:$0xff]
    %v596 = vld [vmem:[#allocation5 + $0x4e0] sm:$0xff]
    %v597 = vld [vmem:[#allocation5 + $0x4e8] sm:$0xff]
    %v598 = vld [vmem:[#allocation5 + $0x4f0] sm:$0xff]
    %v599 = vld [vmem:[#allocation5 + $0x6f0] sm:$0xff]
    %v600 = vld [vmem:[#allocation5 + $0x6f8] sm:$0xff]
    %v601 = vld [vmem:[#allocation5 + $0x700] sm:$0xff]
    %v602 = vld [vmem:[#allocation5 + $0x708] sm:$0xff]
    %v603 = vld [vmem:[#allocation5 + $0x710] sm:$0xff]
    %v604 = vld [vmem:[#allocation5 + $0x718] sm:$0xff]
    %v605 = vld [vmem:[#allocation5 + $0x720] sm:$0xff]
    %v606 = vld [vmem:[#allocation5 + $0x728] sm:$0xff]
    %v607 = vld [vmem:[#allocation7 + $0x16] sm:$0x1]
    %v608 = vpack.c.bf16 %v535, %v535
    %v611 = vperm.slane %v570, 0
    %v612 = vperm.slane %v570, 1
    %v613 = vperm.slane %v570, 2
    %v614 = vperm.slane %v570, 3
    %v615 = vperm.slane %v570, 4
    %v616 = vperm.slane %v570, 5
    %v617 = vperm.slane %v570, 6
    %v618 = vperm.slane %v570, 7
    %v619 = vperm.slane %v574, 0
    %v620 = vperm.slane %v574, 1
    %v621 = vperm.slane %v574, 2
    %v622 = vperm.slane %v574, 3
    %v623 = vperm.slane %v574, 4
    %v624 = vperm.slane %v574, 5
    %v625 = vperm.slane %v574, 6
    %v626 = vperm.slane %v574, 7
    %v675 = vunpack.c.l.b16 %v536
    %v676 = vunpack.c.h.b16 %v536
    %v677 = vunpack.c.l.b16 %v537
    %v678 = vunpack.c.h.b16 %v537
    %v679 = vunpack.c.l.b16 %v538
    %v680 = vunpack.c.h.b16 %v538
    %v681 = vunpack.c.l.b16 %v539
    %v682 = vunpack.c.h.b16 %v539
    %v683 = vunpack.c.l.b16 %v540
    %v684 = vunpack.c.h.b16 %v540
    %v685 = vunpack.c.l.b16 %v541
    %v686 = vunpack.c.h.b16 %v541
    %v687 = vunpack.c.l.b16 %v542
    %v688 = vunpack.c.h.b16 %v542
    %v689 = vunpack.c.l.b16 %v543
    %v690 = vunpack.c.h.b16 %v543
    %v691 = vunpack.c.l.b16 %v544
    %v692 = vunpack.c.h.b16 %v544
    %v693 = vunpack.c.l.b16 %v545
    %v694 = vunpack.c.h.b16 %v545
    %v695 = vunpack.c.l.b16 %v546
    %v696 = vunpack.c.h.b16 %v546
    %v697 = vunpack.c.l.b16 %v547
    %v698 = vunpack.c.h.b16 %v547
    %v699 = vunpack.c.l.b16 %v548
    %v700 = vunpack.c.h.b16 %v548
    %v701 = vunpack.c.l.b16 %v549
    %v702 = vunpack.c.h.b16 %v549
    %v703 = vunpack.c.l.b16 %v550
    %v704 = vunpack.c.h.b16 %v550
    %v705 = vunpack.c.l.b16 %v551
    %v706 = vunpack.c.h.b16 %v551
    %v707 = vunpack.c.l.b16 %v552
    %v708 = vunpack.c.h.b16 %v552
    %v709 = vunpack.c.l.b16 %v553
    %v710 = vunpack.c.h.b16 %v553
    %v711 = vunpack.c.l.b16 %v554
    %v712 = vunpack.c.h.b16 %v554
    %v713 = vunpack.c.l.b16 %v555
    %v714 = vunpack.c.h.b16 %v555
    %v715 = vunpack.c.l.b16 %v556
    %v716 = vunpack.c.h.b16 %v556
    %v717 = vunpack.c.l.b16 %v557
    %v718 = vunpack.c.h.b16 %v557
    %v719 = vunpack.c.l.b16 %v558
    %v720 = vunpack.c.h.b16 %v558
    %v721 = vunpack.c.l.b16 %v559
    %v722 = vunpack.c.h.b16 %v559
    %v723 = vunpack.c.l.b16 %v560
    %v724 = vunpack.c.h.b16 %v560
    %v725 = vunpack.c.l.b16 %v561
    %v726 = vunpack.c.h.b16 %v561
    %v727 = vunpack.c.l.b16 %v562
    %v728 = vunpack.c.h.b16 %v562
    %v729 = vunpack.c.l.b16 %v563
    %v730 = vunpack.c.h.b16 %v563
    %v731 = vunpack.c.l.b16 %v564
    %v732 = vunpack.c.h.b16 %v564
    %v733 = vunpack.c.l.b16 %v565
    %v734 = vunpack.c.h.b16 %v565
    %v735 = vunpack.c.l.b16 %v566
    %v736 = vunpack.c.h.b16 %v566
    %v737 = vunpack.c.l.b16 %v567
    %v738 = vunpack.c.h.b16 %v567
    %v739 = vpack.c.b16 %v691, %v675
    %v740 = vpack.c.b16 %v692, %v676
    %v741 = vpack.c.b16 %v693, %v677
    %v742 = vpack.c.b16 %v694, %v678
    %v743 = vpack.c.b16 %v695, %v679
    %v744 = vpack.c.b16 %v696, %v680
    %v745 = vpack.c.b16 %v697, %v681
    %v746 = vpack.c.b16 %v698, %v682
    %v747 = vpack.c.b16 %v699, %v683
    %v748 = vpack.c.b16 %v700, %v684
    %v749 = vpack.c.b16 %v701, %v685
    %v750 = vpack.c.b16 %v702, %v686
    %v751 = vpack.c.b16 %v703, %v687
    %v752 = vpack.c.b16 %v704, %v688
    %v753 = vpack.c.b16 %v705, %v689
    %v754 = vpack.c.b16 %v706, %v690
    %v755 = vpack.c.b16 %v723, %v707
    %v756 = vpack.c.b16 %v724, %v708
    %v757 = vpack.c.b16 %v725, %v709
    %v758 = vpack.c.b16 %v726, %v710
    %v759 = vpack.c.b16 %v727, %v711
    %v760 = vpack.c.b16 %v728, %v712
    %v761 = vpack.c.b16 %v729, %v713
    %v762 = vpack.c.b16 %v730, %v714
    %v763 = vpack.c.b16 %v731, %v715
    %v764 = vpack.c.b16 %v732, %v716
    %v765 = vpack.c.b16 %v733, %v717
    %v766 = vpack.c.b16 %v734, %v718
    %v767 = vpack.c.b16 %v735, %v719
    %v768 = vpack.c.b16 %v736, %v720
    %v769 = vpack.c.b16 %v737, %v721
    %v770 = vpack.c.b16 %v738, %v722
    %v804 = vsel %vm134, %v608, 0
    %806 = vmatpush.bf16.msra.mxu0 0
    %807 = vmatpush.bf16.msra.mxu0 0
    %808 = vmatpush.bf16.msra.mxu0 0
    %809 = vmatpush.bf16.msra.mxu0 0
    %810 = vmatpush.bf16.msra.mxu0 0
    %811 = vmatpush.bf16.msra.mxu0 0
    %812 = vmatpush.bf16.msra.mxu0 %v755
    %813 = vmatpush.bf16.msra.mxu0 %v739
    %814 = vmatmul.bf16.gmra.mxu0 %v804
    %v815 = vpop.f32.mrf.mxu0
    %v816 = vadd.f32 %v611, %v815
    %v817 = vpop.f32.mrf.mxu0
    %818 = vdwg.mxu0
    %819 = vmatpush.bf16.msra.mxu0 0
    %820 = vmatpush.bf16.msra.mxu0 0
    %821 = vmatpush.bf16.msra.mxu0 0
    %822 = vmatpush.bf16.msra.mxu0 0
    %823 = vmatpush.bf16.msra.mxu0 0
    %824 = vmatpush.bf16.msra.mxu0 0
    %825 = vmatpush.bf16.msra.mxu0 %v756
    %826 = vmatpush.bf16.msra.mxu0 %v740
    %827 = vmatmul.bf16.gmra.mxu0 %v804
    %v828 = vpop.f32.mrf.mxu0
    %v829 = vadd.f32 %v612, %v828
    %v830 = vpop.f32.mrf.mxu0
    %831 = vdwg.mxu0
    %832 = vmatpush.bf16.msra.mxu0 0
    %833 = vmatpush.bf16.msra.mxu0 0
    %834 = vmatpush.bf16.msra.mxu0 0
    %835 = vmatpush.bf16.msra.mxu0 0
    %836 = vmatpush.bf16.msra.mxu0 0
    %837 = vmatpush.bf16.msra.mxu0 0
    %838 = vmatpush.bf16.msra.mxu0 %v757
    %839 = vmatpush.bf16.msra.mxu0 %v741
    %840 = vmatmul.bf16.gmra.mxu0 %v804
    %v841 = vpop.f32.mrf.mxu0
    %v842 = vadd.f32 %v613, %v841
    %v843 = vpop.f32.mrf.mxu0
    %844 = vdwg.mxu0
    %845 = vmatpush.bf16.msra.mxu0 0
    %846 = vmatpush.bf16.msra.mxu0 0
    %847 = vmatpush.bf16.msra.mxu0 0
    %848 = vmatpush.bf16.msra.mxu0 0
    %849 = vmatpush.bf16.msra.mxu0 0
    %850 = vmatpush.bf16.msra.mxu0 0
    %851 = vmatpush.bf16.msra.mxu0 %v758
    %852 = vmatpush.bf16.msra.mxu0 %v742
    %853 = vmatmul.bf16.gmra.mxu0 %v804
    %v854 = vpop.f32.mrf.mxu0
    %v855 = vadd.f32 %v614, %v854
    %v856 = vpop.f32.mrf.mxu0
    %857 = vdwg.mxu0
    %858 = vmatpush.bf16.msra.mxu0 0
    %859 = vmatpush.bf16.msra.mxu0 0
    %860 = vmatpush.bf16.msra.mxu0 0
    %861 = vmatpush.bf16.msra.mxu0 0
    %862 = vmatpush.bf16.msra.mxu0 0
    %863 = vmatpush.bf16.msra.mxu0 0
    %864 = vmatpush.bf16.msra.mxu0 %v759
    %865 = vmatpush.bf16.msra.mxu0 %v743
    %866 = vmatmul.bf16.gmra.mxu0 %v804
    %v867 = vpop.f32.mrf.mxu0
    %v868 = vadd.f32 %v615, %v867
    %v869 = vpop.f32.mrf.mxu0
    %870 = vdwg.mxu0
    %871 = vmatpush.bf16.msra.mxu0 0
    %872 = vmatpush.bf16.msra.mxu0 0
    %873 = vmatpush.bf16.msra.mxu0 0
    %874 = vmatpush.bf16.msra.mxu0 0
    %875 = vmatpush.bf16.msra.mxu0 0
    %876 = vmatpush.bf16.msra.mxu0 0
    %877 = vmatpush.bf16.msra.mxu0 %v760
    %878 = vmatpush.bf16.msra.mxu0 %v744
    %879 = vmatmul.bf16.gmra.mxu0 %v804
    %v880 = vpop.f32.mrf.mxu0
    %v881 = vadd.f32 %v616, %v880
    %v882 = vpop.f32.mrf.mxu0
    %883 = vdwg.mxu0
    %884 = vmatpush.bf16.msra.mxu0 0
    %885 = vmatpush.bf16.msra.mxu0 0
    %886 = vmatpush.bf16.msra.mxu0 0
    %887 = vmatpush.bf16.msra.mxu0 0
    %888 = vmatpush.bf16.msra.mxu0 0
    %889 = vmatpush.bf16.msra.mxu0 0
    %890 = vmatpush.bf16.msra.mxu0 %v761
    %891 = vmatpush.bf16.msra.mxu0 %v745
    %892 = vmatmul.bf16.gmra.mxu0 %v804
    %v893 = vpop.f32.mrf.mxu0
    %v894 = vadd.f32 %v617, %v893
    %v895 = vpop.f32.mrf.mxu0
    %896 = vdwg.mxu0
    %897 = vmatpush.bf16.msra.mxu0 0
    %898 = vmatpush.bf16.msra.mxu0 0
    %899 = vmatpush.bf16.msra.mxu0 0
    %900 = vmatpush.bf16.msra.mxu0 0
    %901 = vmatpush.bf16.msra.mxu0 0
    %902 = vmatpush.bf16.msra.mxu0 0
    %903 = vmatpush.bf16.msra.mxu0 %v762
    %904 = vmatpush.bf16.msra.mxu0 %v746
    %905 = vmatmul.bf16.gmra.mxu0 %v804
    %v906 = vpop.f32.mrf.mxu0
    %v907 = vadd.f32 %v618, %v906
    %v908 = vpop.f32.mrf.mxu0
    %909 = vdwg.mxu0
    %910 = vmatpush.bf16.msra.mxu0 0
    %911 = vmatpush.bf16.msra.mxu0 0
    %912 = vmatpush.bf16.msra.mxu0 0
    %913 = vmatpush.bf16.msra.mxu0 0
    %914 = vmatpush.bf16.msra.mxu0 0
    %915 = vmatpush.bf16.msra.mxu0 0
    %916 = vmatpush.bf16.msra.mxu0 %v763
    %917 = vmatpush.bf16.msra.mxu0 %v747
    %918 = vmatmul.bf16.gmra.mxu0 %v804
    %v919 = vpop.f32.mrf.mxu0
    %v920 = vadd.f32 %v619, %v919
    %v921 = vpop.f32.mrf.mxu0
    %922 = vdwg.mxu0
    %923 = vmatpush.bf16.msra.mxu0 0
    %924 = vmatpush.bf16.msra.mxu0 0
    %925 = vmatpush.bf16.msra.mxu0 0
    %926 = vmatpush.bf16.msra.mxu0 0
    %927 = vmatpush.bf16.msra.mxu0 0
    %928 = vmatpush.bf16.msra.mxu0 0
    %929 = vmatpush.bf16.msra.mxu0 %v764
    %930 = vmatpush.bf16.msra.mxu0 %v748
    %931 = vmatmul.bf16.gmra.mxu0 %v804
    %v932 = vpop.f32.mrf.mxu0
    %v933 = vadd.f32 %v620, %v932
    %v934 = vpop.f32.mrf.mxu0
    %935 = vdwg.mxu0
    %936 = vmatpush.bf16.msra.mxu0 0
    %937 = vmatpush.bf16.msra.mxu0 0
    %938 = vmatpush.bf16.msra.mxu0 0
    %939 = vmatpush.bf16.msra.mxu0 0
    %940 = vmatpush.bf16.msra.mxu0 0
    %941 = vmatpush.bf16.msra.mxu0 0
    %942 = vmatpush.bf16.msra.mxu0 %v765
    %943 = vmatpush.bf16.msra.mxu0 %v749
    %944 = vmatmul.bf16.gmra.mxu0 %v804
    %v945 = vpop.f32.mrf.mxu0
    %v946 = vadd.f32 %v621, %v945
    %v947 = vpop.f32.mrf.mxu0
    %948 = vdwg.mxu0
    %949 = vmatpush.bf16.msra.mxu0 0
    %950 = vmatpush.bf16.msra.mxu0 0
    %951 = vmatpush.bf16.msra.mxu0 0
    %952 = vmatpush.bf16.msra.mxu0 0
    %953 = vmatpush.bf16.msra.mxu0 0
    %954 = vmatpush.bf16.msra.mxu0 0
    %955 = vmatpush.bf16.msra.mxu0 %v766
    %956 = vmatpush.bf16.msra.mxu0 %v750
    %957 = vmatmul.bf16.gmra.mxu0 %v804
    %v958 = vpop.f32.mrf.mxu0
    %v959 = vadd.f32 %v622, %v958
    %v960 = vpop.f32.mrf.mxu0
    %961 = vdwg.mxu0
    %962 = vmatpush.bf16.msra.mxu0 0
    %963 = vmatpush.bf16.msra.mxu0 0
    %964 = vmatpush.bf16.msra.mxu0 0
    %965 = vmatpush.bf16.msra.mxu0 0
    %966 = vmatpush.bf16.msra.mxu0 0
    %967 = vmatpush.bf16.msra.mxu0 0
    %968 = vmatpush.bf16.msra.mxu0 %v767
    %969 = vmatpush.bf16.msra.mxu0 %v751
    %970 = vmatmul.bf16.gmra.mxu0 %v804
    %v971 = vpop.f32.mrf.mxu0
    %v972 = vadd.f32 %v623, %v971
    %v973 = vpop.f32.mrf.mxu0
    %974 = vdwg.mxu0
    %975 = vmatpush.bf16.msra.mxu0 0
    %976 = vmatpush.bf16.msra.mxu0 0
    %977 = vmatpush.bf16.msra.mxu0 0
    %978 = vmatpush.bf16.msra.mxu0 0
    %979 = vmatpush.bf16.msra.mxu0 0
    %980 = vmatpush.bf16.msra.mxu0 0
    %981 = vmatpush.bf16.msra.mxu0 %v768
    %982 = vmatpush.bf16.msra.mxu0 %v752
    %983 = vmatmul.bf16.gmra.mxu0 %v804
    %v984 = vpop.f32.mrf.mxu0
    %v985 = vadd.f32 %v624, %v984
    %v986 = vpop.f32.mrf.mxu0
    %987 = vdwg.mxu0
    %988 = vmatpush.bf16.msra.mxu0 0
    %989 = vmatpush.bf16.msra.mxu0 0
    %990 = vmatpush.bf16.msra.mxu0 0
    %991 = vmatpush.bf16.msra.mxu0 0
    %992 = vmatpush.bf16.msra.mxu0 0
    %993 = vmatpush.bf16.msra.mxu0 0
    %994 = vmatpush.bf16.msra.mxu0 %v769
    %995 = vmatpush.bf16.msra.mxu0 %v753
    %996 = vmatmul.bf16.gmra.mxu0 %v804
    %v997 = vpop.f32.mrf.mxu0
    %v998 = vadd.f32 %v625, %v997
    %v999 = vpop.f32.mrf.mxu0
    %1000 = vdwg.mxu0
    %1001 = vmatpush.bf16.msra.mxu0 0
    %1002 = vmatpush.bf16.msra.mxu0 0
    %1003 = vmatpush.bf16.msra.mxu0 0
    %1004 = vmatpush.bf16.msra.mxu0 0
    %1005 = vmatpush.bf16.msra.mxu0 0
    %1006 = vmatpush.bf16.msra.mxu0 0
    %1007 = vmatpush.bf16.msra.mxu0 %v770
    %1008 = vmatpush.bf16.msra.mxu0 %v754
    %1009 = vmatmul.bf16.gmra.mxu0 %v804
    %v1010 = vpop.f32.mrf.mxu0
    %v1011 = vadd.f32 %v626, %v1010
    %v1012 = vpop.f32.mrf.mxu0
    %1013 = vdwg.mxu0
    %v1014 = vmax.f32 %v816, 0.0
    %v1015 = vmax.f32 %v829, 0.0
    %v1016 = vmax.f32 %v842, 0.0
    %v1017 = vmax.f32 %v855, 0.0
    %v1018 = vmax.f32 %v868, 0.0
    %v1019 = vmax.f32 %v881, 0.0
    %v1020 = vmax.f32 %v894, 0.0
    %v1021 = vmax.f32 %v907, 0.0
    %v1022 = vmax.f32 %v920, 0.0
    %v1023 = vmax.f32 %v933, 0.0
    %v1024 = vmax.f32 %v946, 0.0
    %v1025 = vmax.f32 %v959, 0.0
    %v1026 = vmax.f32 %v972, 0.0
    %v1027 = vmax.f32 %v985, 0.0
    %v1028 = vmax.f32 %v998, 0.0
    %v1029 = vmax.f32 %v1011, 0.0
    %v1030 = vpack.c.bf16 %v1014, %v1014
    %v1031 = vpack.c.bf16 %v1015, %v1015
    %v1032 = vpack.c.bf16 %v1016, %v1016
    %v1033 = vpack.c.bf16 %v1017, %v1017
    %v1034 = vpack.c.bf16 %v1018, %v1018
    %v1035 = vpack.c.bf16 %v1019, %v1019
    %v1036 = vpack.c.bf16 %v1020, %v1020
    %v1037 = vpack.c.bf16 %v1021, %v1021
    %v1038 = vpack.c.bf16 %v1022, %v1022
    %v1039 = vpack.c.bf16 %v1023, %v1023
    %v1040 = vpack.c.bf16 %v1024, %v1024
    %v1041 = vpack.c.bf16 %v1025, %v1025
    %v1042 = vpack.c.bf16 %v1026, %v1026
    %v1043 = vpack.c.bf16 %v1027, %v1027
    %v1044 = vpack.c.bf16 %v1028, %v1028
    %v1045 = vpack.c.bf16 %v1029, %v1029
    %v1046 = vperm.slane %v607, 0
    %v1079 = vunpack.c.l.b16 %v575
    %v1080 = vunpack.c.h.b16 %v575
    %v1081 = vunpack.c.l.b16 %v576
    %v1082 = vunpack.c.h.b16 %v576
    %v1083 = vunpack.c.l.b16 %v577
    %v1084 = vunpack.c.h.b16 %v577
    %v1085 = vunpack.c.l.b16 %v578
    %v1086 = vunpack.c.h.b16 %v578
    %v1087 = vunpack.c.l.b16 %v579
    %v1088 = vunpack.c.h.b16 %v579
    %v1089 = vunpack.c.l.b16 %v580
    %v1090 = vunpack.c.h.b16 %v580
    %v1091 = vunpack.c.l.b16 %v581
    %v1092 = vunpack.c.h.b16 %v581
    %v1093 = vunpack.c.l.b16 %v582
    %v1094 = vunpack.c.h.b16 %v582
    %v1095 = vunpack.c.l.b16 %v583
    %v1096 = vunpack.c.h.b16 %v583
    %v1097 = vunpack.c.l.b16 %v584
    %v1098 = vunpack.c.h.b16 %v584
    %v1099 = vunpack.c.l.b16 %v585
    %v1100 = vunpack.c.h.b16 %v585
    %v1101 = vunpack.c.l.b16 %v586
    %v1102 = vunpack.c.h.b16 %v586
    %v1103 = vunpack.c.l.b16 %v587
    %v1104 = vunpack.c.h.b16 %v587
    %v1105 = vunpack.c.l.b16 %v588
    %v1106 = vunpack.c.h.b16 %v588
    %v1107 = vunpack.c.l.b16 %v589
    %v1108 = vunpack.c.h.b16 %v589
    %v1109 = vunpack.c.l.b16 %v590
    %v1110 = vunpack.c.h.b16 %v590
    %v1111 = vunpack.c.l.b16 %v591
    %v1112 = vunpack.c.h.b16 %v591
    %v1113 = vunpack.c.l.b16 %v592
    %v1114 = vunpack.c.h.b16 %v592
    %v1115 = vunpack.c.l.b16 %v593
    %v1116 = vunpack.c.h.b16 %v593
    %v1117 = vunpack.c.l.b16 %v594
    %v1118 = vunpack.c.h.b16 %v594
    %v1119 = vunpack.c.l.b16 %v595
    %v1120 = vunpack.c.h.b16 %v595
    %v1121 = vunpack.c.l.b16 %v596
    %v1122 = vunpack.c.h.b16 %v596
    %v1123 = vunpack.c.l.b16 %v597
    %v1124 = vunpack.c.h.b16 %v597
    %v1125 = vunpack.c.l.b16 %v598
    %v1126 = vunpack.c.h.b16 %v598
    %v1127 = vunpack.c.l.b16 %v599
    %v1128 = vunpack.c.h.b16 %v599
    %v1129 = vunpack.c.l.b16 %v600
    %v1130 = vunpack.c.h.b16 %v600
    %v1131 = vunpack.c.l.b16 %v601
    %v1132 = vunpack.c.h.b16 %v601
    %v1133 = vunpack.c.l.b16 %v602
    %v1134 = vunpack.c.h.b16 %v602
    %v1135 = vunpack.c.l.b16 %v603
    %v1136 = vunpack.c.h.b16 %v603
    %v1137 = vunpack.c.l.b16 %v604
    %v1138 = vunpack.c.h.b16 %v604
    %v1139 = vunpack.c.l.b16 %v605
    %v1140 = vunpack.c.h.b16 %v605
    %v1141 = vunpack.c.l.b16 %v606
    %v1142 = vunpack.c.h.b16 %v606
    %v1143 = vpack.c.b16 %v1095, %v1079
    %v1144 = vpack.c.b16 %v1096, %v1080
    %v1145 = vpack.c.b16 %v1097, %v1081
    %v1146 = vpack.c.b16 %v1098, %v1082
    %v1147 = vpack.c.b16 %v1099, %v1083
    %v1148 = vpack.c.b16 %v1100, %v1084
    %v1149 = vpack.c.b16 %v1101, %v1085
    %v1150 = vpack.c.b16 %v1102, %v1086
    %v1151 = vpack.c.b16 %v1103, %v1087
    %v1152 = vpack.c.b16 %v1104, %v1088
    %v1153 = vpack.c.b16 %v1105, %v1089
    %v1154 = vpack.c.b16 %v1106, %v1090
    %v1155 = vpack.c.b16 %v1107, %v1091
    %v1156 = vpack.c.b16 %v1108, %v1092
    %v1157 = vpack.c.b16 %v1109, %v1093
    %v1158 = vpack.c.b16 %v1110, %v1094
    %v1159 = vpack.c.b16 %v1127, %v1111
    %v1160 = vpack.c.b16 %v1128, %v1112
    %v1161 = vpack.c.b16 %v1129, %v1113
    %v1162 = vpack.c.b16 %v1130, %v1114
    %v1163 = vpack.c.b16 %v1131, %v1115
    %v1164 = vpack.c.b16 %v1132, %v1116
    %v1165 = vpack.c.b16 %v1133, %v1117
    %v1166 = vpack.c.b16 %v1134, %v1118
    %v1167 = vpack.c.b16 %v1135, %v1119
    %v1168 = vpack.c.b16 %v1136, %v1120
    %v1169 = vpack.c.b16 %v1137, %v1121
    %v1170 = vpack.c.b16 %v1138, %v1122
    %v1171 = vpack.c.b16 %v1139, %v1123
    %v1172 = vpack.c.b16 %v1140, %v1124
    %v1173 = vpack.c.b16 %v1141, %v1125
    %v1174 = vpack.c.b16 %v1142, %v1126
    %1207 = vmatpush.bf16.xpose.msra.mxu0 0
    %1208 = vmatpush.bf16.xpose.msra.mxu0 0
    %1209 = vmatpush.bf16.xpose.msra.mxu0 0
    %1210 = vmatpush.bf16.xpose.msra.mxu0 0
    %1211 = vmatpush.bf16.xpose.msra.mxu0 0
    %1212 = vmatpush.bf16.xpose.msra.mxu0 0
    %1213 = vmatpush.bf16.xpose.msra.mxu0 %v1159
    %1214 = vmatpush.bf16.xpose.msra.mxu0 %v1143
    %1215 = vmatmul.bf16.gmra.mxu0 %v1030
    %v1216 = vpop.f32.mrf.mxu0
    %v1217 = vadd.f32 %v1046, %v1216
    %v1218 = vpop.f32.mrf.mxu0
    %1219 = vdwg.mxu0
    %1220 = vmatpush.bf16.xpose.msra.mxu0 0
    %1221 = vmatpush.bf16.xpose.msra.mxu0 0
    %1222 = vmatpush.bf16.xpose.msra.mxu0 0
    %1223 = vmatpush.bf16.xpose.msra.mxu0 0
    %1224 = vmatpush.bf16.xpose.msra.mxu0 0
    %1225 = vmatpush.bf16.xpose.msra.mxu0 0
    %1226 = vmatpush.bf16.xpose.msra.mxu0 %v1160
    %1227 = vmatpush.bf16.xpose.msra.mxu0 %v1144
    %1228 = vmatmul.bf16.gmra.mxu0 %v1031
    %v1229 = vpop.f32.mrf.mxu0
    %v1230 = vadd.f32 %v1217, %v1229
    %v1231 = vpop.f32.mrf.mxu0
    %1232 = vdwg.mxu0
    %1233 = vmatpush.bf16.xpose.msra.mxu0 0
    %1234 = vmatpush.bf16.xpose.msra.mxu0 0
    %1235 = vmatpush.bf16.xpose.msra.mxu0 0
    %1236 = vmatpush.bf16.xpose.msra.mxu0 0
    %1237 = vmatpush.bf16.xpose.msra.mxu0 0
    %1238 = vmatpush.bf16.xpose.msra.mxu0 0
    %1239 = vmatpush.bf16.xpose.msra.mxu0 %v1161
    %1240 = vmatpush.bf16.xpose.msra.mxu0 %v1145
    %1241 = vmatmul.bf16.gmra.mxu0 %v1032
    %v1242 = vpop.f32.mrf.mxu0
    %v1243 = vadd.f32 %v1230, %v1242
    %v1244 = vpop.f32.mrf.mxu0
    %1245 = vdwg.mxu0
    %1246 = vmatpush.bf16.xpose.msra.mxu0 0
    %1247 = vmatpush.bf16.xpose.msra.mxu0 0
    %1248 = vmatpush.bf16.xpose.msra.mxu0 0
    %1249 = vmatpush.bf16.xpose.msra.mxu0 0
    %1250 = vmatpush.bf16.xpose.msra.mxu0 0
    %1251 = vmatpush.bf16.xpose.msra.mxu0 0
    %1252 = vmatpush.bf16.xpose.msra.mxu0 %v1162
    %1253 = vmatpush.bf16.xpose.msra.mxu0 %v1146
    %1254 = vmatmul.bf16.gmra.mxu0 %v1033
    %v1255 = vpop.f32.mrf.mxu0
    %v1256 = vadd.f32 %v1243, %v1255
    %v1257 = vpop.f32.mrf.mxu0
    %1258 = vdwg.mxu0
    %1259 = vmatpush.bf16.xpose.msra.mxu0 0
    %1260 = vmatpush.bf16.xpose.msra.mxu0 0
    %1261 = vmatpush.bf16.xpose.msra.mxu0 0
    %1262 = vmatpush.bf16.xpose.msra.mxu0 0
    %1263 = vmatpush.bf16.xpose.msra.mxu0 0
    %1264 = vmatpush.bf16.xpose.msra.mxu0 0
    %1265 = vmatpush.bf16.xpose.msra.mxu0 %v1163
    %1266 = vmatpush.bf16.xpose.msra.mxu0 %v1147
    %1267 = vmatmul.bf16.gmra.mxu0 %v1034
    %v1268 = vpop.f32.mrf.mxu0
    %v1269 = vadd.f32 %v1256, %v1268
    %v1270 = vpop.f32.mrf.mxu0
    %1271 = vdwg.mxu0
    %1272 = vmatpush.bf16.xpose.msra.mxu0 0
    %1273 = vmatpush.bf16.xpose.msra.mxu0 0
    %1274 = vmatpush.bf16.xpose.msra.mxu0 0
    %1275 = vmatpush.bf16.xpose.msra.mxu0 0
    %1276 = vmatpush.bf16.xpose.msra.mxu0 0
    %1277 = vmatpush.bf16.xpose.msra.mxu0 0
    %1278 = vmatpush.bf16.xpose.msra.mxu0 %v1164
    %1279 = vmatpush.bf16.xpose.msra.mxu0 %v1148
    %1280 = vmatmul.bf16.gmra.mxu0 %v1035
    %v1281 = vpop.f32.mrf.mxu0
    %v1282 = vadd.f32 %v1269, %v1281
    %v1283 = vpop.f32.mrf.mxu0
    %1284 = vdwg.mxu0
    %1285 = vmatpush.bf16.xpose.msra.mxu0 0
    %1286 = vmatpush.bf16.xpose.msra.mxu0 0
    %1287 = vmatpush.bf16.xpose.msra.mxu0 0
    %1288 = vmatpush.bf16.xpose.msra.mxu0 0
    %1289 = vmatpush.bf16.xpose.msra.mxu0 0
    %1290 = vmatpush.bf16.xpose.msra.mxu0 0
    %1291 = vmatpush.bf16.xpose.msra.mxu0 %v1165
    %1292 = vmatpush.bf16.xpose.msra.mxu0 %v1149
    %1293 = vmatmul.bf16.gmra.mxu0 %v1036
    %v1294 = vpop.f32.mrf.mxu0
    %v1295 = vadd.f32 %v1282, %v1294
    %v1296 = vpop.f32.mrf.mxu0
    %1297 = vdwg.mxu0
    %1298 = vmatpush.bf16.xpose.msra.mxu0 0
    %1299 = vmatpush.bf16.xpose.msra.mxu0 0
    %1300 = vmatpush.bf16.xpose.msra.mxu0 0
    %1301 = vmatpush.bf16.xpose.msra.mxu0 0
    %1302 = vmatpush.bf16.xpose.msra.mxu0 0
    %1303 = vmatpush.bf16.xpose.msra.mxu0 0
    %1304 = vmatpush.bf16.xpose.msra.mxu0 %v1166
    %1305 = vmatpush.bf16.xpose.msra.mxu0 %v1150
    %1306 = vmatmul.bf16.gmra.mxu0 %v1037
    %v1307 = vpop.f32.mrf.mxu0
    %v1308 = vadd.f32 %v1295, %v1307
    %v1309 = vpop.f32.mrf.mxu0
    %1310 = vdwg.mxu0
    %1311 = vmatpush.bf16.xpose.msra.mxu0 0
    %1312 = vmatpush.bf16.xpose.msra.mxu0 0
    %1313 = vmatpush.bf16.xpose.msra.mxu0 0
    %1314 = vmatpush.bf16.xpose.msra.mxu0 0
    %1315 = vmatpush.bf16.xpose.msra.mxu0 0
    %1316 = vmatpush.bf16.xpose.msra.mxu0 0
    %1317 = vmatpush.bf16.xpose.msra.mxu0 %v1167
    %1318 = vmatpush.bf16.xpose.msra.mxu0 %v1151
    %1319 = vmatmul.bf16.gmra.mxu0 %v1038
    %v1320 = vpop.f32.mrf.mxu0
    %v1321 = vadd.f32 %v1308, %v1320
    %v1322 = vpop.f32.mrf.mxu0
    %1323 = vdwg.mxu0
    %1324 = vmatpush.bf16.xpose.msra.mxu0 0
    %1325 = vmatpush.bf16.xpose.msra.mxu0 0
    %1326 = vmatpush.bf16.xpose.msra.mxu0 0
    %1327 = vmatpush.bf16.xpose.msra.mxu0 0
    %1328 = vmatpush.bf16.xpose.msra.mxu0 0
    %1329 = vmatpush.bf16.xpose.msra.mxu0 0
    %1330 = vmatpush.bf16.xpose.msra.mxu0 %v1168
    %1331 = vmatpush.bf16.xpose.msra.mxu0 %v1152
    %1332 = vmatmul.bf16.gmra.mxu0 %v1039
    %v1333 = vpop.f32.mrf.mxu0
    %v1334 = vadd.f32 %v1321, %v1333
    %v1335 = vpop.f32.mrf.mxu0
    %1336 = vdwg.mxu0
    %1337 = vmatpush.bf16.xpose.msra.mxu0 0
    %1338 = vmatpush.bf16.xpose.msra.mxu0 0
    %1339 = vmatpush.bf16.xpose.msra.mxu0 0
    %1340 = vmatpush.bf16.xpose.msra.mxu0 0
    %1341 = vmatpush.bf16.xpose.msra.mxu0 0
    %1342 = vmatpush.bf16.xpose.msra.mxu0 0
    %1343 = vmatpush.bf16.xpose.msra.mxu0 %v1169
    %1344 = vmatpush.bf16.xpose.msra.mxu0 %v1153
    %1345 = vmatmul.bf16.gmra.mxu0 %v1040
    %v1346 = vpop.f32.mrf.mxu0
    %v1347 = vadd.f32 %v1334, %v1346
    %v1348 = vpop.f32.mrf.mxu0
    %1349 = vdwg.mxu0
    %1350 = vmatpush.bf16.xpose.msra.mxu0 0
    %1351 = vmatpush.bf16.xpose.msra.mxu0 0
    %1352 = vmatpush.bf16.xpose.msra.mxu0 0
    %1353 = vmatpush.bf16.xpose.msra.mxu0 0
    %1354 = vmatpush.bf16.xpose.msra.mxu0 0
    %1355 = vmatpush.bf16.xpose.msra.mxu0 0
    %1356 = vmatpush.bf16.xpose.msra.mxu0 %v1170
    %1357 = vmatpush.bf16.xpose.msra.mxu0 %v1154
    %1358 = vmatmul.bf16.gmra.mxu0 %v1041
    %v1359 = vpop.f32.mrf.mxu0
    %v1360 = vadd.f32 %v1347, %v1359
    %v1361 = vpop.f32.mrf.mxu0
    %1362 = vdwg.mxu0
    %1363 = vmatpush.bf16.xpose.msra.mxu0 0
    %1364 = vmatpush.bf16.xpose.msra.mxu0 0
    %1365 = vmatpush.bf16.xpose.msra.mxu0 0
    %1366 = vmatpush.bf16.xpose.msra.mxu0 0
    %1367 = vmatpush.bf16.xpose.msra.mxu0 0
    %1368 = vmatpush.bf16.xpose.msra.mxu0 0
    %1369 = vmatpush.bf16.xpose.msra.mxu0 %v1171
    %1370 = vmatpush.bf16.xpose.msra.mxu0 %v1155
    %1371 = vmatmul.bf16.gmra.mxu0 %v1042
    %v1372 = vpop.f32.mrf.mxu0
    %v1373 = vadd.f32 %v1360, %v1372
    %v1374 = vpop.f32.mrf.mxu0
    %1375 = vdwg.mxu0
    %1376 = vmatpush.bf16.xpose.msra.mxu0 0
    %1377 = vmatpush.bf16.xpose.msra.mxu0 0
    %1378 = vmatpush.bf16.xpose.msra.mxu0 0
    %1379 = vmatpush.bf16.xpose.msra.mxu0 0
    %1380 = vmatpush.bf16.xpose.msra.mxu0 0
    %1381 = vmatpush.bf16.xpose.msra.mxu0 0
    %1382 = vmatpush.bf16.xpose.msra.mxu0 %v1172
    %1383 = vmatpush.bf16.xpose.msra.mxu0 %v1156
    %1384 = vmatmul.bf16.gmra.mxu0 %v1043
    %v1385 = vpop.f32.mrf.mxu0
    %v1386 = vadd.f32 %v1373, %v1385
    %v1387 = vpop.f32.mrf.mxu0
    %1388 = vdwg.mxu0
    %1389 = vmatpush.bf16.xpose.msra.mxu0 0
    %1390 = vmatpush.bf16.xpose.msra.mxu0 0
    %1391 = vmatpush.bf16.xpose.msra.mxu0 0
    %1392 = vmatpush.bf16.xpose.msra.mxu0 0
    %1393 = vmatpush.bf16.xpose.msra.mxu0 0
    %1394 = vmatpush.bf16.xpose.msra.mxu0 0
    %1395 = vmatpush.bf16.xpose.msra.mxu0 %v1173
    %1396 = vmatpush.bf16.xpose.msra.mxu0 %v1157
    %1397 = vmatmul.bf16.gmra.mxu0 %v1044
    %v1398 = vpop.f32.mrf.mxu0
    %v1399 = vadd.f32 %v1386, %v1398
    %v1400 = vpop.f32.mrf.mxu0
    %1401 = vdwg.mxu0
    %1402 = vmatpush.bf16.xpose.msra.mxu0 0
    %1403 = vmatpush.bf16.xpose.msra.mxu0 0
    %1404 = vmatpush.bf16.xpose.msra.mxu0 0
    %1405 = vmatpush.bf16.xpose.msra.mxu0 0
    %1406 = vmatpush.bf16.xpose.msra.mxu0 0
    %1407 = vmatpush.bf16.xpose.msra.mxu0 0
    %1408 = vmatpush.bf16.xpose.msra.mxu0 %v1174
    %1409 = vmatpush.bf16.xpose.msra.mxu0 %v1158
    %1410 = vmatmul.bf16.gmra.mxu0 %v1045
    %v1411 = vpop.f32.mrf.mxu0
    %v1412 = vadd.f32 %v1399, %v1411
    %v1413 = vpop.f32.mrf.mxu0
    %1414 = vdwg.mxu0
    %v1415 = vadd.f32 %v535, %v1412
    %v1416 = vld [vmem:[#allocation7 + $0x17] sm:$0x1]
    %v1417 = vld [vmem:[#allocation7 + $0x18] sm:$0x1]
    %v1418 = vsel %vm134, %v1415, 0.0
    %1419 = vadd.xlane.f32.xlu0 %v1418
    %v1420 = vpop.xlane.xlu0 %1419
    %v1421 = vmul.f32 %v1420, %v512
    %v1422 = vsub.f32 %v1415, %v1421
    %v1423 = vmul.f32 %v1422, %v1422
    %v1424 = vsel %vm134, %v1423, 0.0
    %1425 = vadd.xlane.f32.xlu0 %v1424
    %v1426 = vpop.xlane.xlu0 %1425
    %v1427 = vmul.f32 %v1426, %v512
    %v1428 = vadd.f32 %v1427, 1e-05
    %v1429 = vrsqrt.pop %v1428
    %v1430 = vmul.f32 %v1429, %v1428
    %v1431 = vmul.f32 %v1430, %v1429
    %v1432 = vmul.f32 0.5, %v1431
    %v1433 = vsub.f32 1.5, %v1432
    %v1434 = vmul.f32 %v1429, %v1433
    %vm1435 = vweird.f32 %v1428
    %vm1436 = vweird.f32 %v1429
    %vm1437 = vmor %vm1435, %vm1436
    %v1438 = vsel %vm1437, %v1429, %v1434
    %v1439 = vmul.f32 %v1422, %v1438
    %v1440 = vperm.slane %v1416, 0
    %v1441 = vmul.f32 %v1439, %v1440
    %v1442 = vperm.slane %v1417, 0
    %v1443 = vadd.f32 %v1441, %v1442
    %v1444 = vld [vmem:[#allocation5 + $0x88] sm:$0xf]
    %v1445 = vld [vmem:[#allocation5 + $0x2c0] sm:$0xf]
    %v1446 = vld [vmem:[#allocation5 + $0x4f8] sm:$0xf]
    %v1447 = vld [vmem:[#allocation5 + $0x730] sm:$0xf]
    %v1448 = vld [vmem:[#allocation7 + $0x19] sm:$0x1]
    %v1449 = vld [vmem:[#allocation5 + $0x8c] sm:$0xf]
    %v1450 = vld [vmem:[#allocation5 + $0x2c4] sm:$0xf]
    %v1451 = vld [vmem:[#allocation5 + $0x4fc] sm:$0xf]
    %v1452 = vld [vmem:[#allocation5 + $0x734] sm:$0xf]
    %v1453 = vld [vmem:[#allocation7 + $0x1a] sm:$0x1]
    %v1454 = vpack.c.bf16 %v1443, %v1443
    %v1455 = vperm.slane %v1448, 0
    %v1460 = vunpack.c.l.b16 %v1444
    %v1461 = vunpack.c.l.b16 %v1445
    %v1462 = vunpack.c.l.b16 %v1446
    %v1463 = vunpack.c.l.b16 %v1447
    %v1464 = vpack.c.b16 %v1461, %v1460
    %v1465 = vpack.c.b16 %v1463, %v1462
    %v1469 = vsel %vm134, %v1454, 0
    %1471 = vmatpush.bf16.msra.mxu0 0
    %1472 = vmatpush.bf16.msra.mxu0 0
    %1473 = vmatpush.bf16.msra.mxu0 0
    %1474 = vmatpush.bf16.msra.mxu0 0
    %1475 = vmatpush.bf16.msra.mxu0 0
    %1476 = vmatpush.bf16.msra.mxu0 0
    %1477 = vmatpush.bf16.msra.mxu0 %v1465
    %1478 = vmatpush.bf16.msra.mxu0 %v1464
    %1479 = vmatmul.bf16.gmra.mxu0 %v1469
    %v1480 = vpop.f32.mrf.mxu0
    %v1481 = vadd.f32 %v1455, %v1480
    %v1482 = vpop.f32.mrf.mxu0
    %1483 = vdwg.mxu0
    %1485 = vrot.lane.b32.xlu0 %v1481, 96
    %v1486 = vpop.permute.xlu0 %1485
    %v1487 = vsel %vm154, %v1481, 0
    %v1489 = vsel %vm154, %v1486, 0
    %1491 = vmatpush.xpose.msra.mxu0 0.0
    %1492 = vmatpush.xpose.msra.mxu0 0.0
    %1493 = vmatpush.xpose.msra.mxu0 0.0
    %1494 = vmatpush.xpose.msra.mxu0 0.0
    %1495 = vmatpush.xpose.msra.mxu0 0.0
    %1496 = vmatpush.xpose.msra.mxu0 0.0
    %1497 = vmatpush.xpose.msra.mxu0 0.0
    %1498 = vmatpush.xpose.msra.mxu0 0.0
    %1499 = vmatpush.xpose.msra.mxu0 0.0
    %1500 = vmatpush.xpose.msra.mxu0 0.0
    %1501 = vmatpush.xpose.msra.mxu0 0.0
    %1502 = vmatpush.xpose.msra.mxu0 0.0
    %1503 = vmatpush.xpose.msra.mxu0 0.0
    %1504 = vmatpush.xpose.msra.mxu0 0.0
    %1505 = vmatpush.xpose.msra.mxu0 0.0
    %1506 = vmatpush.xpose.msra.mxu0 %v1489
    %1507 = vmatmul.f32.gmra.mxu0 %v1487
    %v1508 = vpop.f32.mrf.mxu0
    %v1509 = vadd.f32 0.0, %v1508
    %1510 = vdwg.mxu0
    %v1511 = vmul.f32 %v1509, 0.35355338
    %v1512 = vsel %vm154, %v1511, -inf
    %1513 = vmax.xlane.f32.xlu0 %v1512
    %v1514 = vpop.xlane.xlu0 %1513
    %v1515 = vsub.f32 %v1511, %v1514
    %v1516 = vmul.f32 %v1515, 1.442695
    %v1517 = vpow.pop %v1516
    %v1518 = vsel %vm154, %v1517, 0.0
    %1519 = vadd.xlane.f32.xlu0 %v1518
    %v1520 = vpop.xlane.xlu0 %1519
    %v1521 = vrcp.pop %v1520
    %v1522 = vmul.f32 %v1517, %v1521
    %1523 = vrot.lane.b32.xlu0 %v1481, 64
    %v1524 = vpop.permute.xlu0 %1523
    %v1527 = vsel %vm154, %v1522, 0
    %1529 = vmatpush.msra.mxu0 0.0
    %1530 = vmatpush.msra.mxu0 0.0
    %1531 = vmatpush.msra.mxu0 0.0
    %1532 = vmatpush.msra.mxu0 0.0
    %1533 = vmatpush.msra.mxu0 0.0
    %1534 = vmatpush.msra.mxu0 0.0
    %1535 = vmatpush.msra.mxu0 0.0
    %1536 = vmatpush.msra.mxu0 0.0
    %1537 = vmatpush.msra.mxu0 0.0
    %1538 = vmatpush.msra.mxu0 0.0
    %1539 = vmatpush.msra.mxu0 0.0
    %1540 = vmatpush.msra.mxu0 0.0
    %1541 = vmatpush.msra.mxu0 0.0
    %1542 = vmatpush.msra.mxu0 0.0
    %1543 = vmatpush.msra.mxu0 0.0
    %1544 = vmatpush.msra.mxu0 %v1524
    %1545 = vmatmul.f32.gmra.mxu0 %v1527
    %v1546 = vpop.f32.mrf.mxu0
    %v1547 = vadd.f32 0.0, %v1546
    %1548 = vdwg.mxu0
    %v1549 = vpack.c.bf16 %v1547, %v1547
    %1550 = vrot.lane.b32.xlu0 %v1481, 120
    %v1551 = vpop.permute.xlu0 %1550
    %1552 = vrot.lane.b32.xlu0 %v1481, 88
    %v1553 = vpop.permute.xlu0 %1552
    %v1554 = vsel %vm154, %v1551, 0
    %v1556 = vsel %vm154, %v1553, 0
    %1558 = vmatpush.xpose.msra.mxu0 0.0
    %1559 = vmatpush.xpose.msra.mxu0 0.0
    %1560 = vmatpush.xpose.msra.mxu0 0.0
    %1561 = vmatpush.xpose.msra.mxu0 0.0
    %1562 = vmatpush.xpose.msra.mxu0 0.0
    %1563 = vmatpush.xpose.msra.mxu0 0.0
    %1564 = vmatpush.xpose.msra.mxu0 0.0
    %1565 = vmatpush.xpose.msra.mxu0 0.0
    %1566 = vmatpush.xpose.msra.mxu0 0.0
    %1567 = vmatpush.xpose.msra.mxu0 0.0
    %1568 = vmatpush.xpose.msra.mxu0 0.0
    %1569 = vmatpush.xpose.msra.mxu0 0.0
    %1570 = vmatpush.xpose.msra.mxu0 0.0
    %1571 = vmatpush.xpose.msra.mxu0 0.0
    %1572 = vmatpush.xpose.msra.mxu0 0.0
    %1573 = vmatpush.xpose.msra.mxu0 %v1556
    %1574 = vmatmul.f32.gmra.mxu0 %v1554
    %v1575 = vpop.f32.mrf.mxu0
    %v1576 = vadd.f32 0.0, %v1575
    %1577 = vdwg.mxu0
    %v1578 = vmul.f32 %v1576, 0.35355338
    %v1579 = vsel %vm154, %v1578, -inf
    %1580 = vmax.xlane.f32.xlu0 %v1579
    %v1581 = vpop.xlane.xlu0 %1580
    %v1582 = vsub.f32 %v1578, %v1581
    %v1583 = vmul.f32 %v1582, 1.442695
    %v1584 = vpow.pop %v1583
    %v1585 = vsel %vm154, %v1584, 0.0
    %1586 = vadd.xlane.f32.xlu0 %v1585
    %v1587 = vpop.xlane.xlu0 %1586
    %v1588 = vrcp.pop %v1587
    %v1589 = vmul.f32 %v1584, %v1588
    %1590 = vrot.lane.b32.xlu0 %v1481, 56
    %v1591 = vpop.permute.xlu0 %1590
    %v1594 = vsel %vm154, %v1589, 0
    %1596 = vmatpush.msra.mxu0 0.0
    %1597 = vmatpush.msra.mxu0 0.0
    %1598 = vmatpush.msra.mxu0 0.0
    %1599 = vmatpush.msra.mxu0 0.0
    %1600 = vmatpush.msra.mxu0 0.0
    %1601 = vmatpush.msra.mxu0 0.0
    %1602 = vmatpush.msra.mxu0 0.0
    %1603 = vmatpush.msra.mxu0 0.0
    %1604 = vmatpush.msra.mxu0 0.0
    %1605 = vmatpush.msra.mxu0 0.0
    %1606 = vmatpush.msra.mxu0 0.0
    %1607 = vmatpush.msra.mxu0 0.0
    %1608 = vmatpush.msra.mxu0 0.0
    %1609 = vmatpush.msra.mxu0 0.0
    %1610 = vmatpush.msra.mxu0 0.0
    %1611 = vmatpush.msra.mxu0 %v1591
    %1612 = vmatmul.f32.gmra.mxu0 %v1594
    %v1613 = vpop.f32.mrf.mxu0
    %v1614 = vadd.f32 0.0, %v1613
    %1615 = vdwg.mxu0
    %v1616 = vpack.c.bf16 %v1614, %v1614
    %v1618 = vsel %vm154, %v1616, 0
    %v1621 = vsel %vm288, %v1450, 0
    %1623 = vmatpush.bf16.msra.mxu0 0
    %1624 = vmatpush.bf16.msra.mxu0 0
    %1625 = vmatpush.bf16.msra.mxu0 0
    %1626 = vmatpush.bf16.msra.mxu0 0
    %1627 = vmatpush.bf16.msra.mxu0 0
    %1628 = vmatpush.bf16.msra.mxu0 0
    %1629 = vmatpush.bf16.msra.mxu0 0
    %1630 = vmatpush.bf16.msra.mxu0 %v1621
    %1631 = vmatmul.bf16.gmra.mxu0 %v1618
    %v1632 = vpop.f32.mrf.mxu0
    %v1633 = vadd.f32 0.0, %v1632
    %v1634 = vpop.f32.mrf.mxu0
    %1635 = vdwg.mxu0
    %v1637 = vsel %vm154, %v1549, 0
    %v1640 = vsel %vm288, %v1449, 0
    %1642 = vmatpush.bf16.msra.mxu0 0
    %1643 = vmatpush.bf16.msra.mxu0 0
    %1644 = vmatpush.bf16.msra.mxu0 0
    %1645 = vmatpush.bf16.msra.mxu0 0
    %1646 = vmatpush.bf16.msra.mxu0 0
    %1647 = vmatpush.bf16.msra.mxu0 0
    %1648 = vmatpush.bf16.msra.mxu0 0
    %1649 = vmatpush.bf16.msra.mxu0 %v1640
    %1650 = vmatmul.bf16.gmra.mxu0 %v1637
    %v1651 = vpop.f32.mrf.mxu0
    %v1652 = vadd.f32 %v1633, %v1651
    %v1653 = vpop.f32.mrf.mxu0
    %1654 = vdwg.mxu0
    %1655 = vrot.lane.b32.xlu0 %v1481, 112
    %v1656 = vpop.permute.xlu0 %1655
    %1657 = vrot.lane.b32.xlu0 %v1481, 80
    %v1658 = vpop.permute.xlu0 %1657
    %v1659 = vsel %vm154, %v1656, 0
    %v1661 = vsel %vm154, %v1658, 0
    %1663 = vmatpush.xpose.msra.mxu0 0.0
    %1664 = vmatpush.xpose.msra.mxu0 0.0
    %1665 = vmatpush.xpose.msra.mxu0 0.0
    %1666 = vmatpush.xpose.msra.mxu0 0.0
    %1667 = vmatpush.xpose.msra.mxu0 0.0
    %1668 = vmatpush.xpose.msra.mxu0 0.0
    %1669 = vmatpush.xpose.msra.mxu0 0.0
    %1670 = vmatpush.xpose.msra.mxu0 0.0
    %1671 = vmatpush.xpose.msra.mxu0 0.0
    %1672 = vmatpush.xpose.msra.mxu0 0.0
    %1673 = vmatpush.xpose.msra.mxu0 0.0
    %1674 = vmatpush.xpose.msra.mxu0 0.0
    %1675 = vmatpush.xpose.msra.mxu0 0.0
    %1676 = vmatpush.xpose.msra.mxu0 0.0
    %1677 = vmatpush.xpose.msra.mxu0 0.0
    %1678 = vmatpush.xpose.msra.mxu0 %v1661
    %1679 = vmatmul.f32.gmra.mxu0 %v1659
    %v1680 = vpop.f32.mrf.mxu0
    %v1681 = vadd.f32 0.0, %v1680
    %1682 = vdwg.mxu0
    %v1683 = vmul.f32 %v1681, 0.35355338
    %v1684 = vsel %vm154, %v1683, -inf
    %1685 = vmax.xlane.f32.xlu0 %v1684
    %v1686 = vpop.xlane.xlu0 %1685
    %v1687 = vsub.f32 %v1683, %v1686
    %v1688 = vmul.f32 %v1687, 1.442695
    %v1689 = vpow.pop %v1688
    %v1690 = vsel %vm154, %v1689, 0.0
    %1691 = vadd.xlane.f32.xlu0 %v1690
    %v1692 = vpop.xlane.xlu0 %1691
    %v1693 = vrcp.pop %v1692
    %v1694 = vmul.f32 %v1689, %v1693
    %1695 = vrot.lane.b32.xlu0 %v1481, 48
    %v1696 = vpop.permute.xlu0 %1695
    %v1699 = vsel %vm154, %v1694, 0
    %1701 = vmatpush.msra.mxu0 0.0
    %1702 = vmatpush.msra.mxu0 0.0
    %1703 = vmatpush.msra.mxu0 0.0
    %1704 = vmatpush.msra.mxu0 0.0
    %1705 = vmatpush.msra.mxu0 0.0
    %1706 = vmatpush.msra.mxu0 0.0
    %1707 = vmatpush.msra.mxu0 0.0
    %1708 = vmatpush.msra.mxu0 0.0
    %1709 = vmatpush.msra.mxu0 0.0
    %1710 = vmatpush.msra.mxu0 0.0
    %1711 = vmatpush.msra.mxu0 0.0
    %1712 = vmatpush.msra.mxu0 0.0
    %1713 = vmatpush.msra.mxu0 0.0
    %1714 = vmatpush.msra.mxu0 0.0
    %1715 = vmatpush.msra.mxu0 0.0
    %1716 = vmatpush.msra.mxu0 %v1696
    %1717 = vmatmul.f32.gmra.mxu0 %v1699
    %v1718 = vpop.f32.mrf.mxu0
    %v1719 = vadd.f32 0.0, %v1718
    %1720 = vdwg.mxu0
    %v1721 = vpack.c.bf16 %v1719, %v1719
    %v1723 = vsel %vm154, %v1721, 0
    %v1726 = vsel %vm288, %v1451, 0
    %1728 = vmatpush.bf16.msra.mxu0 0
    %1729 = vmatpush.bf16.msra.mxu0 0
    %1730 = vmatpush.bf16.msra.mxu0 0
    %1731 = vmatpush.bf16.msra.mxu0 0
    %1732 = vmatpush.bf16.msra.mxu0 0
    %1733 = vmatpush.bf16.msra.mxu0 0
    %1734 = vmatpush.bf16.msra.mxu0 0
    %1735 = vmatpush.bf16.msra.mxu0 %v1726
    %1736 = vmatmul.bf16.gmra.mxu0 %v1723
    %v1737 = vpop.f32.mrf.mxu0
    %v1738 = vadd.f32 0.0, %v1737
    %v1739 = vpop.f32.mrf.mxu0
    %1740 = vdwg.mxu0
    %v1741 = vadd.f32 %v1652, %v1738
    %1742 = vrot.lane.b32.xlu0 %v1481, 104
    %v1743 = vpop.permute.xlu0 %1742
    %1744 = vrot.lane.b32.xlu0 %v1481, 72
    %v1745 = vpop.permute.xlu0 %1744
    %v1746 = vsel %vm154, %v1743, 0
    %v1748 = vsel %vm154, %v1745, 0
    %1750 = vmatpush.xpose.msra.mxu0 0.0
    %1751 = vmatpush.xpose.msra.mxu0 0.0
    %1752 = vmatpush.xpose.msra.mxu0 0.0
    %1753 = vmatpush.xpose.msra.mxu0 0.0
    %1754 = vmatpush.xpose.msra.mxu0 0.0
    %1755 = vmatpush.xpose.msra.mxu0 0.0
    %1756 = vmatpush.xpose.msra.mxu0 0.0
    %1757 = vmatpush.xpose.msra.mxu0 0.0
    %1758 = vmatpush.xpose.msra.mxu0 0.0
    %1759 = vmatpush.xpose.msra.mxu0 0.0
    %1760 = vmatpush.xpose.msra.mxu0 0.0
    %1761 = vmatpush.xpose.msra.mxu0 0.0
    %1762 = vmatpush.xpose.msra.mxu0 0.0
    %1763 = vmatpush.xpose.msra.mxu0 0.0
    %1764 = vmatpush.xpose.msra.mxu0 0.0
    %1765 = vmatpush.xpose.msra.mxu0 %v1748
    %1766 = vmatmul.f32.gmra.mxu0 %v1746
    %v1767 = vpop.f32.mrf.mxu0
    %v1768 = vadd.f32 0.0, %v1767
    %1769 = vdwg.mxu0
    %v1770 = vmul.f32 %v1768, 0.35355338
    %v1771 = vsel %vm154, %v1770, -inf
    %1772 = vmax.xlane.f32.xlu0 %v1771
    %v1773 = vpop.xlane.xlu0 %1772
    %v1774 = vsub.f32 %v1770, %v1773
    %v1775 = vmul.f32 %v1774, 1.442695
    %v1776 = vpow.pop %v1775
    %v1777 = vsel %vm154, %v1776, 0.0
    %1778 = vadd.xlane.f32.xlu0 %v1777
    %v1779 = vpop.xlane.xlu0 %1778
    %v1780 = vrcp.pop %v1779
    %v1781 = vmul.f32 %v1776, %v1780
    %1782 = vrot.lane.b32.xlu0 %v1481, 40
    %v1783 = vpop.permute.xlu0 %1782
    %v1786 = vsel %vm154, %v1781, 0
    %1788 = vmatpush.msra.mxu0 0.0
    %1789 = vmatpush.msra.mxu0 0.0
    %1790 = vmatpush.msra.mxu0 0.0
    %1791 = vmatpush.msra.mxu0 0.0
    %1792 = vmatpush.msra.mxu0 0.0
    %1793 = vmatpush.msra.mxu0 0.0
    %1794 = vmatpush.msra.mxu0 0.0
    %1795 = vmatpush.msra.mxu0 0.0
    %1796 = vmatpush.msra.mxu0 0.0
    %1797 = vmatpush.msra.mxu0 0.0
    %1798 = vmatpush.msra.mxu0 0.0
    %1799 = vmatpush.msra.mxu0 0.0
    %1800 = vmatpush.msra.mxu0 0.0
    %1801 = vmatpush.msra.mxu0 0.0
    %1802 = vmatpush.msra.mxu0 0.0
    %1803 = vmatpush.msra.mxu0 %v1783
    %1804 = vmatmul.f32.gmra.mxu0 %v1786
    %v1805 = vpop.f32.mrf.mxu0
    %v1806 = vadd.f32 0.0, %v1805
    %1807 = vdwg.mxu0
    %v1808 = vpack.c.bf16 %v1806, %v1806
    %v1810 = vsel %vm154, %v1808, 0
    %v1813 = vsel %vm288, %v1452, 0
    %1815 = vmatpush.bf16.msra.mxu0 0
    %1816 = vmatpush.bf16.msra.mxu0 0
    %1817 = vmatpush.bf16.msra.mxu0 0
    %1818 = vmatpush.bf16.msra.mxu0 0
    %1819 = vmatpush.bf16.msra.mxu0 0
    %1820 = vmatpush.bf16.msra.mxu0 0
    %1821 = vmatpush.bf16.msra.mxu0 0
    %1822 = vmatpush.bf16.msra.mxu0 %v1813
    %1823 = vmatmul.bf16.gmra.mxu0 %v1810
    %v1824 = vpop.f32.mrf.mxu0
    %v1825 = vadd.f32 0.0, %v1824
    %v1826 = vpop.f32.mrf.mxu0
    %1827 = vdwg.mxu0
    %v1828 = vadd.f32 %v1741, %v1825
    %v1829 = vperm.slane %v1453, 0
    %v1830 = vadd.f32 %v1828, %v1829
    %v1831 = vadd.f32 %v1443, %v1830
    %v1832 = vld [vmem:[#allocation7 + $0x1b] sm:$0x1]
    %v1833 = vld [vmem:[#allocation7 + $0x1c] sm:$0x1]
    %v1834 = vsel %vm134, %v1831, 0.0
    %1835 = vadd.xlane.f32.xlu0 %v1834
    %v1836 = vpop.xlane.xlu0 %1835
    %v1837 = vmul.f32 %v1836, %v512
    %v1838 = vsub.f32 %v1831, %v1837
    %v1839 = vmul.f32 %v1838, %v1838
    %v1840 = vsel %vm134, %v1839, 0.0
    %1841 = vadd.xlane.f32.xlu0 %v1840
    %v1842 = vpop.xlane.xlu0 %1841
    %v1843 = vmul.f32 %v1842, %v512
    %v1844 = vadd.f32 %v1843, 1e-05
    %v1845 = vrsqrt.pop %v1844
    %v1846 = vmul.f32 %v1845, %v1844
    %v1847 = vmul.f32 %v1846, %v1845
    %v1848 = vmul.f32 0.5, %v1847
    %v1849 = vsub.f32 1.5, %v1848
    %v1850 = vmul.f32 %v1845, %v1849
    %vm1851 = vweird.f32 %v1844
    %vm1852 = vweird.f32 %v1845
    %vm1853 = vmor %vm1851, %vm1852
    %v1854 = vsel %vm1853, %v1845, %v1850
    %v1855 = vmul.f32 %v1838, %v1854
    %v1856 = vperm.slane %v1832, 0
    %v1857 = vmul.f32 %v1855, %v1856
    %v1858 = vperm.slane %v1833, 0
    %v1859 = vadd.f32 %v1857, %v1858
    %v1860 = vld [vmem:[#allocation5 + $0x90] sm:$0xff]
    %v1861 = vld [vmem:[#allocation5 + $0x98] sm:$0xff]
    %v1862 = vld [vmem:[#allocation5 + $0xa0] sm:$0xff]
    %v1863 = vld [vmem:[#allocation5 + $0xa8] sm:$0xff]
    %v1864 = vld [vmem:[#allocation5 + $0xb0] sm:$0xff]
    %v1865 = vld [vmem:[#allocation5 + $0xb8] sm:$0xff]
    %v1866 = vld [vmem:[#allocation5 + $0xc0] sm:$0xff]
    %v1867 = vld [vmem:[#allocation5 + $0xc8] sm:$0xff]
    %v1868 = vld [vmem:[#allocation5 + $0x2c8] sm:$0xff]
    %v1869 = vld [vmem:[#allocation5 + $0x2d0] sm:$0xff]
    %v1870 = vld [vmem:[#allocation5 + $0x2d8] sm:$0xff]
    %v1871 = vld [vmem:[#allocation5 + $0x2e0] sm:$0xff]
    %v1872 = vld [vmem:[#allocation5 + $0x2e8] sm:$0xff]
    %v1873 = vld [vmem:[#allocation5 + $0x2f0] sm:$0xff]
    %v1874 = vld [vmem:[#allocation5 + $0x2f8] sm:$0xff]
    %v1875 = vld [vmem:[#allocation5 + $0x300] sm:$0xff]
    %v1876 = vld [vmem:[#allocation5 + $0x500] sm:$0xff]
    %v1877 = vld [vmem:[#allocation5 + $0x508] sm:$0xff]
    %v1878 = vld [vmem:[#allocation5 + $0x510] sm:$0xff]
    %v1879 = vld [vmem:[#allocation5 + $0x518] sm:$0xff]
    %v1880 = vld [vmem:[#allocation5 + $0x520] sm:$0xff]
    %v1881 = vld [vmem:[#allocation5 + $0x528] sm:$0xff]
    %v1882 = vld [vmem:[#allocation5 + $0x530] sm:$0xff]
    %v1883 = vld [vmem:[#allocation5 + $0x538] sm:$0xff]
    %v1884 = vld [vmem:[#allocation5 + $0x738] sm:$0xff]
    %v1885 = vld [vmem:[#allocation5 + $0x740] sm:$0xff]
    %v1886 = vld [vmem:[#allocation5 + $0x748] sm:$0xff]
    %v1887 = vld [vmem:[#allocation5 + $0x750] sm:$0xff]
    %v1888 = vld [vmem:[#allocation5 + $0x758] sm:$0xff]
    %v1889 = vld [vmem:[#allocation5 + $0x760] sm:$0xff]
    %v1890 = vld [vmem:[#allocation5 + $0x768] sm:$0xff]
    %v1891 = vld [vmem:[#allocation5 + $0x770] sm:$0xff]
    %s1892 = scalar_lea.vmem [#allocation8], 1
    %v1893 = vld [vmem:[%s1892] ss:$8 sm:$0xf]
    %v1894 = vld [vmem:[%s1892] ss:$8 sm:$0xf0]
    %v1895 = vor.u32 %v1893, %v1894
    %s1896 = scalar_lea.vmem [#allocation8], 65
    %v1897 = vld [vmem:[%s1896] ss:$8 sm:$0xf]
    %v1898 = vld [vmem:[%s1896] ss:$8 sm:$0xf0]
    %v1899 = vor.u32 %v1897, %v1898
    %v1900 = vld [vmem:[#allocation5 + $0xd0] sm:$0xff]
    %v1901 = vld [vmem:[#allocation5 + $0xd8] sm:$0xff]
    %v1902 = vld [vmem:[#allocation5 + $0xe0] sm:$0xff]
    %v1903 = vld [vmem:[#allocation5 + $0xe8] sm:$0xff]
    %v1904 = vld [vmem:[#allocation5 + $0xf0] sm:$0xff]
    %v1905 = vld [vmem:[#allocation5 + $0xf8] sm:$0xff]
    %v1906 = vld [vmem:[#allocation5 + $0x100] sm:$0xff]
    %v1907 = vld [vmem:[#allocation5 + $0x108] sm:$0xff]
    %v1908 = vld [vmem:[#allocation5 + $0x308] sm:$0xff]
    %v1909 = vld [vmem:[#allocation5 + $0x310] sm:$0xff]
    %v1910 = vld [vmem:[#allocation5 + $0x318] sm:$0xff]
    %v1911 = vld [vmem:[#allocation5 + $0x320] sm:$0xff]
    %v1912 = vld [vmem:[#allocation5 + $0x328] sm:$0xff]
    %v1913 = vld [vmem:[#allocation5 + $0x330] sm:$0xff]
    %v1914 = vld [vmem:[#allocation5 + $0x338] sm:$0xff]
    %v1915 = vld [vmem:[#allocation5 + $0x340] sm:$0xff]
    %v1916 = vld [vmem:[#allocation5 + $0x540] sm:$0xff]
    %v1917 = vld [vmem:[#allocation5 + $0x548] sm:$0xff]
    %v1918 = vld [vmem:[#allocation5 + $0x550] sm:$0xff]
    %v1919 = vld [vmem:[#allocation5 + $0x558] sm:$0xff]
    %v1920 = vld [vmem:[#allocation5 + $0x560] sm:$0xff]
    %v1921 = vld [vmem:[#allocation5 + $0x568] sm:$0xff]
    %v1922 = vld [vmem:[#allocation5 + $0x570] sm:$0xff]
    %v1923 = vld [vmem:[#allocation5 + $0x578] sm:$0xff]
    %v1924 = vld [vmem:[#allocation5 + $0x778] sm:$0xff]
    %v1925 = vld [vmem:[#allocation5 + $0x780] sm:$0xff]
    %v1926 = vld [vmem:[#allocation5 + $0x788] sm:$0xff]
    %v1927 = vld [vmem:[#allocation5 + $0x790] sm:$0xff]
    %v1928 = vld [vmem:[#allocation5 + $0x798] sm:$0xff]
    %v1929 = vld [vmem:[#allocation5 + $0x7a0] sm:$0xff]
    %v1930 = vld [vmem:[#allocation5 + $0x7a8] sm:$0xff]
    %v1931 = vld [vmem:[#allocation5 + $0x7b0] sm:$0xff]
    %v1932 = vld [vmem:[#allocation7 + $0x1d] sm:$0x1]
    %v1933 = vpack.c.bf16 %v1859, %v1859
    %v1936 = vperm.slane %v1895, 0
    %v1937 = vperm.slane %v1895, 1
    %v1938 = vperm.slane %v1895, 2
    %v1939 = vperm.slane %v1895, 3
    %v1940 = vperm.slane %v1895, 4
    %v1941 = vperm.slane %v1895, 5
    %v1942 = vperm.slane %v1895, 6
    %v1943 = vperm.slane %v1895, 7
    %v1944 = vperm.slane %v1899, 0
    %v1945 = vperm.slane %v1899, 1
    %v1946 = vperm.slane %v1899, 2
    %v1947 = vperm.slane %v1899, 3
    %v1948 = vperm.slane %v1899, 4
    %v1949 = vperm.slane %v1899, 5
    %v1950 = vperm.slane %v1899, 6
    %v1951 = vperm.slane %v1899, 7
    %v2000 = vunpack.c.l.b16 %v1860
    %v2001 = vunpack.c.h.b16 %v1860
    %v2002 = vunpack.c.l.b16 %v1861
    %v2003 = vunpack.c.h.b16 %v1861
    %v2004 = vunpack.c.l.b16 %v1862
    %v2005 = vunpack.c.h.b16 %v1862
    %v2006 = vunpack.c.l.b16 %v1863
    %v2007 = vunpack.c.h.b16 %v1863
    %v2008 = vunpack.c.l.b16 %v1864
    %v2009 = vunpack.c.h.b16 %v1864
    %v2010 = vunpack.c.l.b16 %v1865
    %v2011 = vunpack.c.h.b16 %v1865
    %v2012 = vunpack.c.l.b16 %v1866
    %v2013 = vunpack.c.h.b16 %v1866
    %v2014 = vunpack.c.l.b16 %v1867
    %v2015 = vunpack.c.h.b16 %v1867
    %v2016 = vunpack.c.l.b16 %v1868
    %v2017 = vunpack.c.h.b16 %v1868
    %v2018 = vunpack.c.l.b16 %v1869
    %v2019 = vunpack.c.h.b16 %v1869
    %v2020 = vunpack.c.l.b16 %v1870
    %v2021 = vunpack.c.h.b16 %v1870
    %v2022 = vunpack.c.l.b16 %v1871
    %v2023 = vunpack.c.h.b16 %v1871
    %v2024 = vunpack.c.l.b16 %v1872
    %v2025 = vunpack.c.h.b16 %v1872
    %v2026 = vunpack.c.l.b16 %v1873
    %v2027 = vunpack.c.h.b16 %v1873
    %v2028 = vunpack.c.l.b16 %v1874
    %v2029 = vunpack.c.h.b16 %v1874
    %v2030 = vunpack.c.l.b16 %v1875
    %v2031 = vunpack.c.h.b16 %v1875
    %v2032 = vunpack.c.l.b16 %v1876
    %v2033 = vunpack.c.h.b16 %v1876
    %v2034 = vunpack.c.l.b16 %v1877
    %v2035 = vunpack.c.h.b16 %v1877
    %v2036 = vunpack.c.l.b16 %v1878
    %v2037 = vunpack.c.h.b16 %v1878
    %v2038 = vunpack.c.l.b16 %v1879
    %v2039 = vunpack.c.h.b16 %v1879
    %v2040 = vunpack.c.l.b16 %v1880
    %v2041 = vunpack.c.h.b16 %v1880
    %v2042 = vunpack.c.l.b16 %v1881
    %v2043 = vunpack.c.h.b16 %v1881
    %v2044 = vunpack.c.l.b16 %v1882
    %v2045 = vunpack.c.h.b16 %v1882
    %v2046 = vunpack.c.l.b16 %v1883
    %v2047 = vunpack.c.h.b16 %v1883
    %v2048 = vunpack.c.l.b16 %v1884
    %v2049 = vunpack.c.h.b16 %v1884
    %v2050 = vunpack.c.l.b16 %v1885
    %v2051 = vunpack.c.h.b16 %v1885
    %v2052 = vunpack.c.l.b16 %v1886
    %v2053 = vunpack.c.h.b16 %v1886
    %v2054 = vunpack.c.l.b16 %v1887
    %v2055 = vunpack.c.h.b16 %v1887
    %v2056 = vunpack.c.l.b16 %v1888
    %v2057 = vunpack.c.h.b16 %v1888
    %v2058 = vunpack.c.l.b16 %v1889
    %v2059 = vunpack.c.h.b16 %v1889
    %v2060 = vunpack.c.l.b16 %v1890
    %v2061 = vunpack.c.h.b16 %v1890
    %v2062 = vunpack.c.l.b16 %v1891
    %v2063 = vunpack.c.h.b16 %v1891
    %v2064 = vpack.c.b16 %v2016, %v2000
    %v2065 = vpack.c.b16 %v2017, %v2001
    %v2066 = vpack.c.b16 %v2018, %v2002
    %v2067 = vpack.c.b16 %v2019, %v2003
    %v2068 = vpack.c.b16 %v2020, %v2004
    %v2069 = vpack.c.b16 %v2021, %v2005
    %v2070 = vpack.c.b16 %v2022, %v2006
    %v2071 = vpack.c.b16 %v2023, %v2007
    %v2072 = vpack.c.b16 %v2024, %v2008
    %v2073 = vpack.c.b16 %v2025, %v2009
    %v2074 = vpack.c.b16 %v2026, %v2010
    %v2075 = vpack.c.b16 %v2027, %v2011
    %v2076 = vpack.c.b16 %v2028, %v2012
    %v2077 = vpack.c.b16 %v2029, %v2013
    %v2078 = vpack.c.b16 %v2030, %v2014
    %v2079 = vpack.c.b16 %v2031, %v2015
    %v2080 = vpack.c.b16 %v2048, %v2032
    %v2081 = vpack.c.b16 %v2049, %v2033
    %v2082 = vpack.c.b16 %v2050, %v2034
    %v2083 = vpack.c.b16 %v2051, %v2035
    %v2084 = vpack.c.b16 %v2052, %v2036
    %v2085 = vpack.c.b16 %v2053, %v2037
    %v2086 = vpack.c.b16 %v2054, %v2038
    %v2087 = vpack.c.b16 %v2055, %v2039
    %v2088 = vpack.c.b16 %v2056, %v2040
    %v2089 = vpack.c.b16 %v2057, %v2041
    %v2090 = vpack.c.b16 %v2058, %v2042
    %v2091 = vpack.c.b16 %v2059, %v2043
    %v2092 = vpack.c.b16 %v2060, %v2044
    %v2093 = vpack.c.b16 %v2061, %v2045
    %v2094 = vpack.c.b16 %v2062, %v2046
    %v2095 = vpack.c.b16 %v2063, %v2047
    %v2129 = vsel %vm134, %v1933, 0
    %2131 = vmatpush.bf16.msra.mxu0 0
    %2132 = vmatpush.bf16.msra.mxu0 0
    %2133 = vmatpush.bf16.msra.mxu0 0
    %2134 = vmatpush.bf16.msra.mxu0 0
    %2135 = vmatpush.bf16.msra.mxu0 0
    %2136 = vmatpush.bf16.msra.mxu0 0
    %2137 = vmatpush.bf16.msra.mxu0 %v2080
    %2138 = vmatpush.bf16.msra.mxu0 %v2064
    %2139 = vmatmul.bf16.gmra.mxu0 %v2129
    %v2140 = vpop.f32.mrf.mxu0
    %v2141 = vadd.f32 %v1936, %v2140
    %v2142 = vpop.f32.mrf.mxu0
    %2143 = vdwg.mxu0
    %2144 = vmatpush.bf16.msra.mxu0 0
    %2145 = vmatpush.bf16.msra.mxu0 0
    %2146 = vmatpush.bf16.msra.mxu0 0
    %2147 = vmatpush.bf16.msra.mxu0 0
    %2148 = vmatpush.bf16.msra.mxu0 0
    %2149 = vmatpush.bf16.msra.mxu0 0
    %2150 = vmatpush.bf16.msra.mxu0 %v2081
    %2151 = vmatpush.bf16.msra.mxu0 %v2065
    %2152 = vmatmul.bf16.gmra.mxu0 %v2129
    %v2153 = vpop.f32.mrf.mxu0
    %v2154 = vadd.f32 %v1937, %v2153
    %v2155 = vpop.f32.mrf.mxu0
    %2156 = vdwg.mxu0
    %2157 = vmatpush.bf16.msra.mxu0 0
    %2158 = vmatpush.bf16.msra.mxu0 0
    %2159 = vmatpush.bf16.msra.mxu0 0
    %2160 = vmatpush.bf16.msra.mxu0 0
    %2161 = vmatpush.bf16.msra.mxu0 0
    %2162 = vmatpush.bf16.msra.mxu0 0
    %2163 = vmatpush.bf16.msra.mxu0 %v2082
    %2164 = vmatpush.bf16.msra.mxu0 %v2066
    %2165 = vmatmul.bf16.gmra.mxu0 %v2129
    %v2166 = vpop.f32.mrf.mxu0
    %v2167 = vadd.f32 %v1938, %v2166
    %v2168 = vpop.f32.mrf.mxu0
    %2169 = vdwg.mxu0
    %2170 = vmatpush.bf16.msra.mxu0 0
    %2171 = vmatpush.bf16.msra.mxu0 0
    %2172 = vmatpush.bf16.msra.mxu0 0
    %2173 = vmatpush.bf16.msra.mxu0 0
    %2174 = vmatpush.bf16.msra.mxu0 0
    %2175 = vmatpush.bf16.msra.mxu0 0
    %2176 = vmatpush.bf16.msra.mxu0 %v2083
    %2177 = vmatpush.bf16.msra.mxu0 %v2067
    %2178 = vmatmul.bf16.gmra.mxu0 %v2129
    %v2179 = vpop.f32.mrf.mxu0
    %v2180 = vadd.f32 %v1939, %v2179
    %v2181 = vpop.f32.mrf.mxu0
    %2182 = vdwg.mxu0
    %2183 = vmatpush.bf16.msra.mxu0 0
    %2184 = vmatpush.bf16.msra.mxu0 0
    %2185 = vmatpush.bf16.msra.mxu0 0
    %2186 = vmatpush.bf16.msra.mxu0 0
    %2187 = vmatpush.bf16.msra.mxu0 0
    %2188 = vmatpush.bf16.msra.mxu0 0
    %2189 = vmatpush.bf16.msra.mxu0 %v2084
    %2190 = vmatpush.bf16.msra.mxu0 %v2068
    %2191 = vmatmul.bf16.gmra.mxu0 %v2129
    %v2192 = vpop.f32.mrf.mxu0
    %v2193 = vadd.f32 %v1940, %v2192
    %v2194 = vpop.f32.mrf.mxu0
    %2195 = vdwg.mxu0
    %2196 = vmatpush.bf16.msra.mxu0 0
    %2197 = vmatpush.bf16.msra.mxu0 0
    %2198 = vmatpush.bf16.msra.mxu0 0
    %2199 = vmatpush.bf16.msra.mxu0 0
    %2200 = vmatpush.bf16.msra.mxu0 0
    %2201 = vmatpush.bf16.msra.mxu0 0
    %2202 = vmatpush.bf16.msra.mxu0 %v2085
    %2203 = vmatpush.bf16.msra.mxu0 %v2069
    %2204 = vmatmul.bf16.gmra.mxu0 %v2129
    %v2205 = vpop.f32.mrf.mxu0
    %v2206 = vadd.f32 %v1941, %v2205
    %v2207 = vpop.f32.mrf.mxu0
    %2208 = vdwg.mxu0
    %2209 = vmatpush.bf16.msra.mxu0 0
    %2210 = vmatpush.bf16.msra.mxu0 0
    %2211 = vmatpush.bf16.msra.mxu0 0
    %2212 = vmatpush.bf16.msra.mxu0 0
    %2213 = vmatpush.bf16.msra.mxu0 0
    %2214 = vmatpush.bf16.msra.mxu0 0
    %2215 = vmatpush.bf16.msra.mxu0 %v2086
    %2216 = vmatpush.bf16.msra.mxu0 %v2070
    %2217 = vmatmul.bf16.gmra.mxu0 %v2129
    %v2218 = vpop.f32.mrf.mxu0
    %v2219 = vadd.f32 %v1942, %v2218
    %v2220 = vpop.f32.mrf.mxu0
    %2221 = vdwg.mxu0
    %2222 = vmatpush.bf16.msra.mxu0 0
    %2223 = vmatpush.bf16.msra.mxu0 0
    %2224 = vmatpush.bf16.msra.mxu0 0
    %2225 = vmatpush.bf16.msra.mxu0 0
    %2226 = vmatpush.bf16.msra.mxu0 0
    %2227 = vmatpush.bf16.msra.mxu0 0
    %2228 = vmatpush.bf16.msra.mxu0 %v2087
    %2229 = vmatpush.bf16.msra.mxu0 %v2071
    %2230 = vmatmul.bf16.gmra.mxu0 %v2129
    %v2231 = vpop.f32.mrf.mxu0
    %v2232 = vadd.f32 %v1943, %v2231
    %v2233 = vpop.f32.mrf.mxu0
    %2234 = vdwg.mxu0
    %2235 = vmatpush.bf16.msra.mxu0 0
    %2236 = vmatpush.bf16.msra.mxu0 0
    %2237 = vmatpush.bf16.msra.mxu0 0
    %2238 = vmatpush.bf16.msra.mxu0 0
    %2239 = vmatpush.bf16.msra.mxu0 0
    %2240 = vmatpush.bf16.msra.mxu0 0
    %2241 = vmatpush.bf16.msra.mxu0 %v2088
    %2242 = vmatpush.bf16.msra.mxu0 %v2072
    %2243 = vmatmul.bf16.gmra.mxu0 %v2129
    %v2244 = vpop.f32.mrf.mxu0
    %v2245 = vadd.f32 %v1944, %v2244
    %v2246 = vpop.f32.mrf.mxu0
    %2247 = vdwg.mxu0
    %2248 = vmatpush.bf16.msra.mxu0 0
    %2249 = vmatpush.bf16.msra.mxu0 0
    %2250 = vmatpush.bf16.msra.mxu0 0
    %2251 = vmatpush.bf16.msra.mxu0 0
    %2252 = vmatpush.bf16.msra.mxu0 0
    %2253 = vmatpush.bf16.msra.mxu0 0
    %2254 = vmatpush.bf16.msra.mxu0 %v2089
    %2255 = vmatpush.bf16.msra.mxu0 %v2073
    %2256 = vmatmul.bf16.gmra.mxu0 %v2129
    %v2257 = vpop.f32.mrf.mxu0
    %v2258 = vadd.f32 %v1945, %v2257
    %v2259 = vpop.f32.mrf.mxu0
    %2260 = vdwg.mxu0
    %2261 = vmatpush.bf16.msra.mxu0 0
    %2262 = vmatpush.bf16.msra.mxu0 0
    %2263 = vmatpush.bf16.msra.mxu0 0
    %2264 = vmatpush.bf16.msra.mxu0 0
    %2265 = vmatpush.bf16.msra.mxu0 0
    %2266 = vmatpush.bf16.msra.mxu0 0
    %2267 = vmatpush.bf16.msra.mxu0 %v2090
    %2268 = vmatpush.bf16.msra.mxu0 %v2074
    %2269 = vmatmul.bf16.gmra.mxu0 %v2129
    %v2270 = vpop.f32.mrf.mxu0
    %v2271 = vadd.f32 %v1946, %v2270
    %v2272 = vpop.f32.mrf.mxu0
    %2273 = vdwg.mxu0
    %2274 = vmatpush.bf16.msra.mxu0 0
    %2275 = vmatpush.bf16.msra.mxu0 0
    %2276 = vmatpush.bf16.msra.mxu0 0
    %2277 = vmatpush.bf16.msra.mxu0 0
    %2278 = vmatpush.bf16.msra.mxu0 0
    %2279 = vmatpush.bf16.msra.mxu0 0
    %2280 = vmatpush.bf16.msra.mxu0 %v2091
    %2281 = vmatpush.bf16.msra.mxu0 %v2075
    %2282 = vmatmul.bf16.gmra.mxu0 %v2129
    %v2283 = vpop.f32.mrf.mxu0
    %v2284 = vadd.f32 %v1947, %v2283
    %v2285 = vpop.f32.mrf.mxu0
    %2286 = vdwg.mxu0
    %2287 = vmatpush.bf16.msra.mxu0 0
    %2288 = vmatpush.bf16.msra.mxu0 0
    %2289 = vmatpush.bf16.msra.mxu0 0
    %2290 = vmatpush.bf16.msra.mxu0 0
    %2291 = vmatpush.bf16.msra.mxu0 0
    %2292 = vmatpush.bf16.msra.mxu0 0
    %2293 = vmatpush.bf16.msra.mxu0 %v2092
    %2294 = vmatpush.bf16.msra.mxu0 %v2076
    %2295 = vmatmul.bf16.gmra.mxu0 %v2129
    %v2296 = vpop.f32.mrf.mxu0
    %v2297 = vadd.f32 %v1948, %v2296
    %v2298 = vpop.f32.mrf.mxu0
    %2299 = vdwg.mxu0
    %2300 = vmatpush.bf16.msra.mxu0 0
    %2301 = vmatpush.bf16.msra.mxu0 0
    %2302 = vmatpush.bf16.msra.mxu0 0
    %2303 = vmatpush.bf16.msra.mxu0 0
    %2304 = vmatpush.bf16.msra.mxu0 0
    %2305 = vmatpush.bf16.msra.mxu0 0
    %2306 = vmatpush.bf16.msra.mxu0 %v2093
    %2307 = vmatpush.bf16.msra.mxu0 %v2077
    %2308 = vmatmul.bf16.gmra.mxu0 %v2129
    %v2309 = vpop.f32.mrf.mxu0
    %v2310 = vadd.f32 %v1949, %v2309
    %v2311 = vpop.f32.mrf.mxu0
    %2312 = vdwg.mxu0
    %2313 = vmatpush.bf16.msra.mxu0 0
    %2314 = vmatpush.bf16.msra.mxu0 0
    %2315 = vmatpush.bf16.msra.mxu0 0
    %2316 = vmatpush.bf16.msra.mxu0 0
    %2317 = vmatpush.bf16.msra.mxu0 0
    %2318 = vmatpush.bf16.msra.mxu0 0
    %2319 = vmatpush.bf16.msra.mxu0 %v2094
    %2320 = vmatpush.bf16.msra.mxu0 %v2078
    %2321 = vmatmul.bf16.gmra.mxu0 %v2129
    %v2322 = vpop.f32.mrf.mxu0
    %v2323 = vadd.f32 %v1950, %v2322
    %v2324 = vpop.f32.mrf.mxu0
    %2325 = vdwg.mxu0
    %2326 = vmatpush.bf16.msra.mxu0 0
    %2327 = vmatpush.bf16.msra.mxu0 0
    %2328 = vmatpush.bf16.msra.mxu0 0
    %2329 = vmatpush.bf16.msra.mxu0 0
    %2330 = vmatpush.bf16.msra.mxu0 0
    %2331 = vmatpush.bf16.msra.mxu0 0
    %2332 = vmatpush.bf16.msra.mxu0 %v2095
    %2333 = vmatpush.bf16.msra.mxu0 %v2079
    %2334 = vmatmul.bf16.gmra.mxu0 %v2129
    %v2335 = vpop.f32.mrf.mxu0
    %v2336 = vadd.f32 %v1951, %v2335
    %v2337 = vpop.f32.mrf.mxu0
    %2338 = vdwg.mxu0
    %v2339 = vmax.f32 %v2141, 0.0
    %v2340 = vmax.f32 %v2154, 0.0
    %v2341 = vmax.f32 %v2167, 0.0
    %v2342 = vmax.f32 %v2180, 0.0
    %v2343 = vmax.f32 %v2193, 0.0
    %v2344 = vmax.f32 %v2206, 0.0
    %v2345 = vmax.f32 %v2219, 0.0
    %v2346 = vmax.f32 %v2232, 0.0
    %v2347 = vmax.f32 %v2245, 0.0
    %v2348 = vmax.f32 %v2258, 0.0
    %v2349 = vmax.f32 %v2271, 0.0
    %v2350 = vmax.f32 %v2284, 0.0
    %v2351 = vmax.f32 %v2297, 0.0
    %v2352 = vmax.f32 %v2310, 0.0
    %v2353 = vmax.f32 %v2323, 0.0
    %v2354 = vmax.f32 %v2336, 0.0
    %v2355 = vpack.c.bf16 %v2339, %v2339
    %v2356 = vpack.c.bf16 %v2340, %v2340
    %v2357 = vpack.c.bf16 %v2341, %v2341
    %v2358 = vpack.c.bf16 %v2342, %v2342
    %v2359 = vpack.c.bf16 %v2343, %v2343
    %v2360 = vpack.c.bf16 %v2344, %v2344
    %v2361 = vpack.c.bf16 %v2345, %v2345
    %v2362 = vpack.c.bf16 %v2346, %v2346
    %v2363 = vpack.c.bf16 %v2347, %v2347
    %v2364 = vpack.c.bf16 %v2348, %v2348
    %v2365 = vpack.c.bf16 %v2349, %v2349
    %v2366 = vpack.c.bf16 %v2350, %v2350
    %v2367 = vpack.c.bf16 %v2351, %v2351
    %v2368 = vpack.c.bf16 %v2352, %v2352
    %v2369 = vpack.c.bf16 %v2353, %v2353
    %v2370 = vpack.c.bf16 %v2354, %v2354
    %v2371 = vperm.slane %v1932, 0
    %v2404 = vunpack.c.l.b16 %v1900
    %v2405 = vunpack.c.h.b16 %v1900
    %v2406 = vunpack.c.l.b16 %v1901
    %v2407 = vunpack.c.h.b16 %v1901
    %v2408 = vunpack.c.l.b16 %v1902
    %v2409 = vunpack.c.h.b16 %v1902
    %v2410 = vunpack.c.l.b16 %v1903
    %v2411 = vunpack.c.h.b16 %v1903
    %v2412 = vunpack.c.l.b16 %v1904
    %v2413 = vunpack.c.h.b16 %v1904
    %v2414 = vunpack.c.l.b16 %v1905
    %v2415 = vunpack.c.h.b16 %v1905
    %v2416 = vunpack.c.l.b16 %v1906
    %v2417 = vunpack.c.h.b16 %v1906
    %v2418 = vunpack.c.l.b16 %v1907
    %v2419 = vunpack.c.h.b16 %v1907
    %v2420 = vunpack.c.l.b16 %v1908
    %v2421 = vunpack.c.h.b16 %v1908
    %v2422 = vunpack.c.l.b16 %v1909
    %v2423 = vunpack.c.h.b16 %v1909
    %v2424 = vunpack.c.l.b16 %v1910
    %v2425 = vunpack.c.h.b16 %v1910
    %v2426 = vunpack.c.l.b16 %v1911
    %v2427 = vunpack.c.h.b16 %v1911
    %v2428 = vunpack.c.l.b16 %v1912
    %v2429 = vunpack.c.h.b16 %v1912
    %v2430 = vunpack.c.l.b16 %v1913
    %v2431 = vunpack.c.h.b16 %v1913
    %v2432 = vunpack.c.l.b16 %v1914
    %v2433 = vunpack.c.h.b16 %v1914
    %v2434 = vunpack.c.l.b16 %v1915
    %v2435 = vunpack.c.h.b16 %v1915
    %v2436 = vunpack.c.l.b16 %v1916
    %v2437 = vunpack.c.h.b16 %v1916
    %v2438 = vunpack.c.l.b16 %v1917
    %v2439 = vunpack.c.h.b16 %v1917
    %v2440 = vunpack.c.l.b16 %v1918
    %v2441 = vunpack.c.h.b16 %v1918
    %v2442 = vunpack.c.l.b16 %v1919
    %v2443 = vunpack.c.h.b16 %v1919
    %v2444 = vunpack.c.l.b16 %v1920
    %v2445 = vunpack.c.h.b16 %v1920
    %v2446 = vunpack.c.l.b16 %v1921
    %v2447 = vunpack.c.h.b16 %v1921
    %v2448 = vunpack.c.l.b16 %v1922
    %v2449 = vunpack.c.h.b16 %v1922
    %v2450 = vunpack.c.l.b16 %v1923
    %v2451 = vunpack.c.h.b16 %v1923
    %v2452 = vunpack.c.l.b16 %v1924
    %v2453 = vunpack.c.h.b16 %v1924
    %v2454 = vunpack.c.l.b16 %v1925
    %v2455 = vunpack.c.h.b16 %v1925
    %v2456 = vunpack.c.l.b16 %v1926
    %v2457 = vunpack.c.h.b16 %v1926
    %v2458 = vunpack.c.l.b16 %v1927
    %v2459 = vunpack.c.h.b16 %v1927
    %v2460 = vunpack.c.l.b16 %v1928
    %v2461 = vunpack.c.h.b16 %v1928
    %v2462 = vunpack.c.l.b16 %v1929
    %v2463 = vunpack.c.h.b16 %v1929
    %v2464 = vunpack.c.l.b16 %v1930
    %v2465 = vunpack.c.h.b16 %v1930
    %v2466 = vunpack.c.l.b16 %v1931
    %v2467 = vunpack.c.h.b16 %v1931
    %v2468 = vpack.c.b16 %v2420, %v2404
    %v2469 = vpack.c.b16 %v2421, %v2405
    %v2470 = vpack.c.b16 %v2422, %v2406
    %v2471 = vpack.c.b16 %v2423, %v2407
    %v2472 = vpack.c.b16 %v2424, %v2408
    %v2473 = vpack.c.b16 %v2425, %v2409
    %v2474 = vpack.c.b16 %v2426, %v2410
    %v2475 = vpack.c.b16 %v2427, %v2411
    %v2476 = vpack.c.b16 %v2428, %v2412
    %v2477 = vpack.c.b16 %v2429, %v2413
    %v2478 = vpack.c.b16 %v2430, %v2414
    %v2479 = vpack.c.b16 %v2431, %v2415
    %v2480 = vpack.c.b16 %v2432, %v2416
    %v2481 = vpack.c.b16 %v2433, %v2417
    %v2482 = vpack.c.b16 %v2434, %v2418
    %v2483 = vpack.c.b16 %v2435, %v2419
    %v2484 = vpack.c.b16 %v2452, %v2436
    %v2485 = vpack.c.b16 %v2453, %v2437
    %v2486 = vpack.c.b16 %v2454, %v2438
    %v2487 = vpack.c.b16 %v2455, %v2439
    %v2488 = vpack.c.b16 %v2456, %v2440
    %v2489 = vpack.c.b16 %v2457, %v2441
    %v2490 = vpack.c.b16 %v2458, %v2442
    %v2491 = vpack.c.b16 %v2459, %v2443
    %v2492 = vpack.c.b16 %v2460, %v2444
    %v2493 = vpack.c.b16 %v2461, %v2445
    %v2494 = vpack.c.b16 %v2462, %v2446
    %v2495 = vpack.c.b16 %v2463, %v2447
    %v2496 = vpack.c.b16 %v2464, %v2448
    %v2497 = vpack.c.b16 %v2465, %v2449
    %v2498 = vpack.c.b16 %v2466, %v2450
    %v2499 = vpack.c.b16 %v2467, %v2451
    %2532 = vmatpush.bf16.xpose.msra.mxu0 0
    %2533 = vmatpush.bf16.xpose.msra.mxu0 0
    %2534 = vmatpush.bf16.xpose.msra.mxu0 0
    %2535 = vmatpush.bf16.xpose.msra.mxu0 0
    %2536 = vmatpush.bf16.xpose.msra.mxu0 0
    %2537 = vmatpush.bf16.xpose.msra.mxu0 0
    %2538 = vmatpush.bf16.xpose.msra.mxu0 %v2484
    %2539 = vmatpush.bf16.xpose.msra.mxu0 %v2468
    %2540 = vmatmul.bf16.gmra.mxu0 %v2355
    %v2541 = vpop.f32.mrf.mxu0
    %v2542 = vadd.f32 %v2371, %v2541
    %v2543 = vpop.f32.mrf.mxu0
    %2544 = vdwg.mxu0
    %2545 = vmatpush.bf16.xpose.msra.mxu0 0
    %2546 = vmatpush.bf16.xpose.msra.mxu0 0
    %2547 = vmatpush.bf16.xpose.msra.mxu0 0
    %2548 = vmatpush.bf16.xpose.msra.mxu0 0
    %2549 = vmatpush.bf16.xpose.msra.mxu0 0
    %2550 = vmatpush.bf16.xpose.msra.mxu0 0
    %2551 = vmatpush.bf16.xpose.msra.mxu0 %v2485
    %2552 = vmatpush.bf16.xpose.msra.mxu0 %v2469
    %2553 = vmatmul.bf16.gmra.mxu0 %v2356
    %v2554 = vpop.f32.mrf.mxu0
    %v2555 = vadd.f32 %v2542, %v2554
    %v2556 = vpop.f32.mrf.mxu0
    %2557 = vdwg.mxu0
    %2558 = vmatpush.bf16.xpose.msra.mxu0 0
    %2559 = vmatpush.bf16.xpose.msra.mxu0 0
    %2560 = vmatpush.bf16.xpose.msra.mxu0 0
    %2561 = vmatpush.bf16.xpose.msra.mxu0 0
    %2562 = vmatpush.bf16.xpose.msra.mxu0 0
    %2563 = vmatpush.bf16.xpose.msra.mxu0 0
    %2564 = vmatpush.bf16.xpose.msra.mxu0 %v2486
    %2565 = vmatpush.bf16.xpose.msra.mxu0 %v2470
    %2566 = vmatmul.bf16.gmra.mxu0 %v2357
    %v2567 = vpop.f32.mrf.mxu0
    %v2568 = vadd.f32 %v2555, %v2567
    %v2569 = vpop.f32.mrf.mxu0
    %2570 = vdwg.mxu0
    %2571 = vmatpush.bf16.xpose.msra.mxu0 0
    %2572 = vmatpush.bf16.xpose.msra.mxu0 0
    %2573 = vmatpush.bf16.xpose.msra.mxu0 0
    %2574 = vmatpush.bf16.xpose.msra.mxu0 0
    %2575 = vmatpush.bf16.xpose.msra.mxu0 0
    %2576 = vmatpush.bf16.xpose.msra.mxu0 0
    %2577 = vmatpush.bf16.xpose.msra.mxu0 %v2487
    %2578 = vmatpush.bf16.xpose.msra.mxu0 %v2471
    %2579 = vmatmul.bf16.gmra.mxu0 %v2358
    %v2580 = vpop.f32.mrf.mxu0
    %v2581 = vadd.f32 %v2568, %v2580
    %v2582 = vpop.f32.mrf.mxu0
    %2583 = vdwg.mxu0
    %2584 = vmatpush.bf16.xpose.msra.mxu0 0
    %2585 = vmatpush.bf16.xpose.msra.mxu0 0
    %2586 = vmatpush.bf16.xpose.msra.mxu0 0
    %2587 = vmatpush.bf16.xpose.msra.mxu0 0
    %2588 = vmatpush.bf16.xpose.msra.mxu0 0
    %2589 = vmatpush.bf16.xpose.msra.mxu0 0
    %2590 = vmatpush.bf16.xpose.msra.mxu0 %v2488
    %2591 = vmatpush.bf16.xpose.msra.mxu0 %v2472
    %2592 = vmatmul.bf16.gmra.mxu0 %v2359
    %v2593 = vpop.f32.mrf.mxu0
    %v2594 = vadd.f32 %v2581, %v2593
    %v2595 = vpop.f32.mrf.mxu0
    %2596 = vdwg.mxu0
    %2597 = vmatpush.bf16.xpose.msra.mxu0 0
    %2598 = vmatpush.bf16.xpose.msra.mxu0 0
    %2599 = vmatpush.bf16.xpose.msra.mxu0 0
    %2600 = vmatpush.bf16.xpose.msra.mxu0 0
    %2601 = vmatpush.bf16.xpose.msra.mxu0 0
    %2602 = vmatpush.bf16.xpose.msra.mxu0 0
    %2603 = vmatpush.bf16.xpose.msra.mxu0 %v2489
    %2604 = vmatpush.bf16.xpose.msra.mxu0 %v2473
    %2605 = vmatmul.bf16.gmra.mxu0 %v2360
    %v2606 = vpop.f32.mrf.mxu0
    %v2607 = vadd.f32 %v2594, %v2606
    %v2608 = vpop.f32.mrf.mxu0
    %2609 = vdwg.mxu0
    %2610 = vmatpush.bf16.xpose.msra.mxu0 0
    %2611 = vmatpush.bf16.xpose.msra.mxu0 0
    %2612 = vmatpush.bf16.xpose.msra.mxu0 0
    %2613 = vmatpush.bf16.xpose.msra.mxu0 0
    %2614 = vmatpush.bf16.xpose.msra.mxu0 0
    %2615 = vmatpush.bf16.xpose.msra.mxu0 0
    %2616 = vmatpush.bf16.xpose.msra.mxu0 %v2490
    %2617 = vmatpush.bf16.xpose.msra.mxu0 %v2474
    %2618 = vmatmul.bf16.gmra.mxu0 %v2361
    %v2619 = vpop.f32.mrf.mxu0
    %v2620 = vadd.f32 %v2607, %v2619
    %v2621 = vpop.f32.mrf.mxu0
    %2622 = vdwg.mxu0
    %2623 = vmatpush.bf16.xpose.msra.mxu0 0
    %2624 = vmatpush.bf16.xpose.msra.mxu0 0
    %2625 = vmatpush.bf16.xpose.msra.mxu0 0
    %2626 = vmatpush.bf16.xpose.msra.mxu0 0
    %2627 = vmatpush.bf16.xpose.msra.mxu0 0
    %2628 = vmatpush.bf16.xpose.msra.mxu0 0
    %2629 = vmatpush.bf16.xpose.msra.mxu0 %v2491
    %2630 = vmatpush.bf16.xpose.msra.mxu0 %v2475
    %2631 = vmatmul.bf16.gmra.mxu0 %v2362
    %v2632 = vpop.f32.mrf.mxu0
    %v2633 = vadd.f32 %v2620, %v2632
    %v2634 = vpop.f32.mrf.mxu0
    %2635 = vdwg.mxu0
    %2636 = vmatpush.bf16.xpose.msra.mxu0 0
    %2637 = vmatpush.bf16.xpose.msra.mxu0 0
    %2638 = vmatpush.bf16.xpose.msra.mxu0 0
    %2639 = vmatpush.bf16.xpose.msra.mxu0 0
    %2640 = vmatpush.bf16.xpose.msra.mxu0 0
    %2641 = vmatpush.bf16.xpose.msra.mxu0 0
    %2642 = vmatpush.bf16.xpose.msra.mxu0 %v2492
    %2643 = vmatpush.bf16.xpose.msra.mxu0 %v2476
    %2644 = vmatmul.bf16.gmra.mxu0 %v2363
    %v2645 = vpop.f32.mrf.mxu0
    %v2646 = vadd.f32 %v2633, %v2645
    %v2647 = vpop.f32.mrf.mxu0
    %2648 = vdwg.mxu0
    %2649 = vmatpush.bf16.xpose.msra.mxu0 0
    %2650 = vmatpush.bf16.xpose.msra.mxu0 0
    %2651 = vmatpush.bf16.xpose.msra.mxu0 0
    %2652 = vmatpush.bf16.xpose.msra.mxu0 0
    %2653 = vmatpush.bf16.xpose.msra.mxu0 0
    %2654 = vmatpush.bf16.xpose.msra.mxu0 0
    %2655 = vmatpush.bf16.xpose.msra.mxu0 %v2493
    %2656 = vmatpush.bf16.xpose.msra.mxu0 %v2477
    %2657 = vmatmul.bf16.gmra.mxu0 %v2364
    %v2658 = vpop.f32.mrf.mxu0
    %v2659 = vadd.f32 %v2646, %v2658
    %v2660 = vpop.f32.mrf.mxu0
    %2661 = vdwg.mxu0
    %2662 = vmatpush.bf16.xpose.msra.mxu0 0
    %2663 = vmatpush.bf16.xpose.msra.mxu0 0
    %2664 = vmatpush.bf16.xpose.msra.mxu0 0
    %2665 = vmatpush.bf16.xpose.msra.mxu0 0
    %2666 = vmatpush.bf16.xpose.msra.mxu0 0
    %2667 = vmatpush.bf16.xpose.msra.mxu0 0
    %2668 = vmatpush.bf16.xpose.msra.mxu0 %v2494
    %2669 = vmatpush.bf16.xpose.msra.mxu0 %v2478
    %2670 = vmatmul.bf16.gmra.mxu0 %v2365
    %v2671 = vpop.f32.mrf.mxu0
    %v2672 = vadd.f32 %v2659, %v2671
    %v2673 = vpop.f32.mrf.mxu0
    %2674 = vdwg.mxu0
    %2675 = vmatpush.bf16.xpose.msra.mxu0 0
    %2676 = vmatpush.bf16.xpose.msra.mxu0 0
    %2677 = vmatpush.bf16.xpose.msra.mxu0 0
    %2678 = vmatpush.bf16.xpose.msra.mxu0 0
    %2679 = vmatpush.bf16.xpose.msra.mxu0 0
    %2680 = vmatpush.bf16.xpose.msra.mxu0 0
    %2681 = vmatpush.bf16.xpose.msra.mxu0 %v2495
    %2682 = vmatpush.bf16.xpose.msra.mxu0 %v2479
    %2683 = vmatmul.bf16.gmra.mxu0 %v2366
    %v2684 = vpop.f32.mrf.mxu0
    %v2685 = vadd.f32 %v2672, %v2684
    %v2686 = vpop.f32.mrf.mxu0
    %2687 = vdwg.mxu0
    %2688 = vmatpush.bf16.xpose.msra.mxu0 0
    %2689 = vmatpush.bf16.xpose.msra.mxu0 0
    %2690 = vmatpush.bf16.xpose.msra.mxu0 0
    %2691 = vmatpush.bf16.xpose.msra.mxu0 0
    %2692 = vmatpush.bf16.xpose.msra.mxu0 0
    %2693 = vmatpush.bf16.xpose.msra.mxu0 0
    %2694 = vmatpush.bf16.xpose.msra.mxu0 %v2496
    %2695 = vmatpush.bf16.xpose.msra.mxu0 %v2480
    %2696 = vmatmul.bf16.gmra.mxu0 %v2367
    %v2697 = vpop.f32.mrf.mxu0
    %v2698 = vadd.f32 %v2685, %v2697
    %v2699 = vpop.f32.mrf.mxu0
    %2700 = vdwg.mxu0
    %2701 = vmatpush.bf16.xpose.msra.mxu0 0
    %2702 = vmatpush.bf16.xpose.msra.mxu0 0
    %2703 = vmatpush.bf16.xpose.msra.mxu0 0
    %2704 = vmatpush.bf16.xpose.msra.mxu0 0
    %2705 = vmatpush.bf16.xpose.msra.mxu0 0
    %2706 = vmatpush.bf16.xpose.msra.mxu0 0
    %2707 = vmatpush.bf16.xpose.msra.mxu0 %v2497
    %2708 = vmatpush.bf16.xpose.msra.mxu0 %v2481
    %2709 = vmatmul.bf16.gmra.mxu0 %v2368
    %v2710 = vpop.f32.mrf.mxu0
    %v2711 = vadd.f32 %v2698, %v2710
    %v2712 = vpop.f32.mrf.mxu0
    %2713 = vdwg.mxu0
    %2714 = vmatpush.bf16.xpose.msra.mxu0 0
    %2715 = vmatpush.bf16.xpose.msra.mxu0 0
    %2716 = vmatpush.bf16.xpose.msra.mxu0 0
    %2717 = vmatpush.bf16.xpose.msra.mxu0 0
    %2718 = vmatpush.bf16.xpose.msra.mxu0 0
    %2719 = vmatpush.bf16.xpose.msra.mxu0 0
    %2720 = vmatpush.bf16.xpose.msra.mxu0 %v2498
    %2721 = vmatpush.bf16.xpose.msra.mxu0 %v2482
    %2722 = vmatmul.bf16.gmra.mxu0 %v2369
    %v2723 = vpop.f32.mrf.mxu0
    %v2724 = vadd.f32 %v2711, %v2723
    %v2725 = vpop.f32.mrf.mxu0
    %2726 = vdwg.mxu0
    %2727 = vmatpush.bf16.xpose.msra.mxu0 0
    %2728 = vmatpush.bf16.xpose.msra.mxu0 0
    %2729 = vmatpush.bf16.xpose.msra.mxu0 0
    %2730 = vmatpush.bf16.xpose.msra.mxu0 0
    %2731 = vmatpush.bf16.xpose.msra.mxu0 0
    %2732 = vmatpush.bf16.xpose.msra.mxu0 0
    %2733 = vmatpush.bf16.xpose.msra.mxu0 %v2499
    %2734 = vmatpush.bf16.xpose.msra.mxu0 %v2483
    %2735 = vmatmul.bf16.gmra.mxu0 %v2370
    %v2736 = vpop.f32.mrf.mxu0
    %v2737 = vadd.f32 %v2724, %v2736
    %v2738 = vpop.f32.mrf.mxu0
    %2739 = vdwg.mxu0
    %v2740 = vadd.f32 %v1859, %v2737
    %v2741 = vld [vmem:[#allocation7 + $0x1e] sm:$0x1]
    %v2742 = vld [vmem:[#allocation7 + $0x1f] sm:$0x1]
    %v2743 = vsel %vm134, %v2740, 0.0
    %2744 = vadd.xlane.f32.xlu0 %v2743
    %v2745 = vpop.xlane.xlu0 %2744
    %v2746 = vmul.f32 %v2745, %v512
    %v2747 = vsub.f32 %v2740, %v2746
    %v2748 = vmul.f32 %v2747, %v2747
    %v2749 = vsel %vm134, %v2748, 0.0
    %2750 = vadd.xlane.f32.xlu0 %v2749
    %v2751 = vpop.xlane.xlu0 %2750
    %v2752 = vmul.f32 %v2751, %v512
    %v2753 = vadd.f32 %v2752, 1e-05
    %v2754 = vrsqrt.pop %v2753
    %v2755 = vmul.f32 %v2754, %v2753
    %v2756 = vmul.f32 %v2755, %v2754
    %v2757 = vmul.f32 0.5, %v2756
    %v2758 = vsub.f32 1.5, %v2757
    %v2759 = vmul.f32 %v2754, %v2758
    %vm2760 = vweird.f32 %v2753
    %vm2761 = vweird.f32 %v2754
    %vm2762 = vmor %vm2760, %vm2761
    %v2763 = vsel %vm2762, %v2754, %v2759
    %v2764 = vmul.f32 %v2747, %v2763
    %v2765 = vperm.slane %v2741, 0
    %v2766 = vmul.f32 %v2764, %v2765
    %v2767 = vperm.slane %v2742, 0
    %v2768 = vadd.f32 %v2766, %v2767
    %v2769 = vld [vmem:[#allocation7 + $0x20] sm:$0x1]
    %v2770 = vld [vmem:[#allocation7 + $0x21] sm:$0x1]
    %v2771 = vsel %vm134, %v2768, 0.0
    %2772 = vadd.xlane.f32.xlu0 %v2771
    %v2773 = vpop.xlane.xlu0 %2772
    %v2774 = vmul.f32 %v2773, %v512
    %v2775 = vsub.f32 %v2768, %v2774
    %v2776 = vmul.f32 %v2775, %v2775
    %v2777 = vsel %vm134, %v2776, 0.0
    %2778 = vadd.xlane.f32.xlu0 %v2777
    %v2779 = vpop.xlane.xlu0 %2778
    %v2780 = vmul.f32 %v2779, %v512
    %v2781 = vadd.f32 %v2780, 1e-05
    %v2782 = vrsqrt.pop %v2781
    %v2783 = vmul.f32 %v2782, %v2781
    %v2784 = vmul.f32 %v2783, %v2782
    %v2785 = vmul.f32 0.5, %v2784
    %v2786 = vsub.f32 1.5, %v2785
    %v2787 = vmul.f32 %v2782, %v2786
    %vm2788 = vweird.f32 %v2781
    %vm2789 = vweird.f32 %v2782
    %vm2790 = vmor %vm2788, %vm2789
    %v2791 = vsel %vm2790, %v2782, %v2787
    %v2792 = vmul.f32 %v2775, %v2791
    %v2793 = vperm.slane %v2769, 0
    %v2794 = vmul.f32 %v2792, %v2793
    %v2795 = vperm.slane %v2770, 0
    %v2796 = vadd.f32 %v2794, %v2795
    %v2797 = vld [vmem:[#allocation5 + $0x110] sm:$0xf]
    %v2798 = vld [vmem:[#allocation5 + $0x348] sm:$0xf]
    %v2799 = vld [vmem:[#allocation5 + $0x580] sm:$0xf]
    %v2800 = vld [vmem:[#allocation5 + $0x7b8] sm:$0xf]
    %v2801 = vld [vmem:[#allocation7 + $0x22] sm:$0x1]
    %v2802 = vld [vmem:[#allocation5 + $0x114] sm:$0xf]
    %v2803 = vld [vmem:[#allocation5 + $0x34c] sm:$0xf]
    %v2804 = vld [vmem:[#allocation5 + $0x584] sm:$0xf]
    %v2805 = vld [vmem:[#allocation5 + $0x7bc] sm:$0xf]
    %v2806 = vld [vmem:[#allocation7 + $0x23] sm:$0x1]
    %v2807 = vperm.slane %v2801, 0
    %v2812 = vunpack.c.l.b16 %v2797
    %v2813 = vunpack.c.l.b16 %v2798
    %v2814 = vunpack.c.l.b16 %v2799
    %v2815 = vunpack.c.l.b16 %v2800
    %v2816 = vpack.c.b16 %v2813, %v2812
    %v2817 = vpack.c.b16 %v2815, %v2814
    %2820 = vmatpush.bf16.msra.mxu0 0
    %2821 = vmatpush.bf16.msra.mxu0 0
    %2822 = vmatpush.bf16.msra.mxu0 0
    %2823 = vmatpush.bf16.msra.mxu0 0
    %2824 = vmatpush.bf16.msra.mxu0 0
    %2825 = vmatpush.bf16.msra.mxu0 0
    %2826 = vmatpush.bf16.msra.mxu0 %v2817
    %2827 = vmatpush.bf16.msra.mxu0 %v2816
    %2828 = vmatmul.bf16.gmra.mxu0 %v136
    %v2829 = vpop.f32.mrf.mxu0
    %v2830 = vadd.f32 %v2807, %v2829
    %v2831 = vpop.f32.mrf.mxu0
    %2832 = vdwg.mxu0
    %2834 = vrot.lane.b32.xlu0 %v2830, 96
    %v2835 = vpop.permute.xlu0 %2834
    %v2836 = vsel %vm154, %v2830, 0
    %v2838 = vsel %vm154, %v2835, 0
    %2840 = vmatpush.xpose.msra.mxu0 0.0
    %2841 = vmatpush.xpose.msra.mxu0 0.0
    %2842 = vmatpush.xpose.msra.mxu0 0.0
    %2843 = vmatpush.xpose.msra.mxu0 0.0
    %2844 = vmatpush.xpose.msra.mxu0 0.0
    %2845 = vmatpush.xpose.msra.mxu0 0.0
    %2846 = vmatpush.xpose.msra.mxu0 0.0
    %2847 = vmatpush.xpose.msra.mxu0 0.0
    %2848 = vmatpush.xpose.msra.mxu0 0.0
    %2849 = vmatpush.xpose.msra.mxu0 0.0
    %2850 = vmatpush.xpose.msra.mxu0 0.0
    %2851 = vmatpush.xpose.msra.mxu0 0.0
    %2852 = vmatpush.xpose.msra.mxu0 0.0
    %2853 = vmatpush.xpose.msra.mxu0 0.0
    %2854 = vmatpush.xpose.msra.mxu0 0.0
    %2855 = vmatpush.xpose.msra.mxu0 %v2838
    %2856 = vmatmul.f32.gmra.mxu0 %v2836
    %v2857 = vpop.f32.mrf.mxu0
    %v2858 = vadd.f32 0.0, %v2857
    %2859 = vdwg.mxu0
    %v2860 = vmul.f32 %v2858, 0.35355338
    %v2861 = vsel %vm154, %v2860, -inf
    %2862 = vmax.xlane.f32.xlu0 %v2861
    %v2863 = vpop.xlane.xlu0 %2862
    %v2864 = vsub.f32 %v2860, %v2863
    %v2865 = vmul.f32 %v2864, 1.442695
    %v2866 = vpow.pop %v2865
    %v2867 = vsel %vm154, %v2866, 0.0
    %2868 = vadd.xlane.f32.xlu0 %v2867
    %v2869 = vpop.xlane.xlu0 %2868
    %v2870 = vrcp.pop %v2869
    %v2871 = vmul.f32 %v2866, %v2870
    %2872 = vrot.lane.b32.xlu0 %v2830, 64
    %v2873 = vpop.permute.xlu0 %2872
    %v2876 = vsel %vm154, %v2871, 0
    %2878 = vmatpush.msra.mxu0 0.0
    %2879 = vmatpush.msra.mxu0 0.0
    %2880 = vmatpush.msra.mxu0 0.0
    %2881 = vmatpush.msra.mxu0 0.0
    %2882 = vmatpush.msra.mxu0 0.0
    %2883 = vmatpush.msra.mxu0 0.0
    %2884 = vmatpush.msra.mxu0 0.0
    %2885 = vmatpush.msra.mxu0 0.0
    %2886 = vmatpush.msra.mxu0 0.0
    %2887 = vmatpush.msra.mxu0 0.0
    %2888 = vmatpush.msra.mxu0 0.0
    %2889 = vmatpush.msra.mxu0 0.0
    %2890 = vmatpush.msra.mxu0 0.0
    %2891 = vmatpush.msra.mxu0 0.0
    %2892 = vmatpush.msra.mxu0 0.0
    %2893 = vmatpush.msra.mxu0 %v2873
    %2894 = vmatmul.f32.gmra.mxu0 %v2876
    %v2895 = vpop.f32.mrf.mxu0
    %v2896 = vadd.f32 0.0, %v2895
    %2897 = vdwg.mxu0
    %v2898 = vpack.c.bf16 %v2896, %v2896
    %2899 = vrot.lane.b32.xlu0 %v2830, 120
    %v2900 = vpop.permute.xlu0 %2899
    %2901 = vrot.lane.b32.xlu0 %v2830, 88
    %v2902 = vpop.permute.xlu0 %2901
    %v2903 = vsel %vm154, %v2900, 0
    %v2905 = vsel %vm154, %v2902, 0
    %2907 = vmatpush.xpose.msra.mxu0 0.0
    %2908 = vmatpush.xpose.msra.mxu0 0.0
    %2909 = vmatpush.xpose.msra.mxu0 0.0
    %2910 = vmatpush.xpose.msra.mxu0 0.0
    %2911 = vmatpush.xpose.msra.mxu0 0.0
    %2912 = vmatpush.xpose.msra.mxu0 0.0
    %2913 = vmatpush.xpose.msra.mxu0 0.0
    %2914 = vmatpush.xpose.msra.mxu0 0.0
    %2915 = vmatpush.xpose.msra.mxu0 0.0
    %2916 = vmatpush.xpose.msra.mxu0 0.0
    %2917 = vmatpush.xpose.msra.mxu0 0.0
    %2918 = vmatpush.xpose.msra.mxu0 0.0
    %2919 = vmatpush.xpose.msra.mxu0 0.0
    %2920 = vmatpush.xpose.msra.mxu0 0.0
    %2921 = vmatpush.xpose.msra.mxu0 0.0
    %2922 = vmatpush.xpose.msra.mxu0 %v2905
    %2923 = vmatmul.f32.gmra.mxu0 %v2903
    %v2924 = vpop.f32.mrf.mxu0
    %v2925 = vadd.f32 0.0, %v2924
    %2926 = vdwg.mxu0
    %v2927 = vmul.f32 %v2925, 0.35355338
    %v2928 = vsel %vm154, %v2927, -inf
    %2929 = vmax.xlane.f32.xlu0 %v2928
    %v2930 = vpop.xlane.xlu0 %2929
    %v2931 = vsub.f32 %v2927, %v2930
    %v2932 = vmul.f32 %v2931, 1.442695
    %v2933 = vpow.pop %v2932
    %v2934 = vsel %vm154, %v2933, 0.0
    %2935 = vadd.xlane.f32.xlu0 %v2934
    %v2936 = vpop.xlane.xlu0 %2935
    %v2937 = vrcp.pop %v2936
    %v2938 = vmul.f32 %v2933, %v2937
    %2939 = vrot.lane.b32.xlu0 %v2830, 56
    %v2940 = vpop.permute.xlu0 %2939
    %v2943 = vsel %vm154, %v2938, 0
    %2945 = vmatpush.msra.mxu0 0.0
    %2946 = vmatpush.msra.mxu0 0.0
    %2947 = vmatpush.msra.mxu0 0.0
    %2948 = vmatpush.msra.mxu0 0.0
    %2949 = vmatpush.msra.mxu0 0.0
    %2950 = vmatpush.msra.mxu0 0.0
    %2951 = vmatpush.msra.mxu0 0.0
    %2952 = vmatpush.msra.mxu0 0.0
    %2953 = vmatpush.msra.mxu0 0.0
    %2954 = vmatpush.msra.mxu0 0.0
    %2955 = vmatpush.msra.mxu0 0.0
    %2956 = vmatpush.msra.mxu0 0.0
    %2957 = vmatpush.msra.mxu0 0.0
    %2958 = vmatpush.msra.mxu0 0.0
    %2959 = vmatpush.msra.mxu0 0.0
    %2960 = vmatpush.msra.mxu0 %v2940
    %2961 = vmatmul.f32.gmra.mxu0 %v2943
    %v2962 = vpop.f32.mrf.mxu0
    %v2963 = vadd.f32 0.0, %v2962
    %2964 = vdwg.mxu0
    %v2965 = vpack.c.bf16 %v2963, %v2963
    %v2967 = vsel %vm154, %v2965, 0
    %v2970 = vsel %vm288, %v2803, 0
    %2972 = vmatpush.bf16.msra.mxu0 0
    %2973 = vmatpush.bf16.msra.mxu0 0
    %2974 = vmatpush.bf16.msra.mxu0 0
    %2975 = vmatpush.bf16.msra.mxu0 0
    %2976 = vmatpush.bf16.msra.mxu0 0
    %2977 = vmatpush.bf16.msra.mxu0 0
    %2978 = vmatpush.bf16.msra.mxu0 0
    %2979 = vmatpush.bf16.msra.mxu0 %v2970
    %2980 = vmatmul.bf16.gmra.mxu0 %v2967
    %v2981 = vpop.f32.mrf.mxu0
    %v2982 = vadd.f32 0.0, %v2981
    %v2983 = vpop.f32.mrf.mxu0
    %2984 = vdwg.mxu0
    %v2986 = vsel %vm154, %v2898, 0
    %v2989 = vsel %vm288, %v2802, 0
    %2991 = vmatpush.bf16.msra.mxu0 0
    %2992 = vmatpush.bf16.msra.mxu0 0
    %2993 = vmatpush.bf16.msra.mxu0 0
    %2994 = vmatpush.bf16.msra.mxu0 0
    %2995 = vmatpush.bf16.msra.mxu0 0
    %2996 = vmatpush.bf16.msra.mxu0 0
    %2997 = vmatpush.bf16.msra.mxu0 0
    %2998 = vmatpush.bf16.msra.mxu0 %v2989
    %2999 = vmatmul.bf16.gmra.mxu0 %v2986
    %v3000 = vpop.f32.mrf.mxu0
    %v3001 = vadd.f32 %v2982, %v3000
    %v3002 = vpop.f32.mrf.mxu0
    %3003 = vdwg.mxu0
    %3004 = vrot.lane.b32.xlu0 %v2830, 112
    %v3005 = vpop.permute.xlu0 %3004
    %3006 = vrot.lane.b32.xlu0 %v2830, 80
    %v3007 = vpop.permute.xlu0 %3006
    %v3008 = vsel %vm154, %v3005, 0
    %v3010 = vsel %vm154, %v3007, 0
    %3012 = vmatpush.xpose.msra.mxu0 0.0
    %3013 = vmatpush.xpose.msra.mxu0 0.0
    %3014 = vmatpush.xpose.msra.mxu0 0.0
    %3015 = vmatpush.xpose.msra.mxu0 0.0
    %3016 = vmatpush.xpose.msra.mxu0 0.0
    %3017 = vmatpush.xpose.msra.mxu0 0.0
    %3018 = vmatpush.xpose.msra.mxu0 0.0
    %3019 = vmatpush.xpose.msra.mxu0 0.0
    %3020 = vmatpush.xpose.msra.mxu0 0.0
    %3021 = vmatpush.xpose.msra.mxu0 0.0
    %3022 = vmatpush.xpose.msra.mxu0 0.0
    %3023 = vmatpush.xpose.msra.mxu0 0.0
    %3024 = vmatpush.xpose.msra.mxu0 0.0
    %3025 = vmatpush.xpose.msra.mxu0 0.0
    %3026 = vmatpush.xpose.msra.mxu0 0.0
    %3027 = vmatpush.xpose.msra.mxu0 %v3010
    %3028 = vmatmul.f32.gmra.mxu0 %v3008
    %v3029 = vpop.f32.mrf.mxu0
    %v3030 = vadd.f32 0.0, %v3029
    %3031 = vdwg.mxu0
    %v3032 = vmul.f32 %v3030, 0.35355338
    %v3033 = vsel %vm154, %v3032, -inf
    %3034 = vmax.xlane.f32.xlu0 %v3033
    %v3035 = vpop.xlane.xlu0 %3034
    %v3036 = vsub.f32 %v3032, %v3035
    %v3037 = vmul.f32 %v3036, 1.442695
    %v3038 = vpow.pop %v3037
    %v3039 = vsel %vm154, %v3038, 0.0
    %3040 = vadd.xlane.f32.xlu0 %v3039
    %v3041 = vpop.xlane.xlu0 %3040
    %v3042 = vrcp.pop %v3041
    %v3043 = vmul.f32 %v3038, %v3042
    %3044 = vrot.lane.b32.xlu0 %v2830, 48
    %v3045 = vpop.permute.xlu0 %3044
    %v3048 = vsel %vm154, %v3043, 0
    %3050 = vmatpush.msra.mxu0 0.0
    %3051 = vmatpush.msra.mxu0 0.0
    %3052 = vmatpush.msra.mxu0 0.0
    %3053 = vmatpush.msra.mxu0 0.0
    %3054 = vmatpush.msra.mxu0 0.0
    %3055 = vmatpush.msra.mxu0 0.0
    %3056 = vmatpush.msra.mxu0 0.0
    %3057 = vmatpush.msra.mxu0 0.0
    %3058 = vmatpush.msra.mxu0 0.0
    %3059 = vmatpush.msra.mxu0 0.0
    %3060 = vmatpush.msra.mxu0 0.0
    %3061 = vmatpush.msra.mxu0 0.0
    %3062 = vmatpush.msra.mxu0 0.0
    %3063 = vmatpush.msra.mxu0 0.0
    %3064 = vmatpush.msra.mxu0 0.0
    %3065 = vmatpush.msra.mxu0 %v3045
    %3066 = vmatmul.f32.gmra.mxu0 %v3048
    %v3067 = vpop.f32.mrf.mxu0
    %v3068 = vadd.f32 0.0, %v3067
    %3069 = vdwg.mxu0
    %v3070 = vpack.c.bf16 %v3068, %v3068
    %v3072 = vsel %vm154, %v3070, 0
    %v3075 = vsel %vm288, %v2804, 0
    %3077 = vmatpush.bf16.msra.mxu0 0
    %3078 = vmatpush.bf16.msra.mxu0 0
    %3079 = vmatpush.bf16.msra.mxu0 0
    %3080 = vmatpush.bf16.msra.mxu0 0
    %3081 = vmatpush.bf16.msra.mxu0 0
    %3082 = vmatpush.bf16.msra.mxu0 0
    %3083 = vmatpush.bf16.msra.mxu0 0
    %3084 = vmatpush.bf16.msra.mxu0 %v3075
    %3085 = vmatmul.bf16.gmra.mxu0 %v3072
    %v3086 = vpop.f32.mrf.mxu0
    %v3087 = vadd.f32 0.0, %v3086
    %v3088 = vpop.f32.mrf.mxu0
    %3089 = vdwg.mxu0
    %v3090 = vadd.f32 %v3001, %v3087
    %3091 = vrot.lane.b32.xlu0 %v2830, 104
    %v3092 = vpop.permute.xlu0 %3091
    %3093 = vrot.lane.b32.xlu0 %v2830, 72
    %v3094 = vpop.permute.xlu0 %3093
    %v3095 = vsel %vm154, %v3092, 0
    %v3097 = vsel %vm154, %v3094, 0
    %3099 = vmatpush.xpose.msra.mxu0 0.0
    %3100 = vmatpush.xpose.msra.mxu0 0.0
    %3101 = vmatpush.xpose.msra.mxu0 0.0
    %3102 = vmatpush.xpose.msra.mxu0 0.0
    %3103 = vmatpush.xpose.msra.mxu0 0.0
    %3104 = vmatpush.xpose.msra.mxu0 0.0
    %3105 = vmatpush.xpose.msra.mxu0 0.0
    %3106 = vmatpush.xpose.msra.mxu0 0.0
    %3107 = vmatpush.xpose.msra.mxu0 0.0
    %3108 = vmatpush.xpose.msra.mxu0 0.0
    %3109 = vmatpush.xpose.msra.mxu0 0.0
    %3110 = vmatpush.xpose.msra.mxu0 0.0
    %3111 = vmatpush.xpose.msra.mxu0 0.0
    %3112 = vmatpush.xpose.msra.mxu0 0.0
    %3113 = vmatpush.xpose.msra.mxu0 0.0
    %3114 = vmatpush.xpose.msra.mxu0 %v3097
    %3115 = vmatmul.f32.gmra.mxu0 %v3095
    %v3116 = vpop.f32.mrf.mxu0
    %v3117 = vadd.f32 0.0, %v3116
    %3118 = vdwg.mxu0
    %v3119 = vmul.f32 %v3117, 0.35355338
    %v3120 = vsel %vm154, %v3119, -inf
    %3121 = vmax.xlane.f32.xlu0 %v3120
    %v3122 = vpop.xlane.xlu0 %3121
    %v3123 = vsub.f32 %v3119, %v3122
    %v3124 = vmul.f32 %v3123, 1.442695
    %v3125 = vpow.pop %v3124
    %v3126 = vsel %vm154, %v3125, 0.0
    %3127 = vadd.xlane.f32.xlu0 %v3126
    %v3128 = vpop.xlane.xlu0 %3127
    %v3129 = vrcp.pop %v3128
    %v3130 = vmul.f32 %v3125, %v3129
    %3131 = vrot.lane.b32.xlu0 %v2830, 40
    %v3132 = vpop.permute.xlu0 %3131
    %v3135 = vsel %vm154, %v3130, 0
    %3137 = vmatpush.msra.mxu0 0.0
    %3138 = vmatpush.msra.mxu0 0.0
    %3139 = vmatpush.msra.mxu0 0.0
    %3140 = vmatpush.msra.mxu0 0.0
    %3141 = vmatpush.msra.mxu0 0.0
    %3142 = vmatpush.msra.mxu0 0.0
    %3143 = vmatpush.msra.mxu0 0.0
    %3144 = vmatpush.msra.mxu0 0.0
    %3145 = vmatpush.msra.mxu0 0.0
    %3146 = vmatpush.msra.mxu0 0.0
    %3147 = vmatpush.msra.mxu0 0.0
    %3148 = vmatpush.msra.mxu0 0.0
    %3149 = vmatpush.msra.mxu0 0.0
    %3150 = vmatpush.msra.mxu0 0.0
    %3151 = vmatpush.msra.mxu0 0.0
    %3152 = vmatpush.msra.mxu0 %v3132
    %3153 = vmatmul.f32.gmra.mxu0 %v3135
    %v3154 = vpop.f32.mrf.mxu0
    %v3155 = vadd.f32 0.0, %v3154
    %3156 = vdwg.mxu0
    %v3157 = vpack.c.bf16 %v3155, %v3155
    %v3159 = vsel %vm154, %v3157, 0
    %v3162 = vsel %vm288, %v2805, 0
    %3164 = vmatpush.bf16.msra.mxu0 0
    %3165 = vmatpush.bf16.msra.mxu0 0
    %3166 = vmatpush.bf16.msra.mxu0 0
    %3167 = vmatpush.bf16.msra.mxu0 0
    %3168 = vmatpush.bf16.msra.mxu0 0
    %3169 = vmatpush.bf16.msra.mxu0 0
    %3170 = vmatpush.bf16.msra.mxu0 0
    %3171 = vmatpush.bf16.msra.mxu0 %v3162
    %3172 = vmatmul.bf16.gmra.mxu0 %v3159
    %v3173 = vpop.f32.mrf.mxu0
    %v3174 = vadd.f32 0.0, %v3173
    %v3175 = vpop.f32.mrf.mxu0
    %3176 = vdwg.mxu0
    %v3177 = vadd.f32 %v3090, %v3174
    %v3178 = vperm.slane %v2806, 0
    %v3179 = vadd.f32 %v3177, %v3178
    %v3180 = vadd.f32 %v108, %v3179
    %v3181 = vld [vmem:[#allocation7 + $0x24] sm:$0x1]
    %v3182 = vld [vmem:[#allocation7 + $0x25] sm:$0x1]
    %v3183 = vsel %vm134, %v3180, 0.0
    %3184 = vadd.xlane.f32.xlu0 %v3183
    %v3185 = vpop.xlane.xlu0 %3184
    %v3186 = vmul.f32 %v3185, %v512
    %v3187 = vsub.f32 %v3180, %v3186
    %v3188 = vmul.f32 %v3187, %v3187
    %v3189 = vsel %vm134, %v3188, 0.0
    %3190 = vadd.xlane.f32.xlu0 %v3189
    %v3191 = vpop.xlane.xlu0 %3190
    %v3192 = vmul.f32 %v3191, %v512
    %v3193 = vadd.f32 %v3192, 1e-05
    %v3194 = vrsqrt.pop %v3193
    %v3195 = vmul.f32 %v3194, %v3193
    %v3196 = vmul.f32 %v3195, %v3194
    %v3197 = vmul.f32 0.5, %v3196
    %v3198 = vsub.f32 1.5, %v3197
    %v3199 = vmul.f32 %v3194, %v3198
    %vm3200 = vweird.f32 %v3193
    %vm3201 = vweird.f32 %v3194
    %vm3202 = vmor %vm3200, %vm3201
    %v3203 = vsel %vm3202, %v3194, %v3199
    %v3204 = vmul.f32 %v3187, %v3203
    %v3205 = vperm.slane %v3181, 0
    %v3206 = vmul.f32 %v3204, %v3205
    %v3207 = vperm.slane %v3182, 0
    %v3208 = vadd.f32 %v3206, %v3207
    %v3209 = vld [vmem:[#allocation5 + $0x118] sm:$0xf]
    %v3210 = vld [vmem:[#allocation5 + $0x350] sm:$0xf]
    %v3211 = vld [vmem:[#allocation5 + $0x588] sm:$0xf]
    %v3212 = vld [vmem:[#allocation5 + $0x7c0] sm:$0xf]
    %v3213 = vld [vmem:[#allocation7 + $0x26] sm:$0x1]
    %v3214 = vld [vmem:[#allocation5 + $0x11c] sm:$0xf]
    %v3215 = vld [vmem:[#allocation5 + $0x354] sm:$0xf]
    %v3216 = vld [vmem:[#allocation5 + $0x58c] sm:$0xf]
    %v3217 = vld [vmem:[#allocation5 + $0x7c4] sm:$0xf]
    %v3218 = vld [vmem:[#allocation7 + $0x27] sm:$0x1]
    %v3219 = vld [vmem:[#allocation5 + $0x120] sm:$0xf]
    %v3220 = vld [vmem:[#allocation5 + $0x358] sm:$0xf]
    %v3221 = vld [vmem:[#allocation5 + $0x590] sm:$0xf]
    %v3222 = vld [vmem:[#allocation5 + $0x7c8] sm:$0xf]
    %v3223 = vld [vmem:[#allocation7 + $0x28] sm:$0x1]
    %v3224 = vpack.c.bf16 %v3208, %v3208
    %v3225 = vperm.slane %v3213, 0
    %v3230 = vunpack.c.l.b16 %v3209
    %v3231 = vunpack.c.l.b16 %v3210
    %v3232 = vunpack.c.l.b16 %v3211
    %v3233 = vunpack.c.l.b16 %v3212
    %v3234 = vpack.c.b16 %v3231, %v3230
    %v3235 = vpack.c.b16 %v3233, %v3232
    %v3239 = vsel %vm134, %v3224, 0
    %3241 = vmatpush.bf16.msra.mxu0 0
    %3242 = vmatpush.bf16.msra.mxu0 0
    %3243 = vmatpush.bf16.msra.mxu0 0
    %3244 = vmatpush.bf16.msra.mxu0 0
    %3245 = vmatpush.bf16.msra.mxu0 0
    %3246 = vmatpush.bf16.msra.mxu0 0
    %3247 = vmatpush.bf16.msra.mxu0 %v3235
    %3248 = vmatpush.bf16.msra.mxu0 %v3234
    %3249 = vmatmul.bf16.gmra.mxu0 %v3239
    %v3250 = vpop.f32.mrf.mxu0
    %v3251 = vadd.f32 %v3225, %v3250
    %v3252 = vpop.f32.mrf.mxu0
    %3253 = vdwg.mxu0
    %v3254 = vpack.c.bf16 %v2796, %v2796
    %v3255 = vperm.slane %v3218, 0
    %v3260 = vunpack.c.l.b16 %v3214
    %v3261 = vunpack.c.l.b16 %v3215
    %v3262 = vunpack.c.l.b16 %v3216
    %v3263 = vunpack.c.l.b16 %v3217
    %v3264 = vpack.c.b16 %v3261, %v3260
    %v3265 = vpack.c.b16 %v3263, %v3262
    %v3269 = vsel %vm134, %v3254, 0
    %3271 = vmatpush.bf16.msra.mxu0 0
    %3272 = vmatpush.bf16.msra.mxu0 0
    %3273 = vmatpush.bf16.msra.mxu0 0
    %3274 = vmatpush.bf16.msra.mxu0 0
    %3275 = vmatpush.bf16.msra.mxu0 0
    %3276 = vmatpush.bf16.msra.mxu0 0
    %3277 = vmatpush.bf16.msra.mxu0 %v3265
    %3278 = vmatpush.bf16.msra.mxu0 %v3264
    %3279 = vmatmul.bf16.gmra.mxu0 %v3269
    %v3280 = vpop.f32.mrf.mxu0
    %v3281 = vadd.f32 %v3255, %v3280
    %v3282 = vpop.f32.mrf.mxu0
    %3283 = vdwg.mxu0
    %v3285 = vsel %vm154, %v3251, 0
    %v3288 = vsel %vm154, %v3281, 0
    %3290 = vmatpush.xpose.msra.mxu0 0.0
    %3291 = vmatpush.xpose.msra.mxu0 0.0
    %3292 = vmatpush.xpose.msra.mxu0 0.0
    %3293 = vmatpush.xpose.msra.mxu0 0.0
    %3294 = vmatpush.xpose.msra.mxu0 0.0
    %3295 = vmatpush.xpose.msra.mxu0 0.0
    %3296 = vmatpush.xpose.msra.mxu0 0.0
    %3297 = vmatpush.xpose.msra.mxu0 0.0
    %3298 = vmatpush.xpose.msra.mxu0 0.0
    %3299 = vmatpush.xpose.msra.mxu0 0.0
    %3300 = vmatpush.xpose.msra.mxu0 0.0
    %3301 = vmatpush.xpose.msra.mxu0 0.0
    %3302 = vmatpush.xpose.msra.mxu0 0.0
    %3303 = vmatpush.xpose.msra.mxu0 0.0
    %3304 = vmatpush.xpose.msra.mxu0 0.0
    %3305 = vmatpush.xpose.msra.mxu0 %v3288
    %3306 = vmatmul.f32.gmra.mxu0 %v3285
    %v3307 = vpop.f32.mrf.mxu0
    %v3308 = vadd.f32 0.0, %v3307
    %3309 = vdwg.mxu0
    %v3310 = vmul.f32 %v3308, 0.35355338
    %v3311 = vsel %vm154, %v3310, -inf
    %3312 = vmax.xlane.f32.xlu0 %v3311
    %v3313 = vpop.xlane.xlu0 %3312
    %v3314 = vsub.f32 %v3310, %v3313
    %v3315 = vmul.f32 %v3314, 1.442695
    %v3316 = vpow.pop %v3315
    %v3317 = vsel %vm154, %v3316, 0.0
    %3318 = vadd.xlane.f32.xlu0 %v3317
    %v3319 = vpop.xlane.xlu0 %3318
    %v3320 = vrcp.pop %v3319
    %v3321 = vmul.f32 %v3316, %v3320
    %3322 = vrot.lane.b32.xlu0 %v3281, 96
    %v3323 = vpop.permute.xlu0 %3322
    %v3326 = vsel %vm154, %v3321, 0
    %3328 = vmatpush.msra.mxu0 0.0
    %3329 = vmatpush.msra.mxu0 0.0
    %3330 = vmatpush.msra.mxu0 0.0
    %3331 = vmatpush.msra.mxu0 0.0
    %3332 = vmatpush.msra.mxu0 0.0
    %3333 = vmatpush.msra.mxu0 0.0
    %3334 = vmatpush.msra.mxu0 0.0
    %3335 = vmatpush.msra.mxu0 0.0
    %3336 = vmatpush.msra.mxu0 0.0
    %3337 = vmatpush.msra.mxu0 0.0
    %3338 = vmatpush.msra.mxu0 0.0
    %3339 = vmatpush.msra.mxu0 0.0
    %3340 = vmatpush.msra.mxu0 0.0
    %3341 = vmatpush.msra.mxu0 0.0
    %3342 = vmatpush.msra.mxu0 0.0
    %3343 = vmatpush.msra.mxu0 %v3323
    %3344 = vmatmul.f32.gmra.mxu0 %v3326
    %v3345 = vpop.f32.mrf.mxu0
    %v3346 = vadd.f32 0.0, %v3345
    %3347 = vdwg.mxu0
    %v3348 = vpack.c.bf16 %v3346, %v3346
    %3349 = vrot.lane.b32.xlu0 %v3251, 120
    %v3350 = vpop.permute.xlu0 %3349
    %3351 = vrot.lane.b32.xlu0 %v3281, 120
    %v3352 = vpop.permute.xlu0 %3351
    %v3353 = vsel %vm154, %v3350, 0
    %v3355 = vsel %vm154, %v3352, 0
    %3357 = vmatpush.xpose.msra.mxu0 0.0
    %3358 = vmatpush.xpose.msra.mxu0 0.0
    %3359 = vmatpush.xpose.msra.mxu0 0.0
    %3360 = vmatpush.xpose.msra.mxu0 0.0
    %3361 = vmatpush.xpose.msra.mxu0 0.0
    %3362 = vmatpush.xpose.msra.mxu0 0.0
    %3363 = vmatpush.xpose.msra.mxu0 0.0
    %3364 = vmatpush.xpose.msra.mxu0 0.0
    %3365 = vmatpush.xpose.msra.mxu0 0.0
    %3366 = vmatpush.xpose.msra.mxu0 0.0
    %3367 = vmatpush.xpose.msra.mxu0 0.0
    %3368 = vmatpush.xpose.msra.mxu0 0.0
    %3369 = vmatpush.xpose.msra.mxu0 0.0
    %3370 = vmatpush.xpose.msra.mxu0 0.0
    %3371 = vmatpush.xpose.msra.mxu0 0.0
    %3372 = vmatpush.xpose.msra.mxu0 %v3355
    %3373 = vmatmul.f32.gmra.mxu0 %v3353
    %v3374 = vpop.f32.mrf.mxu0
    %v3375 = vadd.f32 0.0, %v3374
    %3376 = vdwg.mxu0
    %v3377 = vmul.f32 %v3375, 0.35355338
    %v3378 = vsel %vm154, %v3377, -inf
    %3379 = vmax.xlane.f32.xlu0 %v3378
    %v3380 = vpop.xlane.xlu0 %3379
    %v3381 = vsub.f32 %v3377, %v3380
    %v3382 = vmul.f32 %v3381, 1.442695
    %v3383 = vpow.pop %v3382
    %v3384 = vsel %vm154, %v3383, 0.0
    %3385 = vadd.xlane.f32.xlu0 %v3384
    %v3386 = vpop.xlane.xlu0 %3385
    %v3387 = vrcp.pop %v3386
    %v3388 = vmul.f32 %v3383, %v3387
    %3389 = vrot.lane.b32.xlu0 %v3281, 88
    %v3390 = vpop.permute.xlu0 %3389
    %v3393 = vsel %vm154, %v3388, 0
    %3395 = vmatpush.msra.mxu0 0.0
    %3396 = vmatpush.msra.mxu0 0.0
    %3397 = vmatpush.msra.mxu0 0.0
    %3398 = vmatpush.msra.mxu0 0.0
    %3399 = vmatpush.msra.mxu0 0.0
    %3400 = vmatpush.msra.mxu0 0.0
    %3401 = vmatpush.msra.mxu0 0.0
    %3402 = vmatpush.msra.mxu0 0.0
    %3403 = vmatpush.msra.mxu0 0.0
    %3404 = vmatpush.msra.mxu0 0.0
    %3405 = vmatpush.msra.mxu0 0.0
    %3406 = vmatpush.msra.mxu0 0.0
    %3407 = vmatpush.msra.mxu0 0.0
    %3408 = vmatpush.msra.mxu0 0.0
    %3409 = vmatpush.msra.mxu0 0.0
    %3410 = vmatpush.msra.mxu0 %v3390
    %3411 = vmatmul.f32.gmra.mxu0 %v3393
    %v3412 = vpop.f32.mrf.mxu0
    %v3413 = vadd.f32 0.0, %v3412
    %3414 = vdwg.mxu0
    %v3415 = vpack.c.bf16 %v3413, %v3413
    %v3417 = vsel %vm154, %v3415, 0
    %v3420 = vsel %vm288, %v3220, 0
    %3422 = vmatpush.bf16.msra.mxu0 0
    %3423 = vmatpush.bf16.msra.mxu0 0
    %3424 = vmatpush.bf16.msra.mxu0 0
    %3425 = vmatpush.bf16.msra.mxu0 0
    %3426 = vmatpush.bf16.msra.mxu0 0
    %3427 = vmatpush.bf16.msra.mxu0 0
    %3428 = vmatpush.bf16.msra.mxu0 0
    %3429 = vmatpush.bf16.msra.mxu0 %v3420
    %3430 = vmatmul.bf16.gmra.mxu0 %v3417
    %v3431 = vpop.f32.mrf.mxu0
    %v3432 = vadd.f32 0.0, %v3431
    %v3433 = vpop.f32.mrf.mxu0
    %3434 = vdwg.mxu0
    %v3436 = vsel %vm154, %v3348, 0
    %v3439 = vsel %vm288, %v3219, 0
    %3441 = vmatpush.bf16.msra.mxu0 0
    %3442 = vmatpush.bf16.msra.mxu0 0
    %3443 = vmatpush.bf16.msra.mxu0 0
    %3444 = vmatpush.bf16.msra.mxu0 0
    %3445 = vmatpush.bf16.msra.mxu0 0
    %3446 = vmatpush.bf16.msra.mxu0 0
    %3447 = vmatpush.bf16.msra.mxu0 0
    %3448 = vmatpush.bf16.msra.mxu0 %v3439
    %3449 = vmatmul.bf16.gmra.mxu0 %v3436
    %v3450 = vpop.f32.mrf.mxu0
    %v3451 = vadd.f32 %v3432, %v3450
    %v3452 = vpop.f32.mrf.mxu0
    %3453 = vdwg.mxu0
    %3454 = vrot.lane.b32.xlu0 %v3251, 112
    %v3455 = vpop.permute.xlu0 %3454
    %3456 = vrot.lane.b32.xlu0 %v3281, 112
    %v3457 = vpop.permute.xlu0 %3456
    %v3458 = vsel %vm154, %v3455, 0
    %v3460 = vsel %vm154, %v3457, 0
    %3462 = vmatpush.xpose.msra.mxu0 0.0
    %3463 = vmatpush.xpose.msra.mxu0 0.0
    %3464 = vmatpush.xpose.msra.mxu0 0.0
    %3465 = vmatpush.xpose.msra.mxu0 0.0
    %3466 = vmatpush.xpose.msra.mxu0 0.0
    %3467 = vmatpush.xpose.msra.mxu0 0.0
    %3468 = vmatpush.xpose.msra.mxu0 0.0
    %3469 = vmatpush.xpose.msra.mxu0 0.0
    %3470 = vmatpush.xpose.msra.mxu0 0.0
    %3471 = vmatpush.xpose.msra.mxu0 0.0
    %3472 = vmatpush.xpose.msra.mxu0 0.0
    %3473 = vmatpush.xpose.msra.mxu0 0.0
    %3474 = vmatpush.xpose.msra.mxu0 0.0
    %3475 = vmatpush.xpose.msra.mxu0 0.0
    %3476 = vmatpush.xpose.msra.mxu0 0.0
    %3477 = vmatpush.xpose.msra.mxu0 %v3460
    %3478 = vmatmul.f32.gmra.mxu0 %v3458
    %v3479 = vpop.f32.mrf.mxu0
    %v3480 = vadd.f32 0.0, %v3479
    %3481 = vdwg.mxu0
    %v3482 = vmul.f32 %v3480, 0.35355338
    %v3483 = vsel %vm154, %v3482, -inf
    %3484 = vmax.xlane.f32.xlu0 %v3483
    %v3485 = vpop.xlane.xlu0 %3484
    %v3486 = vsub.f32 %v3482, %v3485
    %v3487 = vmul.f32 %v3486, 1.442695
    %v3488 = vpow.pop %v3487
    %v3489 = vsel %vm154, %v3488, 0.0
    %3490 = vadd.xlane.f32.xlu0 %v3489
    %v3491 = vpop.xlane.xlu0 %3490
    %v3492 = vrcp.pop %v3491
    %v3493 = vmul.f32 %v3488, %v3492
    %3494 = vrot.lane.b32.xlu0 %v3281, 80
    %v3495 = vpop.permute.xlu0 %3494
    %v3498 = vsel %vm154, %v3493, 0
    %3500 = vmatpush.msra.mxu0 0.0
    %3501 = vmatpush.msra.mxu0 0.0
    %3502 = vmatpush.msra.mxu0 0.0
    %3503 = vmatpush.msra.mxu0 0.0
    %3504 = vmatpush.msra.mxu0 0.0
    %3505 = vmatpush.msra.mxu0 0.0
    %3506 = vmatpush.msra.mxu0 0.0
    %3507 = vmatpush.msra.mxu0 0.0
    %3508 = vmatpush.msra.mxu0 0.0
    %3509 = vmatpush.msra.mxu0 0.0
    %3510 = vmatpush.msra.mxu0 0.0
    %3511 = vmatpush.msra.mxu0 0.0
    %3512 = vmatpush.msra.mxu0 0.0
    %3513 = vmatpush.msra.mxu0 0.0
    %3514 = vmatpush.msra.mxu0 0.0
    %3515 = vmatpush.msra.mxu0 %v3495
    %3516 = vmatmul.f32.gmra.mxu0 %v3498
    %v3517 = vpop.f32.mrf.mxu0
    %v3518 = vadd.f32 0.0, %v3517
    %3519 = vdwg.mxu0
    %v3520 = vpack.c.bf16 %v3518, %v3518
    %v3522 = vsel %vm154, %v3520, 0
    %v3525 = vsel %vm288, %v3221, 0
    %3527 = vmatpush.bf16.msra.mxu0 0
    %3528 = vmatpush.bf16.msra.mxu0 0
    %3529 = vmatpush.bf16.msra.mxu0 0
    %3530 = vmatpush.bf16.msra.mxu0 0
    %3531 = vmatpush.bf16.msra.mxu0 0
    %3532 = vmatpush.bf16.msra.mxu0 0
    %3533 = vmatpush.bf16.msra.mxu0 0
    %3534 = vmatpush.bf16.msra.mxu0 %v3525
    %3535 = vmatmul.bf16.gmra.mxu0 %v3522
    %v3536 = vpop.f32.mrf.mxu0
    %v3537 = vadd.f32 0.0, %v3536
    %v3538 = vpop.f32.mrf.mxu0
    %3539 = vdwg.mxu0
    %v3540 = vadd.f32 %v3451, %v3537
    %3541 = vrot.lane.b32.xlu0 %v3251, 104
    %v3542 = vpop.permute.xlu0 %3541
    %3543 = vrot.lane.b32.xlu0 %v3281, 104
    %v3544 = vpop.permute.xlu0 %3543
    %v3545 = vsel %vm154, %v3542, 0
    %v3547 = vsel %vm154, %v3544, 0
    %3549 = vmatpush.xpose.msra.mxu0 0.0
    %3550 = vmatpush.xpose.msra.mxu0 0.0
    %3551 = vmatpush.xpose.msra.mxu0 0.0
    %3552 = vmatpush.xpose.msra.mxu0 0.0
    %3553 = vmatpush.xpose.msra.mxu0 0.0
    %3554 = vmatpush.xpose.msra.mxu0 0.0
    %3555 = vmatpush.xpose.msra.mxu0 0.0
    %3556 = vmatpush.xpose.msra.mxu0 0.0
    %3557 = vmatpush.xpose.msra.mxu0 0.0
    %3558 = vmatpush.xpose.msra.mxu0 0.0
    %3559 = vmatpush.xpose.msra.mxu0 0.0
    %3560 = vmatpush.xpose.msra.mxu0 0.0
    %3561 = vmatpush.xpose.msra.mxu0 0.0
    %3562 = vmatpush.xpose.msra.mxu0 0.0
    %3563 = vmatpush.xpose.msra.mxu0 0.0
    %3564 = vmatpush.xpose.msra.mxu0 %v3547
    %3565 = vmatmul.f32.gmra.mxu0 %v3545
    %v3566 = vpop.f32.mrf.mxu0
    %v3567 = vadd.f32 0.0, %v3566
    %3568 = vdwg.mxu0
    %v3569 = vmul.f32 %v3567, 0.35355338
    %v3570 = vsel %vm154, %v3569, -inf
    %3571 = vmax.xlane.f32.xlu0 %v3570
    %v3572 = vpop.xlane.xlu0 %3571
    %v3573 = vsub.f32 %v3569, %v3572
    %v3574 = vmul.f32 %v3573, 1.442695
    %v3575 = vpow.pop %v3574
    %v3576 = vsel %vm154, %v3575, 0.0
    %3577 = vadd.xlane.f32.xlu0 %v3576
    %v3578 = vpop.xlane.xlu0 %3577
    %v3579 = vrcp.pop %v3578
    %v3580 = vmul.f32 %v3575, %v3579
    %3581 = vrot.lane.b32.xlu0 %v3281, 72
    %v3582 = vpop.permute.xlu0 %3581
    %v3585 = vsel %vm154, %v3580, 0
    %3587 = vmatpush.msra.mxu0 0.0
    %3588 = vmatpush.msra.mxu0 0.0
    %3589 = vmatpush.msra.mxu0 0.0
    %3590 = vmatpush.msra.mxu0 0.0
    %3591 = vmatpush.msra.mxu0 0.0
    %3592 = vmatpush.msra.mxu0 0.0
    %3593 = vmatpush.msra.mxu0 0.0
    %3594 = vmatpush.msra.mxu0 0.0
    %3595 = vmatpush.msra.mxu0 0.0
    %3596 = vmatpush.msra.mxu0 0.0
    %3597 = vmatpush.msra.mxu0 0.0
    %3598 = vmatpush.msra.mxu0 0.0
    %3599 = vmatpush.msra.mxu0 0.0
    %3600 = vmatpush.msra.mxu0 0.0
    %3601 = vmatpush.msra.mxu0 0.0
    %3602 = vmatpush.msra.mxu0 %v3582
    %3603 = vmatmul.f32.gmra.mxu0 %v3585
    %v3604 = vpop.f32.mrf.mxu0
    %v3605 = vadd.f32 0.0, %v3604
    %3606 = vdwg.mxu0
    %v3607 = vpack.c.bf16 %v3605, %v3605
    %v3609 = vsel %vm154, %v3607, 0
    %v3612 = vsel %vm288, %v3222, 0
    %3614 = vmatpush.bf16.msra.mxu0 0
    %3615 = vmatpush.bf16.msra.mxu0 0
    %3616 = vmatpush.bf16.msra.mxu0 0
    %3617 = vmatpush.bf16.msra.mxu0 0
    %3618 = vmatpush.bf16.msra.mxu0 0
    %3619 = vmatpush.bf16.msra.mxu0 0
    %3620 = vmatpush.bf16.msra.mxu0 0
    %3621 = vmatpush.bf16.msra.mxu0 %v3612
    %3622 = vmatmul.bf16.gmra.mxu0 %v3609
    %v3623 = vpop.f32.mrf.mxu0
    %v3624 = vadd.f32 0.0, %v3623
    %v3625 = vpop.f32.mrf.mxu0
    %3626 = vdwg.mxu0
    %v3627 = vadd.f32 %v3540, %v3624
    %v3628 = vperm.slane %v3223, 0
    %v3629 = vadd.f32 %v3627, %v3628
    %v3630 = vadd.f32 %v3208, %v3629
    %v3631 = vld [vmem:[#allocation7 + $0x29] sm:$0x1]
    %v3632 = vld [vmem:[#allocation7 + $0x2a] sm:$0x1]
    %v3633 = vsel %vm134, %v3630, 0.0
    %3634 = vadd.xlane.f32.xlu0 %v3633
    %v3635 = vpop.xlane.xlu0 %3634
    %v3636 = vmul.f32 %v3635, %v512
    %v3637 = vsub.f32 %v3630, %v3636
    %v3638 = vmul.f32 %v3637, %v3637
    %v3639 = vsel %vm134, %v3638, 0.0
    %3640 = vadd.xlane.f32.xlu0 %v3639
    %v3641 = vpop.xlane.xlu0 %3640
    %v3642 = vmul.f32 %v3641, %v512
    %v3643 = vadd.f32 %v3642, 1e-05
    %v3644 = vrsqrt.pop %v3643
    %v3645 = vmul.f32 %v3644, %v3643
    %v3646 = vmul.f32 %v3645, %v3644
    %v3647 = vmul.f32 0.5, %v3646
    %v3648 = vsub.f32 1.5, %v3647
    %v3649 = vmul.f32 %v3644, %v3648
    %vm3650 = vweird.f32 %v3643
    %vm3651 = vweird.f32 %v3644
    %vm3652 = vmor %vm3650, %vm3651
    %v3653 = vsel %vm3652, %v3644, %v3649
    %v3654 = vmul.f32 %v3637, %v3653
    %v3655 = vperm.slane %v3631, 0
    %v3656 = vmul.f32 %v3654, %v3655
    %v3657 = vperm.slane %v3632, 0
    %v3658 = vadd.f32 %v3656, %v3657
    %v3659 = vld [vmem:[#allocation5 + $0x124] sm:$0xff]
    %v3660 = vld [vmem:[#allocation5 + $0x12c] sm:$0xff]
    %v3661 = vld [vmem:[#allocation5 + $0x134] sm:$0xff]
    %v3662 = vld [vmem:[#allocation5 + $0x13c] sm:$0xff]
    %v3663 = vld [vmem:[#allocation5 + $0x144] sm:$0xff]
    %v3664 = vld [vmem:[#allocation5 + $0x14c] sm:$0xff]
    %v3665 = vld [vmem:[#allocation5 + $0x154] sm:$0xff]
    %v3666 = vld [vmem:[#allocation5 + $0x15c] sm:$0xff]
    %v3667 = vld [vmem:[#allocation5 + $0x35c] sm:$0xff]
    %v3668 = vld [vmem:[#allocation5 + $0x364] sm:$0xff]
    %v3669 = vld [vmem:[#allocation5 + $0x36c] sm:$0xff]
    %v3670 = vld [vmem:[#allocation5 + $0x374] sm:$0xff]
    %v3671 = vld [vmem:[#allocation5 + $0x37c] sm:$0xff]
    %v3672 = vld [vmem:[#allocation5 + $0x384] sm:$0xff]
    %v3673 = vld [vmem:[#allocation5 + $0x38c] sm:$0xff]
    %v3674 = vld [vmem:[#allocation5 + $0x394] sm:$0xff]
    %v3675 = vld [vmem:[#allocation5 + $0x594] sm:$0xff]
    %v3676 = vld [vmem:[#allocation5 + $0x59c] sm:$0xff]
    %v3677 = vld [vmem:[#allocation5 + $0x5a4] sm:$0xff]
    %v3678 = vld [vmem:[#allocation5 + $0x5ac] sm:$0xff]
    %v3679 = vld [vmem:[#allocation5 + $0x5b4] sm:$0xff]
    %v3680 = vld [vmem:[#allocation5 + $0x5bc] sm:$0xff]
    %v3681 = vld [vmem:[#allocation5 + $0x5c4] sm:$0xff]
    %v3682 = vld [vmem:[#allocation5 + $0x5cc] sm:$0xff]
    %v3683 = vld [vmem:[#allocation5 + $0x7cc] sm:$0xff]
    %v3684 = vld [vmem:[#allocation5 + $0x7d4] sm:$0xff]
    %v3685 = vld [vmem:[#allocation5 + $0x7dc] sm:$0xff]
    %v3686 = vld [vmem:[#allocation5 + $0x7e4] sm:$0xff]
    %v3687 = vld [vmem:[#allocation5 + $0x7ec] sm:$0xff]
    %v3688 = vld [vmem:[#allocation5 + $0x7f4] sm:$0xff]
    %v3689 = vld [vmem:[#allocation5 + $0x7fc] sm:$0xff]
    %v3690 = vld [vmem:[#allocation5 + $0x804] sm:$0xff]
    %s3691 = scalar_lea.vmem [#allocation8], 2
    %v3692 = vld [vmem:[%s3691] ss:$8 sm:$0xf]
    %v3693 = vld [vmem:[%s3691] ss:$8 sm:$0xf0]
    %v3694 = vor.u32 %v3692, %v3693
    %s3695 = scalar_lea.vmem [#allocation8], 66
    %v3696 = vld [vmem:[%s3695] ss:$8 sm:$0xf]
    %v3697 = vld [vmem:[%s3695] ss:$8 sm:$0xf0]
    %v3698 = vor.u32 %v3696, %v3697
    %v3699 = vld [vmem:[#allocation5 + $0x164] sm:$0xff]
    %v3700 = vld [vmem:[#allocation5 + $0x16c] sm:$0xff]
    %v3701 = vld [vmem:[#allocation5 + $0x174] sm:$0xff]
    %v3702 = vld [vmem:[#allocation5 + $0x17c] sm:$0xff]
    %v3703 = vld [vmem:[#allocation5 + $0x184] sm:$0xff]
    %v3704 = vld [vmem:[#allocation5 + $0x18c] sm:$0xff]
    %v3705 = vld [vmem:[#allocation5 + $0x194] sm:$0xff]
    %v3706 = vld [vmem:[#allocation5 + $0x19c] sm:$0xff]
    %v3707 = vld [vmem:[#allocation5 + $0x39c] sm:$0xff]
    %v3708 = vld [vmem:[#allocation5 + $0x3a4] sm:$0xff]
    %v3709 = vld [vmem:[#allocation5 + $0x3ac] sm:$0xff]
    %v3710 = vld [vmem:[#allocation5 + $0x3b4] sm:$0xff]
    %v3711 = vld [vmem:[#allocation5 + $0x3bc] sm:$0xff]
    %v3712 = vld [vmem:[#allocation5 + $0x3c4] sm:$0xff]
    %v3713 = vld [vmem:[#allocation5 + $0x3cc] sm:$0xff]
    %v3714 = vld [vmem:[#allocation5 + $0x3d4] sm:$0xff]
    %v3715 = vld [vmem:[#allocation5 + $0x5d4] sm:$0xff]
    %v3716 = vld [vmem:[#allocation5 + $0x5dc] sm:$0xff]
    %v3717 = vld [vmem:[#allocation5 + $0x5e4] sm:$0xff]
    %v3718 = vld [vmem:[#allocation5 + $0x5ec] sm:$0xff]
    %v3719 = vld [vmem:[#allocation5 + $0x5f4] sm:$0xff]
    %v3720 = vld [vmem:[#allocation5 + $0x5fc] sm:$0xff]
    %v3721 = vld [vmem:[#allocation5 + $0x604] sm:$0xff]
    %v3722 = vld [vmem:[#allocation5 + $0x60c] sm:$0xff]
    %v3723 = vld [vmem:[#allocation5 + $0x80c] sm:$0xff]
    %v3724 = vld [vmem:[#allocation5 + $0x814] sm:$0xff]
    %v3725 = vld [vmem:[#allocation5 + $0x81c] sm:$0xff]
    %v3726 = vld [vmem:[#allocation5 + $0x824] sm:$0xff]
    %v3727 = vld [vmem:[#allocation5 + $0x82c] sm:$0xff]
    %v3728 = vld [vmem:[#allocation5 + $0x834] sm:$0xff]
    %v3729 = vld [vmem:[#allocation5 + $0x83c] sm:$0xff]
    %v3730 = vld [vmem:[#allocation5 + $0x844] sm:$0xff]
    %v3731 = vld [vmem:[#allocation7 + $0x2b] sm:$0x1]
    %v3732 = vpack.c.bf16 %v3658, %v3658
    %v3735 = vperm.slane %v3694, 0
    %v3736 = vperm.slane %v3694, 1
    %v3737 = vperm.slane %v3694, 2
    %v3738 = vperm.slane %v3694, 3
    %v3739 = vperm.slane %v3694, 4
    %v3740 = vperm.slane %v3694, 5
    %v3741 = vperm.slane %v3694, 6
    %v3742 = vperm.slane %v3694, 7
    %v3743 = vperm.slane %v3698, 0
    %v3744 = vperm.slane %v3698, 1
    %v3745 = vperm.slane %v3698, 2
    %v3746 = vperm.slane %v3698, 3
    %v3747 = vperm.slane %v3698, 4
    %v3748 = vperm.slane %v3698, 5
    %v3749 = vperm.slane %v3698, 6
    %v3750 = vperm.slane %v3698, 7
    %v3799 = vunpack.c.l.b16 %v3659
    %v3800 = vunpack.c.h.b16 %v3659
    %v3801 = vunpack.c.l.b16 %v3660
    %v3802 = vunpack.c.h.b16 %v3660
    %v3803 = vunpack.c.l.b16 %v3661
    %v3804 = vunpack.c.h.b16 %v3661
    %v3805 = vunpack.c.l.b16 %v3662
    %v3806 = vunpack.c.h.b16 %v3662
    %v3807 = vunpack.c.l.b16 %v3663
    %v3808 = vunpack.c.h.b16 %v3663
    %v3809 = vunpack.c.l.b16 %v3664
    %v3810 = vunpack.c.h.b16 %v3664
    %v3811 = vunpack.c.l.b16 %v3665
    %v3812 = vunpack.c.h.b16 %v3665
    %v3813 = vunpack.c.l.b16 %v3666
    %v3814 = vunpack.c.h.b16 %v3666
    %v3815 = vunpack.c.l.b16 %v3667
    %v3816 = vunpack.c.h.b16 %v3667
    %v3817 = vunpack.c.l.b16 %v3668
    %v3818 = vunpack.c.h.b16 %v3668
    %v3819 = vunpack.c.l.b16 %v3669
    %v3820 = vunpack.c.h.b16 %v3669
    %v3821 = vunpack.c.l.b16 %v3670
    %v3822 = vunpack.c.h.b16 %v3670
    %v3823 = vunpack.c.l.b16 %v3671
    %v3824 = vunpack.c.h.b16 %v3671
    %v3825 = vunpack.c.l.b16 %v3672
    %v3826 = vunpack.c.h.b16 %v3672
    %v3827 = vunpack.c.l.b16 %v3673
    %v3828 = vunpack.c.h.b16 %v3673
    %v3829 = vunpack.c.l.b16 %v3674
    %v3830 = vunpack.c.h.b16 %v3674
    %v3831 = vunpack.c.l.b16 %v3675
    %v3832 = vunpack.c.h.b16 %v3675
    %v3833 = vunpack.c.l.b16 %v3676
    %v3834 = vunpack.c.h.b16 %v3676
    %v3835 = vunpack.c.l.b16 %v3677
    %v3836 = vunpack.c.h.b16 %v3677
    %v3837 = vunpack.c.l.b16 %v3678
    %v3838 = vunpack.c.h.b16 %v3678
    %v3839 = vunpack.c.l.b16 %v3679
    %v3840 = vunpack.c.h.b16 %v3679
    %v3841 = vunpack.c.l.b16 %v3680
    %v3842 = vunpack.c.h.b16 %v3680
    %v3843 = vunpack.c.l.b16 %v3681
    %v3844 = vunpack.c.h.b16 %v3681
    %v3845 = vunpack.c.l.b16 %v3682
    %v3846 = vunpack.c.h.b16 %v3682
    %v3847 = vunpack.c.l.b16 %v3683
    %v3848 = vunpack.c.h.b16 %v3683
    %v3849 = vunpack.c.l.b16 %v3684
    %v3850 = vunpack.c.h.b16 %v3684
    %v3851 = vunpack.c.l.b16 %v3685
    %v3852 = vunpack.c.h.b16 %v3685
    %v3853 = vunpack.c.l.b16 %v3686
    %v3854 = vunpack.c.h.b16 %v3686
    %v3855 = vunpack.c.l.b16 %v3687
    %v3856 = vunpack.c.h.b16 %v3687
    %v3857 = vunpack.c.l.b16 %v3688
    %v3858 = vunpack.c.h.b16 %v3688
    %v3859 = vunpack.c.l.b16 %v3689
    %v3860 = vunpack.c.h.b16 %v3689
    %v3861 = vunpack.c.l.b16 %v3690
    %v3862 = vunpack.c.h.b16 %v3690
    %v3863 = vpack.c.b16 %v3815, %v3799
    %v3864 = vpack.c.b16 %v3816, %v3800
    %v3865 = vpack.c.b16 %v3817, %v3801
    %v3866 = vpack.c.b16 %v3818, %v3802
    %v3867 = vpack.c.b16 %v3819, %v3803
    %v3868 = vpack.c.b16 %v3820, %v3804
    %v3869 = vpack.c.b16 %v3821, %v3805
    %v3870 = vpack.c.b16 %v3822, %v3806
    %v3871 = vpack.c.b16 %v3823, %v3807
    %v3872 = vpack.c.b16 %v3824, %v3808
    %v3873 = vpack.c.b16 %v3825, %v3809
    %v3874 = vpack.c.b16 %v3826, %v3810
    %v3875 = vpack.c.b16 %v3827, %v3811
    %v3876 = vpack.c.b16 %v3828, %v3812
    %v3877 = vpack.c.b16 %v3829, %v3813
    %v3878 = vpack.c.b16 %v3830, %v3814
    %v3879 = vpack.c.b16 %v3847, %v3831
    %v3880 = vpack.c.b16 %v3848, %v3832
    %v3881 = vpack.c.b16 %v3849, %v3833
    %v3882 = vpack.c.b16 %v3850, %v3834
    %v3883 = vpack.c.b16 %v3851, %v3835
    %v3884 = vpack.c.b16 %v3852, %v3836
    %v3885 = vpack.c.b16 %v3853, %v3837
    %v3886 = vpack.c.b16 %v3854, %v3838
    %v3887 = vpack.c.b16 %v3855, %v3839
    %v3888 = vpack.c.b16 %v3856, %v3840
    %v3889 = vpack.c.b16 %v3857, %v3841
    %v3890 = vpack.c.b16 %v3858, %v3842
    %v3891 = vpack.c.b16 %v3859, %v3843
    %v3892 = vpack.c.b16 %v3860, %v3844
    %v3893 = vpack.c.b16 %v3861, %v3845
    %v3894 = vpack.c.b16 %v3862, %v3846
    %v3928 = vsel %vm134, %v3732, 0
    %3930 = vmatpush.bf16.msra.mxu0 0
    %3931 = vmatpush.bf16.msra.mxu0 0
    %3932 = vmatpush.bf16.msra.mxu0 0
    %3933 = vmatpush.bf16.msra.mxu0 0
    %3934 = vmatpush.bf16.msra.mxu0 0
    %3935 = vmatpush.bf16.msra.mxu0 0
    %3936 = vmatpush.bf16.msra.mxu0 %v3879
    %3937 = vmatpush.bf16.msra.mxu0 %v3863
    %3938 = vmatmul.bf16.gmra.mxu0 %v3928
    %v3939 = vpop.f32.mrf.mxu0
    %v3940 = vadd.f32 %v3735, %v3939
    %v3941 = vpop.f32.mrf.mxu0
    %3942 = vdwg.mxu0
    %3943 = vmatpush.bf16.msra.mxu0 0
    %3944 = vmatpush.bf16.msra.mxu0 0
    %3945 = vmatpush.bf16.msra.mxu0 0
    %3946 = vmatpush.bf16.msra.mxu0 0
    %3947 = vmatpush.bf16.msra.mxu0 0
    %3948 = vmatpush.bf16.msra.mxu0 0
    %3949 = vmatpush.bf16.msra.mxu0 %v3880
    %3950 = vmatpush.bf16.msra.mxu0 %v3864
    %3951 = vmatmul.bf16.gmra.mxu0 %v3928
    %v3952 = vpop.f32.mrf.mxu0
    %v3953 = vadd.f32 %v3736, %v3952
    %v3954 = vpop.f32.mrf.mxu0
    %3955 = vdwg.mxu0
    %3956 = vmatpush.bf16.msra.mxu0 0
    %3957 = vmatpush.bf16.msra.mxu0 0
    %3958 = vmatpush.bf16.msra.mxu0 0
    %3959 = vmatpush.bf16.msra.mxu0 0
    %3960 = vmatpush.bf16.msra.mxu0 0
    %3961 = vmatpush.bf16.msra.mxu0 0
    %3962 = vmatpush.bf16.msra.mxu0 %v3881
    %3963 = vmatpush.bf16.msra.mxu0 %v3865
    %3964 = vmatmul.bf16.gmra.mxu0 %v3928
    %v3965 = vpop.f32.mrf.mxu0
    %v3966 = vadd.f32 %v3737, %v3965
    %v3967 = vpop.f32.mrf.mxu0
    %3968 = vdwg.mxu0
    %3969 = vmatpush.bf16.msra.mxu0 0
    %3970 = vmatpush.bf16.msra.mxu0 0
    %3971 = vmatpush.bf16.msra.mxu0 0
    %3972 = vmatpush.bf16.msra.mxu0 0
    %3973 = vmatpush.bf16.msra.mxu0 0
    %3974 = vmatpush.bf16.msra.mxu0 0
    %3975 = vmatpush.bf16.msra.mxu0 %v3882
    %3976 = vmatpush.bf16.msra.mxu0 %v3866
    %3977 = vmatmul.bf16.gmra.mxu0 %v3928
    %v3978 = vpop.f32.mrf.mxu0
    %v3979 = vadd.f32 %v3738, %v3978
    %v3980 = vpop.f32.mrf.mxu0
    %3981 = vdwg.mxu0
    %3982 = vmatpush.bf16.msra.mxu0 0
    %3983 = vmatpush.bf16.msra.mxu0 0
    %3984 = vmatpush.bf16.msra.mxu0 0
    %3985 = vmatpush.bf16.msra.mxu0 0
    %3986 = vmatpush.bf16.msra.mxu0 0
    %3987 = vmatpush.bf16.msra.mxu0 0
    %3988 = vmatpush.bf16.msra.mxu0 %v3883
    %3989 = vmatpush.bf16.msra.mxu0 %v3867
    %3990 = vmatmul.bf16.gmra.mxu0 %v3928
    %v3991 = vpop.f32.mrf.mxu0
    %v3992 = vadd.f32 %v3739, %v3991
    %v3993 = vpop.f32.mrf.mxu0
    %3994 = vdwg.mxu0
    %3995 = vmatpush.bf16.msra.mxu0 0
    %3996 = vmatpush.bf16.msra.mxu0 0
    %3997 = vmatpush.bf16.msra.mxu0 0
    %3998 = vmatpush.bf16.msra.mxu0 0
    %3999 = vmatpush.bf16.msra.mxu0 0
    %4000 = vmatpush.bf16.msra.mxu0 0
    %4001 = vmatpush.bf16.msra.mxu0 %v3884
    %4002 = vmatpush.bf16.msra.mxu0 %v3868
    %4003 = vmatmul.bf16.gmra.mxu0 %v3928
    %v4004 = vpop.f32.mrf.mxu0
    %v4005 = vadd.f32 %v3740, %v4004
    %v4006 = vpop.f32.mrf.mxu0
    %4007 = vdwg.mxu0
    %4008 = vmatpush.bf16.msra.mxu0 0
    %4009 = vmatpush.bf16.msra.mxu0 0
    %4010 = vmatpush.bf16.msra.mxu0 0
    %4011 = vmatpush.bf16.msra.mxu0 0
    %4012 = vmatpush.bf16.msra.mxu0 0
    %4013 = vmatpush.bf16.msra.mxu0 0
    %4014 = vmatpush.bf16.msra.mxu0 %v3885
    %4015 = vmatpush.bf16.msra.mxu0 %v3869
    %4016 = vmatmul.bf16.gmra.mxu0 %v3928
    %v4017 = vpop.f32.mrf.mxu0
    %v4018 = vadd.f32 %v3741, %v4017
    %v4019 = vpop.f32.mrf.mxu0
    %4020 = vdwg.mxu0
    %4021 = vmatpush.bf16.msra.mxu0 0
    %4022 = vmatpush.bf16.msra.mxu0 0
    %4023 = vmatpush.bf16.msra.mxu0 0
    %4024 = vmatpush.bf16.msra.mxu0 0
    %4025 = vmatpush.bf16.msra.mxu0 0
    %4026 = vmatpush.bf16.msra.mxu0 0
    %4027 = vmatpush.bf16.msra.mxu0 %v3886
    %4028 = vmatpush.bf16.msra.mxu0 %v3870
    %4029 = vmatmul.bf16.gmra.mxu0 %v3928
    %v4030 = vpop.f32.mrf.mxu0
    %v4031 = vadd.f32 %v3742, %v4030
    %v4032 = vpop.f32.mrf.mxu0
    %4033 = vdwg.mxu0
    %4034 = vmatpush.bf16.msra.mxu0 0
    %4035 = vmatpush.bf16.msra.mxu0 0
    %4036 = vmatpush.bf16.msra.mxu0 0
    %4037 = vmatpush.bf16.msra.mxu0 0
    %4038 = vmatpush.bf16.msra.mxu0 0
    %4039 = vmatpush.bf16.msra.mxu0 0
    %4040 = vmatpush.bf16.msra.mxu0 %v3887
    %4041 = vmatpush.bf16.msra.mxu0 %v3871
    %4042 = vmatmul.bf16.gmra.mxu0 %v3928
    %v4043 = vpop.f32.mrf.mxu0
    %v4044 = vadd.f32 %v3743, %v4043
    %v4045 = vpop.f32.mrf.mxu0
    %4046 = vdwg.mxu0
    %4047 = vmatpush.bf16.msra.mxu0 0
    %4048 = vmatpush.bf16.msra.mxu0 0
    %4049 = vmatpush.bf16.msra.mxu0 0
    %4050 = vmatpush.bf16.msra.mxu0 0
    %4051 = vmatpush.bf16.msra.mxu0 0
    %4052 = vmatpush.bf16.msra.mxu0 0
    %4053 = vmatpush.bf16.msra.mxu0 %v3888
    %4054 = vmatpush.bf16.msra.mxu0 %v3872
    %4055 = vmatmul.bf16.gmra.mxu0 %v3928
    %v4056 = vpop.f32.mrf.mxu0
    %v4057 = vadd.f32 %v3744, %v4056
    %v4058 = vpop.f32.mrf.mxu0
    %4059 = vdwg.mxu0
    %4060 = vmatpush.bf16.msra.mxu0 0
    %4061 = vmatpush.bf16.msra.mxu0 0
    %4062 = vmatpush.bf16.msra.mxu0 0
    %4063 = vmatpush.bf16.msra.mxu0 0
    %4064 = vmatpush.bf16.msra.mxu0 0
    %4065 = vmatpush.bf16.msra.mxu0 0
    %4066 = vmatpush.bf16.msra.mxu0 %v3889
    %4067 = vmatpush.bf16.msra.mxu0 %v3873
    %4068 = vmatmul.bf16.gmra.mxu0 %v3928
    %v4069 = vpop.f32.mrf.mxu0
    %v4070 = vadd.f32 %v3745, %v4069
    %v4071 = vpop.f32.mrf.mxu0
    %4072 = vdwg.mxu0
    %4073 = vmatpush.bf16.msra.mxu0 0
    %4074 = vmatpush.bf16.msra.mxu0 0
    %4075 = vmatpush.bf16.msra.mxu0 0
    %4076 = vmatpush.bf16.msra.mxu0 0
    %4077 = vmatpush.bf16.msra.mxu0 0
    %4078 = vmatpush.bf16.msra.mxu0 0
    %4079 = vmatpush.bf16.msra.mxu0 %v3890
    %4080 = vmatpush.bf16.msra.mxu0 %v3874
    %4081 = vmatmul.bf16.gmra.mxu0 %v3928
    %v4082 = vpop.f32.mrf.mxu0
    %v4083 = vadd.f32 %v3746, %v4082
    %v4084 = vpop.f32.mrf.mxu0
    %4085 = vdwg.mxu0
    %4086 = vmatpush.bf16.msra.mxu0 0
    %4087 = vmatpush.bf16.msra.mxu0 0
    %4088 = vmatpush.bf16.msra.mxu0 0
    %4089 = vmatpush.bf16.msra.mxu0 0
    %4090 = vmatpush.bf16.msra.mxu0 0
    %4091 = vmatpush.bf16.msra.mxu0 0
    %4092 = vmatpush.bf16.msra.mxu0 %v3891
    %4093 = vmatpush.bf16.msra.mxu0 %v3875
    %4094 = vmatmul.bf16.gmra.mxu0 %v3928
    %v4095 = vpop.f32.mrf.mxu0
    %v4096 = vadd.f32 %v3747, %v4095
    %v4097 = vpop.f32.mrf.mxu0
    %4098 = vdwg.mxu0
    %4099 = vmatpush.bf16.msra.mxu0 0
    %4100 = vmatpush.bf16.msra.mxu0 0
    %4101 = vmatpush.bf16.msra.mxu0 0
    %4102 = vmatpush.bf16.msra.mxu0 0
    %4103 = vmatpush.bf16.msra.mxu0 0
    %4104 = vmatpush.bf16.msra.mxu0 0
    %4105 = vmatpush.bf16.msra.mxu0 %v3892
    %4106 = vmatpush.bf16.msra.mxu0 %v3876
    %4107 = vmatmul.bf16.gmra.mxu0 %v3928
    %v4108 = vpop.f32.mrf.mxu0
    %v4109 = vadd.f32 %v3748, %v4108
    %v4110 = vpop.f32.mrf.mxu0
    %4111 = vdwg.mxu0
    %4112 = vmatpush.bf16.msra.mxu0 0
    %4113 = vmatpush.bf16.msra.mxu0 0
    %4114 = vmatpush.bf16.msra.mxu0 0
    %4115 = vmatpush.bf16.msra.mxu0 0
    %4116 = vmatpush.bf16.msra.mxu0 0
    %4117 = vmatpush.bf16.msra.mxu0 0
    %4118 = vmatpush.bf16.msra.mxu0 %v3893
    %4119 = vmatpush.bf16.msra.mxu0 %v3877
    %4120 = vmatmul.bf16.gmra.mxu0 %v3928
    %v4121 = vpop.f32.mrf.mxu0
    %v4122 = vadd.f32 %v3749, %v4121
    %v4123 = vpop.f32.mrf.mxu0
    %4124 = vdwg.mxu0
    %4125 = vmatpush.bf16.msra.mxu0 0
    %4126 = vmatpush.bf16.msra.mxu0 0
    %4127 = vmatpush.bf16.msra.mxu0 0
    %4128 = vmatpush.bf16.msra.mxu0 0
    %4129 = vmatpush.bf16.msra.mxu0 0
    %4130 = vmatpush.bf16.msra.mxu0 0
    %4131 = vmatpush.bf16.msra.mxu0 %v3894
    %4132 = vmatpush.bf16.msra.mxu0 %v3878
    %4133 = vmatmul.bf16.gmra.mxu0 %v3928
    %v4134 = vpop.f32.mrf.mxu0
    %v4135 = vadd.f32 %v3750, %v4134
    %v4136 = vpop.f32.mrf.mxu0
    %4137 = vdwg.mxu0
    %v4138 = vmax.f32 %v3940, 0.0
    %v4139 = vmax.f32 %v3953, 0.0
    %v4140 = vmax.f32 %v3966, 0.0
    %v4141 = vmax.f32 %v3979, 0.0
    %v4142 = vmax.f32 %v3992, 0.0
    %v4143 = vmax.f32 %v4005, 0.0
    %v4144 = vmax.f32 %v4018, 0.0
    %v4145 = vmax.f32 %v4031, 0.0
    %v4146 = vmax.f32 %v4044, 0.0
    %v4147 = vmax.f32 %v4057, 0.0
    %v4148 = vmax.f32 %v4070, 0.0
    %v4149 = vmax.f32 %v4083, 0.0
    %v4150 = vmax.f32 %v4096, 0.0
    %v4151 = vmax.f32 %v4109, 0.0
    %v4152 = vmax.f32 %v4122, 0.0
    %v4153 = vmax.f32 %v4135, 0.0
    %v4154 = vpack.c.bf16 %v4138, %v4138
    %v4155 = vpack.c.bf16 %v4139, %v4139
    %v4156 = vpack.c.bf16 %v4140, %v4140
    %v4157 = vpack.c.bf16 %v4141, %v4141
    %v4158 = vpack.c.bf16 %v4142, %v4142
    %v4159 = vpack.c.bf16 %v4143, %v4143
    %v4160 = vpack.c.bf16 %v4144, %v4144
    %v4161 = vpack.c.bf16 %v4145, %v4145
    %v4162 = vpack.c.bf16 %v4146, %v4146
    %v4163 = vpack.c.bf16 %v4147, %v4147
    %v4164 = vpack.c.bf16 %v4148, %v4148
    %v4165 = vpack.c.bf16 %v4149, %v4149
    %v4166 = vpack.c.bf16 %v4150, %v4150
    %v4167 = vpack.c.bf16 %v4151, %v4151
    %v4168 = vpack.c.bf16 %v4152, %v4152
    %v4169 = vpack.c.bf16 %v4153, %v4153
    %v4170 = vperm.slane %v3731, 0
    %v4203 = vunpack.c.l.b16 %v3699
    %v4204 = vunpack.c.h.b16 %v3699
    %v4205 = vunpack.c.l.b16 %v3700
    %v4206 = vunpack.c.h.b16 %v3700
    %v4207 = vunpack.c.l.b16 %v3701
    %v4208 = vunpack.c.h.b16 %v3701
    %v4209 = vunpack.c.l.b16 %v3702
    %v4210 = vunpack.c.h.b16 %v3702
    %v4211 = vunpack.c.l.b16 %v3703
    %v4212 = vunpack.c.h.b16 %v3703
    %v4213 = vunpack.c.l.b16 %v3704
    %v4214 = vunpack.c.h.b16 %v3704
    %v4215 = vunpack.c.l.b16 %v3705
    %v4216 = vunpack.c.h.b16 %v3705
    %v4217 = vunpack.c.l.b16 %v3706
    %v4218 = vunpack.c.h.b16 %v3706
    %v4219 = vunpack.c.l.b16 %v3707
    %v4220 = vunpack.c.h.b16 %v3707
    %v4221 = vunpack.c.l.b16 %v3708
    %v4222 = vunpack.c.h.b16 %v3708
    %v4223 = vunpack.c.l.b16 %v3709
    %v4224 = vunpack.c.h.b16 %v3709
    %v4225 = vunpack.c.l.b16 %v3710
    %v4226 = vunpack.c.h.b16 %v3710
    %v4227 = vunpack.c.l.b16 %v3711
    %v4228 = vunpack.c.h.b16 %v3711
    %v4229 = vunpack.c.l.b16 %v3712
    %v4230 = vunpack.c.h.b16 %v3712
    %v4231 = vunpack.c.l.b16 %v3713
    %v4232 = vunpack.c.h.b16 %v3713
    %v4233 = vunpack.c.l.b16 %v3714
    %v4234 = vunpack.c.h.b16 %v3714
    %v4235 = vunpack.c.l.b16 %v3715
    %v4236 = vunpack.c.h.b16 %v3715
    %v4237 = vunpack.c.l.b16 %v3716
    %v4238 = vunpack.c.h.b16 %v3716
    %v4239 = vunpack.c.l.b16 %v3717
    %v4240 = vunpack.c.h.b16 %v3717
    %v4241 = vunpack.c.l.b16 %v3718
    %v4242 = vunpack.c.h.b16 %v3718
    %v4243 = vunpack.c.l.b16 %v3719
    %v4244 = vunpack.c.h.b16 %v3719
    %v4245 = vunpack.c.l.b16 %v3720
    %v4246 = vunpack.c.h.b16 %v3720
    %v4247 = vunpack.c.l.b16 %v3721
    %v4248 = vunpack.c.h.b16 %v3721
    %v4249 = vunpack.c.l.b16 %v3722
    %v4250 = vunpack.c.h.b16 %v3722
    %v4251 = vunpack.c.l.b16 %v3723
    %v4252 = vunpack.c.h.b16 %v3723
    %v4253 = vunpack.c.l.b16 %v3724
    %v4254 = vunpack.c.h.b16 %v3724
    %v4255 = vunpack.c.l.b16 %v3725
    %v4256 = vunpack.c.h.b16 %v3725
    %v4257 = vunpack.c.l.b16 %v3726
    %v4258 = vunpack.c.h.b16 %v3726
    %v4259 = vunpack.c.l.b16 %v3727
    %v4260 = vunpack.c.h.b16 %v3727
    %v4261 = vunpack.c.l.b16 %v3728
    %v4262 = vunpack.c.h.b16 %v3728
    %v4263 = vunpack.c.l.b16 %v3729
    %v4264 = vunpack.c.h.b16 %v3729
    %v4265 = vunpack.c.l.b16 %v3730
    %v4266 = vunpack.c.h.b16 %v3730
    %v4267 = vpack.c.b16 %v4219, %v4203
    %v4268 = vpack.c.b16 %v4220, %v4204
    %v4269 = vpack.c.b16 %v4221, %v4205
    %v4270 = vpack.c.b16 %v4222, %v4206
    %v4271 = vpack.c.b16 %v4223, %v4207
    %v4272 = vpack.c.b16 %v4224, %v4208
    %v4273 = vpack.c.b16 %v4225, %v4209
    %v4274 = vpack.c.b16 %v4226, %v4210
    %v4275 = vpack.c.b16 %v4227, %v4211
    %v4276 = vpack.c.b16 %v4228, %v4212
    %v4277 = vpack.c.b16 %v4229, %v4213
    %v4278 = vpack.c.b16 %v4230, %v4214
    %v4279 = vpack.c.b16 %v4231, %v4215
    %v4280 = vpack.c.b16 %v4232, %v4216
    %v4281 = vpack.c.b16 %v4233, %v4217
    %v4282 = vpack.c.b16 %v4234, %v4218
    %v4283 = vpack.c.b16 %v4251, %v4235
    %v4284 = vpack.c.b16 %v4252, %v4236
    %v4285 = vpack.c.b16 %v4253, %v4237
    %v4286 = vpack.c.b16 %v4254, %v4238
    %v4287 = vpack.c.b16 %v4255, %v4239
    %v4288 = vpack.c.b16 %v4256, %v4240
    %v4289 = vpack.c.b16 %v4257, %v4241
    %v4290 = vpack.c.b16 %v4258, %v4242
    %v4291 = vpack.c.b16 %v4259, %v4243
    %v4292 = vpack.c.b16 %v4260, %v4244
    %v4293 = vpack.c.b16 %v4261, %v4245
    %v4294 = vpack.c.b16 %v4262, %v4246
    %v4295 = vpack.c.b16 %v4263, %v4247
    %v4296 = vpack.c.b16 %v4264, %v4248
    %v4297 = vpack.c.b16 %v4265, %v4249
    %v4298 = vpack.c.b16 %v4266, %v4250
    %4331 = vmatpush.bf16.xpose.msra.mxu0 0
    %4332 = vmatpush.bf16.xpose.msra.mxu0 0
    %4333 = vmatpush.bf16.xpose.msra.mxu0 0
    %4334 = vmatpush.bf16.xpose.msra.mxu0 0
    %4335 = vmatpush.bf16.xpose.msra.mxu0 0
    %4336 = vmatpush.bf16.xpose.msra.mxu0 0
    %4337 = vmatpush.bf16.xpose.msra.mxu0 %v4283
    %4338 = vmatpush.bf16.xpose.msra.mxu0 %v4267
    %4339 = vmatmul.bf16.gmra.mxu0 %v4154
    %v4340 = vpop.f32.mrf.mxu0
    %v4341 = vadd.f32 %v4170, %v4340
    %v4342 = vpop.f32.mrf.mxu0
    %4343 = vdwg.mxu0
    %4344 = vmatpush.bf16.xpose.msra.mxu0 0
    %4345 = vmatpush.bf16.xpose.msra.mxu0 0
    %4346 = vmatpush.bf16.xpose.msra.mxu0 0
    %4347 = vmatpush.bf16.xpose.msra.mxu0 0
    %4348 = vmatpush.bf16.xpose.msra.mxu0 0
    %4349 = vmatpush.bf16.xpose.msra.mxu0 0
    %4350 = vmatpush.bf16.xpose.msra.mxu0 %v4284
    %4351 = vmatpush.bf16.xpose.msra.mxu0 %v4268
    %4352 = vmatmul.bf16.gmra.mxu0 %v4155
    %v4353 = vpop.f32.mrf.mxu0
    %v4354 = vadd.f32 %v4341, %v4353
    %v4355 = vpop.f32.mrf.mxu0
    %4356 = vdwg.mxu0
    %4357 = vmatpush.bf16.xpose.msra.mxu0 0
    %4358 = vmatpush.bf16.xpose.msra.mxu0 0
    %4359 = vmatpush.bf16.xpose.msra.mxu0 0
    %4360 = vmatpush.bf16.xpose.msra.mxu0 0
    %4361 = vmatpush.bf16.xpose.msra.mxu0 0
    %4362 = vmatpush.bf16.xpose.msra.mxu0 0
    %4363 = vmatpush.bf16.xpose.msra.mxu0 %v4285
    %4364 = vmatpush.bf16.xpose.msra.mxu0 %v4269
    %4365 = vmatmul.bf16.gmra.mxu0 %v4156
    %v4366 = vpop.f32.mrf.mxu0
    %v4367 = vadd.f32 %v4354, %v4366
    %v4368 = vpop.f32.mrf.mxu0
    %4369 = vdwg.mxu0
    %4370 = vmatpush.bf16.xpose.msra.mxu0 0
    %4371 = vmatpush.bf16.xpose.msra.mxu0 0
    %4372 = vmatpush.bf16.xpose.msra.mxu0 0
    %4373 = vmatpush.bf16.xpose.msra.mxu0 0
    %4374 = vmatpush.bf16.xpose.msra.mxu0 0
    %4375 = vmatpush.bf16.xpose.msra.mxu0 0
    %4376 = vmatpush.bf16.xpose.msra.mxu0 %v4286
    %4377 = vmatpush.bf16.xpose.msra.mxu0 %v4270
    %4378 = vmatmul.bf16.gmra.mxu0 %v4157
    %v4379 = vpop.f32.mrf.mxu0
    %v4380 = vadd.f32 %v4367, %v4379
    %v4381 = vpop.f32.mrf.mxu0
    %4382 = vdwg.mxu0
    %4383 = vmatpush.bf16.xpose.msra.mxu0 0
    %4384 = vmatpush.bf16.xpose.msra.mxu0 0
    %4385 = vmatpush.bf16.xpose.msra.mxu0 0
    %4386 = vmatpush.bf16.xpose.msra.mxu0 0
    %4387 = vmatpush.bf16.xpose.msra.mxu0 0
    %4388 = vmatpush.bf16.xpose.msra.mxu0 0
    %4389 = vmatpush.bf16.xpose.msra.mxu0 %v4287
    %4390 = vmatpush.bf16.xpose.msra.mxu0 %v4271
    %4391 = vmatmul.bf16.gmra.mxu0 %v4158
    %v4392 = vpop.f32.mrf.mxu0
    %v4393 = vadd.f32 %v4380, %v4392
    %v4394 = vpop.f32.mrf.mxu0
    %4395 = vdwg.mxu0
    %4396 = vmatpush.bf16.xpose.msra.mxu0 0
    %4397 = vmatpush.bf16.xpose.msra.mxu0 0
    %4398 = vmatpush.bf16.xpose.msra.mxu0 0
    %4399 = vmatpush.bf16.xpose.msra.mxu0 0
    %4400 = vmatpush.bf16.xpose.msra.mxu0 0
    %4401 = vmatpush.bf16.xpose.msra.mxu0 0
    %4402 = vmatpush.bf16.xpose.msra.mxu0 %v4288
    %4403 = vmatpush.bf16.xpose.msra.mxu0 %v4272
    %4404 = vmatmul.bf16.gmra.mxu0 %v4159
    %v4405 = vpop.f32.mrf.mxu0
    %v4406 = vadd.f32 %v4393, %v4405
    %v4407 = vpop.f32.mrf.mxu0
    %4408 = vdwg.mxu0
    %4409 = vmatpush.bf16.xpose.msra.mxu0 0
    %4410 = vmatpush.bf16.xpose.msra.mxu0 0
    %4411 = vmatpush.bf16.xpose.msra.mxu0 0
    %4412 = vmatpush.bf16.xpose.msra.mxu0 0
    %4413 = vmatpush.bf16.xpose.msra.mxu0 0
    %4414 = vmatpush.bf16.xpose.msra.mxu0 0
    %4415 = vmatpush.bf16.xpose.msra.mxu0 %v4289
    %4416 = vmatpush.bf16.xpose.msra.mxu0 %v4273
    %4417 = vmatmul.bf16.gmra.mxu0 %v4160
    %v4418 = vpop.f32.mrf.mxu0
    %v4419 = vadd.f32 %v4406, %v4418
    %v4420 = vpop.f32.mrf.mxu0
    %4421 = vdwg.mxu0
    %4422 = vmatpush.bf16.xpose.msra.mxu0 0
    %4423 = vmatpush.bf16.xpose.msra.mxu0 0
    %4424 = vmatpush.bf16.xpose.msra.mxu0 0
    %4425 = vmatpush.bf16.xpose.msra.mxu0 0
    %4426 = vmatpush.bf16.xpose.msra.mxu0 0
    %4427 = vmatpush.bf16.xpose.msra.mxu0 0
    %4428 = vmatpush.bf16.xpose.msra.mxu0 %v4290
    %4429 = vmatpush.bf16.xpose.msra.mxu0 %v4274
    %4430 = vmatmul.bf16.gmra.mxu0 %v4161
    %v4431 = vpop.f32.mrf.mxu0
    %v4432 = vadd.f32 %v4419, %v4431
    %v4433 = vpop.f32.mrf.mxu0
    %4434 = vdwg.mxu0
    %4435 = vmatpush.bf16.xpose.msra.mxu0 0
    %4436 = vmatpush.bf16.xpose.msra.mxu0 0
    %4437 = vmatpush.bf16.xpose.msra.mxu0 0
    %4438 = vmatpush.bf16.xpose.msra.mxu0 0
    %4439 = vmatpush.bf16.xpose.msra.mxu0 0
    %4440 = vmatpush.bf16.xpose.msra.mxu0 0
    %4441 = vmatpush.bf16.xpose.msra.mxu0 %v4291
    %4442 = vmatpush.bf16.xpose.msra.mxu0 %v4275
    %4443 = vmatmul.bf16.gmra.mxu0 %v4162
    %v4444 = vpop.f32.mrf.mxu0
    %v4445 = vadd.f32 %v4432, %v4444
    %v4446 = vpop.f32.mrf.mxu0
    %4447 = vdwg.mxu0
    %4448 = vmatpush.bf16.xpose.msra.mxu0 0
    %4449 = vmatpush.bf16.xpose.msra.mxu0 0
    %4450 = vmatpush.bf16.xpose.msra.mxu0 0
    %4451 = vmatpush.bf16.xpose.msra.mxu0 0
    %4452 = vmatpush.bf16.xpose.msra.mxu0 0
    %4453 = vmatpush.bf16.xpose.msra.mxu0 0
    %4454 = vmatpush.bf16.xpose.msra.mxu0 %v4292
    %4455 = vmatpush.bf16.xpose.msra.mxu0 %v4276
    %4456 = vmatmul.bf16.gmra.mxu0 %v4163
    %v4457 = vpop.f32.mrf.mxu0
    %v4458 = vadd.f32 %v4445, %v4457
    %v4459 = vpop.f32.mrf.mxu0
    %4460 = vdwg.mxu0
    %4461 = vmatpush.bf16.xpose.msra.mxu0 0
    %4462 = vmatpush.bf16.xpose.msra.mxu0 0
    %4463 = vmatpush.bf16.xpose.msra.mxu0 0
    %4464 = vmatpush.bf16.xpose.msra.mxu0 0
    %4465 = vmatpush.bf16.xpose.msra.mxu0 0
    %4466 = vmatpush.bf16.xpose.msra.mxu0 0
    %4467 = vmatpush.bf16.xpose.msra.mxu0 %v4293
    %4468 = vmatpush.bf16.xpose.msra.mxu0 %v4277
    %4469 = vmatmul.bf16.gmra.mxu0 %v4164
    %v4470 = vpop.f32.mrf.mxu0
    %v4471 = vadd.f32 %v4458, %v4470
    %v4472 = vpop.f32.mrf.mxu0
    %4473 = vdwg.mxu0
    %4474 = vmatpush.bf16.xpose.msra.mxu0 0
    %4475 = vmatpush.bf16.xpose.msra.mxu0 0
    %4476 = vmatpush.bf16.xpose.msra.mxu0 0
    %4477 = vmatpush.bf16.xpose.msra.mxu0 0
    %4478 = vmatpush.bf16.xpose.msra.mxu0 0
    %4479 = vmatpush.bf16.xpose.msra.mxu0 0
    %4480 = vmatpush.bf16.xpose.msra.mxu0 %v4294
    %4481 = vmatpush.bf16.xpose.msra.mxu0 %v4278
    %4482 = vmatmul.bf16.gmra.mxu0 %v4165
    %v4483 = vpop.f32.mrf.mxu0
    %v4484 = vadd.f32 %v4471, %v4483
    %v4485 = vpop.f32.mrf.mxu0
    %4486 = vdwg.mxu0
    %4487 = vmatpush.bf16.xpose.msra.mxu0 0
    %4488 = vmatpush.bf16.xpose.msra.mxu0 0
    %4489 = vmatpush.bf16.xpose.msra.mxu0 0
    %4490 = vmatpush.bf16.xpose.msra.mxu0 0
    %4491 = vmatpush.bf16.xpose.msra.mxu0 0
    %4492 = vmatpush.bf16.xpose.msra.mxu0 0
    %4493 = vmatpush.bf16.xpose.msra.mxu0 %v4295
    %4494 = vmatpush.bf16.xpose.msra.mxu0 %v4279
    %4495 = vmatmul.bf16.gmra.mxu0 %v4166
    %v4496 = vpop.f32.mrf.mxu0
    %v4497 = vadd.f32 %v4484, %v4496
    %v4498 = vpop.f32.mrf.mxu0
    %4499 = vdwg.mxu0
    %4500 = vmatpush.bf16.xpose.msra.mxu0 0
    %4501 = vmatpush.bf16.xpose.msra.mxu0 0
    %4502 = vmatpush.bf16.xpose.msra.mxu0 0
    %4503 = vmatpush.bf16.xpose.msra.mxu0 0
    %4504 = vmatpush.bf16.xpose.msra.mxu0 0
    %4505 = vmatpush.bf16.xpose.msra.mxu0 0
    %4506 = vmatpush.bf16.xpose.msra.mxu0 %v4296
    %4507 = vmatpush.bf16.xpose.msra.mxu0 %v4280
    %4508 = vmatmul.bf16.gmra.mxu0 %v4167
    %v4509 = vpop.f32.mrf.mxu0
    %v4510 = vadd.f32 %v4497, %v4509
    %v4511 = vpop.f32.mrf.mxu0
    %4512 = vdwg.mxu0
    %4513 = vmatpush.bf16.xpose.msra.mxu0 0
    %4514 = vmatpush.bf16.xpose.msra.mxu0 0
    %4515 = vmatpush.bf16.xpose.msra.mxu0 0
    %4516 = vmatpush.bf16.xpose.msra.mxu0 0
    %4517 = vmatpush.bf16.xpose.msra.mxu0 0
    %4518 = vmatpush.bf16.xpose.msra.mxu0 0
    %4519 = vmatpush.bf16.xpose.msra.mxu0 %v4297
    %4520 = vmatpush.bf16.xpose.msra.mxu0 %v4281
    %4521 = vmatmul.bf16.gmra.mxu0 %v4168
    %v4522 = vpop.f32.mrf.mxu0
    %v4523 = vadd.f32 %v4510, %v4522
    %v4524 = vpop.f32.mrf.mxu0
    %4525 = vdwg.mxu0
    %4526 = vmatpush.bf16.xpose.msra.mxu0 0
    %4527 = vmatpush.bf16.xpose.msra.mxu0 0
    %4528 = vmatpush.bf16.xpose.msra.mxu0 0
    %4529 = vmatpush.bf16.xpose.msra.mxu0 0
    %4530 = vmatpush.bf16.xpose.msra.mxu0 0
    %4531 = vmatpush.bf16.xpose.msra.mxu0 0
    %4532 = vmatpush.bf16.xpose.msra.mxu0 %v4298
    %4533 = vmatpush.bf16.xpose.msra.mxu0 %v4282
    %4534 = vmatmul.bf16.gmra.mxu0 %v4169
    %v4535 = vpop.f32.mrf.mxu0
    %v4536 = vadd.f32 %v4523, %v4535
    %v4537 = vpop.f32.mrf.mxu0
    %4538 = vdwg.mxu0
    %v4539 = vadd.f32 %v3658, %v4536
    %v4540 = vld [vmem:[#allocation7 + $0x2c] sm:$0x1]
    %v4541 = vld [vmem:[#allocation7 + $0x2d] sm:$0x1]
    %v4542 = vsel %vm134, %v4539, 0.0
    %4543 = vadd.xlane.f32.xlu0 %v4542
    %v4544 = vpop.xlane.xlu0 %4543
    %v4545 = vmul.f32 %v4544, %v512
    %v4546 = vsub.f32 %v4539, %v4545
    %v4547 = vmul.f32 %v4546, %v4546
    %v4548 = vsel %vm134, %v4547, 0.0
    %4549 = vadd.xlane.f32.xlu0 %v4548
    %v4550 = vpop.xlane.xlu0 %4549
    %v4551 = vmul.f32 %v4550, %v512
    %v4552 = vadd.f32 %v4551, 1e-05
    %v4553 = vrsqrt.pop %v4552
    %v4554 = vmul.f32 %v4553, %v4552
    %v4555 = vmul.f32 %v4554, %v4553
    %v4556 = vmul.f32 0.5, %v4555
    %v4557 = vsub.f32 1.5, %v4556
    %v4558 = vmul.f32 %v4553, %v4557
    %vm4559 = vweird.f32 %v4552
    %vm4560 = vweird.f32 %v4553
    %vm4561 = vmor %vm4559, %vm4560
    %v4562 = vsel %vm4561, %v4553, %v4558
    %v4563 = vmul.f32 %v4546, %v4562
    %v4564 = vperm.slane %v4540, 0
    %v4565 = vmul.f32 %v4563, %v4564
    %v4566 = vperm.slane %v4541, 0
    %v4567 = vadd.f32 %v4565, %v4566
    %v4568 = vld [vmem:[#allocation5 + $0x1a4] sm:$0xf]
    %v4569 = vld [vmem:[#allocation5 + $0x3dc] sm:$0xf]
    %v4570 = vld [vmem:[#allocation5 + $0x614] sm:$0xf]
    %v4571 = vld [vmem:[#allocation5 + $0x84c] sm:$0xf]
    %v4572 = vld [vmem:[#allocation7 + $0x2e] sm:$0x1]
    %v4573 = vld [vmem:[#allocation5 + $0x1a8] sm:$0xf]
    %v4574 = vld [vmem:[#allocation5 + $0x3e0] sm:$0xf]
    %v4575 = vld [vmem:[#allocation5 + $0x618] sm:$0xf]
    %v4576 = vld [vmem:[#allocation5 + $0x850] sm:$0xf]
    %v4577 = vld [vmem:[#allocation7 + $0x2f] sm:$0x1]
    %v4578 = vpack.c.bf16 %v4567, %v4567
    %v4579 = vperm.slane %v4572, 0
    %v4584 = vunpack.c.l.b16 %v4568
    %v4585 = vunpack.c.l.b16 %v4569
    %v4586 = vunpack.c.l.b16 %v4570
    %v4587 = vunpack.c.l.b16 %v4571
    %v4588 = vpack.c.b16 %v4585, %v4584
    %v4589 = vpack.c.b16 %v4587, %v4586
    %v4593 = vsel %vm134, %v4578, 0
    %4595 = vmatpush.bf16.msra.mxu0 0
    %4596 = vmatpush.bf16.msra.mxu0 0
    %4597 = vmatpush.bf16.msra.mxu0 0
    %4598 = vmatpush.bf16.msra.mxu0 0
    %4599 = vmatpush.bf16.msra.mxu0 0
    %4600 = vmatpush.bf16.msra.mxu0 0
    %4601 = vmatpush.bf16.msra.mxu0 %v4589
    %4602 = vmatpush.bf16.msra.mxu0 %v4588
    %4603 = vmatmul.bf16.gmra.mxu0 %v4593
    %v4604 = vpop.f32.mrf.mxu0
    %v4605 = vadd.f32 %v4579, %v4604
    %v4606 = vpop.f32.mrf.mxu0
    %4607 = vdwg.mxu0
    %4609 = vrot.lane.b32.xlu0 %v4605, 96
    %v4610 = vpop.permute.xlu0 %4609
    %v4611 = vsel %vm154, %v4605, 0
    %v4613 = vsel %vm154, %v4610, 0
    %4615 = vmatpush.xpose.msra.mxu0 0.0
    %4616 = vmatpush.xpose.msra.mxu0 0.0
    %4617 = vmatpush.xpose.msra.mxu0 0.0
    %4618 = vmatpush.xpose.msra.mxu0 0.0
    %4619 = vmatpush.xpose.msra.mxu0 0.0
    %4620 = vmatpush.xpose.msra.mxu0 0.0
    %4621 = vmatpush.xpose.msra.mxu0 0.0
    %4622 = vmatpush.xpose.msra.mxu0 0.0
    %4623 = vmatpush.xpose.msra.mxu0 0.0
    %4624 = vmatpush.xpose.msra.mxu0 0.0
    %4625 = vmatpush.xpose.msra.mxu0 0.0
    %4626 = vmatpush.xpose.msra.mxu0 0.0
    %4627 = vmatpush.xpose.msra.mxu0 0.0
    %4628 = vmatpush.xpose.msra.mxu0 0.0
    %4629 = vmatpush.xpose.msra.mxu0 0.0
    %4630 = vmatpush.xpose.msra.mxu0 %v4613
    %4631 = vmatmul.f32.gmra.mxu0 %v4611
    %v4632 = vpop.f32.mrf.mxu0
    %v4633 = vadd.f32 0.0, %v4632
    %4634 = vdwg.mxu0
    %v4635 = vmul.f32 %v4633, 0.35355338
    %v4636 = vsel %vm154, %v4635, -inf
    %4637 = vmax.xlane.f32.xlu0 %v4636
    %v4638 = vpop.xlane.xlu0 %4637
    %v4639 = vsub.f32 %v4635, %v4638
    %v4640 = vmul.f32 %v4639, 1.442695
    %v4641 = vpow.pop %v4640
    %v4642 = vsel %vm154, %v4641, 0.0
    %4643 = vadd.xlane.f32.xlu0 %v4642
    %v4644 = vpop.xlane.xlu0 %4643
    %v4645 = vrcp.pop %v4644
    %v4646 = vmul.f32 %v4641, %v4645
    %4647 = vrot.lane.b32.xlu0 %v4605, 64
    %v4648 = vpop.permute.xlu0 %4647
    %v4651 = vsel %vm154, %v4646, 0
    %4653 = vmatpush.msra.mxu0 0.0
    %4654 = vmatpush.msra.mxu0 0.0
    %4655 = vmatpush.msra.mxu0 0.0
    %4656 = vmatpush.msra.mxu0 0.0
    %4657 = vmatpush.msra.mxu0 0.0
    %4658 = vmatpush.msra.mxu0 0.0
    %4659 = vmatpush.msra.mxu0 0.0
    %4660 = vmatpush.msra.mxu0 0.0
    %4661 = vmatpush.msra.mxu0 0.0
    %4662 = vmatpush.msra.mxu0 0.0
    %4663 = vmatpush.msra.mxu0 0.0
    %4664 = vmatpush.msra.mxu0 0.0
    %4665 = vmatpush.msra.mxu0 0.0
    %4666 = vmatpush.msra.mxu0 0.0
    %4667 = vmatpush.msra.mxu0 0.0
    %4668 = vmatpush.msra.mxu0 %v4648
    %4669 = vmatmul.f32.gmra.mxu0 %v4651
    %v4670 = vpop.f32.mrf.mxu0
    %v4671 = vadd.f32 0.0, %v4670
    %4672 = vdwg.mxu0
    %v4673 = vpack.c.bf16 %v4671, %v4671
    %4674 = vrot.lane.b32.xlu0 %v4605, 120
    %v4675 = vpop.permute.xlu0 %4674
    %4676 = vrot.lane.b32.xlu0 %v4605, 88
    %v4677 = vpop.permute.xlu0 %4676
    %v4678 = vsel %vm154, %v4675, 0
    %v4680 = vsel %vm154, %v4677, 0
    %4682 = vmatpush.xpose.msra.mxu0 0.0
    %4683 = vmatpush.xpose.msra.mxu0 0.0
    %4684 = vmatpush.xpose.msra.mxu0 0.0
    %4685 = vmatpush.xpose.msra.mxu0 0.0
    %4686 = vmatpush.xpose.msra.mxu0 0.0
    %4687 = vmatpush.xpose.msra.mxu0 0.0
    %4688 = vmatpush.xpose.msra.mxu0 0.0
    %4689 = vmatpush.xpose.msra.mxu0 0.0
    %4690 = vmatpush.xpose.msra.mxu0 0.0
    %4691 = vmatpush.xpose.msra.mxu0 0.0
    %4692 = vmatpush.xpose.msra.mxu0 0.0
    %4693 = vmatpush.xpose.msra.mxu0 0.0
    %4694 = vmatpush.xpose.msra.mxu0 0.0
    %4695 = vmatpush.xpose.msra.mxu0 0.0
    %4696 = vmatpush.xpose.msra.mxu0 0.0
    %4697 = vmatpush.xpose.msra.mxu0 %v4680
    %4698 = vmatmul.f32.gmra.mxu0 %v4678
    %v4699 = vpop.f32.mrf.mxu0
    %v4700 = vadd.f32 0.0, %v4699
    %4701 = vdwg.mxu0
    %v4702 = vmul.f32 %v4700, 0.35355338
    %v4703 = vsel %vm154, %v4702, -inf
    %4704 = vmax.xlane.f32.xlu0 %v4703
    %v4705 = vpop.xlane.xlu0 %4704
    %v4706 = vsub.f32 %v4702, %v4705
    %v4707 = vmul.f32 %v4706, 1.442695
    %v4708 = vpow.pop %v4707
    %v4709 = vsel %vm154, %v4708, 0.0
    %4710 = vadd.xlane.f32.xlu0 %v4709
    %v4711 = vpop.xlane.xlu0 %4710
    %v4712 = vrcp.pop %v4711
    %v4713 = vmul.f32 %v4708, %v4712
    %4714 = vrot.lane.b32.xlu0 %v4605, 56
    %v4715 = vpop.permute.xlu0 %4714
    %v4718 = vsel %vm154, %v4713, 0
    %4720 = vmatpush.msra.mxu0 0.0
    %4721 = vmatpush.msra.mxu0 0.0
    %4722 = vmatpush.msra.mxu0 0.0
    %4723 = vmatpush.msra.mxu0 0.0
    %4724 = vmatpush.msra.mxu0 0.0
    %4725 = vmatpush.msra.mxu0 0.0
    %4726 = vmatpush.msra.mxu0 0.0
    %4727 = vmatpush.msra.mxu0 0.0
    %4728 = vmatpush.msra.mxu0 0.0
    %4729 = vmatpush.msra.mxu0 0.0
    %4730 = vmatpush.msra.mxu0 0.0
    %4731 = vmatpush.msra.mxu0 0.0
    %4732 = vmatpush.msra.mxu0 0.0
    %4733 = vmatpush.msra.mxu0 0.0
    %4734 = vmatpush.msra.mxu0 0.0
    %4735 = vmatpush.msra.mxu0 %v4715
    %4736 = vmatmul.f32.gmra.mxu0 %v4718
    %v4737 = vpop.f32.mrf.mxu0
    %v4738 = vadd.f32 0.0, %v4737
    %4739 = vdwg.mxu0
    %v4740 = vpack.c.bf16 %v4738, %v4738
    %v4742 = vsel %vm154, %v4740, 0
    %v4745 = vsel %vm288, %v4574, 0
    %4747 = vmatpush.bf16.msra.mxu0 0
    %4748 = vmatpush.bf16.msra.mxu0 0
    %4749 = vmatpush.bf16.msra.mxu0 0
    %4750 = vmatpush.bf16.msra.mxu0 0
    %4751 = vmatpush.bf16.msra.mxu0 0
    %4752 = vmatpush.bf16.msra.mxu0 0
    %4753 = vmatpush.bf16.msra.mxu0 0
    %4754 = vmatpush.bf16.msra.mxu0 %v4745
    %4755 = vmatmul.bf16.gmra.mxu0 %v4742
    %v4756 = vpop.f32.mrf.mxu0
    %v4757 = vadd.f32 0.0, %v4756
    %v4758 = vpop.f32.mrf.mxu0
    %4759 = vdwg.mxu0
    %v4761 = vsel %vm154, %v4673, 0
    %v4764 = vsel %vm288, %v4573, 0
    %4766 = vmatpush.bf16.msra.mxu0 0
    %4767 = vmatpush.bf16.msra.mxu0 0
    %4768 = vmatpush.bf16.msra.mxu0 0
    %4769 = vmatpush.bf16.msra.mxu0 0
    %4770 = vmatpush.bf16.msra.mxu0 0
    %4771 = vmatpush.bf16.msra.mxu0 0
    %4772 = vmatpush.bf16.msra.mxu0 0
    %4773 = vmatpush.bf16.msra.mxu0 %v4764
    %4774 = vmatmul.bf16.gmra.mxu0 %v4761
    %v4775 = vpop.f32.mrf.mxu0
    %v4776 = vadd.f32 %v4757, %v4775
    %v4777 = vpop.f32.mrf.mxu0
    %4778 = vdwg.mxu0
    %4779 = vrot.lane.b32.xlu0 %v4605, 112
    %v4780 = vpop.permute.xlu0 %4779
    %4781 = vrot.lane.b32.xlu0 %v4605, 80
    %v4782 = vpop.permute.xlu0 %4781
    %v4783 = vsel %vm154, %v4780, 0
    %v4785 = vsel %vm154, %v4782, 0
    %4787 = vmatpush.xpose.msra.mxu0 0.0
    %4788 = vmatpush.xpose.msra.mxu0 0.0
    %4789 = vmatpush.xpose.msra.mxu0 0.0
    %4790 = vmatpush.xpose.msra.mxu0 0.0
    %4791 = vmatpush.xpose.msra.mxu0 0.0
    %4792 = vmatpush.xpose.msra.mxu0 0.0
    %4793 = vmatpush.xpose.msra.mxu0 0.0
    %4794 = vmatpush.xpose.msra.mxu0 0.0
    %4795 = vmatpush.xpose.msra.mxu0 0.0
    %4796 = vmatpush.xpose.msra.mxu0 0.0
    %4797 = vmatpush.xpose.msra.mxu0 0.0
    %4798 = vmatpush.xpose.msra.mxu0 0.0
    %4799 = vmatpush.xpose.msra.mxu0 0.0
    %4800 = vmatpush.xpose.msra.mxu0 0.0
    %4801 = vmatpush.xpose.msra.mxu0 0.0
    %4802 = vmatpush.xpose.msra.mxu0 %v4785
    %4803 = vmatmul.f32.gmra.mxu0 %v4783
    %v4804 = vpop.f32.mrf.mxu0
    %v4805 = vadd.f32 0.0, %v4804
    %4806 = vdwg.mxu0
    %v4807 = vmul.f32 %v4805, 0.35355338
    %v4808 = vsel %vm154, %v4807, -inf
    %4809 = vmax.xlane.f32.xlu0 %v4808
    %v4810 = vpop.xlane.xlu0 %4809
    %v4811 = vsub.f32 %v4807, %v4810
    %v4812 = vmul.f32 %v4811, 1.442695
    %v4813 = vpow.pop %v4812
    %v4814 = vsel %vm154, %v4813, 0.0
    %4815 = vadd.xlane.f32.xlu0 %v4814
    %v4816 = vpop.xlane.xlu0 %4815
    %v4817 = vrcp.pop %v4816
    %v4818 = vmul.f32 %v4813, %v4817
    %4819 = vrot.lane.b32.xlu0 %v4605, 48
    %v4820 = vpop.permute.xlu0 %4819
    %v4823 = vsel %vm154, %v4818, 0
    %4825 = vmatpush.msra.mxu0 0.0
    %4826 = vmatpush.msra.mxu0 0.0
    %4827 = vmatpush.msra.mxu0 0.0
    %4828 = vmatpush.msra.mxu0 0.0
    %4829 = vmatpush.msra.mxu0 0.0
    %4830 = vmatpush.msra.mxu0 0.0
    %4831 = vmatpush.msra.mxu0 0.0
    %4832 = vmatpush.msra.mxu0 0.0
    %4833 = vmatpush.msra.mxu0 0.0
    %4834 = vmatpush.msra.mxu0 0.0
    %4835 = vmatpush.msra.mxu0 0.0
    %4836 = vmatpush.msra.mxu0 0.0
    %4837 = vmatpush.msra.mxu0 0.0
    %4838 = vmatpush.msra.mxu0 0.0
    %4839 = vmatpush.msra.mxu0 0.0
    %4840 = vmatpush.msra.mxu0 %v4820
    %4841 = vmatmul.f32.gmra.mxu0 %v4823
    %v4842 = vpop.f32.mrf.mxu0
    %v4843 = vadd.f32 0.0, %v4842
    %4844 = vdwg.mxu0
    %v4845 = vpack.c.bf16 %v4843, %v4843
    %v4847 = vsel %vm154, %v4845, 0
    %v4850 = vsel %vm288, %v4575, 0
    %4852 = vmatpush.bf16.msra.mxu0 0
    %4853 = vmatpush.bf16.msra.mxu0 0
    %4854 = vmatpush.bf16.msra.mxu0 0
    %4855 = vmatpush.bf16.msra.mxu0 0
    %4856 = vmatpush.bf16.msra.mxu0 0
    %4857 = vmatpush.bf16.msra.mxu0 0
    %4858 = vmatpush.bf16.msra.mxu0 0
    %4859 = vmatpush.bf16.msra.mxu0 %v4850
    %4860 = vmatmul.bf16.gmra.mxu0 %v4847
    %v4861 = vpop.f32.mrf.mxu0
    %v4862 = vadd.f32 0.0, %v4861
    %v4863 = vpop.f32.mrf.mxu0
    %4864 = vdwg.mxu0
    %v4865 = vadd.f32 %v4776, %v4862
    %4866 = vrot.lane.b32.xlu0 %v4605, 104
    %v4867 = vpop.permute.xlu0 %4866
    %4868 = vrot.lane.b32.xlu0 %v4605, 72
    %v4869 = vpop.permute.xlu0 %4868
    %v4870 = vsel %vm154, %v4867, 0
    %v4872 = vsel %vm154, %v4869, 0
    %4874 = vmatpush.xpose.msra.mxu0 0.0
    %4875 = vmatpush.xpose.msra.mxu0 0.0
    %4876 = vmatpush.xpose.msra.mxu0 0.0
    %4877 = vmatpush.xpose.msra.mxu0 0.0
    %4878 = vmatpush.xpose.msra.mxu0 0.0
    %4879 = vmatpush.xpose.msra.mxu0 0.0
    %4880 = vmatpush.xpose.msra.mxu0 0.0
    %4881 = vmatpush.xpose.msra.mxu0 0.0
    %4882 = vmatpush.xpose.msra.mxu0 0.0
    %4883 = vmatpush.xpose.msra.mxu0 0.0
    %4884 = vmatpush.xpose.msra.mxu0 0.0
    %4885 = vmatpush.xpose.msra.mxu0 0.0
    %4886 = vmatpush.xpose.msra.mxu0 0.0
    %4887 = vmatpush.xpose.msra.mxu0 0.0
    %4888 = vmatpush.xpose.msra.mxu0 0.0
    %4889 = vmatpush.xpose.msra.mxu0 %v4872
    %4890 = vmatmul.f32.gmra.mxu0 %v4870
    %v4891 = vpop.f32.mrf.mxu0
    %v4892 = vadd.f32 0.0, %v4891
    %4893 = vdwg.mxu0
    %v4894 = vmul.f32 %v4892, 0.35355338
    %v4895 = vsel %vm154, %v4894, -inf
    %4896 = vmax.xlane.f32.xlu0 %v4895
    %v4897 = vpop.xlane.xlu0 %4896
    %v4898 = vsub.f32 %v4894, %v4897
    %v4899 = vmul.f32 %v4898, 1.442695
    %v4900 = vpow.pop %v4899
    %v4901 = vsel %vm154, %v4900, 0.0
    %4902 = vadd.xlane.f32.xlu0 %v4901
    %v4903 = vpop.xlane.xlu0 %4902
    %v4904 = vrcp.pop %v4903
    %v4905 = vmul.f32 %v4900, %v4904
    %4906 = vrot.lane.b32.xlu0 %v4605, 40
    %v4907 = vpop.permute.xlu0 %4906
    %v4910 = vsel %vm154, %v4905, 0
    %4912 = vmatpush.msra.mxu0 0.0
    %4913 = vmatpush.msra.mxu0 0.0
    %4914 = vmatpush.msra.mxu0 0.0
    %4915 = vmatpush.msra.mxu0 0.0
    %4916 = vmatpush.msra.mxu0 0.0
    %4917 = vmatpush.msra.mxu0 0.0
    %4918 = vmatpush.msra.mxu0 0.0
    %4919 = vmatpush.msra.mxu0 0.0
    %4920 = vmatpush.msra.mxu0 0.0
    %4921 = vmatpush.msra.mxu0 0.0
    %4922 = vmatpush.msra.mxu0 0.0
    %4923 = vmatpush.msra.mxu0 0.0
    %4924 = vmatpush.msra.mxu0 0.0
    %4925 = vmatpush.msra.mxu0 0.0
    %4926 = vmatpush.msra.mxu0 0.0
    %4927 = vmatpush.msra.mxu0 %v4907
    %4928 = vmatmul.f32.gmra.mxu0 %v4910
    %v4929 = vpop.f32.mrf.mxu0
    %v4930 = vadd.f32 0.0, %v4929
    %4931 = vdwg.mxu0
    %v4932 = vpack.c.bf16 %v4930, %v4930
    %v4934 = vsel %vm154, %v4932, 0
    %v4937 = vsel %vm288, %v4576, 0
    %4939 = vmatpush.bf16.msra.mxu0 0
    %4940 = vmatpush.bf16.msra.mxu0 0
    %4941 = vmatpush.bf16.msra.mxu0 0
    %4942 = vmatpush.bf16.msra.mxu0 0
    %4943 = vmatpush.bf16.msra.mxu0 0
    %4944 = vmatpush.bf16.msra.mxu0 0
    %4945 = vmatpush.bf16.msra.mxu0 0
    %4946 = vmatpush.bf16.msra.mxu0 %v4937
    %4947 = vmatmul.bf16.gmra.mxu0 %v4934
    %v4948 = vpop.f32.mrf.mxu0
    %v4949 = vadd.f32 0.0, %v4948
    %v4950 = vpop.f32.mrf.mxu0
    %4951 = vdwg.mxu0
    %v4952 = vadd.f32 %v4865, %v4949
    %v4953 = vperm.slane %v4577, 0
    %v4954 = vadd.f32 %v4952, %v4953
    %v4955 = vadd.f32 %v4567, %v4954
    %v4956 = vld [vmem:[#allocation7 + $0x30] sm:$0x1]
    %v4957 = vld [vmem:[#allocation7 + $0x31] sm:$0x1]
    %v4958 = vsel %vm134, %v4955, 0.0
    %4959 = vadd.xlane.f32.xlu0 %v4958
    %v4960 = vpop.xlane.xlu0 %4959
    %v4961 = vmul.f32 %v4960, %v512
    %v4962 = vsub.f32 %v4955, %v4961
    %v4963 = vmul.f32 %v4962, %v4962
    %v4964 = vsel %vm134, %v4963, 0.0
    %4965 = vadd.xlane.f32.xlu0 %v4964
    %v4966 = vpop.xlane.xlu0 %4965
    %v4967 = vmul.f32 %v4966, %v512
    %v4968 = vadd.f32 %v4967, 1e-05
    %v4969 = vrsqrt.pop %v4968
    %v4970 = vmul.f32 %v4969, %v4968
    %v4971 = vmul.f32 %v4970, %v4969
    %v4972 = vmul.f32 0.5, %v4971
    %v4973 = vsub.f32 1.5, %v4972
    %v4974 = vmul.f32 %v4969, %v4973
    %vm4975 = vweird.f32 %v4968
    %vm4976 = vweird.f32 %v4969
    %vm4977 = vmor %vm4975, %vm4976
    %v4978 = vsel %vm4977, %v4969, %v4974
    %v4979 = vmul.f32 %v4962, %v4978
    %v4980 = vperm.slane %v4956, 0
    %v4981 = vmul.f32 %v4979, %v4980
    %v4982 = vperm.slane %v4957, 0
    %v4983 = vadd.f32 %v4981, %v4982
    %v4984 = vld [vmem:[#allocation5 + $0x1ac] sm:$0xf]
    %v4985 = vld [vmem:[#allocation5 + $0x3e4] sm:$0xf]
    %v4986 = vld [vmem:[#allocation5 + $0x61c] sm:$0xf]
    %v4987 = vld [vmem:[#allocation5 + $0x854] sm:$0xf]
    %v4988 = vld [vmem:[#allocation7 + $0x32] sm:$0x1]
    %v4989 = vld [vmem:[#allocation5 + $0x1b0] sm:$0xf]
    %v4990 = vld [vmem:[#allocation5 + $0x3e8] sm:$0xf]
    %v4991 = vld [vmem:[#allocation5 + $0x620] sm:$0xf]
    %v4992 = vld [vmem:[#allocation5 + $0x858] sm:$0xf]
    %v4993 = vld [vmem:[#allocation7 + $0x33] sm:$0x1]
    %v4994 = vld [vmem:[#allocation5 + $0x1b4] sm:$0xf]
    %v4995 = vld [vmem:[#allocation5 + $0x3ec] sm:$0xf]
    %v4996 = vld [vmem:[#allocation5 + $0x624] sm:$0xf]
    %v4997 = vld [vmem:[#allocation5 + $0x85c] sm:$0xf]
    %v4998 = vld [vmem:[#allocation7 + $0x34] sm:$0x1]
    %v4999 = vpack.c.bf16 %v4983, %v4983
    %v5000 = vperm.slane %v4988, 0
    %v5005 = vunpack.c.l.b16 %v4984
    %v5006 = vunpack.c.l.b16 %v4985
    %v5007 = vunpack.c.l.b16 %v4986
    %v5008 = vunpack.c.l.b16 %v4987
    %v5009 = vpack.c.b16 %v5006, %v5005
    %v5010 = vpack.c.b16 %v5008, %v5007
    %v5014 = vsel %vm134, %v4999, 0
    %5016 = vmatpush.bf16.msra.mxu0 0
    %5017 = vmatpush.bf16.msra.mxu0 0
    %5018 = vmatpush.bf16.msra.mxu0 0
    %5019 = vmatpush.bf16.msra.mxu0 0
    %5020 = vmatpush.bf16.msra.mxu0 0
    %5021 = vmatpush.bf16.msra.mxu0 0
    %5022 = vmatpush.bf16.msra.mxu0 %v5010
    %5023 = vmatpush.bf16.msra.mxu0 %v5009
    %5024 = vmatmul.bf16.gmra.mxu0 %v5014
    %v5025 = vpop.f32.mrf.mxu0
    %v5026 = vadd.f32 %v5000, %v5025
    %v5027 = vpop.f32.mrf.mxu0
    %5028 = vdwg.mxu0
    %v5029 = vperm.slane %v4993, 0
    %v5034 = vunpack.c.l.b16 %v4989
    %v5035 = vunpack.c.l.b16 %v4990
    %v5036 = vunpack.c.l.b16 %v4991
    %v5037 = vunpack.c.l.b16 %v4992
    %v5038 = vpack.c.b16 %v5035, %v5034
    %v5039 = vpack.c.b16 %v5037, %v5036
    %5042 = vmatpush.bf16.msra.mxu0 0
    %5043 = vmatpush.bf16.msra.mxu0 0
    %5044 = vmatpush.bf16.msra.mxu0 0
    %5045 = vmatpush.bf16.msra.mxu0 0
    %5046 = vmatpush.bf16.msra.mxu0 0
    %5047 = vmatpush.bf16.msra.mxu0 0
    %5048 = vmatpush.bf16.msra.mxu0 %v5039
    %5049 = vmatpush.bf16.msra.mxu0 %v5038
    %5050 = vmatmul.bf16.gmra.mxu0 %v3269
    %v5051 = vpop.f32.mrf.mxu0
    %v5052 = vadd.f32 %v5029, %v5051
    %v5053 = vpop.f32.mrf.mxu0
    %5054 = vdwg.mxu0
    %v5056 = vsel %vm154, %v5026, 0
    %v5059 = vsel %vm154, %v5052, 0
    %5061 = vmatpush.xpose.msra.mxu0 0.0
    %5062 = vmatpush.xpose.msra.mxu0 0.0
    %5063 = vmatpush.xpose.msra.mxu0 0.0
    %5064 = vmatpush.xpose.msra.mxu0 0.0
    %5065 = vmatpush.xpose.msra.mxu0 0.0
    %5066 = vmatpush.xpose.msra.mxu0 0.0
    %5067 = vmatpush.xpose.msra.mxu0 0.0
    %5068 = vmatpush.xpose.msra.mxu0 0.0
    %5069 = vmatpush.xpose.msra.mxu0 0.0
    %5070 = vmatpush.xpose.msra.mxu0 0.0
    %5071 = vmatpush.xpose.msra.mxu0 0.0
    %5072 = vmatpush.xpose.msra.mxu0 0.0
    %5073 = vmatpush.xpose.msra.mxu0 0.0
    %5074 = vmatpush.xpose.msra.mxu0 0.0
    %5075 = vmatpush.xpose.msra.mxu0 0.0
    %5076 = vmatpush.xpose.msra.mxu0 %v5059
    %5077 = vmatmul.f32.gmra.mxu0 %v5056
    %v5078 = vpop.f32.mrf.mxu0
    %v5079 = vadd.f32 0.0, %v5078
    %5080 = vdwg.mxu0
    %v5081 = vmul.f32 %v5079, 0.35355338
    %v5082 = vsel %vm154, %v5081, -inf
    %5083 = vmax.xlane.f32.xlu0 %v5082
    %v5084 = vpop.xlane.xlu0 %5083
    %v5085 = vsub.f32 %v5081, %v5084
    %v5086 = vmul.f32 %v5085, 1.442695
    %v5087 = vpow.pop %v5086
    %v5088 = vsel %vm154, %v5087, 0.0
    %5089 = vadd.xlane.f32.xlu0 %v5088
    %v5090 = vpop.xlane.xlu0 %5089
    %v5091 = vrcp.pop %v5090
    %v5092 = vmul.f32 %v5087, %v5091
    %5093 = vrot.lane.b32.xlu0 %v5052, 96
    %v5094 = vpop.permute.xlu0 %5093
    %v5097 = vsel %vm154, %v5092, 0
    %5099 = vmatpush.msra.mxu0 0.0
    %5100 = vmatpush.msra.mxu0 0.0
    %5101 = vmatpush.msra.mxu0 0.0
    %5102 = vmatpush.msra.mxu0 0.0
    %5103 = vmatpush.msra.mxu0 0.0
    %5104 = vmatpush.msra.mxu0 0.0
    %5105 = vmatpush.msra.mxu0 0.0
    %5106 = vmatpush.msra.mxu0 0.0
    %5107 = vmatpush.msra.mxu0 0.0
    %5108 = vmatpush.msra.mxu0 0.0
    %5109 = vmatpush.msra.mxu0 0.0
    %5110 = vmatpush.msra.mxu0 0.0
    %5111 = vmatpush.msra.mxu0 0.0
    %5112 = vmatpush.msra.mxu0 0.0
    %5113 = vmatpush.msra.mxu0 0.0
    %5114 = vmatpush.msra.mxu0 %v5094
    %5115 = vmatmul.f32.gmra.mxu0 %v5097
    %v5116 = vpop.f32.mrf.mxu0
    %v5117 = vadd.f32 0.0, %v5116
    %5118 = vdwg.mxu0
    %v5119 = vpack.c.bf16 %v5117, %v5117
    %5120 = vrot.lane.b32.xlu0 %v5026, 120
    %v5121 = vpop.permute.xlu0 %5120
    %5122 = vrot.lane.b32.xlu0 %v5052, 120
    %v5123 = vpop.permute.xlu0 %5122
    %v5124 = vsel %vm154, %v5121, 0
    %v5126 = vsel %vm154, %v5123, 0
    %5128 = vmatpush.xpose.msra.mxu0 0.0
    %5129 = vmatpush.xpose.msra.mxu0 0.0
    %5130 = vmatpush.xpose.msra.mxu0 0.0
    %5131 = vmatpush.xpose.msra.mxu0 0.0
    %5132 = vmatpush.xpose.msra.mxu0 0.0
    %5133 = vmatpush.xpose.msra.mxu0 0.0
    %5134 = vmatpush.xpose.msra.mxu0 0.0
    %5135 = vmatpush.xpose.msra.mxu0 0.0
    %5136 = vmatpush.xpose.msra.mxu0 0.0
    %5137 = vmatpush.xpose.msra.mxu0 0.0
    %5138 = vmatpush.xpose.msra.mxu0 0.0
    %5139 = vmatpush.xpose.msra.mxu0 0.0
    %5140 = vmatpush.xpose.msra.mxu0 0.0
    %5141 = vmatpush.xpose.msra.mxu0 0.0
    %5142 = vmatpush.xpose.msra.mxu0 0.0
    %5143 = vmatpush.xpose.msra.mxu0 %v5126
    %5144 = vmatmul.f32.gmra.mxu0 %v5124
    %v5145 = vpop.f32.mrf.mxu0
    %v5146 = vadd.f32 0.0, %v5145
    %5147 = vdwg.mxu0
    %v5148 = vmul.f32 %v5146, 0.35355338
    %v5149 = vsel %vm154, %v5148, -inf
    %5150 = vmax.xlane.f32.xlu0 %v5149
    %v5151 = vpop.xlane.xlu0 %5150
    %v5152 = vsub.f32 %v5148, %v5151
    %v5153 = vmul.f32 %v5152, 1.442695
    %v5154 = vpow.pop %v5153
    %v5155 = vsel %vm154, %v5154, 0.0
    %5156 = vadd.xlane.f32.xlu0 %v5155
    %v5157 = vpop.xlane.xlu0 %5156
    %v5158 = vrcp.pop %v5157
    %v5159 = vmul.f32 %v5154, %v5158
    %5160 = vrot.lane.b32.xlu0 %v5052, 88
    %v5161 = vpop.permute.xlu0 %5160
    %v5164 = vsel %vm154, %v5159, 0
    %5166 = vmatpush.msra.mxu0 0.0
    %5167 = vmatpush.msra.mxu0 0.0
    %5168 = vmatpush.msra.mxu0 0.0
    %5169 = vmatpush.msra.mxu0 0.0
    %5170 = vmatpush.msra.mxu0 0.0
    %5171 = vmatpush.msra.mxu0 0.0
    %5172 = vmatpush.msra.mxu0 0.0
    %5173 = vmatpush.msra.mxu0 0.0
    %5174 = vmatpush.msra.mxu0 0.0
    %5175 = vmatpush.msra.mxu0 0.0
    %5176 = vmatpush.msra.mxu0 0.0
    %5177 = vmatpush.msra.mxu0 0.0
    %5178 = vmatpush.msra.mxu0 0.0
    %5179 = vmatpush.msra.mxu0 0.0
    %5180 = vmatpush.msra.mxu0 0.0
    %5181 = vmatpush.msra.mxu0 %v5161
    %5182 = vmatmul.f32.gmra.mxu0 %v5164
    %v5183 = vpop.f32.mrf.mxu0
    %v5184 = vadd.f32 0.0, %v5183
    %5185 = vdwg.mxu0
    %v5186 = vpack.c.bf16 %v5184, %v5184
    %v5188 = vsel %vm154, %v5186, 0
    %v5191 = vsel %vm288, %v4995, 0
    %5193 = vmatpush.bf16.msra.mxu0 0
    %5194 = vmatpush.bf16.msra.mxu0 0
    %5195 = vmatpush.bf16.msra.mxu0 0
    %5196 = vmatpush.bf16.msra.mxu0 0
    %5197 = vmatpush.bf16.msra.mxu0 0
    %5198 = vmatpush.bf16.msra.mxu0 0
    %5199 = vmatpush.bf16.msra.mxu0 0
    %5200 = vmatpush.bf16.msra.mxu0 %v5191
    %5201 = vmatmul.bf16.gmra.mxu0 %v5188
    %v5202 = vpop.f32.mrf.mxu0
    %v5203 = vadd.f32 0.0, %v5202
    %v5204 = vpop.f32.mrf.mxu0
    %5205 = vdwg.mxu0
    %v5207 = vsel %vm154, %v5119, 0
    %v5210 = vsel %vm288, %v4994, 0
    %5212 = vmatpush.bf16.msra.mxu0 0
    %5213 = vmatpush.bf16.msra.mxu0 0
    %5214 = vmatpush.bf16.msra.mxu0 0
    %5215 = vmatpush.bf16.msra.mxu0 0
    %5216 = vmatpush.bf16.msra.mxu0 0
    %5217 = vmatpush.bf16.msra.mxu0 0
    %5218 = vmatpush.bf16.msra.mxu0 0
    %5219 = vmatpush.bf16.msra.mxu0 %v5210
    %5220 = vmatmul.bf16.gmra.mxu0 %v5207
    %v5221 = vpop.f32.mrf.mxu0
    %v5222 = vadd.f32 %v5203, %v5221
    %v5223 = vpop.f32.mrf.mxu0
    %5224 = vdwg.mxu0
    %5225 = vrot.lane.b32.xlu0 %v5026, 112
    %v5226 = vpop.permute.xlu0 %5225
    %5227 = vrot.lane.b32.xlu0 %v5052, 112
    %v5228 = vpop.permute.xlu0 %5227
    %v5229 = vsel %vm154, %v5226, 0
    %v5231 = vsel %vm154, %v5228, 0
    %5233 = vmatpush.xpose.msra.mxu0 0.0
    %5234 = vmatpush.xpose.msra.mxu0 0.0
    %5235 = vmatpush.xpose.msra.mxu0 0.0
    %5236 = vmatpush.xpose.msra.mxu0 0.0
    %5237 = vmatpush.xpose.msra.mxu0 0.0
    %5238 = vmatpush.xpose.msra.mxu0 0.0
    %5239 = vmatpush.xpose.msra.mxu0 0.0
    %5240 = vmatpush.xpose.msra.mxu0 0.0
    %5241 = vmatpush.xpose.msra.mxu0 0.0
    %5242 = vmatpush.xpose.msra.mxu0 0.0
    %5243 = vmatpush.xpose.msra.mxu0 0.0
    %5244 = vmatpush.xpose.msra.mxu0 0.0
    %5245 = vmatpush.xpose.msra.mxu0 0.0
    %5246 = vmatpush.xpose.msra.mxu0 0.0
    %5247 = vmatpush.xpose.msra.mxu0 0.0
    %5248 = vmatpush.xpose.msra.mxu0 %v5231
    %5249 = vmatmul.f32.gmra.mxu0 %v5229
    %v5250 = vpop.f32.mrf.mxu0
    %v5251 = vadd.f32 0.0, %v5250
    %5252 = vdwg.mxu0
    %v5253 = vmul.f32 %v5251, 0.35355338
    %v5254 = vsel %vm154, %v5253, -inf
    %5255 = vmax.xlane.f32.xlu0 %v5254
    %v5256 = vpop.xlane.xlu0 %5255
    %v5257 = vsub.f32 %v5253, %v5256
    %v5258 = vmul.f32 %v5257, 1.442695
    %v5259 = vpow.pop %v5258
    %v5260 = vsel %vm154, %v5259, 0.0
    %5261 = vadd.xlane.f32.xlu0 %v5260
    %v5262 = vpop.xlane.xlu0 %5261
    %v5263 = vrcp.pop %v5262
    %v5264 = vmul.f32 %v5259, %v5263
    %5265 = vrot.lane.b32.xlu0 %v5052, 80
    %v5266 = vpop.permute.xlu0 %5265
    %v5269 = vsel %vm154, %v5264, 0
    %5271 = vmatpush.msra.mxu0 0.0
    %5272 = vmatpush.msra.mxu0 0.0
    %5273 = vmatpush.msra.mxu0 0.0
    %5274 = vmatpush.msra.mxu0 0.0
    %5275 = vmatpush.msra.mxu0 0.0
    %5276 = vmatpush.msra.mxu0 0.0
    %5277 = vmatpush.msra.mxu0 0.0
    %5278 = vmatpush.msra.mxu0 0.0
    %5279 = vmatpush.msra.mxu0 0.0
    %5280 = vmatpush.msra.mxu0 0.0
    %5281 = vmatpush.msra.mxu0 0.0
    %5282 = vmatpush.msra.mxu0 0.0
    %5283 = vmatpush.msra.mxu0 0.0
    %5284 = vmatpush.msra.mxu0 0.0
    %5285 = vmatpush.msra.mxu0 0.0
    %5286 = vmatpush.msra.mxu0 %v5266
    %5287 = vmatmul.f32.gmra.mxu0 %v5269
    %v5288 = vpop.f32.mrf.mxu0
    %v5289 = vadd.f32 0.0, %v5288
    %5290 = vdwg.mxu0
    %v5291 = vpack.c.bf16 %v5289, %v5289
    %v5293 = vsel %vm154, %v5291, 0
    %v5296 = vsel %vm288, %v4996, 0
    %5298 = vmatpush.bf16.msra.mxu0 0
    %5299 = vmatpush.bf16.msra.mxu0 0
    %5300 = vmatpush.bf16.msra.mxu0 0
    %5301 = vmatpush.bf16.msra.mxu0 0
    %5302 = vmatpush.bf16.msra.mxu0 0
    %5303 = vmatpush.bf16.msra.mxu0 0
    %5304 = vmatpush.bf16.msra.mxu0 0
    %5305 = vmatpush.bf16.msra.mxu0 %v5296
    %5306 = vmatmul.bf16.gmra.mxu0 %v5293
    %v5307 = vpop.f32.mrf.mxu0
    %v5308 = vadd.f32 0.0, %v5307
    %v5309 = vpop.f32.mrf.mxu0
    %5310 = vdwg.mxu0
    %v5311 = vadd.f32 %v5222, %v5308
    %5312 = vrot.lane.b32.xlu0 %v5026, 104
    %v5313 = vpop.permute.xlu0 %5312
    %5314 = vrot.lane.b32.xlu0 %v5052, 104
    %v5315 = vpop.permute.xlu0 %5314
    %v5316 = vsel %vm154, %v5313, 0
    %v5318 = vsel %vm154, %v5315, 0
    %5320 = vmatpush.xpose.msra.mxu0 0.0
    %5321 = vmatpush.xpose.msra.mxu0 0.0
    %5322 = vmatpush.xpose.msra.mxu0 0.0
    %5323 = vmatpush.xpose.msra.mxu0 0.0
    %5324 = vmatpush.xpose.msra.mxu0 0.0
    %5325 = vmatpush.xpose.msra.mxu0 0.0
    %5326 = vmatpush.xpose.msra.mxu0 0.0
    %5327 = vmatpush.xpose.msra.mxu0 0.0
    %5328 = vmatpush.xpose.msra.mxu0 0.0
    %5329 = vmatpush.xpose.msra.mxu0 0.0
    %5330 = vmatpush.xpose.msra.mxu0 0.0
    %5331 = vmatpush.xpose.msra.mxu0 0.0
    %5332 = vmatpush.xpose.msra.mxu0 0.0
    %5333 = vmatpush.xpose.msra.mxu0 0.0
    %5334 = vmatpush.xpose.msra.mxu0 0.0
    %5335 = vmatpush.xpose.msra.mxu0 %v5318
    %5336 = vmatmul.f32.gmra.mxu0 %v5316
    %v5337 = vpop.f32.mrf.mxu0
    %v5338 = vadd.f32 0.0, %v5337
    %5339 = vdwg.mxu0
    %v5340 = vmul.f32 %v5338, 0.35355338
    %v5341 = vsel %vm154, %v5340, -inf
    %5342 = vmax.xlane.f32.xlu0 %v5341
    %v5343 = vpop.xlane.xlu0 %5342
    %v5344 = vsub.f32 %v5340, %v5343
    %v5345 = vmul.f32 %v5344, 1.442695
    %v5346 = vpow.pop %v5345
    %v5347 = vsel %vm154, %v5346, 0.0
    %5348 = vadd.xlane.f32.xlu0 %v5347
    %v5349 = vpop.xlane.xlu0 %5348
    %v5350 = vrcp.pop %v5349
    %v5351 = vmul.f32 %v5346, %v5350
    %5352 = vrot.lane.b32.xlu0 %v5052, 72
    %v5353 = vpop.permute.xlu0 %5352
    %v5356 = vsel %vm154, %v5351, 0
    %5358 = vmatpush.msra.mxu0 0.0
    %5359 = vmatpush.msra.mxu0 0.0
    %5360 = vmatpush.msra.mxu0 0.0
    %5361 = vmatpush.msra.mxu0 0.0
    %5362 = vmatpush.msra.mxu0 0.0
    %5363 = vmatpush.msra.mxu0 0.0
    %5364 = vmatpush.msra.mxu0 0.0
    %5365 = vmatpush.msra.mxu0 0.0
    %5366 = vmatpush.msra.mxu0 0.0
    %5367 = vmatpush.msra.mxu0 0.0
    %5368 = vmatpush.msra.mxu0 0.0
    %5369 = vmatpush.msra.mxu0 0.0
    %5370 = vmatpush.msra.mxu0 0.0
    %5371 = vmatpush.msra.mxu0 0.0
    %5372 = vmatpush.msra.mxu0 0.0
    %5373 = vmatpush.msra.mxu0 %v5353
    %5374 = vmatmul.f32.gmra.mxu0 %v5356
    %v5375 = vpop.f32.mrf.mxu0
    %v5376 = vadd.f32 0.0, %v5375
    %5377 = vdwg.mxu0
    %v5378 = vpack.c.bf16 %v5376, %v5376
    %v5380 = vsel %vm154, %v5378, 0
    %v5383 = vsel %vm288, %v4997, 0
    %5385 = vmatpush.bf16.msra.mxu0 0
    %5386 = vmatpush.bf16.msra.mxu0 0
    %5387 = vmatpush.bf16.msra.mxu0 0
    %5388 = vmatpush.bf16.msra.mxu0 0
    %5389 = vmatpush.bf16.msra.mxu0 0
    %5390 = vmatpush.bf16.msra.mxu0 0
    %5391 = vmatpush.bf16.msra.mxu0 0
    %5392 = vmatpush.bf16.msra.mxu0 %v5383
    %5393 = vmatmul.bf16.gmra.mxu0 %v5380
    %v5394 = vpop.f32.mrf.mxu0
    %v5395 = vadd.f32 0.0, %v5394
    %v5396 = vpop.f32.mrf.mxu0
    %5397 = vdwg.mxu0
    %v5398 = vadd.f32 %v5311, %v5395
    %v5399 = vperm.slane %v4998, 0
    %v5400 = vadd.f32 %v5398, %v5399
    %v5401 = vadd.f32 %v4983, %v5400
    %v5402 = vld [vmem:[#allocation7 + $0x35] sm:$0x1]
    %v5403 = vld [vmem:[#allocation7 + $0x36] sm:$0x1]
    %v5404 = vsel %vm134, %v5401, 0.0
    %5405 = vadd.xlane.f32.xlu0 %v5404
    %v5406 = vpop.xlane.xlu0 %5405
    %v5407 = vmul.f32 %v5406, %v512
    %v5408 = vsub.f32 %v5401, %v5407
    %v5409 = vmul.f32 %v5408, %v5408
    %v5410 = vsel %vm134, %v5409, 0.0
    %5411 = vadd.xlane.f32.xlu0 %v5410
    %v5412 = vpop.xlane.xlu0 %5411
    %v5413 = vmul.f32 %v5412, %v512
    %v5414 = vadd.f32 %v5413, 1e-05
    %v5415 = vrsqrt.pop %v5414
    %v5416 = vmul.f32 %v5415, %v5414
    %v5417 = vmul.f32 %v5416, %v5415
    %v5418 = vmul.f32 0.5, %v5417
    %v5419 = vsub.f32 1.5, %v5418
    %v5420 = vmul.f32 %v5415, %v5419
    %vm5421 = vweird.f32 %v5414
    %vm5422 = vweird.f32 %v5415
    %vm5423 = vmor %vm5421, %vm5422
    %v5424 = vsel %vm5423, %v5415, %v5420
    %v5425 = vmul.f32 %v5408, %v5424
    %v5426 = vperm.slane %v5402, 0
    %v5427 = vmul.f32 %v5425, %v5426
    %v5428 = vperm.slane %v5403, 0
    %v5429 = vadd.f32 %v5427, %v5428
    %v5430 = vld [vmem:[#allocation5 + $0x1b8] sm:$0xff]
    %v5431 = vld [vmem:[#allocation5 + $0x1c0] sm:$0xff]
    %v5432 = vld [vmem:[#allocation5 + $0x1c8] sm:$0xff]
    %v5433 = vld [vmem:[#allocation5 + $0x1d0] sm:$0xff]
    %v5434 = vld [vmem:[#allocation5 + $0x1d8] sm:$0xff]
    %v5435 = vld [vmem:[#allocation5 + $0x1e0] sm:$0xff]
    %v5436 = vld [vmem:[#allocation5 + $0x1e8] sm:$0xff]
    %v5437 = vld [vmem:[#allocation5 + $0x1f0] sm:$0xff]
    %v5438 = vld [vmem:[#allocation5 + $0x3f0] sm:$0xff]
    %v5439 = vld [vmem:[#allocation5 + $0x3f8] sm:$0xff]
    %v5440 = vld [vmem:[#allocation5 + $0x400] sm:$0xff]
    %v5441 = vld [vmem:[#allocation5 + $0x408] sm:$0xff]
    %v5442 = vld [vmem:[#allocation5 + $0x410] sm:$0xff]
    %v5443 = vld [vmem:[#allocation5 + $0x418] sm:$0xff]
    %v5444 = vld [vmem:[#allocation5 + $0x420] sm:$0xff]
    %v5445 = vld [vmem:[#allocation5 + $0x428] sm:$0xff]
    %v5446 = vld [vmem:[#allocation5 + $0x628] sm:$0xff]
    %v5447 = vld [vmem:[#allocation5 + $0x630] sm:$0xff]
    %v5448 = vld [vmem:[#allocation5 + $0x638] sm:$0xff]
    %v5449 = vld [vmem:[#allocation5 + $0x640] sm:$0xff]
    %v5450 = vld [vmem:[#allocation5 + $0x648] sm:$0xff]
    %v5451 = vld [vmem:[#allocation5 + $0x650] sm:$0xff]
    %v5452 = vld [vmem:[#allocation5 + $0x658] sm:$0xff]
    %v5453 = vld [vmem:[#allocation5 + $0x660] sm:$0xff]
    %v5454 = vld [vmem:[#allocation5 + $0x860] sm:$0xff]
    %v5455 = vld [vmem:[#allocation5 + $0x868] sm:$0xff]
    %v5456 = vld [vmem:[#allocation5 + $0x870] sm:$0xff]
    %v5457 = vld [vmem:[#allocation5 + $0x878] sm:$0xff]
    %v5458 = vld [vmem:[#allocation5 + $0x880] sm:$0xff]
    %v5459 = vld [vmem:[#allocation5 + $0x888] sm:$0xff]
    %v5460 = vld [vmem:[#allocation5 + $0x890] sm:$0xff]
    %v5461 = vld [vmem:[#allocation5 + $0x898] sm:$0xff]
    %s5462 = scalar_lea.vmem [#allocation8], 3
    %v5463 = vld [vmem:[%s5462] ss:$8 sm:$0xf]
    %v5464 = vld [vmem:[%s5462] ss:$8 sm:$0xf0]
    %v5465 = vor.u32 %v5463, %v5464
    %s5466 = scalar_lea.vmem [#allocation8], 67
    %v5467 = vld [vmem:[%s5466] ss:$8 sm:$0xf]
    %v5468 = vld [vmem:[%s5466] ss:$8 sm:$0xf0]
    %v5469 = vor.u32 %v5467, %v5468
    %v5470 = vld [vmem:[#allocation5 + $0x1f8] sm:$0xff]
    %v5471 = vld [vmem:[#allocation5 + $0x200] sm:$0xff]
    %v5472 = vld [vmem:[#allocation5 + $0x208] sm:$0xff]
    %v5473 = vld [vmem:[#allocation5 + $0x210] sm:$0xff]
    %v5474 = vld [vmem:[#allocation5 + $0x218] sm:$0xff]
    %v5475 = vld [vmem:[#allocation5 + $0x220] sm:$0xff]
    %v5476 = vld [vmem:[#allocation5 + $0x228] sm:$0xff]
    %v5477 = vld [vmem:[#allocation5 + $0x230] sm:$0xff]
    %v5478 = vld [vmem:[#allocation5 + $0x430] sm:$0xff]
    %v5479 = vld [vmem:[#allocation5 + $0x438] sm:$0xff]
    %v5480 = vld [vmem:[#allocation5 + $0x440] sm:$0xff]
    %v5481 = vld [vmem:[#allocation5 + $0x448] sm:$0xff]
    %v5482 = vld [vmem:[#allocation5 + $0x450] sm:$0xff]
    %v5483 = vld [vmem:[#allocation5 + $0x458] sm:$0xff]
    %v5484 = vld [vmem:[#allocation5 + $0x460] sm:$0xff]
    %v5485 = vld [vmem:[#allocation5 + $0x468] sm:$0xff]
    %v5486 = vld [vmem:[#allocation5 + $0x668] sm:$0xff]
    %v5487 = vld [vmem:[#allocation5 + $0x670] sm:$0xff]
    %v5488 = vld [vmem:[#allocation5 + $0x678] sm:$0xff]
    %v5489 = vld [vmem:[#allocation5 + $0x680] sm:$0xff]
    %v5490 = vld [vmem:[#allocation5 + $0x688] sm:$0xff]
    %v5491 = vld [vmem:[#allocation5 + $0x690] sm:$0xff]
    %v5492 = vld [vmem:[#allocation5 + $0x698] sm:$0xff]
    %v5493 = vld [vmem:[#allocation5 + $0x6a0] sm:$0xff]
    %v5494 = vld [vmem:[#allocation5 + $0x8a0] sm:$0xff]
    %v5495 = vld [vmem:[#allocation5 + $0x8a8] sm:$0xff]
    %v5496 = vld [vmem:[#allocation5 + $0x8b0] sm:$0xff]
    %v5497 = vld [vmem:[#allocation5 + $0x8b8] sm:$0xff]
    %v5498 = vld [vmem:[#allocation5 + $0x8c0] sm:$0xff]
    %v5499 = vld [vmem:[#allocation5 + $0x8c8] sm:$0xff]
    %v5500 = vld [vmem:[#allocation5 + $0x8d0] sm:$0xff]
    %v5501 = vld [vmem:[#allocation5 + $0x8d8] sm:$0xff]
    %v5502 = vld [vmem:[#allocation7 + $0x37] sm:$0x1]
    %v5503 = vpack.c.bf16 %v5429, %v5429
    %v5506 = vperm.slane %v5465, 0
    %v5507 = vperm.slane %v5465, 1
    %v5508 = vperm.slane %v5465, 2
    %v5509 = vperm.slane %v5465, 3
    %v5510 = vperm.slane %v5465, 4
    %v5511 = vperm.slane %v5465, 5
    %v5512 = vperm.slane %v5465, 6
    %v5513 = vperm.slane %v5465, 7
    %v5514 = vperm.slane %v5469, 0
    %v5515 = vperm.slane %v5469, 1
    %v5516 = vperm.slane %v5469, 2
    %v5517 = vperm.slane %v5469, 3
    %v5518 = vperm.slane %v5469, 4
    %v5519 = vperm.slane %v5469, 5
    %v5520 = vperm.slane %v5469, 6
    %v5521 = vperm.slane %v5469, 7
    %v5570 = vunpack.c.l.b16 %v5430
    %v5571 = vunpack.c.h.b16 %v5430
    %v5572 = vunpack.c.l.b16 %v5431
    %v5573 = vunpack.c.h.b16 %v5431
    %v5574 = vunpack.c.l.b16 %v5432
    %v5575 = vunpack.c.h.b16 %v5432
    %v5576 = vunpack.c.l.b16 %v5433
    %v5577 = vunpack.c.h.b16 %v5433
    %v5578 = vunpack.c.l.b16 %v5434
    %v5579 = vunpack.c.h.b16 %v5434
    %v5580 = vunpack.c.l.b16 %v5435
    %v5581 = vunpack.c.h.b16 %v5435
    %v5582 = vunpack.c.l.b16 %v5436
    %v5583 = vunpack.c.h.b16 %v5436
    %v5584 = vunpack.c.l.b16 %v5437
    %v5585 = vunpack.c.h.b16 %v5437
    %v5586 = vunpack.c.l.b16 %v5438
    %v5587 = vunpack.c.h.b16 %v5438
    %v5588 = vunpack.c.l.b16 %v5439
    %v5589 = vunpack.c.h.b16 %v5439
    %v5590 = vunpack.c.l.b16 %v5440
    %v5591 = vunpack.c.h.b16 %v5440
    %v5592 = vunpack.c.l.b16 %v5441
    %v5593 = vunpack.c.h.b16 %v5441
    %v5594 = vunpack.c.l.b16 %v5442
    %v5595 = vunpack.c.h.b16 %v5442
    %v5596 = vunpack.c.l.b16 %v5443
    %v5597 = vunpack.c.h.b16 %v5443
    %v5598 = vunpack.c.l.b16 %v5444
    %v5599 = vunpack.c.h.b16 %v5444
    %v5600 = vunpack.c.l.b16 %v5445
    %v5601 = vunpack.c.h.b16 %v5445
    %v5602 = vunpack.c.l.b16 %v5446
    %v5603 = vunpack.c.h.b16 %v5446
    %v5604 = vunpack.c.l.b16 %v5447
    %v5605 = vunpack.c.h.b16 %v5447
    %v5606 = vunpack.c.l.b16 %v5448
    %v5607 = vunpack.c.h.b16 %v5448
    %v5608 = vunpack.c.l.b16 %v5449
    %v5609 = vunpack.c.h.b16 %v5449
    %v5610 = vunpack.c.l.b16 %v5450
    %v5611 = vunpack.c.h.b16 %v5450
    %v5612 = vunpack.c.l.b16 %v5451
    %v5613 = vunpack.c.h.b16 %v5451
    %v5614 = vunpack.c.l.b16 %v5452
    %v5615 = vunpack.c.h.b16 %v5452
    %v5616 = vunpack.c.l.b16 %v5453
    %v5617 = vunpack.c.h.b16 %v5453
    %v5618 = vunpack.c.l.b16 %v5454
    %v5619 = vunpack.c.h.b16 %v5454
    %v5620 = vunpack.c.l.b16 %v5455
    %v5621 = vunpack.c.h.b16 %v5455
    %v5622 = vunpack.c.l.b16 %v5456
    %v5623 = vunpack.c.h.b16 %v5456
    %v5624 = vunpack.c.l.b16 %v5457
    %v5625 = vunpack.c.h.b16 %v5457
    %v5626 = vunpack.c.l.b16 %v5458
    %v5627 = vunpack.c.h.b16 %v5458
    %v5628 = vunpack.c.l.b16 %v5459
    %v5629 = vunpack.c.h.b16 %v5459
    %v5630 = vunpack.c.l.b16 %v5460
    %v5631 = vunpack.c.h.b16 %v5460
    %v5632 = vunpack.c.l.b16 %v5461
    %v5633 = vunpack.c.h.b16 %v5461
    %v5634 = vpack.c.b16 %v5586, %v5570
    %v5635 = vpack.c.b16 %v5587, %v5571
    %v5636 = vpack.c.b16 %v5588, %v5572
    %v5637 = vpack.c.b16 %v5589, %v5573
    %v5638 = vpack.c.b16 %v5590, %v5574
    %v5639 = vpack.c.b16 %v5591, %v5575
    %v5640 = vpack.c.b16 %v5592, %v5576
    %v5641 = vpack.c.b16 %v5593, %v5577
    %v5642 = vpack.c.b16 %v5594, %v5578
    %v5643 = vpack.c.b16 %v5595, %v5579
    %v5644 = vpack.c.b16 %v5596, %v5580
    %v5645 = vpack.c.b16 %v5597, %v5581
    %v5646 = vpack.c.b16 %v5598, %v5582
    %v5647 = vpack.c.b16 %v5599, %v5583
    %v5648 = vpack.c.b16 %v5600, %v5584
    %v5649 = vpack.c.b16 %v5601, %v5585
    %v5650 = vpack.c.b16 %v5618, %v5602
    %v5651 = vpack.c.b16 %v5619, %v5603
    %v5652 = vpack.c.b16 %v5620, %v5604
    %v5653 = vpack.c.b16 %v5621, %v5605
    %v5654 = vpack.c.b16 %v5622, %v5606
    %v5655 = vpack.c.b16 %v5623, %v5607
    %v5656 = vpack.c.b16 %v5624, %v5608
    %v5657 = vpack.c.b16 %v5625, %v5609
    %v5658 = vpack.c.b16 %v5626, %v5610
    %v5659 = vpack.c.b16 %v5627, %v5611
    %v5660 = vpack.c.b16 %v5628, %v5612
    %v5661 = vpack.c.b16 %v5629, %v5613
    %v5662 = vpack.c.b16 %v5630, %v5614
    %v5663 = vpack.c.b16 %v5631, %v5615
    %v5664 = vpack.c.b16 %v5632, %v5616
    %v5665 = vpack.c.b16 %v5633, %v5617
    %v5699 = vsel %vm134, %v5503, 0
    %5701 = vmatpush.bf16.msra.mxu0 0
    %5702 = vmatpush.bf16.msra.mxu0 0
    %5703 = vmatpush.bf16.msra.mxu0 0
    %5704 = vmatpush.bf16.msra.mxu0 0
    %5705 = vmatpush.bf16.msra.mxu0 0
    %5706 = vmatpush.bf16.msra.mxu0 0
    %5707 = vmatpush.bf16.msra.mxu0 %v5650
    %5708 = vmatpush.bf16.msra.mxu0 %v5634
    %5709 = vmatmul.bf16.gmra.mxu0 %v5699
    %v5710 = vpop.f32.mrf.mxu0
    %v5711 = vadd.f32 %v5506, %v5710
    %v5712 = vpop.f32.mrf.mxu0
    %5713 = vdwg.mxu0
    %5714 = vmatpush.bf16.msra.mxu0 0
    %5715 = vmatpush.bf16.msra.mxu0 0
    %5716 = vmatpush.bf16.msra.mxu0 0
    %5717 = vmatpush.bf16.msra.mxu0 0
    %5718 = vmatpush.bf16.msra.mxu0 0
    %5719 = vmatpush.bf16.msra.mxu0 0
    %5720 = vmatpush.bf16.msra.mxu0 %v5651
    %5721 = vmatpush.bf16.msra.mxu0 %v5635
    %5722 = vmatmul.bf16.gmra.mxu0 %v5699
    %v5723 = vpop.f32.mrf.mxu0
    %v5724 = vadd.f32 %v5507, %v5723
    %v5725 = vpop.f32.mrf.mxu0
    %5726 = vdwg.mxu0
    %5727 = vmatpush.bf16.msra.mxu0 0
    %5728 = vmatpush.bf16.msra.mxu0 0
    %5729 = vmatpush.bf16.msra.mxu0 0
    %5730 = vmatpush.bf16.msra.mxu0 0
    %5731 = vmatpush.bf16.msra.mxu0 0
    %5732 = vmatpush.bf16.msra.mxu0 0
    %5733 = vmatpush.bf16.msra.mxu0 %v5652
    %5734 = vmatpush.bf16.msra.mxu0 %v5636
    %5735 = vmatmul.bf16.gmra.mxu0 %v5699
    %v5736 = vpop.f32.mrf.mxu0
    %v5737 = vadd.f32 %v5508, %v5736
    %v5738 = vpop.f32.mrf.mxu0
    %5739 = vdwg.mxu0
    %5740 = vmatpush.bf16.msra.mxu0 0
    %5741 = vmatpush.bf16.msra.mxu0 0
    %5742 = vmatpush.bf16.msra.mxu0 0
    %5743 = vmatpush.bf16.msra.mxu0 0
    %5744 = vmatpush.bf16.msra.mxu0 0
    %5745 = vmatpush.bf16.msra.mxu0 0
    %5746 = vmatpush.bf16.msra.mxu0 %v5653
    %5747 = vmatpush.bf16.msra.mxu0 %v5637
    %5748 = vmatmul.bf16.gmra.mxu0 %v5699
    %v5749 = vpop.f32.mrf.mxu0
    %v5750 = vadd.f32 %v5509, %v5749
    %v5751 = vpop.f32.mrf.mxu0
    %5752 = vdwg.mxu0
    %5753 = vmatpush.bf16.msra.mxu0 0
    %5754 = vmatpush.bf16.msra.mxu0 0
    %5755 = vmatpush.bf16.msra.mxu0 0
    %5756 = vmatpush.bf16.msra.mxu0 0
    %5757 = vmatpush.bf16.msra.mxu0 0
    %5758 = vmatpush.bf16.msra.mxu0 0
    %5759 = vmatpush.bf16.msra.mxu0 %v5654
    %5760 = vmatpush.bf16.msra.mxu0 %v5638
    %5761 = vmatmul.bf16.gmra.mxu0 %v5699
    %v5762 = vpop.f32.mrf.mxu0
    %v5763 = vadd.f32 %v5510, %v5762
    %v5764 = vpop.f32.mrf.mxu0
    %5765 = vdwg.mxu0
    %5766 = vmatpush.bf16.msra.mxu0 0
    %5767 = vmatpush.bf16.msra.mxu0 0
    %5768 = vmatpush.bf16.msra.mxu0 0
    %5769 = vmatpush.bf16.msra.mxu0 0
    %5770 = vmatpush.bf16.msra.mxu0 0
    %5771 = vmatpush.bf16.msra.mxu0 0
    %5772 = vmatpush.bf16.msra.mxu0 %v5655
    %5773 = vmatpush.bf16.msra.mxu0 %v5639
    %5774 = vmatmul.bf16.gmra.mxu0 %v5699
    %v5775 = vpop.f32.mrf.mxu0
    %v5776 = vadd.f32 %v5511, %v5775
    %v5777 = vpop.f32.mrf.mxu0
    %5778 = vdwg.mxu0
    %5779 = vmatpush.bf16.msra.mxu0 0
    %5780 = vmatpush.bf16.msra.mxu0 0
    %5781 = vmatpush.bf16.msra.mxu0 0
    %5782 = vmatpush.bf16.msra.mxu0 0
    %5783 = vmatpush.bf16.msra.mxu0 0
    %5784 = vmatpush.bf16.msra.mxu0 0
    %5785 = vmatpush.bf16.msra.mxu0 %v5656
    %5786 = vmatpush.bf16.msra.mxu0 %v5640
    %5787 = vmatmul.bf16.gmra.mxu0 %v5699
    %v5788 = vpop.f32.mrf.mxu0
    %v5789 = vadd.f32 %v5512, %v5788
    %v5790 = vpop.f32.mrf.mxu0
    %5791 = vdwg.mxu0
    %5792 = vmatpush.bf16.msra.mxu0 0
    %5793 = vmatpush.bf16.msra.mxu0 0
    %5794 = vmatpush.bf16.msra.mxu0 0
    %5795 = vmatpush.bf16.msra.mxu0 0
    %5796 = vmatpush.bf16.msra.mxu0 0
    %5797 = vmatpush.bf16.msra.mxu0 0
    %5798 = vmatpush.bf16.msra.mxu0 %v5657
    %5799 = vmatpush.bf16.msra.mxu0 %v5641
    %5800 = vmatmul.bf16.gmra.mxu0 %v5699
    %v5801 = vpop.f32.mrf.mxu0
    %v5802 = vadd.f32 %v5513, %v5801
    %v5803 = vpop.f32.mrf.mxu0
    %5804 = vdwg.mxu0
    %5805 = vmatpush.bf16.msra.mxu0 0
    %5806 = vmatpush.bf16.msra.mxu0 0
    %5807 = vmatpush.bf16.msra.mxu0 0
    %5808 = vmatpush.bf16.msra.mxu0 0
    %5809 = vmatpush.bf16.msra.mxu0 0
    %5810 = vmatpush.bf16.msra.mxu0 0
    %5811 = vmatpush.bf16.msra.mxu0 %v5658
    %5812 = vmatpush.bf16.msra.mxu0 %v5642
    %5813 = vmatmul.bf16.gmra.mxu0 %v5699
    %v5814 = vpop.f32.mrf.mxu0
    %v5815 = vadd.f32 %v5514, %v5814
    %v5816 = vpop.f32.mrf.mxu0
    %5817 = vdwg.mxu0
    %5818 = vmatpush.bf16.msra.mxu0 0
    %5819 = vmatpush.bf16.msra.mxu0 0
    %5820 = vmatpush.bf16.msra.mxu0 0
    %5821 = vmatpush.bf16.msra.mxu0 0
    %5822 = vmatpush.bf16.msra.mxu0 0
    %5823 = vmatpush.bf16.msra.mxu0 0
    %5824 = vmatpush.bf16.msra.mxu0 %v5659
    %5825 = vmatpush.bf16.msra.mxu0 %v5643
    %5826 = vmatmul.bf16.gmra.mxu0 %v5699
    %v5827 = vpop.f32.mrf.mxu0
    %v5828 = vadd.f32 %v5515, %v5827
    %v5829 = vpop.f32.mrf.mxu0
    %5830 = vdwg.mxu0
    %5831 = vmatpush.bf16.msra.mxu0 0
    %5832 = vmatpush.bf16.msra.mxu0 0
    %5833 = vmatpush.bf16.msra.mxu0 0
    %5834 = vmatpush.bf16.msra.mxu0 0
    %5835 = vmatpush.bf16.msra.mxu0 0
    %5836 = vmatpush.bf16.msra.mxu0 0
    %5837 = vmatpush.bf16.msra.mxu0 %v5660
    %5838 = vmatpush.bf16.msra.mxu0 %v5644
    %5839 = vmatmul.bf16.gmra.mxu0 %v5699
    %v5840 = vpop.f32.mrf.mxu0
    %v5841 = vadd.f32 %v5516, %v5840
    %v5842 = vpop.f32.mrf.mxu0
    %5843 = vdwg.mxu0
    %5844 = vmatpush.bf16.msra.mxu0 0
    %5845 = vmatpush.bf16.msra.mxu0 0
    %5846 = vmatpush.bf16.msra.mxu0 0
    %5847 = vmatpush.bf16.msra.mxu0 0
    %5848 = vmatpush.bf16.msra.mxu0 0
    %5849 = vmatpush.bf16.msra.mxu0 0
    %5850 = vmatpush.bf16.msra.mxu0 %v5661
    %5851 = vmatpush.bf16.msra.mxu0 %v5645
    %5852 = vmatmul.bf16.gmra.mxu0 %v5699
    %v5853 = vpop.f32.mrf.mxu0
    %v5854 = vadd.f32 %v5517, %v5853
    %v5855 = vpop.f32.mrf.mxu0
    %5856 = vdwg.mxu0
    %5857 = vmatpush.bf16.msra.mxu0 0
    %5858 = vmatpush.bf16.msra.mxu0 0
    %5859 = vmatpush.bf16.msra.mxu0 0
    %5860 = vmatpush.bf16.msra.mxu0 0
    %5861 = vmatpush.bf16.msra.mxu0 0
    %5862 = vmatpush.bf16.msra.mxu0 0
    %5863 = vmatpush.bf16.msra.mxu0 %v5662
    %5864 = vmatpush.bf16.msra.mxu0 %v5646
    %5865 = vmatmul.bf16.gmra.mxu0 %v5699
    %v5866 = vpop.f32.mrf.mxu0
    %v5867 = vadd.f32 %v5518, %v5866
    %v5868 = vpop.f32.mrf.mxu0
    %5869 = vdwg.mxu0
    %5870 = vmatpush.bf16.msra.mxu0 0
    %5871 = vmatpush.bf16.msra.mxu0 0
    %5872 = vmatpush.bf16.msra.mxu0 0
    %5873 = vmatpush.bf16.msra.mxu0 0
    %5874 = vmatpush.bf16.msra.mxu0 0
    %5875 = vmatpush.bf16.msra.mxu0 0
    %5876 = vmatpush.bf16.msra.mxu0 %v5663
    %5877 = vmatpush.bf16.msra.mxu0 %v5647
    %5878 = vmatmul.bf16.gmra.mxu0 %v5699
    %v5879 = vpop.f32.mrf.mxu0
    %v5880 = vadd.f32 %v5519, %v5879
    %v5881 = vpop.f32.mrf.mxu0
    %5882 = vdwg.mxu0
    %5883 = vmatpush.bf16.msra.mxu0 0
    %5884 = vmatpush.bf16.msra.mxu0 0
    %5885 = vmatpush.bf16.msra.mxu0 0
    %5886 = vmatpush.bf16.msra.mxu0 0
    %5887 = vmatpush.bf16.msra.mxu0 0
    %5888 = vmatpush.bf16.msra.mxu0 0
    %5889 = vmatpush.bf16.msra.mxu0 %v5664
    %5890 = vmatpush.bf16.msra.mxu0 %v5648
    %5891 = vmatmul.bf16.gmra.mxu0 %v5699
    %v5892 = vpop.f32.mrf.mxu0
    %v5893 = vadd.f32 %v5520, %v5892
    %v5894 = vpop.f32.mrf.mxu0
    %5895 = vdwg.mxu0
    %5896 = vmatpush.bf16.msra.mxu0 0
    %5897 = vmatpush.bf16.msra.mxu0 0
    %5898 = vmatpush.bf16.msra.mxu0 0
    %5899 = vmatpush.bf16.msra.mxu0 0
    %5900 = vmatpush.bf16.msra.mxu0 0
    %5901 = vmatpush.bf16.msra.mxu0 0
    %5902 = vmatpush.bf16.msra.mxu0 %v5665
    %5903 = vmatpush.bf16.msra.mxu0 %v5649
    %5904 = vmatmul.bf16.gmra.mxu0 %v5699
    %v5905 = vpop.f32.mrf.mxu0
    %v5906 = vadd.f32 %v5521, %v5905
    %v5907 = vpop.f32.mrf.mxu0
    %5908 = vdwg.mxu0
    %v5909 = vmax.f32 %v5711, 0.0
    %v5910 = vmax.f32 %v5724, 0.0
    %v5911 = vmax.f32 %v5737, 0.0
    %v5912 = vmax.f32 %v5750, 0.0
    %v5913 = vmax.f32 %v5763, 0.0
    %v5914 = vmax.f32 %v5776, 0.0
    %v5915 = vmax.f32 %v5789, 0.0
    %v5916 = vmax.f32 %v5802, 0.0
    %v5917 = vmax.f32 %v5815, 0.0
    %v5918 = vmax.f32 %v5828, 0.0
    %v5919 = vmax.f32 %v5841, 0.0
    %v5920 = vmax.f32 %v5854, 0.0
    %v5921 = vmax.f32 %v5867, 0.0
    %v5922 = vmax.f32 %v5880, 0.0
    %v5923 = vmax.f32 %v5893, 0.0
    %v5924 = vmax.f32 %v5906, 0.0
    %v5925 = vpack.c.bf16 %v5909, %v5909
    %v5926 = vpack.c.bf16 %v5910, %v5910
    %v5927 = vpack.c.bf16 %v5911, %v5911
    %v5928 = vpack.c.bf16 %v5912, %v5912
    %v5929 = vpack.c.bf16 %v5913, %v5913
    %v5930 = vpack.c.bf16 %v5914, %v5914
    %v5931 = vpack.c.bf16 %v5915, %v5915
    %v5932 = vpack.c.bf16 %v5916, %v5916
    %v5933 = vpack.c.bf16 %v5917, %v5917
    %v5934 = vpack.c.bf16 %v5918, %v5918
    %v5935 = vpack.c.bf16 %v5919, %v5919
    %v5936 = vpack.c.bf16 %v5920, %v5920
    %v5937 = vpack.c.bf16 %v5921, %v5921
    %v5938 = vpack.c.bf16 %v5922, %v5922
    %v5939 = vpack.c.bf16 %v5923, %v5923
    %v5940 = vpack.c.bf16 %v5924, %v5924
    %v5941 = vperm.slane %v5502, 0
    %v5974 = vunpack.c.l.b16 %v5470
    %v5975 = vunpack.c.h.b16 %v5470
    %v5976 = vunpack.c.l.b16 %v5471
    %v5977 = vunpack.c.h.b16 %v5471
    %v5978 = vunpack.c.l.b16 %v5472
    %v5979 = vunpack.c.h.b16 %v5472
    %v5980 = vunpack.c.l.b16 %v5473
    %v5981 = vunpack.c.h.b16 %v5473
    %v5982 = vunpack.c.l.b16 %v5474
    %v5983 = vunpack.c.h.b16 %v5474
    %v5984 = vunpack.c.l.b16 %v5475
    %v5985 = vunpack.c.h.b16 %v5475
    %v5986 = vunpack.c.l.b16 %v5476
    %v5987 = vunpack.c.h.b16 %v5476
    %v5988 = vunpack.c.l.b16 %v5477
    %v5989 = vunpack.c.h.b16 %v5477
    %v5990 = vunpack.c.l.b16 %v5478
    %v5991 = vunpack.c.h.b16 %v5478
    %v5992 = vunpack.c.l.b16 %v5479
    %v5993 = vunpack.c.h.b16 %v5479
    %v5994 = vunpack.c.l.b16 %v5480
    %v5995 = vunpack.c.h.b16 %v5480
    %v5996 = vunpack.c.l.b16 %v5481
    %v5997 = vunpack.c.h.b16 %v5481
    %v5998 = vunpack.c.l.b16 %v5482
    %v5999 = vunpack.c.h.b16 %v5482
    %v6000 = vunpack.c.l.b16 %v5483
    %v6001 = vunpack.c.h.b16 %v5483
    %v6002 = vunpack.c.l.b16 %v5484
    %v6003 = vunpack.c.h.b16 %v5484
    %v6004 = vunpack.c.l.b16 %v5485
    %v6005 = vunpack.c.h.b16 %v5485
    %v6006 = vunpack.c.l.b16 %v5486
    %v6007 = vunpack.c.h.b16 %v5486
    %v6008 = vunpack.c.l.b16 %v5487
    %v6009 = vunpack.c.h.b16 %v5487
    %v6010 = vunpack.c.l.b16 %v5488
    %v6011 = vunpack.c.h.b16 %v5488
    %v6012 = vunpack.c.l.b16 %v5489
    %v6013 = vunpack.c.h.b16 %v5489
    %v6014 = vunpack.c.l.b16 %v5490
    %v6015 = vunpack.c.h.b16 %v5490
    %v6016 = vunpack.c.l.b16 %v5491
    %v6017 = vunpack.c.h.b16 %v5491
    %v6018 = vunpack.c.l.b16 %v5492
    %v6019 = vunpack.c.h.b16 %v5492
    %v6020 = vunpack.c.l.b16 %v5493
    %v6021 = vunpack.c.h.b16 %v5493
    %v6022 = vunpack.c.l.b16 %v5494
    %v6023 = vunpack.c.h.b16 %v5494
    %v6024 = vunpack.c.l.b16 %v5495
    %v6025 = vunpack.c.h.b16 %v5495
    %v6026 = vunpack.c.l.b16 %v5496
    %v6027 = vunpack.c.h.b16 %v5496
    %v6028 = vunpack.c.l.b16 %v5497
    %v6029 = vunpack.c.h.b16 %v5497
    %v6030 = vunpack.c.l.b16 %v5498
    %v6031 = vunpack.c.h.b16 %v5498
    %v6032 = vunpack.c.l.b16 %v5499
    %v6033 = vunpack.c.h.b16 %v5499
    %v6034 = vunpack.c.l.b16 %v5500
    %v6035 = vunpack.c.h.b16 %v5500
    %v6036 = vunpack.c.l.b16 %v5501
    %v6037 = vunpack.c.h.b16 %v5501
    %v6038 = vpack.c.b16 %v5990, %v5974
    %v6039 = vpack.c.b16 %v5991, %v5975
    %v6040 = vpack.c.b16 %v5992, %v5976
    %v6041 = vpack.c.b16 %v5993, %v5977
    %v6042 = vpack.c.b16 %v5994, %v5978
    %v6043 = vpack.c.b16 %v5995, %v5979
    %v6044 = vpack.c.b16 %v5996, %v5980
    %v6045 = vpack.c.b16 %v5997, %v5981
    %v6046 = vpack.c.b16 %v5998, %v5982
    %v6047 = vpack.c.b16 %v5999, %v5983
    %v6048 = vpack.c.b16 %v6000, %v5984
    %v6049 = vpack.c.b16 %v6001, %v5985
    %v6050 = vpack.c.b16 %v6002, %v5986
    %v6051 = vpack.c.b16 %v6003, %v5987
    %v6052 = vpack.c.b16 %v6004, %v5988
    %v6053 = vpack.c.b16 %v6005, %v5989
    %v6054 = vpack.c.b16 %v6022, %v6006
    %v6055 = vpack.c.b16 %v6023, %v6007
    %v6056 = vpack.c.b16 %v6024, %v6008
    %v6057 = vpack.c.b16 %v6025, %v6009
    %v6058 = vpack.c.b16 %v6026, %v6010
    %v6059 = vpack.c.b16 %v6027, %v6011
    %v6060 = vpack.c.b16 %v6028, %v6012
    %v6061 = vpack.c.b16 %v6029, %v6013
    %v6062 = vpack.c.b16 %v6030, %v6014
    %v6063 = vpack.c.b16 %v6031, %v6015
    %v6064 = vpack.c.b16 %v6032, %v6016
    %v6065 = vpack.c.b16 %v6033, %v6017
    %v6066 = vpack.c.b16 %v6034, %v6018
    %v6067 = vpack.c.b16 %v6035, %v6019
    %v6068 = vpack.c.b16 %v6036, %v6020
    %v6069 = vpack.c.b16 %v6037, %v6021
    %6102 = vmatpush.bf16.xpose.msra.mxu0 0
    %6103 = vmatpush.bf16.xpose.msra.mxu0 0
    %6104 = vmatpush.bf16.xpose.msra.mxu0 0
    %6105 = vmatpush.bf16.xpose.msra.mxu0 0
    %6106 = vmatpush.bf16.xpose.msra.mxu0 0
    %6107 = vmatpush.bf16.xpose.msra.mxu0 0
    %6108 = vmatpush.bf16.xpose.msra.mxu0 %v6054
    %6109 = vmatpush.bf16.xpose.msra.mxu0 %v6038
    %6110 = vmatmul.bf16.gmra.mxu0 %v5925
    %v6111 = vpop.f32.mrf.mxu0
    %v6112 = vadd.f32 %v5941, %v6111
    %v6113 = vpop.f32.mrf.mxu0
    %6114 = vdwg.mxu0
    %6115 = vmatpush.bf16.xpose.msra.mxu0 0
    %6116 = vmatpush.bf16.xpose.msra.mxu0 0
    %6117 = vmatpush.bf16.xpose.msra.mxu0 0
    %6118 = vmatpush.bf16.xpose.msra.mxu0 0
    %6119 = vmatpush.bf16.xpose.msra.mxu0 0
    %6120 = vmatpush.bf16.xpose.msra.mxu0 0
    %6121 = vmatpush.bf16.xpose.msra.mxu0 %v6055
    %6122 = vmatpush.bf16.xpose.msra.mxu0 %v6039
    %6123 = vmatmul.bf16.gmra.mxu0 %v5926
    %v6124 = vpop.f32.mrf.mxu0
    %v6125 = vadd.f32 %v6112, %v6124
    %v6126 = vpop.f32.mrf.mxu0
    %6127 = vdwg.mxu0
    %6128 = vmatpush.bf16.xpose.msra.mxu0 0
    %6129 = vmatpush.bf16.xpose.msra.mxu0 0
    %6130 = vmatpush.bf16.xpose.msra.mxu0 0
    %6131 = vmatpush.bf16.xpose.msra.mxu0 0
    %6132 = vmatpush.bf16.xpose.msra.mxu0 0
    %6133 = vmatpush.bf16.xpose.msra.mxu0 0
    %6134 = vmatpush.bf16.xpose.msra.mxu0 %v6056
    %6135 = vmatpush.bf16.xpose.msra.mxu0 %v6040
    %6136 = vmatmul.bf16.gmra.mxu0 %v5927
    %v6137 = vpop.f32.mrf.mxu0
    %v6138 = vadd.f32 %v6125, %v6137
    %v6139 = vpop.f32.mrf.mxu0
    %6140 = vdwg.mxu0
    %6141 = vmatpush.bf16.xpose.msra.mxu0 0
    %6142 = vmatpush.bf16.xpose.msra.mxu0 0
    %6143 = vmatpush.bf16.xpose.msra.mxu0 0
    %6144 = vmatpush.bf16.xpose.msra.mxu0 0
    %6145 = vmatpush.bf16.xpose.msra.mxu0 0
    %6146 = vmatpush.bf16.xpose.msra.mxu0 0
    %6147 = vmatpush.bf16.xpose.msra.mxu0 %v6057
    %6148 = vmatpush.bf16.xpose.msra.mxu0 %v6041
    %6149 = vmatmul.bf16.gmra.mxu0 %v5928
    %v6150 = vpop.f32.mrf.mxu0
    %v6151 = vadd.f32 %v6138, %v6150
    %v6152 = vpop.f32.mrf.mxu0
    %6153 = vdwg.mxu0
    %6154 = vmatpush.bf16.xpose.msra.mxu0 0
    %6155 = vmatpush.bf16.xpose.msra.mxu0 0
    %6156 = vmatpush.bf16.xpose.msra.mxu0 0
    %6157 = vmatpush.bf16.xpose.msra.mxu0 0
    %6158 = vmatpush.bf16.xpose.msra.mxu0 0
    %6159 = vmatpush.bf16.xpose.msra.mxu0 0
    %6160 = vmatpush.bf16.xpose.msra.mxu0 %v6058
    %6161 = vmatpush.bf16.xpose.msra.mxu0 %v6042
    %6162 = vmatmul.bf16.gmra.mxu0 %v5929
    %v6163 = vpop.f32.mrf.mxu0
    %v6164 = vadd.f32 %v6151, %v6163
    %v6165 = vpop.f32.mrf.mxu0
    %6166 = vdwg.mxu0
    %6167 = vmatpush.bf16.xpose.msra.mxu0 0
    %6168 = vmatpush.bf16.xpose.msra.mxu0 0
    %6169 = vmatpush.bf16.xpose.msra.mxu0 0
    %6170 = vmatpush.bf16.xpose.msra.mxu0 0
    %6171 = vmatpush.bf16.xpose.msra.mxu0 0
    %6172 = vmatpush.bf16.xpose.msra.mxu0 0
    %6173 = vmatpush.bf16.xpose.msra.mxu0 %v6059
    %6174 = vmatpush.bf16.xpose.msra.mxu0 %v6043
    %6175 = vmatmul.bf16.gmra.mxu0 %v5930
    %v6176 = vpop.f32.mrf.mxu0
    %v6177 = vadd.f32 %v6164, %v6176
    %v6178 = vpop.f32.mrf.mxu0
    %6179 = vdwg.mxu0
    %6180 = vmatpush.bf16.xpose.msra.mxu0 0
    %6181 = vmatpush.bf16.xpose.msra.mxu0 0
    %6182 = vmatpush.bf16.xpose.msra.mxu0 0
    %6183 = vmatpush.bf16.xpose.msra.mxu0 0
    %6184 = vmatpush.bf16.xpose.msra.mxu0 0
    %6185 = vmatpush.bf16.xpose.msra.mxu0 0
    %6186 = vmatpush.bf16.xpose.msra.mxu0 %v6060
    %6187 = vmatpush.bf16.xpose.msra.mxu0 %v6044
    %6188 = vmatmul.bf16.gmra.mxu0 %v5931
    %v6189 = vpop.f32.mrf.mxu0
    %v6190 = vadd.f32 %v6177, %v6189
    %v6191 = vpop.f32.mrf.mxu0
    %6192 = vdwg.mxu0
    %6193 = vmatpush.bf16.xpose.msra.mxu0 0
    %6194 = vmatpush.bf16.xpose.msra.mxu0 0
    %6195 = vmatpush.bf16.xpose.msra.mxu0 0
    %6196 = vmatpush.bf16.xpose.msra.mxu0 0
    %6197 = vmatpush.bf16.xpose.msra.mxu0 0
    %6198 = vmatpush.bf16.xpose.msra.mxu0 0
    %6199 = vmatpush.bf16.xpose.msra.mxu0 %v6061
    %6200 = vmatpush.bf16.xpose.msra.mxu0 %v6045
    %6201 = vmatmul.bf16.gmra.mxu0 %v5932
    %v6202 = vpop.f32.mrf.mxu0
    %v6203 = vadd.f32 %v6190, %v6202
    %v6204 = vpop.f32.mrf.mxu0
    %6205 = vdwg.mxu0
    %6206 = vmatpush.bf16.xpose.msra.mxu0 0
    %6207 = vmatpush.bf16.xpose.msra.mxu0 0
    %6208 = vmatpush.bf16.xpose.msra.mxu0 0
    %6209 = vmatpush.bf16.xpose.msra.mxu0 0
    %6210 = vmatpush.bf16.xpose.msra.mxu0 0
    %6211 = vmatpush.bf16.xpose.msra.mxu0 0
    %6212 = vmatpush.bf16.xpose.msra.mxu0 %v6062
    %6213 = vmatpush.bf16.xpose.msra.mxu0 %v6046
    %6214 = vmatmul.bf16.gmra.mxu0 %v5933
    %v6215 = vpop.f32.mrf.mxu0
    %v6216 = vadd.f32 %v6203, %v6215
    %v6217 = vpop.f32.mrf.mxu0
    %6218 = vdwg.mxu0
    %6219 = vmatpush.bf16.xpose.msra.mxu0 0
    %6220 = vmatpush.bf16.xpose.msra.mxu0 0
    %6221 = vmatpush.bf16.xpose.msra.mxu0 0
    %6222 = vmatpush.bf16.xpose.msra.mxu0 0
    %6223 = vmatpush.bf16.xpose.msra.mxu0 0
    %6224 = vmatpush.bf16.xpose.msra.mxu0 0
    %6225 = vmatpush.bf16.xpose.msra.mxu0 %v6063
    %6226 = vmatpush.bf16.xpose.msra.mxu0 %v6047
    %6227 = vmatmul.bf16.gmra.mxu0 %v5934
    %v6228 = vpop.f32.mrf.mxu0
    %v6229 = vadd.f32 %v6216, %v6228
    %v6230 = vpop.f32.mrf.mxu0
    %6231 = vdwg.mxu0
    %6232 = vmatpush.bf16.xpose.msra.mxu0 0
    %6233 = vmatpush.bf16.xpose.msra.mxu0 0
    %6234 = vmatpush.bf16.xpose.msra.mxu0 0
    %6235 = vmatpush.bf16.xpose.msra.mxu0 0
    %6236 = vmatpush.bf16.xpose.msra.mxu0 0
    %6237 = vmatpush.bf16.xpose.msra.mxu0 0
    %6238 = vmatpush.bf16.xpose.msra.mxu0 %v6064
    %6239 = vmatpush.bf16.xpose.msra.mxu0 %v6048
    %6240 = vmatmul.bf16.gmra.mxu0 %v5935
    %v6241 = vpop.f32.mrf.mxu0
    %v6242 = vadd.f32 %v6229, %v6241
    %v6243 = vpop.f32.mrf.mxu0
    %6244 = vdwg.mxu0
    %6245 = vmatpush.bf16.xpose.msra.mxu0 0
    %6246 = vmatpush.bf16.xpose.msra.mxu0 0
    %6247 = vmatpush.bf16.xpose.msra.mxu0 0
    %6248 = vmatpush.bf16.xpose.msra.mxu0 0
    %6249 = vmatpush.bf16.xpose.msra.mxu0 0
    %6250 = vmatpush.bf16.xpose.msra.mxu0 0
    %6251 = vmatpush.bf16.xpose.msra.mxu0 %v6065
    %6252 = vmatpush.bf16.xpose.msra.mxu0 %v6049
    %6253 = vmatmul.bf16.gmra.mxu0 %v5936
    %v6254 = vpop.f32.mrf.mxu0
    %v6255 = vadd.f32 %v6242, %v6254
    %v6256 = vpop.f32.mrf.mxu0
    %6257 = vdwg.mxu0
    %6258 = vmatpush.bf16.xpose.msra.mxu0 0
    %6259 = vmatpush.bf16.xpose.msra.mxu0 0
    %6260 = vmatpush.bf16.xpose.msra.mxu0 0
    %6261 = vmatpush.bf16.xpose.msra.mxu0 0
    %6262 = vmatpush.bf16.xpose.msra.mxu0 0
    %6263 = vmatpush.bf16.xpose.msra.mxu0 0
    %6264 = vmatpush.bf16.xpose.msra.mxu0 %v6066
    %6265 = vmatpush.bf16.xpose.msra.mxu0 %v6050
    %6266 = vmatmul.bf16.gmra.mxu0 %v5937
    %v6267 = vpop.f32.mrf.mxu0
    %v6268 = vadd.f32 %v6255, %v6267
    %v6269 = vpop.f32.mrf.mxu0
    %6270 = vdwg.mxu0
    %6271 = vmatpush.bf16.xpose.msra.mxu0 0
    %6272 = vmatpush.bf16.xpose.msra.mxu0 0
    %6273 = vmatpush.bf16.xpose.msra.mxu0 0
    %6274 = vmatpush.bf16.xpose.msra.mxu0 0
    %6275 = vmatpush.bf16.xpose.msra.mxu0 0
    %6276 = vmatpush.bf16.xpose.msra.mxu0 0
    %6277 = vmatpush.bf16.xpose.msra.mxu0 %v6067
    %6278 = vmatpush.bf16.xpose.msra.mxu0 %v6051
    %6279 = vmatmul.bf16.gmra.mxu0 %v5938
    %v6280 = vpop.f32.mrf.mxu0
    %v6281 = vadd.f32 %v6268, %v6280
    %v6282 = vpop.f32.mrf.mxu0
    %6283 = vdwg.mxu0
    %6284 = vmatpush.bf16.xpose.msra.mxu0 0
    %6285 = vmatpush.bf16.xpose.msra.mxu0 0
    %6286 = vmatpush.bf16.xpose.msra.mxu0 0
    %6287 = vmatpush.bf16.xpose.msra.mxu0 0
    %6288 = vmatpush.bf16.xpose.msra.mxu0 0
    %6289 = vmatpush.bf16.xpose.msra.mxu0 0
    %6290 = vmatpush.bf16.xpose.msra.mxu0 %v6068
    %6291 = vmatpush.bf16.xpose.msra.mxu0 %v6052
    %6292 = vmatmul.bf16.gmra.mxu0 %v5939
    %v6293 = vpop.f32.mrf.mxu0
    %v6294 = vadd.f32 %v6281, %v6293
    %v6295 = vpop.f32.mrf.mxu0
    %6296 = vdwg.mxu0
    %6297 = vmatpush.bf16.xpose.msra.mxu0 0
    %6298 = vmatpush.bf16.xpose.msra.mxu0 0
    %6299 = vmatpush.bf16.xpose.msra.mxu0 0
    %6300 = vmatpush.bf16.xpose.msra.mxu0 0
    %6301 = vmatpush.bf16.xpose.msra.mxu0 0
    %6302 = vmatpush.bf16.xpose.msra.mxu0 0
    %6303 = vmatpush.bf16.xpose.msra.mxu0 %v6069
    %6304 = vmatpush.bf16.xpose.msra.mxu0 %v6053
    %6305 = vmatmul.bf16.gmra.mxu0 %v5940
    %v6306 = vpop.f32.mrf.mxu0
    %v6307 = vadd.f32 %v6294, %v6306
    %v6308 = vpop.f32.mrf.mxu0
    %6309 = vdwg.mxu0
    %v6310 = vadd.f32 %v5429, %v6307
    %v6311 = vld [vmem:[#allocation7 + $0x38] sm:$0x1]
    %v6312 = vld [vmem:[#allocation7 + $0x39] sm:$0x1]
    %v6313 = vsel %vm134, %v6310, 0.0
    %6314 = vadd.xlane.f32.xlu0 %v6313
    %v6315 = vpop.xlane.xlu0 %6314
    %v6316 = vmul.f32 %v6315, %v512
    %v6317 = vsub.f32 %v6310, %v6316
    %v6318 = vmul.f32 %v6317, %v6317
    %v6319 = vsel %vm134, %v6318, 0.0
    %6320 = vadd.xlane.f32.xlu0 %v6319
    %v6321 = vpop.xlane.xlu0 %6320
    %v6322 = vmul.f32 %v6321, %v512
    %v6323 = vadd.f32 %v6322, 1e-05
    %v6324 = vrsqrt.pop %v6323
    %v6325 = vmul.f32 %v6324, %v6323
    %v6326 = vmul.f32 %v6325, %v6324
    %v6327 = vmul.f32 0.5, %v6326
    %v6328 = vsub.f32 1.5, %v6327
    %v6329 = vmul.f32 %v6324, %v6328
    %vm6330 = vweird.f32 %v6323
    %vm6331 = vweird.f32 %v6324
    %vm6332 = vmor %vm6330, %vm6331
    %v6333 = vsel %vm6332, %v6324, %v6329
    %v6334 = vmul.f32 %v6317, %v6333
    %v6335 = vperm.slane %v6311, 0
    %v6336 = vmul.f32 %v6334, %v6335
    %v6337 = vperm.slane %v6312, 0
    %v6338 = vadd.f32 %v6336, %v6337
    %v6339 = vld [vmem:[#allocation7 + $0x3a] sm:$0x1]
    %v6340 = vld [vmem:[#allocation7 + $0x3b] sm:$0x1]
    %v6341 = vsel %vm134, %v6338, 0.0
    %6342 = vadd.xlane.f32.xlu0 %v6341
    %v6343 = vpop.xlane.xlu0 %6342
    %v6344 = vmul.f32 %v6343, %v512
    %v6345 = vsub.f32 %v6338, %v6344
    %v6346 = vmul.f32 %v6345, %v6345
    %v6347 = vsel %vm134, %v6346, 0.0
    %6348 = vadd.xlane.f32.xlu0 %v6347
    %v6349 = vpop.xlane.xlu0 %6348
    %v6350 = vmul.f32 %v6349, %v512
    %v6351 = vadd.f32 %v6350, 1e-05
    %v6352 = vrsqrt.pop %v6351
    %v6353 = vmul.f32 %v6352, %v6351
    %v6354 = vmul.f32 %v6353, %v6352
    %v6355 = vmul.f32 0.5, %v6354
    %v6356 = vsub.f32 1.5, %v6355
    %v6357 = vmul.f32 %v6352, %v6356
    %vm6358 = vweird.f32 %v6351
    %vm6359 = vweird.f32 %v6352
    %vm6360 = vmor %vm6358, %vm6359
    %v6361 = vsel %vm6360, %v6352, %v6357
    %v6362 = vmul.f32 %v6345, %v6361
    %v6363 = vperm.slane %v6339, 0
    %v6364 = vmul.f32 %v6362, %v6363
    %v6365 = vperm.slane %v6340, 0
    %v6366 = vadd.f32 %v6364, %v6365
    %v6367 = vld [vmem:[#allocation7 + $0x8] sm:$0x7f]
    %v6368 = vld [vmem:[#allocation7 + $0x11] sm:$0x1]
    %v6369 = vperm.slane %v6368, 0
    %v6371 = vsel %vm134, %v6366, 0
    %v6374 = vsel %vm134, %v6367, 0
    %6376 = vmatpush.xpose.msra.mxu0 0.0
    %6377 = vmatpush.xpose.msra.mxu0 0.0
    %6378 = vmatpush.xpose.msra.mxu0 0.0
    %6379 = vmatpush.xpose.msra.mxu0 0.0
    %6380 = vmatpush.xpose.msra.mxu0 0.0
    %6381 = vmatpush.xpose.msra.mxu0 0.0
    %6382 = vmatpush.xpose.msra.mxu0 0.0
    %6383 = vmatpush.xpose.msra.mxu0 0.0
    %6384 = vmatpush.xpose.msra.mxu0 0.0
    %6385 = vmatpush.xpose.msra.mxu0 0.0
    %6386 = vmatpush.xpose.msra.mxu0 0.0
    %6387 = vmatpush.xpose.msra.mxu0 0.0
    %6388 = vmatpush.xpose.msra.mxu0 0.0
    %6389 = vmatpush.xpose.msra.mxu0 0.0
    %6390 = vmatpush.xpose.msra.mxu0 0.0
    %6391 = vmatpush.xpose.msra.mxu0 %v6374
    %6392 = vmatmul.f32.gmra.mxu0 %v6371
    %v6393 = vpop.f32.mrf.mxu0
    %v6394 = vadd.f32 %v6369, %v6393
    %6395 = vdwg.mxu0
    %6396 = vst.msk [vmem:[#allocation10] sm:$0xff] %vm82, %v6394
    // Predicated region
    $region34: #{transformer_forward.1} parent=1 // pred_check
      _
    $region35: #{transformer_forward.1} parent=1 // pred_check_branch
      %6398 = sbr.rel (0) target = $region37
    $region36: #{transformer_forward.1} parent=1 // pred_region
      %6400 = vsyncadd [#allocation4], 0
      %s6402 = sshll.u32 [#allocation10], 4
      %s6403 = int_to_ptr.vmem [resolvable:$true] %s6402
      %s6404 = sshll.u32 %s4, 4
      %s6405 = int_to_ptr.hbm [resolvable:$true] %s6404
      %6407 = dma.vmem_to_hbm [thread:$0]  %s6403, 128, %s6405, [#allocation4]
    $region37: #{transformer_forward.1} parent=1 // pred_fallthru
      _
    // Predicated region
    $region38: #{transformer_forward.1} parent=1 // pred_check
      _
    $region39: #{transformer_forward.1} parent=1 // pred_check_branch
      %6409 = sbr.rel (0) target = $region41
    $region40: #{transformer_forward.1} parent=1 // pred_region
      %6411 = dma.done [#allocation4], 128
    $region41: #{transformer_forward.1} parent=1 // pred_fallthru
      _
    %6412 = vsyncpa [#allocation3], 1
    %6413 = vsyncpa [#allocation6], 1
    %6414 = vsyncpa [#allocation9], 1
    %6415 = vsyncpa [#allocation4], 1

</llo_original>
